<compile_context>
chip_gen: v5e
topology: v5e:2x2
jax: 0.10.0
libtpu: 0.0.40
codegen_flags: <defaults>
</compile_context>

<pallas_src>
import functools

import jax
import jax.numpy as jnp
from jax.experimental import pallas as pl
from jax.experimental.pallas import tpu as pltpu


_LANE = 128
_EPS = 1e-5
_ALPHA = 0.2
_TM_MAX = 512
_VMEM_LIMIT = 32 * 1024 * 1024


def _round_up(x, m):
    return ((x + m - 1) // m) * m


# ----------------------------------------------------------------------------
# Pallas kernels
# ----------------------------------------------------------------------------
def _mm_bias_act_kernel(p_ref, w_ref, b_ref, o_ref, *, use_lrelu):
    """Tiled matmul + bias (+ LeakyReLU).  No BatchNorm."""
    y = jnp.dot(p_ref[...], w_ref[...], preferred_element_type=jnp.float32)
    y = y + b_ref[...]
    if use_lrelu:
        y = jnp.where(y >= 0.0, y, _ALPHA * y)
    o_ref[...] = y


def _mm_bias_stats_kernel(p_ref, w_ref, b_ref, y_ref, s_ref, q_ref, *,
                          tm, m_valid):
    """Tiled matmul + bias; also accumulates per-channel sum / sum-of-squares
    (over valid rows only) into resident (1, C) accumulators."""
    i = pl.program_id(0)

    @pl.when(i == 0)
    def _():
        s_ref[...] = jnp.zeros_like(s_ref)
        q_ref[...] = jnp.zeros_like(q_ref)

    y = jnp.dot(p_ref[...], w_ref[...], preferred_element_type=jnp.float32)
    y = y + b_ref[...]
    y_ref[...] = y

    # Mask rows that are only M-padding so they do not pollute the statistics.
    row = jax.lax.broadcasted_iota(jnp.int32, y.shape, 0) + i * tm
    ym = jnp.where(row < m_valid, y, 0.0)
    s_ref[...] += jnp.sum(ym, axis=0, keepdims=True)
    q_ref[...] += jnp.sum(ym * ym, axis=0, keepdims=True)


def _bn_lrelu_kernel(y_ref, s_ref, q_ref, g_ref, be_ref, o_ref, *, m_valid):
    """Tiled BatchNorm (training-mode batch stats, biased var) + LeakyReLU."""
    inv_m = 1.0 / float(m_valid)
    mean = s_ref[...] * inv_m
    var = jnp.maximum(q_ref[...] * inv_m - mean * mean, 0.0)
    y = (y_ref[...] - mean) * jax.lax.rsqrt(var + _EPS) * g_ref[...] + be_ref[...]
    o_ref[...] = jnp.where(y >= 0.0, y, _ALPHA * y)


# ----------------------------------------------------------------------------
# pallas_call wrappers
# ----------------------------------------------------------------------------
def _run_mm_bias_act(patches, w2d, bias, use_lrelu, tm):
    mp, kp = patches.shape
    cp = w2d.shape[1]
    kern = functools.partial(_mm_bias_act_kernel, use_lrelu=use_lrelu)
    return pl.pallas_call(
        kern,
        out_shape=jax.ShapeDtypeStruct((mp, cp), jnp.float32),
        grid=(mp // tm,),
        in_specs=[
            pl.BlockSpec((tm, kp), lambda i: (i, 0)),
            pl.BlockSpec((kp, cp), lambda i: (0, 0)),
            pl.BlockSpec((1, cp), lambda i: (0, 0)),
        ],
        out_specs=pl.BlockSpec((tm, cp), lambda i: (i, 0)),
        compiler_params=pltpu.CompilerParams(
            dimension_semantics=("parallel",),
            vmem_limit_bytes=_VMEM_LIMIT),
    )(patches, w2d, bias)


def _run_mm_bias_stats(patches, w2d, bias, tm, m_valid):
    mp, kp = patches.shape
    cp = w2d.shape[1]
    kern = functools.partial(_mm_bias_stats_kernel, tm=tm, m_valid=m_valid)
    return pl.pallas_call(
        kern,
        out_shape=(
            jax.ShapeDtypeStruct((mp, cp), jnp.float32),   # y
            jax.ShapeDtypeStruct((1, cp), jnp.float32),    # sum
            jax.ShapeDtypeStruct((1, cp), jnp.float32),    # sum of squares
        ),
        grid=(mp // tm,),
        in_specs=[
            pl.BlockSpec((tm, kp), lambda i: (i, 0)),
            pl.BlockSpec((kp, cp), lambda i: (0, 0)),
            pl.BlockSpec((1, cp), lambda i: (0, 0)),
        ],
        out_specs=(
            pl.BlockSpec((tm, cp), lambda i: (i, 0)),
            pl.BlockSpec((1, cp), lambda i: (0, 0)),
            pl.BlockSpec((1, cp), lambda i: (0, 0)),
        ),
        compiler_params=pltpu.CompilerParams(
            dimension_semantics=("arbitrary",),   # stats accumulate across M
            vmem_limit_bytes=_VMEM_LIMIT),
    )(patches, w2d, bias)


def _run_bn_lrelu(y, s, q, gamma, beta, tm, m_valid):
    mp, cp = y.shape
    kern = functools.partial(_bn_lrelu_kernel, m_valid=m_valid)
    return pl.pallas_call(
        kern,
        out_shape=jax.ShapeDtypeStruct((mp, cp), jnp.float32),
        grid=(mp // tm,),
        in_specs=[
            pl.BlockSpec((tm, cp), lambda i: (i, 0)),
            pl.BlockSpec((1, cp), lambda i: (0, 0)),
            pl.BlockSpec((1, cp), lambda i: (0, 0)),
            pl.BlockSpec((1, cp), lambda i: (0, 0)),
            pl.BlockSpec((1, cp), lambda i: (0, 0)),
        ],
        out_specs=pl.BlockSpec((tm, cp), lambda i: (i, 0)),
        compiler_params=pltpu.CompilerParams(
            dimension_semantics=("parallel",),
            vmem_limit_bytes=_VMEM_LIMIT),
    )(y, s, q, gamma, beta)


# ----------------------------------------------------------------------------
# Plain-JAX glue: im2col (NHWC) and layer driver
# ----------------------------------------------------------------------------
def _im2col(x_nhwc, kh, kw, stride, pad):
    n, h, w, c = x_nhwc.shape
    xp = jnp.pad(x_nhwc, ((0, 0), (pad, pad), (pad, pad), (0, 0)))
    oh = (h + 2 * pad - kh) // stride + 1
    ow = (w + 2 * pad - kw) // stride + 1
    cols = []
    for i in range(kh):
        for j in range(kw):
            cols.append(xp[:, i:i + stride * oh:stride,
                           j:j + stride * ow:stride, :])
    patches = jnp.concatenate(cols, axis=-1)        # (N, OH, OW, kh*kw*C)
    return patches.reshape(n * oh * ow, kh * kw * c), oh, ow


def _conv_layer(x_nhwc, layer):
    n = x_nhwc.shape[0]
    kh = kw = 4
    patches, oh, ow = _im2col(x_nhwc, kh, kw, layer["stride"], 1)
    m, k = patches.shape
    kp, cp = layer["w2d"].shape

    # Tile over M: largest multiple of 8 up to 512; pad M so TM divides it.
    tm = min(_TM_MAX, _round_up(m, 8))
    mp = _round_up(m, tm)
    patches = jnp.pad(patches, ((0, mp - m), (0, kp - k))).astype(jnp.bfloat16)

    if layer["bn"]:
        y, s, q = _run_mm_bias_stats(patches, layer["w2d"], layer["b"], tm, m)
        out = _run_bn_lrelu(y, s, q, layer["gamma"], layer["beta"], tm, m)
    else:
        out = _run_mm_bias_act(patches, layer["w2d"], layer["b"],
                               layer["lrelu"], tm)

    out = out[:m, :layer["cout"]]
    return out.reshape(n, oh, ow, layer["cout"])


# ----------------------------------------------------------------------------
# Parameters
# ----------------------------------------------------------------------------
def _prepare_layer(w_oikk, b, gamma, beta, stride, bn, lrelu):
    """Precompute kernel-ready (padded, transposed, bf16) weights once."""
    cout, cin, kh, kw = w_oikk.shape
    k = kh * kw * cin
    kp = _round_up(k, _LANE)
    cp = _round_up(cout, _LANE)
    # Match im2col K-order (kh, kw, cin): (Cout,Cin,KH,KW) -> (KH,KW,Cin,Cout)
    w2d = jnp.transpose(w_oikk, (2, 3, 1, 0)).reshape(k, cout)
    w2d = jnp.pad(w2d, ((0, kp - k), (0, cp - cout))).astype(jnp.bfloat16)
    pad_c = ((0, 0), (0, cp - cout))
    return dict(
        w2d=w2d,
        b=jnp.pad(b.reshape(1, cout), pad_c).astype(jnp.float32),
        gamma=jnp.pad(gamma.reshape(1, cout), pad_c).astype(jnp.float32),
        beta=jnp.pad(beta.reshape(1, cout), pad_c).astype(jnp.float32),
        cout=cout, cin=cin, stride=stride, bn=bn, lrelu=lrelu)


def init_discriminator_params(key, in_channels=3, channel_list=(64, 128, 256)):
    k = 4
    defs = [dict(cin=in_channels, cout=channel_list[0], stride=2,
                 bn=False, lrelu=True)]
    for i in range(1, len(channel_list)):
        defs.append(dict(cin=channel_list[i - 1], cout=channel_list[i],
                         stride=2, bn=True, lrelu=True))
    defs.append(dict(cin=channel_list[-1], cout=channel_list[-1],
                     stride=1, bn=True, lrelu=True))
    defs.append(dict(cin=channel_list[-1], cout=1,
                     stride=1, bn=False, lrelu=False))

    layers = []
    for d in defs:
        key, kw_, kb_ = jax.random.split(key, 3)
        fan_in = d["cin"] * k * k
        bound = 1.0 / (fan_in ** 0.5)   # PyTorch Conv2d default init
        w = jax.random.uniform(kw_, (d["cout"], d["cin"], k, k),
                               jnp.float32, -bound, bound)
        b = jax.random.uniform(kb_, (d["cout"],), jnp.float32, -bound, bound)
        gamma = jnp.ones((d["cout"],), jnp.float32)  # BN default init
        beta = jnp.zeros((d["cout"],), jnp.float32)
        layers.append(_prepare_layer(w, b, gamma, beta,
                                     d["stride"], d["bn"], d["lrelu"]))
    return layers


def discriminator_forward(x_nchw, layers):
    # PyTorch NCHW input -> NHWC for the kernel pipeline.
    x = jnp.transpose(x_nchw, (0, 2, 3, 1)).astype(jnp.float32)
    for layer in layers:
        x = _conv_layer(x, layer)
    return jnp.transpose(x, (0, 3, 1, 2))    # back to NCHW


if __name__ == "__main__":
    key = jax.random.PRNGKey(0)
    kx, kp = jax.random.split(key)

    # 32x32 spatial so all layers keep positive extent: 32->16->8->4->3->2.
    x = jax.random.normal(kx, (2, 3, 32, 32), dtype=jnp.float32)  # NCHW

    params = init_discriminator_params(kp, in_channels=3,
                                       channel_list=(64, 128, 256))

    out = jax.jit(lambda a: discriminator_forward(a, params))(x)
    out = jax.block_until_ready(out)
    assert out.shape == (2, 1, 2, 2), out.shape
    assert bool(jnp.all(jnp.isfinite(out)))
    print("KERNEL_OK")
</pallas_src>

<mosaic_0001>
module attributes {stable_mosaic.version = 11 : i64} {
  func.func @_mm_bias_act_kernel(%arg0: i32, %arg1: memref<512x128xbf16, #tpu.memory_space<vmem>>, %arg2: memref<128x128xbf16, #tpu.memory_space<vmem>>, %arg3: memref<1x128xf32, #tpu.memory_space<vmem>>, %arg4: memref<512x128xf32, #tpu.memory_space<vmem>>) attributes {dimension_semantics = [#tpu.dimension_semantics<parallel>], iteration_bounds = array<i64: 1>, scalar_prefetch = 0 : i64, scratch_operands = 0 : i64, tpu.core_type = #tpu.core_type<tc>, window_params = [{transform_indices = @transform_0, window_bounds = array<i64: 512, 128>}, {pipeline_mode = #tpu.pipeline_mode<synchronous>, transform_indices = @transform_1, window_bounds = array<i64: 128, 128>}, {pipeline_mode = #tpu.pipeline_mode<synchronous>, transform_indices = @transform_2, window_bounds = array<i64: 1, 128>}, {transform_indices = @transform_3, window_bounds = array<i64: 512, 128>}]} {
    %c0 = arith.constant 0 : index
    %c0_0 = arith.constant 0 : index
    %0 = vector.load %arg1[%c0, %c0_0] : memref<512x128xbf16, #tpu.memory_space<vmem>>, vector<512x128xbf16>
    %c0_1 = arith.constant 0 : index
    %c0_2 = arith.constant 0 : index
    %1 = vector.load %arg2[%c0_1, %c0_2] : memref<128x128xbf16, #tpu.memory_space<vmem>>, vector<128x128xbf16>
    %cst = arith.constant dense<0.000000e+00> : vector<512x128xf32>
    %2 = tpu.matmul %0, %1, %cst {dimension_numbers = #tpu.dot_dimension_numbers<[1], [0], [0], [1], [0, 0, 1, 1], [], []>} : vector<512x128xbf16>, vector<128x128xbf16>, vector<512x128xf32> -> vector<512x128xf32>
    %c0_3 = arith.constant 0 : index
    %c0_4 = arith.constant 0 : index
    %3 = vector.load %arg3[%c0_3, %c0_4] : memref<1x128xf32, #tpu.memory_space<vmem>>, vector<1x128xf32>
    %4 = vector.broadcast %3 : vector<1x128xf32> to vector<512x128xf32>
    %5 = arith.addf %2, %4 : vector<512x128xf32>
    %cst_5 = arith.constant 0.000000e+00 : f32
    %6 = vector.broadcast %cst_5 : f32 to vector<512x128xf32>
    %7 = arith.cmpf oge, %5, %6 : vector<512x128xf32>
    %cst_6 = arith.constant 2.000000e-01 : f32
    %8 = vector.broadcast %cst_6 : f32 to vector<512x128xf32>
    %9 = arith.mulf %8, %5 : vector<512x128xf32>
    %10 = arith.select %7, %5, %9 : vector<512x128xi1>, vector<512x128xf32>
    %c0_7 = arith.constant 0 : index
    %c0_8 = arith.constant 0 : index
    %11 = vector.load %arg4[%c0_7, %c0_8] : memref<512x128xf32, #tpu.memory_space<vmem>>, vector<512x128xf32>
    tpu.vector_store %arg4[%c0_7, %c0_8], %10 {strides = array<i32>} : memref<512x128xf32, #tpu.memory_space<vmem>>, vector<512x128xf32>,
    return
  }
  func.func @transform_0(%arg0: i32) -> (i32, i32) {
    %c0_i32 = arith.constant 0 : i32
    %c0_i32_0 = arith.constant 0 : i32
    return %arg0, %c0_i32 : i32, i32
  }
  func.func @transform_1(%arg0: i32) -> (i32, i32) {
    %c0_i32 = arith.constant 0 : i32
    %c0_i32_0 = arith.constant 0 : i32
    %c0_i32_1 = arith.constant 0 : i32
    return %c0_i32, %c0_i32_0 : i32, i32
  }
  func.func @transform_2(%arg0: i32) -> (i32, i32) {
    %c0_i32 = arith.constant 0 : i32
    %c0_i32_0 = arith.constant 0 : i32
    %c0_i32_1 = arith.constant 0 : i32
    return %c0_i32, %c0_i32_0 : i32, i32
  }
  func.func @transform_3(%arg0: i32) -> (i32, i32) {
    %c0_i32 = arith.constant 0 : i32
    %c0_i32_0 = arith.constant 0 : i32
    return %arg0, %c0_i32 : i32, i32
  }
}

module attributes {stable_mosaic.version = 11 : i64} {
  func.func @_bn_lrelu_kernel(%arg0: i32, %arg1: memref<128x128xf32, #tpu.memory_space<vmem>>, %arg2: memref<1x128xf32, #tpu.memory_space<vmem>>, %arg3: memref<1x128xf32, #tpu.memory_space<vmem>>, %arg4: memref<1x128xf32, #tpu.memory_space<vmem>>, %arg5: memref<1x128xf32, #tpu.memory_space<vmem>>, %arg6: memref<128x128xf32, #tpu.memory_space<vmem>>) attributes {dimension_semantics = [#tpu.dimension_semantics<parallel>], iteration_bounds = array<i64: 1>, scalar_prefetch = 0 : i64, scratch_operands = 0 : i64, tpu.core_type = #tpu.core_type<tc>, window_params = [{transform_indices = @transform_0, window_bounds = array<i64: 128, 128>}, {pipeline_mode = #tpu.pipeline_mode<synchronous>, transform_indices = @transform_1, window_bounds = array<i64: 1, 128>}, {pipeline_mode = #tpu.pipeline_mode<synchronous>, transform_indices = @transform_2, window_bounds = array<i64: 1, 128>}, {pipeline_mode = #tpu.pipeline_mode<synchronous>, transform_indices = @transform_3, window_bounds = array<i64: 1, 128>}, {pipeline_mode = #tpu.pipeline_mode<synchronous>, transform_indices = @transform_4, window_bounds = array<i64: 1, 128>}, {transform_indices = @transform_5, window_bounds = array<i64: 128, 128>}]} {
    %c0 = arith.constant 0 : index
    %c0_0 = arith.constant 0 : index
    %0 = vector.load %arg2[%c0, %c0_0] : memref<1x128xf32, #tpu.memory_space<vmem>>, vector<1x128xf32>
    %cst = arith.constant 7.812500e-03 : f32
    %1 = vector.broadcast %cst : f32 to vector<1x128xf32>
    %2 = arith.mulf %0, %1 : vector<1x128xf32>
    %c0_1 = arith.constant 0 : index
    %c0_2 = arith.constant 0 : index
    %3 = vector.load %arg3[%c0_1, %c0_2] : memref<1x128xf32, #tpu.memory_space<vmem>>, vector<1x128xf32>
    %cst_3 = arith.constant 7.812500e-03 : f32
    %4 = vector.broadcast %cst_3 : f32 to vector<1x128xf32>
    %5 = arith.mulf %3, %4 : vector<1x128xf32>
    %6 = arith.mulf %2, %2 : vector<1x128xf32>
    %7 = arith.subf %5, %6 : vector<1x128xf32>
    %cst_4 = arith.constant 0.000000e+00 : f32
    %8 = vector.broadcast %cst_4 : f32 to vector<1x128xf32>
    %9 = arith.maximumf %7, %8 : vector<1x128xf32>
    %c0_5 = arith.constant 0 : index
    %c0_6 = arith.constant 0 : index
    %10 = vector.load %arg1[%c0_5, %c0_6] : memref<128x128xf32, #tpu.memory_space<vmem>>, vector<128x128xf32>
    %11 = vector.broadcast %2 : vector<1x128xf32> to vector<128x128xf32>
    %12 = arith.subf %10, %11 : vector<128x128xf32>
    %cst_7 = arith.constant 9.99999974E-6 : f32
    %13 = vector.broadcast %cst_7 : f32 to vector<1x128xf32>
    %14 = arith.addf %9, %13 : vector<1x128xf32>
    %15 = math.rsqrt %14 : vector<1x128xf32>
    %16 = vector.broadcast %15 : vector<1x128xf32> to vector<128x128xf32>
    %17 = arith.mulf %12, %16 : vector<128x128xf32>
    %c0_8 = arith.constant 0 : index
    %c0_9 = arith.constant 0 : index
    %18 = vector.load %arg4[%c0_8, %c0_9] : memref<1x128xf32, #tpu.memory_space<vmem>>, vector<1x128xf32>
    %19 = vector.broadcast %18 : vector<1x128xf32> to vector<128x128xf32>
    %20 = arith.mulf %17, %19 : vector<128x128xf32>
    %c0_10 = arith.constant 0 : index
    %c0_11 = arith.constant 0 : index
    %21 = vector.load %arg5[%c0_10, %c0_11] : memref<1x128xf32, #tpu.memory_space<vmem>>, vector<1x128xf32>
    %22 = vector.broadcast %21 : vector<1x128xf32> to vector<128x128xf32>
    %23 = arith.addf %20, %22 : vector<128x128xf32>
    %cst_12 = arith.constant 0.000000e+00 : f32
    %24 = vector.broadcast %cst_12 : f32 to vector<128x128xf32>
    %25 = arith.cmpf oge, %23, %24 : vector<128x128xf32>
    %cst_13 = arith.constant 2.000000e-01 : f32
    %26 = vector.broadcast %cst_13 : f32 to vector<128x128xf32>
    %27 = arith.mulf %26, %23 : vector<128x128xf32>
    %28 = arith.select %25, %23, %27 : vector<128x128xi1>, vector<128x128xf32>
    %c0_14 = arith.constant 0 : index
    %c0_15 = arith.constant 0 : index
    %29 = vector.load %arg6[%c0_14, %c0_15] : memref<128x128xf32, #tpu.memory_space<vmem>>, vector<128x128xf32>
    tpu.vector_store %arg6[%c0_14, %c0_15], %28 {strides = array<i32>} : memref<128x128xf32, #tpu.memory_space<vmem>>, vector<128x128xf32>,
    return
  }
  func.func @transform_0(%arg0: i32) -> (i32, i32) {
    %c0_i32 = arith.constant 0 : i32
    %c0_i32_0 = arith.constant 0 : i32
    return %arg0, %c0_i32 : i32, i32
  }
  func.func @transform_1(%arg0: i32) -> (i32, i32) {
    %c0_i32 = arith.constant 0 : i32
    %c0_i32_0 = arith.constant 0 : i32
    %c0_i32_1 = arith.constant 0 : i32
    return %c0_i32, %c0_i32_0 : i32, i32
  }
  func.func @transform_2(%arg0: i32) -> (i32, i32) {
    %c0_i32 = arith.constant 0 : i32
    %c0_i32_0 = arith.constant 0 : i32
    %c0_i32_1 = arith.constant 0 : i32
    return %c0_i32, %c0_i32_0 : i32, i32
  }
  func.func @transform_3(%arg0: i32) -> (i32, i32) {
    %c0_i32 = arith.constant 0 : i32
    %c0_i32_0 = arith.constant 0 : i32
    %c0_i32_1 = arith.constant 0 : i32
    return %c0_i32, %c0_i32_0 : i32, i32
  }
  func.func @transform_4(%arg0: i32) -> (i32, i32) {
    %c0_i32 = arith.constant 0 : i32
    %c0_i32_0 = arith.constant 0 : i32
    %c0_i32_1 = arith.constant 0 : i32
    return %c0_i32, %c0_i32_0 : i32, i32
  }
  func.func @transform_5(%arg0: i32) -> (i32, i32) {
    %c0_i32 = arith.constant 0 : i32
    %c0_i32_0 = arith.constant 0 : i32
    return %arg0, %c0_i32 : i32, i32
  }
}

module attributes {stable_mosaic.version = 11 : i64} {
  func.func @_mm_bias_stats_kernel(%arg0: i32, %arg1: memref<128x1024xbf16, #tpu.memory_space<vmem>>, %arg2: memref<1024x128xbf16, #tpu.memory_space<vmem>>, %arg3: memref<1x128xf32, #tpu.memory_space<vmem>>, %arg4: memref<128x128xf32, #tpu.memory_space<vmem>>, %arg5: memref<1x128xf32, #tpu.memory_space<vmem>>, %arg6: memref<1x128xf32, #tpu.memory_space<vmem>>) attributes {dimension_semantics = [#tpu.dimension_semantics<arbitrary>], iteration_bounds = array<i64: 1>, scalar_prefetch = 0 : i64, scratch_operands = 0 : i64, tpu.core_type = #tpu.core_type<tc>, window_params = [{transform_indices = @transform_0, window_bounds = array<i64: 128, 1024>}, {pipeline_mode = #tpu.pipeline_mode<synchronous>, transform_indices = @transform_1, window_bounds = array<i64: 1024, 128>}, {pipeline_mode = #tpu.pipeline_mode<synchronous>, transform_indices = @transform_2, window_bounds = array<i64: 1, 128>}, {transform_indices = @transform_3, window_bounds = array<i64: 128, 128>}, {pipeline_mode = #tpu.pipeline_mode<synchronous>, transform_indices = @transform_4, window_bounds = array<i64: 1, 128>}, {pipeline_mode = #tpu.pipeline_mode<synchronous>, transform_indices = @transform_5, window_bounds = array<i64: 1, 128>}]} {
    %c0_i32 = arith.constant 0 : i32
    %0 = arith.cmpi eq, %arg0, %c0_i32 : i32
    %1 = arith.extui %0 : i1 to i32
    %c0_i32_0 = arith.constant 0 : i32
    %2 = arith.cmpi ne, %1, %c0_i32_0 : i32
    scf.if %2 {
      %cst_20 = arith.constant 0.000000e+00 : f32
      %29 = vector.broadcast %cst_20 : f32 to vector<1x128xf32>
      %c0_21 = arith.constant 0 : index
      %c0_22 = arith.constant 0 : index
      %30 = vector.load %arg5[%c0_21, %c0_22] : memref<1x128xf32, #tpu.memory_space<vmem>>, vector<1x128xf32>
      tpu.vector_store %arg5[%c0_21, %c0_22], %29 {strides = array<i32>} : memref<1x128xf32, #tpu.memory_space<vmem>>, vector<1x128xf32>,
      %cst_23 = arith.constant 0.000000e+00 : f32
      %31 = vector.broadcast %cst_23 : f32 to vector<1x128xf32>
      %c0_24 = arith.constant 0 : index
      %c0_25 = arith.constant 0 : index
      %32 = vector.load %arg6[%c0_24, %c0_25] : memref<1x128xf32, #tpu.memory_space<vmem>>, vector<1x128xf32>
      tpu.vector_store %arg6[%c0_24, %c0_25], %31 {strides = array<i32>} : memref<1x128xf32, #tpu.memory_space<vmem>>, vector<1x128xf32>,
    } else {
    }
    %c0 = arith.constant 0 : index
    %c0_1 = arith.constant 0 : index
    %3 = vector.load %arg1[%c0, %c0_1] : memref<128x1024xbf16, #tpu.memory_space<vmem>>, vector<128x1024xbf16>
    %c0_2 = arith.constant 0 : index
    %c0_3 = arith.constant 0 : index
    %4 = vector.load %arg2[%c0_2, %c0_3] : memref<1024x128xbf16, #tpu.memory_space<vmem>>, vector<1024x128xbf16>
    %cst = arith.constant dense<0.000000e+00> : vector<128x128xf32>
    %5 = tpu.matmul %3, %4, %cst {dimension_numbers = #tpu.dot_dimension_numbers<[1], [0], [0], [1], [0, 0, 1, 1], [], []>} : vector<128x1024xbf16>, vector<1024x128xbf16>, vector<128x128xf32> -> vector<128x128xf32>
    %c0_4 = arith.constant 0 : index
    %c0_5 = arith.constant 0 : index
    %6 = vector.load %arg3[%c0_4, %c0_5] : memref<1x128xf32, #tpu.memory_space<vmem>>, vector<1x128xf32>
    %7 = vector.broadcast %6 : vector<1x128xf32> to vector<128x128xf32>
    %8 = arith.addf %5, %7 : vector<128x128xf32>
    %c0_6 = arith.constant 0 : index
    %c0_7 = arith.constant 0 : index
    %9 = vector.load %arg4[%c0_6, %c0_7] : memref<128x128xf32, #tpu.memory_space<vmem>>, vector<128x128xf32>
    tpu.vector_store %arg4[%c0_6, %c0_7], %8 {strides = array<i32>} : memref<128x128xf32, #tpu.memory_space<vmem>>, vector<128x128xf32>,
    %10 = tpu.iota {dimensions = array<i32: 0>} : vector<128x128xi32>
    %c128_i32 = arith.constant 128 : i32
    %11 = arith.muli %arg0, %c128_i32 : i32
    %12 = vector.broadcast %11 : i32 to vector<128x128xi32>
    %13 = arith.addi %10, %12 : vector<128x128xi32>
    %c128_i32_8 = arith.constant 128 : i32
    %14 = vector.broadcast %c128_i32_8 : i32 to vector<128x128xi32>
    %15 = arith.cmpi slt, %13, %14 : vector<128x128xi32>
    %cst_9 = arith.constant 0.000000e+00 : f32
    %16 = vector.broadcast %cst_9 : f32 to vector<128x128xf32>
    %17 = arith.select %15, %8, %16 : vector<128x128xi1>, vector<128x128xf32>
    %c0_10 = arith.constant 0 : index
    %c0_11 = arith.constant 0 : index
    %18 = vector.load %arg5[%c0_10, %c0_11] : memref<1x128xf32, #tpu.memory_space<vmem>>, vector<1x128xf32>
    %cst_12 = arith.constant dense<0.000000e+00> : vector<128xf32>
    %19 = vector.multi_reduction <add>, %17, %cst_12 [0] : vector<128x128xf32> to vector<128xf32>
    %20 = vector.shape_cast %19 : vector<128xf32> to vector<1x128xf32>
    %21 = arith.addf %18, %20 : vector<1x128xf32>
    %c0_13 = arith.constant 0 : index
    %c0_14 = arith.constant 0 : index
    %22 = vector.load %arg5[%c0_13, %c0_14] : memref<1x128xf32, #tpu.memory_space<vmem>>, vector<1x128xf32>
    tpu.vector_store %arg5[%c0_13, %c0_14], %21 {strides = array<i32>} : memref<1x128xf32, #tpu.memory_space<vmem>>, vector<1x128xf32>,
    %c0_15 = arith.constant 0 : index
    %c0_16 = arith.constant 0 : index
    %23 = vector.load %arg6[%c0_15, %c0_16] : memref<1x128xf32, #tpu.memory_space<vmem>>, vector<1x128xf32>
    %24 = arith.mulf %17, %17 : vector<128x128xf32>
    %cst_17 = arith.constant dense<0.000000e+00> : vector<128xf32>
    %25 = vector.multi_reduction <add>, %24, %cst_17 [0] : vector<128x128xf32> to vector<128xf32>
    %26 = vector.shape_cast %25 : vector<128xf32> to vector<1x128xf32>
    %27 = arith.addf %23, %26 : vector<1x128xf32>
    %c0_18 = arith.constant 0 : index
    %c0_19 = arith.constant 0 : index
    %28 = vector.load %arg6[%c0_18, %c0_19] : memref<1x128xf32, #tpu.memory_space<vmem>>, vector<1x128xf32>
    tpu.vector_store %arg6[%c0_18, %c0_19], %27 {strides = array<i32>} : memref<1x128xf32, #tpu.memory_space<vmem>>, vector<1x128xf32>,
    return
  }
  func.func @transform_0(%arg0: i32) -> (i32, i32) {
    %c0_i32 = arith.constant 0 : i32
    %c0_i32_0 = arith.constant 0 : i32
    return %arg0, %c0_i32 : i32, i32
  }
  func.func @transform_1(%arg0: i32) -> (i32, i32) {
    %c0_i32 = arith.constant 0 : i32
    %c0_i32_0 = arith.constant 0 : i32
    %c0_i32_1 = arith.constant 0 : i32
    return %c0_i32, %c0_i32_0 : i32, i32
  }
  func.func @transform_2(%arg0: i32) -> (i32, i32) {
    %c0_i32 = arith.constant 0 : i32
    %c0_i32_0 = arith.constant 0 : i32
    %c0_i32_1 = arith.constant 0 : i32
    return %c0_i32, %c0_i32_0 : i32, i32
  }
  func.func @transform_3(%arg0: i32) -> (i32, i32) {
    %c0_i32 = arith.constant 0 : i32
    %c0_i32_0 = arith.constant 0 : i32
    return %arg0, %c0_i32 : i32, i32
  }
  func.func @transform_4(%arg0: i32) -> (i32, i32) {
    %c0_i32 = arith.constant 0 : i32
    %c0_i32_0 = arith.constant 0 : i32
    %c0_i32_1 = arith.constant 0 : i32
    return %c0_i32, %c0_i32_0 : i32, i32
  }
  func.func @transform_5(%arg0: i32) -> (i32, i32) {
    %c0_i32 = arith.constant 0 : i32
    %c0_i32_0 = arith.constant 0 : i32
    %c0_i32_1 = arith.constant 0 : i32
    return %c0_i32, %c0_i32_0 : i32, i32
  }
}

module attributes {stable_mosaic.version = 11 : i64} {
  func.func @_bn_lrelu_kernel(%arg0: i32, %arg1: memref<32x256xf32, #tpu.memory_space<vmem>>, %arg2: memref<1x256xf32, #tpu.memory_space<vmem>>, %arg3: memref<1x256xf32, #tpu.memory_space<vmem>>, %arg4: memref<1x256xf32, #tpu.memory_space<vmem>>, %arg5: memref<1x256xf32, #tpu.memory_space<vmem>>, %arg6: memref<32x256xf32, #tpu.memory_space<vmem>>) attributes {dimension_semantics = [#tpu.dimension_semantics<parallel>], iteration_bounds = array<i64: 1>, scalar_prefetch = 0 : i64, scratch_operands = 0 : i64, tpu.core_type = #tpu.core_type<tc>, window_params = [{transform_indices = @transform_0, window_bounds = array<i64: 32, 256>}, {pipeline_mode = #tpu.pipeline_mode<synchronous>, transform_indices = @transform_1, window_bounds = array<i64: 1, 256>}, {pipeline_mode = #tpu.pipeline_mode<synchronous>, transform_indices = @transform_2, window_bounds = array<i64: 1, 256>}, {pipeline_mode = #tpu.pipeline_mode<synchronous>, transform_indices = @transform_3, window_bounds = array<i64: 1, 256>}, {pipeline_mode = #tpu.pipeline_mode<synchronous>, transform_indices = @transform_4, window_bounds = array<i64: 1, 256>}, {transform_indices = @transform_5, window_bounds = array<i64: 32, 256>}]} {
    %c0 = arith.constant 0 : index
    %c0_0 = arith.constant 0 : index
    %0 = vector.load %arg2[%c0, %c0_0] : memref<1x256xf32, #tpu.memory_space<vmem>>, vector<1x256xf32>
    %cst = arith.constant 3.125000e-02 : f32
    %1 = vector.broadcast %cst : f32 to vector<1x256xf32>
    %2 = arith.mulf %0, %1 : vector<1x256xf32>
    %c0_1 = arith.constant 0 : index
    %c0_2 = arith.constant 0 : index
    %3 = vector.load %arg3[%c0_1, %c0_2] : memref<1x256xf32, #tpu.memory_space<vmem>>, vector<1x256xf32>
    %cst_3 = arith.constant 3.125000e-02 : f32
    %4 = vector.broadcast %cst_3 : f32 to vector<1x256xf32>
    %5 = arith.mulf %3, %4 : vector<1x256xf32>
    %6 = arith.mulf %2, %2 : vector<1x256xf32>
    %7 = arith.subf %5, %6 : vector<1x256xf32>
    %cst_4 = arith.constant 0.000000e+00 : f32
    %8 = vector.broadcast %cst_4 : f32 to vector<1x256xf32>
    %9 = arith.maximumf %7, %8 : vector<1x256xf32>
    %c0_5 = arith.constant 0 : index
    %c0_6 = arith.constant 0 : index
    %10 = vector.load %arg1[%c0_5, %c0_6] : memref<32x256xf32, #tpu.memory_space<vmem>>, vector<32x256xf32>
    %11 = vector.broadcast %2 : vector<1x256xf32> to vector<32x256xf32>
    %12 = arith.subf %10, %11 : vector<32x256xf32>
    %cst_7 = arith.constant 9.99999974E-6 : f32
    %13 = vector.broadcast %cst_7 : f32 to vector<1x256xf32>
    %14 = arith.addf %9, %13 : vector<1x256xf32>
    %15 = math.rsqrt %14 : vector<1x256xf32>
    %16 = vector.broadcast %15 : vector<1x256xf32> to vector<32x256xf32>
    %17 = arith.mulf %12, %16 : vector<32x256xf32>
    %c0_8 = arith.constant 0 : index
    %c0_9 = arith.constant 0 : index
    %18 = vector.load %arg4[%c0_8, %c0_9] : memref<1x256xf32, #tpu.memory_space<vmem>>, vector<1x256xf32>
    %19 = vector.broadcast %18 : vector<1x256xf32> to vector<32x256xf32>
    %20 = arith.mulf %17, %19 : vector<32x256xf32>
    %c0_10 = arith.constant 0 : index
    %c0_11 = arith.constant 0 : index
    %21 = vector.load %arg5[%c0_10, %c0_11] : memref<1x256xf32, #tpu.memory_space<vmem>>, vector<1x256xf32>
    %22 = vector.broadcast %21 : vector<1x256xf32> to vector<32x256xf32>
    %23 = arith.addf %20, %22 : vector<32x256xf32>
    %cst_12 = arith.constant 0.000000e+00 : f32
    %24 = vector.broadcast %cst_12 : f32 to vector<32x256xf32>
    %25 = arith.cmpf oge, %23, %24 : vector<32x256xf32>
    %cst_13 = arith.constant 2.000000e-01 : f32
    %26 = vector.broadcast %cst_13 : f32 to vector<32x256xf32>
    %27 = arith.mulf %26, %23 : vector<32x256xf32>
    %28 = arith.select %25, %23, %27 : vector<32x256xi1>, vector<32x256xf32>
    %c0_14 = arith.constant 0 : index
    %c0_15 = arith.constant 0 : index
    %29 = vector.load %arg6[%c0_14, %c0_15] : memref<32x256xf32, #tpu.memory_space<vmem>>, vector<32x256xf32>
    tpu.vector_store %arg6[%c0_14, %c0_15], %28 {strides = array<i32>} : memref<32x256xf32, #tpu.memory_space<vmem>>, vector<32x256xf32>,
    return
  }
  func.func @transform_0(%arg0: i32) -> (i32, i32) {
    %c0_i32 = arith.constant 0 : i32
    %c0_i32_0 = arith.constant 0 : i32
    return %arg0, %c0_i32 : i32, i32
  }
  func.func @transform_1(%arg0: i32) -> (i32, i32) {
    %c0_i32 = arith.constant 0 : i32
    %c0_i32_0 = arith.constant 0 : i32
    %c0_i32_1 = arith.constant 0 : i32
    return %c0_i32, %c0_i32_0 : i32, i32
  }
  func.func @transform_2(%arg0: i32) -> (i32, i32) {
    %c0_i32 = arith.constant 0 : i32
    %c0_i32_0 = arith.constant 0 : i32
    %c0_i32_1 = arith.constant 0 : i32
    return %c0_i32, %c0_i32_0 : i32, i32
  }
  func.func @transform_3(%arg0: i32) -> (i32, i32) {
    %c0_i32 = arith.constant 0 : i32
    %c0_i32_0 = arith.constant 0 : i32
    %c0_i32_1 = arith.constant 0 : i32
    return %c0_i32, %c0_i32_0 : i32, i32
  }
  func.func @transform_4(%arg0: i32) -> (i32, i32) {
    %c0_i32 = arith.constant 0 : i32
    %c0_i32_0 = arith.constant 0 : i32
    %c0_i32_1 = arith.constant 0 : i32
    return %c0_i32, %c0_i32_0 : i32, i32
  }
  func.func @transform_5(%arg0: i32) -> (i32, i32) {
    %c0_i32 = arith.constant 0 : i32
    %c0_i32_0 = arith.constant 0 : i32
    return %arg0, %c0_i32 : i32, i32
  }
}

module attributes {stable_mosaic.version = 11 : i64} {
  func.func @_mm_bias_stats_kernel(%arg0: i32, %arg1: memref<32x2048xbf16, #tpu.memory_space<vmem>>, %arg2: memref<2048x256xbf16, #tpu.memory_space<vmem>>, %arg3: memref<1x256xf32, #tpu.memory_space<vmem>>, %arg4: memref<32x256xf32, #tpu.memory_space<vmem>>, %arg5: memref<1x256xf32, #tpu.memory_space<vmem>>, %arg6: memref<1x256xf32, #tpu.memory_space<vmem>>) attributes {dimension_semantics = [#tpu.dimension_semantics<arbitrary>], iteration_bounds = array<i64: 1>, scalar_prefetch = 0 : i64, scratch_operands = 0 : i64, tpu.core_type = #tpu.core_type<tc>, window_params = [{transform_indices = @transform_0, window_bounds = array<i64: 32, 2048>}, {pipeline_mode = #tpu.pipeline_mode<synchronous>, transform_indices = @transform_1, window_bounds = array<i64: 2048, 256>}, {pipeline_mode = #tpu.pipeline_mode<synchronous>, transform_indices = @transform_2, window_bounds = array<i64: 1, 256>}, {transform_indices = @transform_3, window_bounds = array<i64: 32, 256>}, {pipeline_mode = #tpu.pipeline_mode<synchronous>, transform_indices = @transform_4, window_bounds = array<i64: 1, 256>}, {pipeline_mode = #tpu.pipeline_mode<synchronous>, transform_indices = @transform_5, window_bounds = array<i64: 1, 256>}]} {
    %c0_i32 = arith.constant 0 : i32
    %0 = arith.cmpi eq, %arg0, %c0_i32 : i32
    %1 = arith.extui %0 : i1 to i32
    %c0_i32_0 = arith.constant 0 : i32
    %2 = arith.cmpi ne, %1, %c0_i32_0 : i32
    scf.if %2 {
      %cst_20 = arith.constant 0.000000e+00 : f32
      %29 = vector.broadcast %cst_20 : f32 to vector<1x256xf32>
      %c0_21 = arith.constant 0 : index
      %c0_22 = arith.constant 0 : index
      %30 = vector.load %arg5[%c0_21, %c0_22] : memref<1x256xf32, #tpu.memory_space<vmem>>, vector<1x256xf32>
      tpu.vector_store %arg5[%c0_21, %c0_22], %29 {strides = array<i32>} : memref<1x256xf32, #tpu.memory_space<vmem>>, vector<1x256xf32>,
      %cst_23 = arith.constant 0.000000e+00 : f32
      %31 = vector.broadcast %cst_23 : f32 to vector<1x256xf32>
      %c0_24 = arith.constant 0 : index
      %c0_25 = arith.constant 0 : index
      %32 = vector.load %arg6[%c0_24, %c0_25] : memref<1x256xf32, #tpu.memory_space<vmem>>, vector<1x256xf32>
      tpu.vector_store %arg6[%c0_24, %c0_25], %31 {strides = array<i32>} : memref<1x256xf32, #tpu.memory_space<vmem>>, vector<1x256xf32>,
    } else {
    }
    %c0 = arith.constant 0 : index
    %c0_1 = arith.constant 0 : index
    %3 = vector.load %arg1[%c0, %c0_1] : memref<32x2048xbf16, #tpu.memory_space<vmem>>, vector<32x2048xbf16>
    %c0_2 = arith.constant 0 : index
    %c0_3 = arith.constant 0 : index
    %4 = vector.load %arg2[%c0_2, %c0_3] : memref<2048x256xbf16, #tpu.memory_space<vmem>>, vector<2048x256xbf16>
    %cst = arith.constant dense<0.000000e+00> : vector<32x256xf32>
    %5 = tpu.matmul %3, %4, %cst {dimension_numbers = #tpu.dot_dimension_numbers<[1], [0], [0], [1], [0, 0, 1, 1], [], []>} : vector<32x2048xbf16>, vector<2048x256xbf16>, vector<32x256xf32> -> vector<32x256xf32>
    %c0_4 = arith.constant 0 : index
    %c0_5 = arith.constant 0 : index
    %6 = vector.load %arg3[%c0_4, %c0_5] : memref<1x256xf32, #tpu.memory_space<vmem>>, vector<1x256xf32>
    %7 = vector.broadcast %6 : vector<1x256xf32> to vector<32x256xf32>
    %8 = arith.addf %5, %7 : vector<32x256xf32>
    %c0_6 = arith.constant 0 : index
    %c0_7 = arith.constant 0 : index
    %9 = vector.load %arg4[%c0_6, %c0_7] : memref<32x256xf32, #tpu.memory_space<vmem>>, vector<32x256xf32>
    tpu.vector_store %arg4[%c0_6, %c0_7], %8 {strides = array<i32>} : memref<32x256xf32, #tpu.memory_space<vmem>>, vector<32x256xf32>,
    %10 = tpu.iota {dimensions = array<i32: 0>} : vector<32x256xi32>
    %c32_i32 = arith.constant 32 : i32
    %11 = arith.muli %arg0, %c32_i32 : i32
    %12 = vector.broadcast %11 : i32 to vector<32x256xi32>
    %13 = arith.addi %10, %12 : vector<32x256xi32>
    %c32_i32_8 = arith.constant 32 : i32
    %14 = vector.broadcast %c32_i32_8 : i32 to vector<32x256xi32>
    %15 = arith.cmpi slt, %13, %14 : vector<32x256xi32>
    %cst_9 = arith.constant 0.000000e+00 : f32
    %16 = vector.broadcast %cst_9 : f32 to vector<32x256xf32>
    %17 = arith.select %15, %8, %16 : vector<32x256xi1>, vector<32x256xf32>
    %c0_10 = arith.constant 0 : index
    %c0_11 = arith.constant 0 : index
    %18 = vector.load %arg5[%c0_10, %c0_11] : memref<1x256xf32, #tpu.memory_space<vmem>>, vector<1x256xf32>
    %cst_12 = arith.constant dense<0.000000e+00> : vector<256xf32>
    %19 = vector.multi_reduction <add>, %17, %cst_12 [0] : vector<32x256xf32> to vector<256xf32>
    %20 = vector.shape_cast %19 : vector<256xf32> to vector<1x256xf32>
    %21 = arith.addf %18, %20 : vector<1x256xf32>
    %c0_13 = arith.constant 0 : index
    %c0_14 = arith.constant 0 : index
    %22 = vector.load %arg5[%c0_13, %c0_14] : memref<1x256xf32, #tpu.memory_space<vmem>>, vector<1x256xf32>
    tpu.vector_store %arg5[%c0_13, %c0_14], %21 {strides = array<i32>} : memref<1x256xf32, #tpu.memory_space<vmem>>, vector<1x256xf32>,
    %c0_15 = arith.constant 0 : index
    %c0_16 = arith.constant 0 : index
    %23 = vector.load %arg6[%c0_15, %c0_16] : memref<1x256xf32, #tpu.memory_space<vmem>>, vector<1x256xf32>
    %24 = arith.mulf %17, %17 : vector<32x256xf32>
    %cst_17 = arith.constant dense<0.000000e+00> : vector<256xf32>
    %25 = vector.multi_reduction <add>, %24, %cst_17 [0] : vector<32x256xf32> to vector<256xf32>
    %26 = vector.shape_cast %25 : vector<256xf32> to vector<1x256xf32>
    %27 = arith.addf %23, %26 : vector<1x256xf32>
    %c0_18 = arith.constant 0 : index
    %c0_19 = arith.constant 0 : index
    %28 = vector.load %arg6[%c0_18, %c0_19] : memref<1x256xf32, #tpu.memory_space<vmem>>, vector<1x256xf32>
    tpu.vector_store %arg6[%c0_18, %c0_19], %27 {strides = array<i32>} : memref<1x256xf32, #tpu.memory_space<vmem>>, vector<1x256xf32>,
    return
  }
  func.func @transform_0(%arg0: i32) -> (i32, i32) {
    %c0_i32 = arith.constant 0 : i32
    %c0_i32_0 = arith.constant 0 : i32
    return %arg0, %c0_i32 : i32, i32
  }
  func.func @transform_1(%arg0: i32) -> (i32, i32) {
    %c0_i32 = arith.constant 0 : i32
    %c0_i32_0 = arith.constant 0 : i32
    %c0_i32_1 = arith.constant 0 : i32
    return %c0_i32, %c0_i32_0 : i32, i32
  }
  func.func @transform_2(%arg0: i32) -> (i32, i32) {
    %c0_i32 = arith.constant 0 : i32
    %c0_i32_0 = arith.constant 0 : i32
    %c0_i32_1 = arith.constant 0 : i32
    return %c0_i32, %c0_i32_0 : i32, i32
  }
  func.func @transform_3(%arg0: i32) -> (i32, i32) {
    %c0_i32 = arith.constant 0 : i32
    %c0_i32_0 = arith.constant 0 : i32
    return %arg0, %c0_i32 : i32, i32
  }
  func.func @transform_4(%arg0: i32) -> (i32, i32) {
    %c0_i32 = arith.constant 0 : i32
    %c0_i32_0 = arith.constant 0 : i32
    %c0_i32_1 = arith.constant 0 : i32
    return %c0_i32, %c0_i32_0 : i32, i32
  }
  func.func @transform_5(%arg0: i32) -> (i32, i32) {
    %c0_i32 = arith.constant 0 : i32
    %c0_i32_0 = arith.constant 0 : i32
    %c0_i32_1 = arith.constant 0 : i32
    return %c0_i32, %c0_i32_0 : i32, i32
  }
}

module attributes {stable_mosaic.version = 11 : i64} {
  func.func @_bn_lrelu_kernel(%arg0: i32, %arg1: memref<24x256xf32, #tpu.memory_space<vmem>>, %arg2: memref<1x256xf32, #tpu.memory_space<vmem>>, %arg3: memref<1x256xf32, #tpu.memory_space<vmem>>, %arg4: memref<1x256xf32, #tpu.memory_space<vmem>>, %arg5: memref<1x256xf32, #tpu.memory_space<vmem>>, %arg6: memref<24x256xf32, #tpu.memory_space<vmem>>) attributes {dimension_semantics = [#tpu.dimension_semantics<parallel>], iteration_bounds = array<i64: 1>, scalar_prefetch = 0 : i64, scratch_operands = 0 : i64, tpu.core_type = #tpu.core_type<tc>, window_params = [{transform_indices = @transform_0, window_bounds = array<i64: 24, 256>}, {pipeline_mode = #tpu.pipeline_mode<synchronous>, transform_indices = @transform_1, window_bounds = array<i64: 1, 256>}, {pipeline_mode = #tpu.pipeline_mode<synchronous>, transform_indices = @transform_2, window_bounds = array<i64: 1, 256>}, {pipeline_mode = #tpu.pipeline_mode<synchronous>, transform_indices = @transform_3, window_bounds = array<i64: 1, 256>}, {pipeline_mode = #tpu.pipeline_mode<synchronous>, transform_indices = @transform_4, window_bounds = array<i64: 1, 256>}, {transform_indices = @transform_5, window_bounds = array<i64: 24, 256>}]} {
    %c0 = arith.constant 0 : index
    %c0_0 = arith.constant 0 : index
    %0 = vector.load %arg2[%c0, %c0_0] : memref<1x256xf32, #tpu.memory_space<vmem>>, vector<1x256xf32>
    %cst = arith.constant 0.055555556 : f32
    %1 = vector.broadcast %cst : f32 to vector<1x256xf32>
    %2 = arith.mulf %0, %1 : vector<1x256xf32>
    %c0_1 = arith.constant 0 : index
    %c0_2 = arith.constant 0 : index
    %3 = vector.load %arg3[%c0_1, %c0_2] : memref<1x256xf32, #tpu.memory_space<vmem>>, vector<1x256xf32>
    %cst_3 = arith.constant 0.055555556 : f32
    %4 = vector.broadcast %cst_3 : f32 to vector<1x256xf32>
    %5 = arith.mulf %3, %4 : vector<1x256xf32>
    %6 = arith.mulf %2, %2 : vector<1x256xf32>
    %7 = arith.subf %5, %6 : vector<1x256xf32>
    %cst_4 = arith.constant 0.000000e+00 : f32
    %8 = vector.broadcast %cst_4 : f32 to vector<1x256xf32>
    %9 = arith.maximumf %7, %8 : vector<1x256xf32>
    %c0_5 = arith.constant 0 : index
    %c0_6 = arith.constant 0 : index
    %10 = vector.load %arg1[%c0_5, %c0_6] : memref<24x256xf32, #tpu.memory_space<vmem>>, vector<24x256xf32>
    %11 = vector.broadcast %2 : vector<1x256xf32> to vector<24x256xf32>
    %12 = arith.subf %10, %11 : vector<24x256xf32>
    %cst_7 = arith.constant 9.99999974E-6 : f32
    %13 = vector.broadcast %cst_7 : f32 to vector<1x256xf32>
    %14 = arith.addf %9, %13 : vector<1x256xf32>
    %15 = math.rsqrt %14 : vector<1x256xf32>
    %16 = vector.broadcast %15 : vector<1x256xf32> to vector<24x256xf32>
    %17 = arith.mulf %12, %16 : vector<24x256xf32>
    %c0_8 = arith.constant 0 : index
    %c0_9 = arith.constant 0 : index
    %18 = vector.load %arg4[%c0_8, %c0_9] : memref<1x256xf32, #tpu.memory_space<vmem>>, vector<1x256xf32>
    %19 = vector.broadcast %18 : vector<1x256xf32> to vector<24x256xf32>
    %20 = arith.mulf %17, %19 : vector<24x256xf32>
    %c0_10 = arith.constant 0 : index
    %c0_11 = arith.constant 0 : index
    %21 = vector.load %arg5[%c0_10, %c0_11] : memref<1x256xf32, #tpu.memory_space<vmem>>, vector<1x256xf32>
    %22 = vector.broadcast %21 : vector<1x256xf32> to vector<24x256xf32>
    %23 = arith.addf %20, %22 : vector<24x256xf32>
    %cst_12 = arith.constant 0.000000e+00 : f32
    %24 = vector.broadcast %cst_12 : f32 to vector<24x256xf32>
    %25 = arith.cmpf oge, %23, %24 : vector<24x256xf32>
    %cst_13 = arith.constant 2.000000e-01 : f32
    %26 = vector.broadcast %cst_13 : f32 to vector<24x256xf32>
    %27 = arith.mulf %26, %23 : vector<24x256xf32>
    %28 = arith.select %25, %23, %27 : vector<24x256xi1>, vector<24x256xf32>
    %c0_14 = arith.constant 0 : index
    %c0_15 = arith.constant 0 : index
    %29 = vector.load %arg6[%c0_14, %c0_15] : memref<24x256xf32, #tpu.memory_space<vmem>>, vector<24x256xf32>
    tpu.vector_store %arg6[%c0_14, %c0_15], %28 {strides = array<i32>} : memref<24x256xf32, #tpu.memory_space<vmem>>, vector<24x256xf32>,
    return
  }
  func.func @transform_0(%arg0: i32) -> (i32, i32) {
    %c0_i32 = arith.constant 0 : i32
    %c0_i32_0 = arith.constant 0 : i32
    return %arg0, %c0_i32 : i32, i32
  }
  func.func @transform_1(%arg0: i32) -> (i32, i32) {
    %c0_i32 = arith.constant 0 : i32
    %c0_i32_0 = arith.constant 0 : i32
    %c0_i32_1 = arith.constant 0 : i32
    return %c0_i32, %c0_i32_0 : i32, i32
  }
  func.func @transform_2(%arg0: i32) -> (i32, i32) {
    %c0_i32 = arith.constant 0 : i32
    %c0_i32_0 = arith.constant 0 : i32
    %c0_i32_1 = arith.constant 0 : i32
    return %c0_i32, %c0_i32_0 : i32, i32
  }
  func.func @transform_3(%arg0: i32) -> (i32, i32) {
    %c0_i32 = arith.constant 0 : i32
    %c0_i32_0 = arith.constant 0 : i32
    %c0_i32_1 = arith.constant 0 : i32
    return %c0_i32, %c0_i32_0 : i32, i32
  }
  func.func @transform_4(%arg0: i32) -> (i32, i32) {
    %c0_i32 = arith.constant 0 : i32
    %c0_i32_0 = arith.constant 0 : i32
    %c0_i32_1 = arith.constant 0 : i32
    return %c0_i32, %c0_i32_0 : i32, i32
  }
  func.func @transform_5(%arg0: i32) -> (i32, i32) {
    %c0_i32 = arith.constant 0 : i32
    %c0_i32_0 = arith.constant 0 : i32
    return %arg0, %c0_i32 : i32, i32
  }
}

module attributes {stable_mosaic.version = 11 : i64} {
  func.func @_mm_bias_stats_kernel(%arg0: i32, %arg1: memref<24x4096xbf16, #tpu.memory_space<vmem>>, %arg2: memref<4096x256xbf16, #tpu.memory_space<vmem>>, %arg3: memref<1x256xf32, #tpu.memory_space<vmem>>, %arg4: memref<24x256xf32, #tpu.memory_space<vmem>>, %arg5: memref<1x256xf32, #tpu.memory_space<vmem>>, %arg6: memref<1x256xf32, #tpu.memory_space<vmem>>) attributes {dimension_semantics = [#tpu.dimension_semantics<arbitrary>], iteration_bounds = array<i64: 1>, scalar_prefetch = 0 : i64, scratch_operands = 0 : i64, tpu.core_type = #tpu.core_type<tc>, window_params = [{transform_indices = @transform_0, window_bounds = array<i64: 24, 4096>}, {pipeline_mode = #tpu.pipeline_mode<synchronous>, transform_indices = @transform_1, window_bounds = array<i64: 4096, 256>}, {pipeline_mode = #tpu.pipeline_mode<synchronous>, transform_indices = @transform_2, window_bounds = array<i64: 1, 256>}, {transform_indices = @transform_3, window_bounds = array<i64: 24, 256>}, {pipeline_mode = #tpu.pipeline_mode<synchronous>, transform_indices = @transform_4, window_bounds = array<i64: 1, 256>}, {pipeline_mode = #tpu.pipeline_mode<synchronous>, transform_indices = @transform_5, window_bounds = array<i64: 1, 256>}]} {
    %c0_i32 = arith.constant 0 : i32
    %0 = arith.cmpi eq, %arg0, %c0_i32 : i32
    %1 = arith.extui %0 : i1 to i32
    %c0_i32_0 = arith.constant 0 : i32
    %2 = arith.cmpi ne, %1, %c0_i32_0 : i32
    scf.if %2 {
      %cst_19 = arith.constant 0.000000e+00 : f32
      %29 = vector.broadcast %cst_19 : f32 to vector<1x256xf32>
      %c0_20 = arith.constant 0 : index
      %c0_21 = arith.constant 0 : index
      %30 = vector.load %arg5[%c0_20, %c0_21] : memref<1x256xf32, #tpu.memory_space<vmem>>, vector<1x256xf32>
      tpu.vector_store %arg5[%c0_20, %c0_21], %29 {strides = array<i32>} : memref<1x256xf32, #tpu.memory_space<vmem>>, vector<1x256xf32>,
      %cst_22 = arith.constant 0.000000e+00 : f32
      %31 = vector.broadcast %cst_22 : f32 to vector<1x256xf32>
      %c0_23 = arith.constant 0 : index
      %c0_24 = arith.constant 0 : index
      %32 = vector.load %arg6[%c0_23, %c0_24] : memref<1x256xf32, #tpu.memory_space<vmem>>, vector<1x256xf32>
      tpu.vector_store %arg6[%c0_23, %c0_24], %31 {strides = array<i32>} : memref<1x256xf32, #tpu.memory_space<vmem>>, vector<1x256xf32>,
    } else {
    }
    %c0 = arith.constant 0 : index
    %c0_1 = arith.constant 0 : index
    %3 = vector.load %arg1[%c0, %c0_1] : memref<24x4096xbf16, #tpu.memory_space<vmem>>, vector<24x4096xbf16>
    %c0_2 = arith.constant 0 : index
    %c0_3 = arith.constant 0 : index
    %4 = vector.load %arg2[%c0_2, %c0_3] : memref<4096x256xbf16, #tpu.memory_space<vmem>>, vector<4096x256xbf16>
    %cst = arith.constant dense<0.000000e+00> : vector<24x256xf32>
    %5 = tpu.matmul %3, %4, %cst {dimension_numbers = #tpu.dot_dimension_numbers<[1], [0], [0], [1], [0, 0, 1, 1], [], []>} : vector<24x4096xbf16>, vector<4096x256xbf16>, vector<24x256xf32> -> vector<24x256xf32>
    %c0_4 = arith.constant 0 : index
    %c0_5 = arith.constant 0 : index
    %6 = vector.load %arg3[%c0_4, %c0_5] : memref<1x256xf32, #tpu.memory_space<vmem>>, vector<1x256xf32>
    %7 = vector.broadcast %6 : vector<1x256xf32> to vector<24x256xf32>
    %8 = arith.addf %5, %7 : vector<24x256xf32>
    %c0_6 = arith.constant 0 : index
    %c0_7 = arith.constant 0 : index
    %9 = vector.load %arg4[%c0_6, %c0_7] : memref<24x256xf32, #tpu.memory_space<vmem>>, vector<24x256xf32>
    tpu.vector_store %arg4[%c0_6, %c0_7], %8 {strides = array<i32>} : memref<24x256xf32, #tpu.memory_space<vmem>>, vector<24x256xf32>,
    %10 = tpu.iota {dimensions = array<i32: 0>} : vector<24x256xi32>
    %c24_i32 = arith.constant 24 : i32
    %11 = arith.muli %arg0, %c24_i32 : i32
    %12 = vector.broadcast %11 : i32 to vector<24x256xi32>
    %13 = arith.addi %10, %12 : vector<24x256xi32>
    %c18_i32 = arith.constant 18 : i32
    %14 = vector.broadcast %c18_i32 : i32 to vector<24x256xi32>
    %15 = arith.cmpi slt, %13, %14 : vector<24x256xi32>
    %cst_8 = arith.constant 0.000000e+00 : f32
    %16 = vector.broadcast %cst_8 : f32 to vector<24x256xf32>
    %17 = arith.select %15, %8, %16 : vector<24x256xi1>, vector<24x256xf32>
    %c0_9 = arith.constant 0 : index
    %c0_10 = arith.constant 0 : index
    %18 = vector.load %arg5[%c0_9, %c0_10] : memref<1x256xf32, #tpu.memory_space<vmem>>, vector<1x256xf32>
    %cst_11 = arith.constant dense<0.000000e+00> : vector<256xf32>
    %19 = vector.multi_reduction <add>, %17, %cst_11 [0] : vector<24x256xf32> to vector<256xf32>
    %20 = vector.shape_cast %19 : vector<256xf32> to vector<1x256xf32>
    %21 = arith.addf %18, %20 : vector<1x256xf32>
    %c0_12 = arith.constant 0 : index
    %c0_13 = arith.constant 0 : index
    %22 = vector.load %arg5[%c0_12, %c0_13] : memref<1x256xf32, #tpu.memory_space<vmem>>, vector<1x256xf32>
    tpu.vector_store %arg5[%c0_12, %c0_13], %21 {strides = array<i32>} : memref<1x256xf32, #tpu.memory_space<vmem>>, vector<1x256xf32>,
    %c0_14 = arith.constant 0 : index
    %c0_15 = arith.constant 0 : index
    %23 = vector.load %arg6[%c0_14, %c0_15] : memref<1x256xf32, #tpu.memory_space<vmem>>, vector<1x256xf32>
    %24 = arith.mulf %17, %17 : vector<24x256xf32>
    %cst_16 = arith.constant dense<0.000000e+00> : vector<256xf32>
    %25 = vector.multi_reduction <add>, %24, %cst_16 [0] : vector<24x256xf32> to vector<256xf32>
    %26 = vector.shape_cast %25 : vector<256xf32> to vector<1x256xf32>
    %27 = arith.addf %23, %26 : vector<1x256xf32>
    %c0_17 = arith.constant 0 : index
    %c0_18 = arith.constant 0 : index
    %28 = vector.load %arg6[%c0_17, %c0_18] : memref<1x256xf32, #tpu.memory_space<vmem>>, vector<1x256xf32>
    tpu.vector_store %arg6[%c0_17, %c0_18], %27 {strides = array<i32>} : memref<1x256xf32, #tpu.memory_space<vmem>>, vector<1x256xf32>,
    return
  }
  func.func @transform_0(%arg0: i32) -> (i32, i32) {
    %c0_i32 = arith.constant 0 : i32
    %c0_i32_0 = arith.constant 0 : i32
    return %arg0, %c0_i32 : i32, i32
  }
  func.func @transform_1(%arg0: i32) -> (i32, i32) {
    %c0_i32 = arith.constant 0 : i32
    %c0_i32_0 = arith.constant 0 : i32
    %c0_i32_1 = arith.constant 0 : i32
    return %c0_i32, %c0_i32_0 : i32, i32
  }
  func.func @transform_2(%arg0: i32) -> (i32, i32) {
    %c0_i32 = arith.constant 0 : i32
    %c0_i32_0 = arith.constant 0 : i32
    %c0_i32_1 = arith.constant 0 : i32
    return %c0_i32, %c0_i32_0 : i32, i32
  }
  func.func @transform_3(%arg0: i32) -> (i32, i32) {
    %c0_i32 = arith.constant 0 : i32
    %c0_i32_0 = arith.constant 0 : i32
    return %arg0, %c0_i32 : i32, i32
  }
  func.func @transform_4(%arg0: i32) -> (i32, i32) {
    %c0_i32 = arith.constant 0 : i32
    %c0_i32_0 = arith.constant 0 : i32
    %c0_i32_1 = arith.constant 0 : i32
    return %c0_i32, %c0_i32_0 : i32, i32
  }
  func.func @transform_5(%arg0: i32) -> (i32, i32) {
    %c0_i32 = arith.constant 0 : i32
    %c0_i32_0 = arith.constant 0 : i32
    %c0_i32_1 = arith.constant 0 : i32
    return %c0_i32, %c0_i32_0 : i32, i32
  }
}

module attributes {stable_mosaic.version = 11 : i64} {
  func.func @_mm_bias_act_kernel(%arg0: i32, %arg1: memref<8x4096xbf16, #tpu.memory_space<vmem>>, %arg2: memref<4096x128xbf16, #tpu.memory_space<vmem>>, %arg3: memref<1x128xf32, #tpu.memory_space<vmem>>, %arg4: memref<8x128xf32, #tpu.memory_space<vmem>>) attributes {dimension_semantics = [#tpu.dimension_semantics<parallel>], iteration_bounds = array<i64: 1>, scalar_prefetch = 0 : i64, scratch_operands = 0 : i64, tpu.core_type = #tpu.core_type<tc>, window_params = [{transform_indices = @transform_0, window_bounds = array<i64: 8, 4096>}, {pipeline_mode = #tpu.pipeline_mode<synchronous>, transform_indices = @transform_1, window_bounds = array<i64: 4096, 128>}, {pipeline_mode = #tpu.pipeline_mode<synchronous>, transform_indices = @transform_2, window_bounds = array<i64: 1, 128>}, {transform_indices = @transform_3, window_bounds = array<i64: 8, 128>}]} {
    %c0 = arith.constant 0 : index
    %c0_0 = arith.constant 0 : index
    %0 = vector.load %arg1[%c0, %c0_0] : memref<8x4096xbf16, #tpu.memory_space<vmem>>, vector<8x4096xbf16>
    %c0_1 = arith.constant 0 : index
    %c0_2 = arith.constant 0 : index
    %1 = vector.load %arg2[%c0_1, %c0_2] : memref<4096x128xbf16, #tpu.memory_space<vmem>>, vector<4096x128xbf16>
    %cst = arith.constant dense<0.000000e+00> : vector<8x128xf32>
    %2 = tpu.matmul %0, %1, %cst {dimension_numbers = #tpu.dot_dimension_numbers<[1], [0], [0], [1], [0, 0, 1, 1], [], []>} : vector<8x4096xbf16>, vector<4096x128xbf16>, vector<8x128xf32> -> vector<8x128xf32>
    %c0_3 = arith.constant 0 : index
    %c0_4 = arith.constant 0 : index
    %3 = vector.load %arg3[%c0_3, %c0_4] : memref<1x128xf32, #tpu.memory_space<vmem>>, vector<1x128xf32>
    %4 = vector.broadcast %3 : vector<1x128xf32> to vector<8x128xf32>
    %5 = arith.addf %2, %4 : vector<8x128xf32>
    %c0_5 = arith.constant 0 : index
    %c0_6 = arith.constant 0 : index
    %6 = vector.load %arg4[%c0_5, %c0_6] : memref<8x128xf32, #tpu.memory_space<vmem>>, vector<8x128xf32>
    tpu.vector_store %arg4[%c0_5, %c0_6], %5 {strides = array<i32>} : memref<8x128xf32, #tpu.memory_space<vmem>>, vector<8x128xf32>,
    return
  }
  func.func @transform_0(%arg0: i32) -> (i32, i32) {
    %c0_i32 = arith.constant 0 : i32
    %c0_i32_0 = arith.constant 0 : i32
    return %arg0, %c0_i32 : i32, i32
  }
  func.func @transform_1(%arg0: i32) -> (i32, i32) {
    %c0_i32 = arith.constant 0 : i32
    %c0_i32_0 = arith.constant 0 : i32
    %c0_i32_1 = arith.constant 0 : i32
    return %c0_i32, %c0_i32_0 : i32, i32
  }
  func.func @transform_2(%arg0: i32) -> (i32, i32) {
    %c0_i32 = arith.constant 0 : i32
    %c0_i32_0 = arith.constant 0 : i32
    %c0_i32_1 = arith.constant 0 : i32
    return %c0_i32, %c0_i32_0 : i32, i32
  }
  func.func @transform_3(%arg0: i32) -> (i32, i32) {
    %c0_i32 = arith.constant 0 : i32
    %c0_i32_0 = arith.constant 0 : i32
    return %arg0, %c0_i32 : i32, i32
  }
}

</mosaic_0001>

<llo_original>
// kernel: _lambda_.8
$region0: #{_lambda_.8}
  #allocation0 [shape = 'u32[]', space=smem, size = 0x4, offset = 0x4, fixed_abs, tag = 'smem constant byte address 0x4 - core index']
  #allocation1 [shape = 'u32[72,128]{1,0:T(1,128)}', space=vmem, size = 0x9000, scoped, tag = 'internal scratch']
  %s0 = inlined_call_operand.vmem [shape: bf16[512,128], index: 0, kind: input, shape index: {}]
  %s1 = inlined_call_operand.vmem [shape: bf16[128,128], index: 1, kind: input, shape index: {}]
  %s2 = inlined_call_operand.vmem [shape: f32[1,128], index: 2, kind: input, shape index: {}]
  %s3 = inlined_call_operand.vmem [shape: f32[512,128], index: 3, kind: output, shape index: {}]
  %s4 = sld [smem:[#allocation0]]
  $region22: #{_lambda_.8} parent=0
    _
  %s6 = ssub.s32 1, %s4
  %s7 = scalar_select 0, %s6, %s4
  // Predicated region
  $region2: #{_lambda_.8} parent=0 // pred_check
    _
  $region3: #{_lambda_.8} parent=0 // pred_check_branch
    %9 = sbr.rel (0) target = $region5
  $region4: #{_lambda_.8} parent=0 // pred_region
    _
  $region5: #{_lambda_.8} parent=0 // pred_fallthru
    _
  // Predicated region
  $region6: #{_lambda_.8} parent=0 // pred_check
    _
  $region7: #{_lambda_.8} parent=0 // pred_check_branch
    %11 = sbr.rel (0) target = $region9
  $region8: #{_lambda_.8} parent=0 // pred_region
    _
  $region9: #{_lambda_.8} parent=0 // pred_fallthru
    _
  // Predicated region
  $region10: #{_lambda_.8} parent=0 // pred_check
    _
  $region11: #{_lambda_.8} parent=0 // pred_check_branch
    %13 = sbr.rel (0) target = $region13
  $region12: #{_lambda_.8} parent=0 // pred_region
    _
  $region13: #{_lambda_.8} parent=0 // pred_fallthru
    _
  %v14 = vld [vmem:[%s0] sm:$0xf]
  %v15 = vld [vmem:[%s0 + $0x4] sm:$0xf]
  %v16 = vld [vmem:[%s0 + $0x8] sm:$0xf]
  %v17 = vld [vmem:[%s0 + $0xc] sm:$0xf]
  %v18 = vld [vmem:[%s0 + $0x10] sm:$0xf]
  %v19 = vld [vmem:[%s0 + $0x14] sm:$0xf]
  %v20 = vld [vmem:[%s0 + $0x18] sm:$0xf]
  %v21 = vld [vmem:[%s0 + $0x1c] sm:$0xf]
  %v22 = vld [vmem:[%s0 + $0x20] sm:$0xf]
  %v23 = vld [vmem:[%s0 + $0x24] sm:$0xf]
  %v24 = vld [vmem:[%s0 + $0x28] sm:$0xf]
  %v25 = vld [vmem:[%s0 + $0x2c] sm:$0xf]
  %v26 = vld [vmem:[%s0 + $0x30] sm:$0xf]
  %v27 = vld [vmem:[%s0 + $0x34] sm:$0xf]
  %v28 = vld [vmem:[%s0 + $0x38] sm:$0xf]
  %v29 = vld [vmem:[%s0 + $0x3c] sm:$0xf]
  %v30 = vld [vmem:[%s0 + $0x40] sm:$0xf]
  %v31 = vld [vmem:[%s0 + $0x44] sm:$0xf]
  %v32 = vld [vmem:[%s0 + $0x48] sm:$0xf]
  %v33 = vld [vmem:[%s0 + $0x4c] sm:$0xf]
  %v34 = vld [vmem:[%s0 + $0x50] sm:$0xf]
  %v35 = vld [vmem:[%s0 + $0x54] sm:$0xf]
  %v36 = vld [vmem:[%s0 + $0x58] sm:$0xf]
  %v37 = vld [vmem:[%s0 + $0x5c] sm:$0xf]
  %v38 = vld [vmem:[%s0 + $0x60] sm:$0xf]
  %v39 = vld [vmem:[%s0 + $0x64] sm:$0xf]
  %v40 = vld [vmem:[%s0 + $0x68] sm:$0xf]
  %v41 = vld [vmem:[%s0 + $0x6c] sm:$0xf]
  %v42 = vld [vmem:[%s0 + $0x70] sm:$0xf]
  %v43 = vld [vmem:[%s0 + $0x74] sm:$0xf]
  %v44 = vld [vmem:[%s0 + $0x78] sm:$0xf]
  %v45 = vld [vmem:[%s0 + $0x7c] sm:$0xf]
  %v46 = vld [vmem:[%s0 + $0x80] sm:$0xf]
  %v47 = vld [vmem:[%s0 + $0x84] sm:$0xf]
  %v48 = vld [vmem:[%s0 + $0x88] sm:$0xf]
  %v49 = vld [vmem:[%s0 + $0x8c] sm:$0xf]
  %v50 = vld [vmem:[%s0 + $0x90] sm:$0xf]
  %v51 = vld [vmem:[%s0 + $0x94] sm:$0xf]
  %v52 = vld [vmem:[%s0 + $0x98] sm:$0xf]
  %v53 = vld [vmem:[%s0 + $0x9c] sm:$0xf]
  %v54 = vld [vmem:[%s0 + $0xa0] sm:$0xf]
  %v55 = vld [vmem:[%s0 + $0xa4] sm:$0xf]
  %v56 = vld [vmem:[%s0 + $0xa8] sm:$0xf]
  %v57 = vld [vmem:[%s0 + $0xac] sm:$0xf]
  %v58 = vld [vmem:[%s0 + $0xb0] sm:$0xf]
  %v59 = vld [vmem:[%s0 + $0xb4] sm:$0xf]
  %v60 = vld [vmem:[%s0 + $0xb8] sm:$0xf]
  %v61 = vld [vmem:[%s0 + $0xbc] sm:$0xf]
  %v62 = vld [vmem:[%s0 + $0xc0] sm:$0xf]
  %v63 = vld [vmem:[%s0 + $0xc4] sm:$0xf]
  %v64 = vld [vmem:[%s0 + $0xc8] sm:$0xf]
  %v65 = vld [vmem:[%s0 + $0xcc] sm:$0xf]
  %v66 = vld [vmem:[%s0 + $0xd0] sm:$0xf]
  %v67 = vld [vmem:[%s0 + $0xd4] sm:$0xf]
  %v68 = vld [vmem:[%s0 + $0xd8] sm:$0xf]
  %v69 = vld [vmem:[%s0 + $0xdc] sm:$0xf]
  %v70 = vld [vmem:[%s0 + $0xe0] sm:$0xf]
  %v71 = vld [vmem:[%s0 + $0xe4] sm:$0xf]
  %v72 = vld [vmem:[%s0 + $0xe8] sm:$0xf]
  %v73 = vld [vmem:[%s0 + $0xec] sm:$0xf]
  %v74 = vld [vmem:[%s0 + $0xf0] sm:$0xf]
  %v75 = vld [vmem:[%s0 + $0xf4] sm:$0xf]
  %v76 = vld [vmem:[%s0 + $0xf8] sm:$0xf]
  %v77 = vld [vmem:[%s0 + $0xfc] sm:$0xf]
  %v78 = vld [vmem:[%s1] sm:$0xf]
  %v79 = vld [vmem:[%s1 + $0x4] sm:$0xf]
  %v80 = vld [vmem:[%s1 + $0x8] sm:$0xf]
  %v81 = vld [vmem:[%s1 + $0xc] sm:$0xf]
  %v82 = vld [vmem:[%s1 + $0x10] sm:$0xf]
  %v83 = vld [vmem:[%s1 + $0x14] sm:$0xf]
  %v84 = vld [vmem:[%s1 + $0x18] sm:$0xf]
  %v85 = vld [vmem:[%s1 + $0x1c] sm:$0xf]
  %v86 = vld [vmem:[%s1 + $0x20] sm:$0xf]
  %v87 = vld [vmem:[%s1 + $0x24] sm:$0xf]
  %v88 = vld [vmem:[%s1 + $0x28] sm:$0xf]
  %v89 = vld [vmem:[%s1 + $0x2c] sm:$0xf]
  %v90 = vld [vmem:[%s1 + $0x30] sm:$0xf]
  %v91 = vld [vmem:[%s1 + $0x34] sm:$0xf]
  %v92 = vld [vmem:[%s1 + $0x38] sm:$0xf]
  %v93 = vld [vmem:[%s1 + $0x3c] sm:$0xf]
  %v94 = vld [vmem:[%s2] sm:$0x1]
  %v96 = vperm.slane %v94, 0
  %v162 = vunpack.c.l.b16 %v14
  %v163 = vunpack.c.l.b16 %v15
  %v164 = vunpack.c.l.b16 %v16
  %v165 = vunpack.c.l.b16 %v17
  %v166 = vunpack.c.l.b16 %v18
  %v167 = vunpack.c.l.b16 %v19
  %v168 = vunpack.c.l.b16 %v20
  %v169 = vunpack.c.l.b16 %v21
  %v170 = vunpack.c.l.b16 %v22
  %v171 = vunpack.c.l.b16 %v23
  %v172 = vunpack.c.l.b16 %v24
  %v173 = vunpack.c.l.b16 %v25
  %v174 = vunpack.c.l.b16 %v26
  %v175 = vunpack.c.l.b16 %v27
  %v176 = vunpack.c.l.b16 %v28
  %v177 = vunpack.c.l.b16 %v29
  %v178 = vunpack.c.l.b16 %v30
  %v179 = vunpack.c.l.b16 %v31
  %v180 = vunpack.c.l.b16 %v32
  %v181 = vunpack.c.l.b16 %v33
  %v182 = vunpack.c.l.b16 %v34
  %v183 = vunpack.c.l.b16 %v35
  %v184 = vunpack.c.l.b16 %v36
  %v185 = vunpack.c.l.b16 %v37
  %v186 = vunpack.c.l.b16 %v38
  %v187 = vunpack.c.l.b16 %v39
  %v188 = vunpack.c.l.b16 %v40
  %v189 = vunpack.c.l.b16 %v41
  %v190 = vunpack.c.l.b16 %v42
  %v191 = vunpack.c.l.b16 %v43
  %v192 = vunpack.c.l.b16 %v44
  %v193 = vunpack.c.l.b16 %v45
  %v194 = vunpack.c.l.b16 %v46
  %v195 = vunpack.c.l.b16 %v47
  %v196 = vunpack.c.l.b16 %v48
  %v197 = vunpack.c.l.b16 %v49
  %v198 = vunpack.c.l.b16 %v50
  %v199 = vunpack.c.l.b16 %v51
  %v200 = vunpack.c.l.b16 %v52
  %v201 = vunpack.c.l.b16 %v53
  %v202 = vunpack.c.l.b16 %v54
  %v203 = vunpack.c.l.b16 %v55
  %v204 = vunpack.c.l.b16 %v56
  %v205 = vunpack.c.l.b16 %v57
  %v206 = vunpack.c.l.b16 %v58
  %v207 = vunpack.c.l.b16 %v59
  %v208 = vunpack.c.l.b16 %v60
  %v209 = vunpack.c.l.b16 %v61
  %v210 = vunpack.c.l.b16 %v62
  %v211 = vunpack.c.l.b16 %v63
  %v212 = vunpack.c.l.b16 %v64
  %v213 = vunpack.c.l.b16 %v65
  %v214 = vunpack.c.l.b16 %v66
  %v215 = vunpack.c.l.b16 %v67
  %v216 = vunpack.c.l.b16 %v68
  %v217 = vunpack.c.l.b16 %v69
  %v218 = vunpack.c.l.b16 %v70
  %v219 = vunpack.c.l.b16 %v71
  %v220 = vunpack.c.l.b16 %v72
  %v221 = vunpack.c.l.b16 %v73
  %v222 = vunpack.c.l.b16 %v74
  %v223 = vunpack.c.l.b16 %v75
  %v224 = vunpack.c.l.b16 %v76
  %v225 = vunpack.c.l.b16 %v77
  %v226 = vpack.c.b16 %v163, %v162
  %v227 = vpack.c.b16 %v165, %v164
  %v228 = vpack.c.b16 %v167, %v166
  %v229 = vpack.c.b16 %v169, %v168
  %v230 = vpack.c.b16 %v171, %v170
  %v231 = vpack.c.b16 %v173, %v172
  %v232 = vpack.c.b16 %v175, %v174
  %v233 = vpack.c.b16 %v177, %v176
  %v234 = vpack.c.b16 %v179, %v178
  %v235 = vpack.c.b16 %v181, %v180
  %v236 = vpack.c.b16 %v183, %v182
  %v237 = vpack.c.b16 %v185, %v184
  %v238 = vpack.c.b16 %v187, %v186
  %v239 = vpack.c.b16 %v189, %v188
  %v240 = vpack.c.b16 %v191, %v190
  %v241 = vpack.c.b16 %v193, %v192
  %v242 = vpack.c.b16 %v195, %v194
  %v243 = vpack.c.b16 %v197, %v196
  %v244 = vpack.c.b16 %v199, %v198
  %v245 = vpack.c.b16 %v201, %v200
  %v246 = vpack.c.b16 %v203, %v202
  %v247 = vpack.c.b16 %v205, %v204
  %v248 = vpack.c.b16 %v207, %v206
  %v249 = vpack.c.b16 %v209, %v208
  %v250 = vpack.c.b16 %v211, %v210
  %v251 = vpack.c.b16 %v213, %v212
  %v252 = vpack.c.b16 %v215, %v214
  %v253 = vpack.c.b16 %v217, %v216
  %v254 = vpack.c.b16 %v219, %v218
  %v255 = vpack.c.b16 %v221, %v220
  %v256 = vpack.c.b16 %v223, %v222
  %v257 = vpack.c.b16 %v225, %v224
  %v306 = vunpack.c.l.b16 %v78
  %v307 = vunpack.c.l.b16 %v79
  %v308 = vunpack.c.l.b16 %v80
  %v309 = vunpack.c.l.b16 %v81
  %v310 = vunpack.c.l.b16 %v82
  %v311 = vunpack.c.l.b16 %v83
  %v312 = vunpack.c.l.b16 %v84
  %v313 = vunpack.c.l.b16 %v85
  %v314 = vunpack.c.l.b16 %v86
  %v315 = vunpack.c.l.b16 %v87
  %v316 = vunpack.c.l.b16 %v88
  %v317 = vunpack.c.l.b16 %v89
  %v318 = vunpack.c.l.b16 %v90
  %v319 = vunpack.c.l.b16 %v91
  %v320 = vunpack.c.l.b16 %v92
  %v321 = vunpack.c.l.b16 %v93
  %v322 = vpack.c.b16 %v307, %v306
  %v323 = vpack.c.b16 %v309, %v308
  %v324 = vpack.c.b16 %v311, %v310
  %v325 = vpack.c.b16 %v313, %v312
  %v326 = vpack.c.b16 %v315, %v314
  %v327 = vpack.c.b16 %v317, %v316
  %v328 = vpack.c.b16 %v319, %v318
  %v329 = vpack.c.b16 %v321, %v320
  %338 = vmatpush.bf16.msra.mxu0 %v329
  %339 = vmatpush.bf16.msra.mxu0 %v328
  %340 = vmatpush.bf16.msra.mxu0 %v327
  %341 = vmatpush.bf16.msra.mxu0 %v326
  %342 = vmatpush.bf16.msra.mxu0 %v325
  %343 = vmatpush.bf16.msra.mxu0 %v324
  %344 = vmatpush.bf16.msra.mxu0 %v323
  %345 = vmatpush.bf16.msra.mxu0 %v322
  %346 = vmatmul.bf16.gmra.mxu0 %v226
  %v347 = vpop.f32.mrf.mxu0
  %v348 = vadd.f32 %v96, %v347
  %v349 = vpop.f32.mrf.mxu0
  %v350 = vadd.f32 %v96, %v349
  %351 = vmatmul.bf16.gmra.mxu0 %v227
  %v352 = vpop.f32.mrf.mxu0
  %v353 = vadd.f32 %v96, %v352
  %v354 = vpop.f32.mrf.mxu0
  %v355 = vadd.f32 %v96, %v354
  %356 = vmatmul.bf16.gmra.mxu0 %v228
  %v357 = vpop.f32.mrf.mxu0
  %v358 = vadd.f32 %v96, %v357
  %v359 = vpop.f32.mrf.mxu0
  %v360 = vadd.f32 %v96, %v359
  %361 = vmatmul.bf16.gmra.mxu0 %v229
  %v362 = vpop.f32.mrf.mxu0
  %v363 = vadd.f32 %v96, %v362
  %v364 = vpop.f32.mrf.mxu0
  %v365 = vadd.f32 %v96, %v364
  %366 = vmatmul.bf16.gmra.mxu0 %v230
  %v367 = vpop.f32.mrf.mxu0
  %v368 = vadd.f32 %v96, %v367
  %v369 = vpop.f32.mrf.mxu0
  %v370 = vadd.f32 %v96, %v369
  %371 = vmatmul.bf16.gmra.mxu0 %v231
  %v372 = vpop.f32.mrf.mxu0
  %v373 = vadd.f32 %v96, %v372
  %v374 = vpop.f32.mrf.mxu0
  %v375 = vadd.f32 %v96, %v374
  %376 = vmatmul.bf16.gmra.mxu0 %v232
  %v377 = vpop.f32.mrf.mxu0
  %v378 = vadd.f32 %v96, %v377
  %v379 = vpop.f32.mrf.mxu0
  %v380 = vadd.f32 %v96, %v379
  %381 = vmatmul.bf16.gmra.mxu0 %v233
  %v382 = vpop.f32.mrf.mxu0
  %v383 = vadd.f32 %v96, %v382
  %v384 = vpop.f32.mrf.mxu0
  %v385 = vadd.f32 %v96, %v384
  %386 = vmatmul.bf16.gmra.mxu0 %v234
  %v387 = vpop.f32.mrf.mxu0
  %v388 = vadd.f32 %v96, %v387
  %v389 = vpop.f32.mrf.mxu0
  %v390 = vadd.f32 %v96, %v389
  %391 = vmatmul.bf16.gmra.mxu0 %v235
  %v392 = vpop.f32.mrf.mxu0
  %v393 = vadd.f32 %v96, %v392
  %v394 = vpop.f32.mrf.mxu0
  %v395 = vadd.f32 %v96, %v394
  %396 = vmatmul.bf16.gmra.mxu0 %v236
  %v397 = vpop.f32.mrf.mxu0
  %v398 = vadd.f32 %v96, %v397
  %v399 = vpop.f32.mrf.mxu0
  %v400 = vadd.f32 %v96, %v399
  %401 = vmatmul.bf16.gmra.mxu0 %v237
  %v402 = vpop.f32.mrf.mxu0
  %v403 = vadd.f32 %v96, %v402
  %v404 = vpop.f32.mrf.mxu0
  %v405 = vadd.f32 %v96, %v404
  %406 = vmatmul.bf16.gmra.mxu0 %v238
  %v407 = vpop.f32.mrf.mxu0
  %v408 = vadd.f32 %v96, %v407
  %v409 = vpop.f32.mrf.mxu0
  %v410 = vadd.f32 %v96, %v409
  %411 = vmatmul.bf16.gmra.mxu0 %v239
  %v412 = vpop.f32.mrf.mxu0
  %v413 = vadd.f32 %v96, %v412
  %v414 = vpop.f32.mrf.mxu0
  %v415 = vadd.f32 %v96, %v414
  %416 = vmatmul.bf16.gmra.mxu0 %v240
  %v417 = vpop.f32.mrf.mxu0
  %v418 = vadd.f32 %v96, %v417
  %v419 = vpop.f32.mrf.mxu0
  %v420 = vadd.f32 %v96, %v419
  %421 = vmatmul.bf16.gmra.mxu0 %v241
  %v422 = vpop.f32.mrf.mxu0
  %v423 = vadd.f32 %v96, %v422
  %v424 = vpop.f32.mrf.mxu0
  %v425 = vadd.f32 %v96, %v424
  %426 = vmatmul.bf16.gmra.mxu0 %v242
  %v427 = vpop.f32.mrf.mxu0
  %v428 = vadd.f32 %v96, %v427
  %v429 = vpop.f32.mrf.mxu0
  %v430 = vadd.f32 %v96, %v429
  %431 = vmatmul.bf16.gmra.mxu0 %v243
  %v432 = vpop.f32.mrf.mxu0
  %v433 = vadd.f32 %v96, %v432
  %v434 = vpop.f32.mrf.mxu0
  %v435 = vadd.f32 %v96, %v434
  %436 = vmatmul.bf16.gmra.mxu0 %v244
  %v437 = vpop.f32.mrf.mxu0
  %v438 = vadd.f32 %v96, %v437
  %v439 = vpop.f32.mrf.mxu0
  %v440 = vadd.f32 %v96, %v439
  %441 = vmatmul.bf16.gmra.mxu0 %v245
  %v442 = vpop.f32.mrf.mxu0
  %v443 = vadd.f32 %v96, %v442
  %v444 = vpop.f32.mrf.mxu0
  %v445 = vadd.f32 %v96, %v444
  %446 = vmatmul.bf16.gmra.mxu0 %v246
  %v447 = vpop.f32.mrf.mxu0
  %v448 = vadd.f32 %v96, %v447
  %v449 = vpop.f32.mrf.mxu0
  %v450 = vadd.f32 %v96, %v449
  %451 = vmatmul.bf16.gmra.mxu0 %v247
  %v452 = vpop.f32.mrf.mxu0
  %v453 = vadd.f32 %v96, %v452
  %v454 = vpop.f32.mrf.mxu0
  %v455 = vadd.f32 %v96, %v454
  %456 = vmatmul.bf16.gmra.mxu0 %v248
  %v457 = vpop.f32.mrf.mxu0
  %v458 = vadd.f32 %v96, %v457
  %v459 = vpop.f32.mrf.mxu0
  %v460 = vadd.f32 %v96, %v459
  %461 = vmatmul.bf16.gmra.mxu0 %v249
  %v462 = vpop.f32.mrf.mxu0
  %v463 = vadd.f32 %v96, %v462
  %v464 = vpop.f32.mrf.mxu0
  %v465 = vadd.f32 %v96, %v464
  %466 = vmatmul.bf16.gmra.mxu0 %v250
  %v467 = vpop.f32.mrf.mxu0
  %v468 = vadd.f32 %v96, %v467
  %v469 = vpop.f32.mrf.mxu0
  %v470 = vadd.f32 %v96, %v469
  %471 = vmatmul.bf16.gmra.mxu0 %v251
  %v472 = vpop.f32.mrf.mxu0
  %v473 = vadd.f32 %v96, %v472
  %v474 = vpop.f32.mrf.mxu0
  %v475 = vadd.f32 %v96, %v474
  %476 = vmatmul.bf16.gmra.mxu0 %v252
  %v477 = vpop.f32.mrf.mxu0
  %v478 = vadd.f32 %v96, %v477
  %v479 = vpop.f32.mrf.mxu0
  %v480 = vadd.f32 %v96, %v479
  %481 = vmatmul.bf16.gmra.mxu0 %v253
  %v482 = vpop.f32.mrf.mxu0
  %v483 = vadd.f32 %v96, %v482
  %v484 = vpop.f32.mrf.mxu0
  %v485 = vadd.f32 %v96, %v484
  %486 = vmatmul.bf16.gmra.mxu0 %v254
  %v487 = vpop.f32.mrf.mxu0
  %v488 = vadd.f32 %v96, %v487
  %v489 = vpop.f32.mrf.mxu0
  %v490 = vadd.f32 %v96, %v489
  %491 = vmatmul.bf16.gmra.mxu0 %v255
  %v492 = vpop.f32.mrf.mxu0
  %v493 = vadd.f32 %v96, %v492
  %v494 = vpop.f32.mrf.mxu0
  %v495 = vadd.f32 %v96, %v494
  %496 = vmatmul.bf16.gmra.mxu0 %v256
  %v497 = vpop.f32.mrf.mxu0
  %v498 = vadd.f32 %v96, %v497
  %v499 = vpop.f32.mrf.mxu0
  %v500 = vadd.f32 %v96, %v499
  %501 = vmatmul.bf16.gmra.mxu0 %v257
  %v502 = vpop.f32.mrf.mxu0
  %v503 = vadd.f32 %v96, %v502
  %v504 = vpop.f32.mrf.mxu0
  %v505 = vadd.f32 %v96, %v504
  %506 = vdwg.mxu0
  %vm507 = vcmp.ge.f32.partialorder %v348, 0.0
  %vm508 = vcmp.ge.f32.partialorder %v350, 0.0
  %vm509 = vcmp.ge.f32.partialorder %v353, 0.0
  %vm510 = vcmp.ge.f32.partialorder %v355, 0.0
  %vm511 = vcmp.ge.f32.partialorder %v358, 0.0
  %vm512 = vcmp.ge.f32.partialorder %v360, 0.0
  %vm513 = vcmp.ge.f32.partialorder %v363, 0.0
  %vm514 = vcmp.ge.f32.partialorder %v365, 0.0
  %vm515 = vcmp.ge.f32.partialorder %v368, 0.0
  %vm516 = vcmp.ge.f32.partialorder %v370, 0.0
  %vm517 = vcmp.ge.f32.partialorder %v373, 0.0
  %vm518 = vcmp.ge.f32.partialorder %v375, 0.0
  %vm519 = vcmp.ge.f32.partialorder %v378, 0.0
  %vm520 = vcmp.ge.f32.partialorder %v380, 0.0
  %vm521 = vcmp.ge.f32.partialorder %v383, 0.0
  %vm522 = vcmp.ge.f32.partialorder %v385, 0.0
  %vm523 = vcmp.ge.f32.partialorder %v388, 0.0
  %vm524 = vcmp.ge.f32.partialorder %v390, 0.0
  %vm525 = vcmp.ge.f32.partialorder %v393, 0.0
  %vm526 = vcmp.ge.f32.partialorder %v395, 0.0
  %vm527 = vcmp.ge.f32.partialorder %v398, 0.0
  %vm528 = vcmp.ge.f32.partialorder %v400, 0.0
  %vm529 = vcmp.ge.f32.partialorder %v403, 0.0
  %vm530 = vcmp.ge.f32.partialorder %v405, 0.0
  %vm531 = vcmp.ge.f32.partialorder %v408, 0.0
  %vm532 = vcmp.ge.f32.partialorder %v410, 0.0
  %vm533 = vcmp.ge.f32.partialorder %v413, 0.0
  %vm534 = vcmp.ge.f32.partialorder %v415, 0.0
  %vm535 = vcmp.ge.f32.partialorder %v418, 0.0
  %vm536 = vcmp.ge.f32.partialorder %v420, 0.0
  %vm537 = vcmp.ge.f32.partialorder %v423, 0.0
  %vm538 = vcmp.ge.f32.partialorder %v425, 0.0
  %vm539 = vcmp.ge.f32.partialorder %v428, 0.0
  %vm540 = vcmp.ge.f32.partialorder %v430, 0.0
  %vm541 = vcmp.ge.f32.partialorder %v433, 0.0
  %vm542 = vcmp.ge.f32.partialorder %v435, 0.0
  %vm543 = vcmp.ge.f32.partialorder %v438, 0.0
  %vm544 = vcmp.ge.f32.partialorder %v440, 0.0
  %vm545 = vcmp.ge.f32.partialorder %v443, 0.0
  %vm546 = vcmp.ge.f32.partialorder %v445, 0.0
  %vm547 = vcmp.ge.f32.partialorder %v448, 0.0
  %vm548 = vcmp.ge.f32.partialorder %v450, 0.0
  %vm549 = vcmp.ge.f32.partialorder %v453, 0.0
  %vm550 = vcmp.ge.f32.partialorder %v455, 0.0
  %vm551 = vcmp.ge.f32.partialorder %v458, 0.0
  %vm552 = vcmp.ge.f32.partialorder %v460, 0.0
  %vm553 = vcmp.ge.f32.partialorder %v463, 0.0
  %vm554 = vcmp.ge.f32.partialorder %v465, 0.0
  %vm555 = vcmp.ge.f32.partialorder %v468, 0.0
  %vm556 = vcmp.ge.f32.partialorder %v470, 0.0
  %vm557 = vcmp.ge.f32.partialorder %v473, 0.0
  %vm558 = vcmp.ge.f32.partialorder %v475, 0.0
  %vm559 = vcmp.ge.f32.partialorder %v478, 0.0
  %vm560 = vcmp.ge.f32.partialorder %v480, 0.0
  %vm561 = vcmp.ge.f32.partialorder %v483, 0.0
  %vm562 = vcmp.ge.f32.partialorder %v485, 0.0
  %vm563 = vcmp.ge.f32.partialorder %v488, 0.0
  %vm564 = vcmp.ge.f32.partialorder %v490, 0.0
  %vm565 = vcmp.ge.f32.partialorder %v493, 0.0
  %vm566 = vcmp.ge.f32.partialorder %v495, 0.0
  %vm567 = vcmp.ge.f32.partialorder %v498, 0.0
  %vm568 = vcmp.ge.f32.partialorder %v500, 0.0
  %vm569 = vcmp.ge.f32.partialorder %v503, 0.0
  %vm570 = vcmp.ge.f32.partialorder %v505, 0.0
  %v571 = vmul.f32 %v348, 0.2
  %v572 = vmul.f32 %v350, 0.2
  %v573 = vmul.f32 %v353, 0.2
  %v574 = vmul.f32 %v355, 0.2
  %v575 = vmul.f32 %v358, 0.2
  %v576 = vmul.f32 %v360, 0.2
  %v577 = vmul.f32 %v363, 0.2
  %v578 = vmul.f32 %v365, 0.2
  %v579 = vmul.f32 %v368, 0.2
  %v580 = vmul.f32 %v370, 0.2
  %v581 = vmul.f32 %v373, 0.2
  %v582 = vmul.f32 %v375, 0.2
  %v583 = vmul.f32 %v378, 0.2
  %v584 = vmul.f32 %v380, 0.2
  %v585 = vmul.f32 %v383, 0.2
  %v586 = vmul.f32 %v385, 0.2
  %v587 = vmul.f32 %v388, 0.2
  %v588 = vmul.f32 %v390, 0.2
  %v589 = vmul.f32 %v393, 0.2
  %v590 = vmul.f32 %v395, 0.2
  %v591 = vmul.f32 %v398, 0.2
  %v592 = vmul.f32 %v400, 0.2
  %v593 = vmul.f32 %v403, 0.2
  %v594 = vmul.f32 %v405, 0.2
  %v595 = vmul.f32 %v408, 0.2
  %v596 = vmul.f32 %v410, 0.2
  %v597 = vmul.f32 %v413, 0.2
  %v598 = vmul.f32 %v415, 0.2
  %v599 = vmul.f32 %v418, 0.2
  %v600 = vmul.f32 %v420, 0.2
  %v601 = vmul.f32 %v423, 0.2
  %v602 = vmul.f32 %v425, 0.2
  %v603 = vmul.f32 %v428, 0.2
  %v604 = vmul.f32 %v430, 0.2
  %v605 = vmul.f32 %v433, 0.2
  %v606 = vmul.f32 %v435, 0.2
  %v607 = vmul.f32 %v438, 0.2
  %v608 = vmul.f32 %v440, 0.2
  %v609 = vmul.f32 %v443, 0.2
  %v610 = vmul.f32 %v445, 0.2
  %v611 = vmul.f32 %v448, 0.2
  %v612 = vmul.f32 %v450, 0.2
  %v613 = vmul.f32 %v453, 0.2
  %v614 = vmul.f32 %v455, 0.2
  %v615 = vmul.f32 %v458, 0.2
  %v616 = vmul.f32 %v460, 0.2
  %v617 = vmul.f32 %v463, 0.2
  %v618 = vmul.f32 %v465, 0.2
  %v619 = vmul.f32 %v468, 0.2
  %v620 = vmul.f32 %v470, 0.2
  %v621 = vmul.f32 %v473, 0.2
  %v622 = vmul.f32 %v475, 0.2
  %v623 = vmul.f32 %v478, 0.2
  %v624 = vmul.f32 %v480, 0.2
  %v625 = vmul.f32 %v483, 0.2
  %v626 = vmul.f32 %v485, 0.2
  %v627 = vmul.f32 %v488, 0.2
  %v628 = vmul.f32 %v490, 0.2
  %v629 = vmul.f32 %v493, 0.2
  %v630 = vmul.f32 %v495, 0.2
  %v631 = vmul.f32 %v498, 0.2
  %v632 = vmul.f32 %v500, 0.2
  %v633 = vmul.f32 %v503, 0.2
  %v634 = vmul.f32 %v505, 0.2
  %v635 = vsel %vm507, %v348, %v571
  %v636 = vsel %vm508, %v350, %v572
  %v637 = vsel %vm509, %v353, %v573
  %v638 = vsel %vm510, %v355, %v574
  %v639 = vsel %vm511, %v358, %v575
  %v640 = vsel %vm512, %v360, %v576
  %v641 = vsel %vm513, %v363, %v577
  %v642 = vsel %vm514, %v365, %v578
  %v643 = vsel %vm515, %v368, %v579
  %v644 = vsel %vm516, %v370, %v580
  %v645 = vsel %vm517, %v373, %v581
  %v646 = vsel %vm518, %v375, %v582
  %v647 = vsel %vm519, %v378, %v583
  %v648 = vsel %vm520, %v380, %v584
  %v649 = vsel %vm521, %v383, %v585
  %v650 = vsel %vm522, %v385, %v586
  %v651 = vsel %vm523, %v388, %v587
  %v652 = vsel %vm524, %v390, %v588
  %v653 = vsel %vm525, %v393, %v589
  %v654 = vsel %vm526, %v395, %v590
  %v655 = vsel %vm527, %v398, %v591
  %v656 = vsel %vm528, %v400, %v592
  %v657 = vsel %vm529, %v403, %v593
  %v658 = vsel %vm530, %v405, %v594
  %v659 = vsel %vm531, %v408, %v595
  %v660 = vsel %vm532, %v410, %v596
  %v661 = vsel %vm533, %v413, %v597
  %v662 = vsel %vm534, %v415, %v598
  %v663 = vsel %vm535, %v418, %v599
  %v664 = vsel %vm536, %v420, %v600
  %v665 = vsel %vm537, %v423, %v601
  %v666 = vsel %vm538, %v425, %v602
  %v667 = vsel %vm539, %v428, %v603
  %v668 = vsel %vm540, %v430, %v604
  %v669 = vsel %vm541, %v433, %v605
  %v670 = vsel %vm542, %v435, %v606
  %v671 = vsel %vm543, %v438, %v607
  %v672 = vsel %vm544, %v440, %v608
  %v673 = vsel %vm545, %v443, %v609
  %v674 = vsel %vm546, %v445, %v610
  %v675 = vsel %vm547, %v448, %v611
  %v676 = vsel %vm548, %v450, %v612
  %v677 = vsel %vm549, %v453, %v613
  %v678 = vsel %vm550, %v455, %v614
  %v679 = vsel %vm551, %v458, %v615
  %v680 = vsel %vm552, %v460, %v616
  %v681 = vsel %vm553, %v463, %v617
  %v682 = vsel %vm554, %v465, %v618
  %v683 = vsel %vm555, %v468, %v619
  %v684 = vsel %vm556, %v470, %v620
  %v685 = vsel %vm557, %v473, %v621
  %v686 = vsel %vm558, %v475, %v622
  %v687 = vsel %vm559, %v478, %v623
  %v688 = vsel %vm560, %v480, %v624
  %v689 = vsel %vm561, %v483, %v625
  %v690 = vsel %vm562, %v485, %v626
  %v691 = vsel %vm563, %v488, %v627
  %v692 = vsel %vm564, %v490, %v628
  %v693 = vsel %vm565, %v493, %v629
  %v694 = vsel %vm566, %v495, %v630
  %v695 = vsel %vm567, %v498, %v631
  %v696 = vsel %vm568, %v500, %v632
  %v697 = vsel %vm569, %v503, %v633
  %v698 = vsel %vm570, %v505, %v634
  %699 = vst [vmem:[%s3] sm:$0xff] %v635
  %700 = vst [vmem:[%s3 + $0x8] sm:$0xff] %v636
  %701 = vst [vmem:[%s3 + $0x10] sm:$0xff] %v637
  %702 = vst [vmem:[%s3 + $0x18] sm:$0xff] %v638
  %703 = vst [vmem:[%s3 + $0x20] sm:$0xff] %v639
  %704 = vst [vmem:[%s3 + $0x28] sm:$0xff] %v640
  %705 = vst [vmem:[%s3 + $0x30] sm:$0xff] %v641
  %706 = vst [vmem:[%s3 + $0x38] sm:$0xff] %v642
  %707 = vst [vmem:[%s3 + $0x40] sm:$0xff] %v643
  %708 = vst [vmem:[%s3 + $0x48] sm:$0xff] %v644
  %709 = vst [vmem:[%s3 + $0x50] sm:$0xff] %v645
  %710 = vst [vmem:[%s3 + $0x58] sm:$0xff] %v646
  %711 = vst [vmem:[%s3 + $0x60] sm:$0xff] %v647
  %712 = vst [vmem:[%s3 + $0x68] sm:$0xff] %v648
  %713 = vst [vmem:[%s3 + $0x70] sm:$0xff] %v649
  %714 = vst [vmem:[%s3 + $0x78] sm:$0xff] %v650
  %715 = vst [vmem:[%s3 + $0x80] sm:$0xff] %v651
  %716 = vst [vmem:[%s3 + $0x88] sm:$0xff] %v652
  %717 = vst [vmem:[%s3 + $0x90] sm:$0xff] %v653
  %718 = vst [vmem:[%s3 + $0x98] sm:$0xff] %v654
  %719 = vst [vmem:[%s3 + $0xa0] sm:$0xff] %v655
  %720 = vst [vmem:[%s3 + $0xa8] sm:$0xff] %v656
  %721 = vst [vmem:[%s3 + $0xb0] sm:$0xff] %v657
  %722 = vst [vmem:[%s3 + $0xb8] sm:$0xff] %v658
  %723 = vst [vmem:[%s3 + $0xc0] sm:$0xff] %v659
  %724 = vst [vmem:[%s3 + $0xc8] sm:$0xff] %v660
  %725 = vst [vmem:[%s3 + $0xd0] sm:$0xff] %v661
  %726 = vst [vmem:[%s3 + $0xd8] sm:$0xff] %v662
  %727 = vst [vmem:[%s3 + $0xe0] sm:$0xff] %v663
  %728 = vst [vmem:[%s3 + $0xe8] sm:$0xff] %v664
  %729 = vst [vmem:[%s3 + $0xf0] sm:$0xff] %v665
  %730 = vst [vmem:[%s3 + $0xf8] sm:$0xff] %v666
  %731 = vst [vmem:[%s3 + $0x100] sm:$0xff] %v667
  %732 = vst [vmem:[%s3 + $0x108] sm:$0xff] %v668
  %733 = vst [vmem:[%s3 + $0x110] sm:$0xff] %v669
  %734 = vst [vmem:[%s3 + $0x118] sm:$0xff] %v670
  %735 = vst [vmem:[%s3 + $0x120] sm:$0xff] %v671
  %736 = vst [vmem:[%s3 + $0x128] sm:$0xff] %v672
  %737 = vst [vmem:[%s3 + $0x130] sm:$0xff] %v673
  %738 = vst [vmem:[%s3 + $0x138] sm:$0xff] %v674
  %739 = vst [vmem:[%s3 + $0x140] sm:$0xff] %v675
  %740 = vst [vmem:[%s3 + $0x148] sm:$0xff] %v676
  %741 = vst [vmem:[%s3 + $0x150] sm:$0xff] %v677
  %742 = vst [vmem:[%s3 + $0x158] sm:$0xff] %v678
  %743 = vst [vmem:[%s3 + $0x160] sm:$0xff] %v679
  %744 = vst [vmem:[%s3 + $0x168] sm:$0xff] %v680
  %745 = vst [vmem:[%s3 + $0x170] sm:$0xff] %v681
  %746 = vst [vmem:[%s3 + $0x178] sm:$0xff] %v682
  %747 = vst [vmem:[%s3 + $0x180] sm:$0xff] %v683
  %748 = vst [vmem:[%s3 + $0x188] sm:$0xff] %v684
  %749 = vst [vmem:[%s3 + $0x190] sm:$0xff] %v685
  %750 = vst [vmem:[%s3 + $0x198] sm:$0xff] %v686
  %751 = vst [vmem:[%s3 + $0x1a0] sm:$0xff] %v687
  %752 = vst [vmem:[%s3 + $0x1a8] sm:$0xff] %v688
  %753 = vst [vmem:[%s3 + $0x1b0] sm:$0xff] %v689
  %754 = vst [vmem:[%s3 + $0x1b8] sm:$0xff] %v690
  %755 = vst [vmem:[%s3 + $0x1c0] sm:$0xff] %v691
  %756 = vst [vmem:[%s3 + $0x1c8] sm:$0xff] %v692
  %757 = vst [vmem:[%s3 + $0x1d0] sm:$0xff] %v693
  %758 = vst [vmem:[%s3 + $0x1d8] sm:$0xff] %v694
  %759 = vst [vmem:[%s3 + $0x1e0] sm:$0xff] %v695
  %760 = vst [vmem:[%s3 + $0x1e8] sm:$0xff] %v696
  %761 = vst [vmem:[%s3 + $0x1f0] sm:$0xff] %v697
  %762 = vst [vmem:[%s3 + $0x1f8] sm:$0xff] %v698
  // Predicated region
  $region14: #{_lambda_.8} parent=0 // pred_check
    _
  $region15: #{_lambda_.8} parent=0 // pred_check_branch
    %764 = sbr.rel (0) target = $region17
  $region16: #{_lambda_.8} parent=0 // pred_region
    _
  $region17: #{_lambda_.8} parent=0 // pred_fallthru
    _
  // Predicated region
  $region18: #{_lambda_.8} parent=0 // pred_check
    _
  $region19: #{_lambda_.8} parent=0 // pred_check_branch
    %766 = sbr.rel (0) target = $region21
  $region20: #{_lambda_.8} parent=0 // pred_region
    _
  $region21: #{_lambda_.8} parent=0 // pred_fallthru
    _

// kernel: _lambda_.10
$region0: #{_lambda_.10}
  #allocation0 [shape = 'u32[]', space=smem, size = 0x4, offset = 0x4, fixed_abs, tag = 'smem constant byte address 0x4 - core index']
  #allocation1 [shape = 'u32[72,128]{1,0:T(1,128)}', space=vmem, size = 0x9000, scoped, tag = 'internal scratch']
  %s0 = inlined_call_operand.vmem [shape: f32[128,128], index: 0, kind: input, shape index: {}]
  %s1 = inlined_call_operand.vmem [shape: f32[1,128], index: 1, kind: input, shape index: {}]
  %s2 = inlined_call_operand.vmem [shape: f32[1,128], index: 2, kind: input, shape index: {}]
  %s3 = inlined_call_operand.vmem [shape: f32[1,128], index: 3, kind: input, shape index: {}]
  %s4 = inlined_call_operand.vmem [shape: f32[1,128], index: 4, kind: input, shape index: {}]
  %s5 = inlined_call_operand.vmem [shape: f32[128,128], index: 5, kind: output, shape index: {}]
  %s6 = sld [smem:[#allocation0]]
  $region30: #{_lambda_.10} parent=0
    _
  %s8 = ssub.s32 1, %s6
  %s9 = scalar_select 0, %s8, %s6
  // Predicated region
  $region2: #{_lambda_.10} parent=0 // pred_check
    _
  $region3: #{_lambda_.10} parent=0 // pred_check_branch
    %11 = sbr.rel (0) target = $region5
  $region4: #{_lambda_.10} parent=0 // pred_region
    _
  $region5: #{_lambda_.10} parent=0 // pred_fallthru
    _
  // Predicated region
  $region6: #{_lambda_.10} parent=0 // pred_check
    _
  $region7: #{_lambda_.10} parent=0 // pred_check_branch
    %13 = sbr.rel (0) target = $region9
  $region8: #{_lambda_.10} parent=0 // pred_region
    _
  $region9: #{_lambda_.10} parent=0 // pred_fallthru
    _
  // Predicated region
  $region10: #{_lambda_.10} parent=0 // pred_check
    _
  $region11: #{_lambda_.10} parent=0 // pred_check_branch
    %15 = sbr.rel (0) target = $region13
  $region12: #{_lambda_.10} parent=0 // pred_region
    _
  $region13: #{_lambda_.10} parent=0 // pred_fallthru
    _
  // Predicated region
  $region14: #{_lambda_.10} parent=0 // pred_check
    _
  $region15: #{_lambda_.10} parent=0 // pred_check_branch
    %17 = sbr.rel (0) target = $region17
  $region16: #{_lambda_.10} parent=0 // pred_region
    _
  $region17: #{_lambda_.10} parent=0 // pred_fallthru
    _
  // Predicated region
  $region18: #{_lambda_.10} parent=0 // pred_check
    _
  $region19: #{_lambda_.10} parent=0 // pred_check_branch
    %19 = sbr.rel (0) target = $region21
  $region20: #{_lambda_.10} parent=0 // pred_region
    _
  $region21: #{_lambda_.10} parent=0 // pred_fallthru
    _
  %v20 = vld [vmem:[%s1] sm:$0x1]
  %v21 = vmul.f32 %v20, 0.0078125
  %v22 = vld [vmem:[%s2] sm:$0x1]
  %v23 = vmul.f32 %v22, 0.0078125
  %v24 = vmul.f32 %v21, %v21
  %v25 = vsub.f32 %v23, %v24
  %v26 = vmax.f32 %v25, 0.0
  %v27 = vld [vmem:[%s0] sm:$0xff]
  %v28 = vld [vmem:[%s0 + $0x8] sm:$0xff]
  %v29 = vld [vmem:[%s0 + $0x10] sm:$0xff]
  %v30 = vld [vmem:[%s0 + $0x18] sm:$0xff]
  %v31 = vld [vmem:[%s0 + $0x20] sm:$0xff]
  %v32 = vld [vmem:[%s0 + $0x28] sm:$0xff]
  %v33 = vld [vmem:[%s0 + $0x30] sm:$0xff]
  %v34 = vld [vmem:[%s0 + $0x38] sm:$0xff]
  %v35 = vld [vmem:[%s0 + $0x40] sm:$0xff]
  %v36 = vld [vmem:[%s0 + $0x48] sm:$0xff]
  %v37 = vld [vmem:[%s0 + $0x50] sm:$0xff]
  %v38 = vld [vmem:[%s0 + $0x58] sm:$0xff]
  %v39 = vld [vmem:[%s0 + $0x60] sm:$0xff]
  %v40 = vld [vmem:[%s0 + $0x68] sm:$0xff]
  %v41 = vld [vmem:[%s0 + $0x70] sm:$0xff]
  %v42 = vld [vmem:[%s0 + $0x78] sm:$0xff]
  %v44 = vperm.slane %v21, 0
  %v46 = vsub.f32 %v27, %v44
  %v47 = vsub.f32 %v28, %v44
  %v48 = vsub.f32 %v29, %v44
  %v49 = vsub.f32 %v30, %v44
  %v50 = vsub.f32 %v31, %v44
  %v51 = vsub.f32 %v32, %v44
  %v52 = vsub.f32 %v33, %v44
  %v53 = vsub.f32 %v34, %v44
  %v54 = vsub.f32 %v35, %v44
  %v55 = vsub.f32 %v36, %v44
  %v56 = vsub.f32 %v37, %v44
  %v57 = vsub.f32 %v38, %v44
  %v58 = vsub.f32 %v39, %v44
  %v59 = vsub.f32 %v40, %v44
  %v60 = vsub.f32 %v41, %v44
  %v61 = vsub.f32 %v42, %v44
  %v62 = vadd.f32 %v26, 1e-05
  %v63 = vrsqrt.pop %v62
  %v64 = vmul.f32 %v63, %v62
  %v65 = vmul.f32 %v64, %v63
  %v66 = vmul.f32 0.5, %v65
  %v67 = vsub.f32 1.5, %v66
  %v68 = vmul.f32 %v63, %v67
  %vm69 = vweird.f32 %v62
  %vm70 = vweird.f32 %v63
  %vm71 = vmor %vm69, %vm70
  %v72 = vsel %vm71, %v63, %v68
  %v74 = vperm.slane %v72, 0
  %v76 = vmul.f32 %v46, %v74
  %v77 = vmul.f32 %v47, %v74
  %v78 = vmul.f32 %v48, %v74
  %v79 = vmul.f32 %v49, %v74
  %v80 = vmul.f32 %v50, %v74
  %v81 = vmul.f32 %v51, %v74
  %v82 = vmul.f32 %v52, %v74
  %v83 = vmul.f32 %v53, %v74
  %v84 = vmul.f32 %v54, %v74
  %v85 = vmul.f32 %v55, %v74
  %v86 = vmul.f32 %v56, %v74
  %v87 = vmul.f32 %v57, %v74
  %v88 = vmul.f32 %v58, %v74
  %v89 = vmul.f32 %v59, %v74
  %v90 = vmul.f32 %v60, %v74
  %v91 = vmul.f32 %v61, %v74
  %v92 = vld [vmem:[%s3] sm:$0x1]
  %v94 = vperm.slane %v92, 0
  %v96 = vmul.f32 %v76, %v94
  %v97 = vmul.f32 %v77, %v94
  %v98 = vmul.f32 %v78, %v94
  %v99 = vmul.f32 %v79, %v94
  %v100 = vmul.f32 %v80, %v94
  %v101 = vmul.f32 %v81, %v94
  %v102 = vmul.f32 %v82, %v94
  %v103 = vmul.f32 %v83, %v94
  %v104 = vmul.f32 %v84, %v94
  %v105 = vmul.f32 %v85, %v94
  %v106 = vmul.f32 %v86, %v94
  %v107 = vmul.f32 %v87, %v94
  %v108 = vmul.f32 %v88, %v94
  %v109 = vmul.f32 %v89, %v94
  %v110 = vmul.f32 %v90, %v94
  %v111 = vmul.f32 %v91, %v94
  %v112 = vld [vmem:[%s4] sm:$0x1]
  %v114 = vperm.slane %v112, 0
  %v116 = vadd.f32 %v96, %v114
  %v117 = vadd.f32 %v97, %v114
  %v118 = vadd.f32 %v98, %v114
  %v119 = vadd.f32 %v99, %v114
  %v120 = vadd.f32 %v100, %v114
  %v121 = vadd.f32 %v101, %v114
  %v122 = vadd.f32 %v102, %v114
  %v123 = vadd.f32 %v103, %v114
  %v124 = vadd.f32 %v104, %v114
  %v125 = vadd.f32 %v105, %v114
  %v126 = vadd.f32 %v106, %v114
  %v127 = vadd.f32 %v107, %v114
  %v128 = vadd.f32 %v108, %v114
  %v129 = vadd.f32 %v109, %v114
  %v130 = vadd.f32 %v110, %v114
  %v131 = vadd.f32 %v111, %v114
  %vm132 = vcmp.ge.f32.partialorder %v116, 0.0
  %vm133 = vcmp.ge.f32.partialorder %v117, 0.0
  %vm134 = vcmp.ge.f32.partialorder %v118, 0.0
  %vm135 = vcmp.ge.f32.partialorder %v119, 0.0
  %vm136 = vcmp.ge.f32.partialorder %v120, 0.0
  %vm137 = vcmp.ge.f32.partialorder %v121, 0.0
  %vm138 = vcmp.ge.f32.partialorder %v122, 0.0
  %vm139 = vcmp.ge.f32.partialorder %v123, 0.0
  %vm140 = vcmp.ge.f32.partialorder %v124, 0.0
  %vm141 = vcmp.ge.f32.partialorder %v125, 0.0
  %vm142 = vcmp.ge.f32.partialorder %v126, 0.0
  %vm143 = vcmp.ge.f32.partialorder %v127, 0.0
  %vm144 = vcmp.ge.f32.partialorder %v128, 0.0
  %vm145 = vcmp.ge.f32.partialorder %v129, 0.0
  %vm146 = vcmp.ge.f32.partialorder %v130, 0.0
  %vm147 = vcmp.ge.f32.partialorder %v131, 0.0
  %v148 = vmul.f32 %v116, 0.2
  %v149 = vmul.f32 %v117, 0.2
  %v150 = vmul.f32 %v118, 0.2
  %v151 = vmul.f32 %v119, 0.2
  %v152 = vmul.f32 %v120, 0.2
  %v153 = vmul.f32 %v121, 0.2
  %v154 = vmul.f32 %v122, 0.2
  %v155 = vmul.f32 %v123, 0.2
  %v156 = vmul.f32 %v124, 0.2
  %v157 = vmul.f32 %v125, 0.2
  %v158 = vmul.f32 %v126, 0.2
  %v159 = vmul.f32 %v127, 0.2
  %v160 = vmul.f32 %v128, 0.2
  %v161 = vmul.f32 %v129, 0.2
  %v162 = vmul.f32 %v130, 0.2
  %v163 = vmul.f32 %v131, 0.2
  %v164 = vsel %vm132, %v116, %v148
  %v165 = vsel %vm133, %v117, %v149
  %v166 = vsel %vm134, %v118, %v150
  %v167 = vsel %vm135, %v119, %v151
  %v168 = vsel %vm136, %v120, %v152
  %v169 = vsel %vm137, %v121, %v153
  %v170 = vsel %vm138, %v122, %v154
  %v171 = vsel %vm139, %v123, %v155
  %v172 = vsel %vm140, %v124, %v156
  %v173 = vsel %vm141, %v125, %v157
  %v174 = vsel %vm142, %v126, %v158
  %v175 = vsel %vm143, %v127, %v159
  %v176 = vsel %vm144, %v128, %v160
  %v177 = vsel %vm145, %v129, %v161
  %v178 = vsel %vm146, %v130, %v162
  %v179 = vsel %vm147, %v131, %v163
  %180 = vst [vmem:[%s5] sm:$0xff] %v164
  %181 = vst [vmem:[%s5 + $0x8] sm:$0xff] %v165
  %182 = vst [vmem:[%s5 + $0x10] sm:$0xff] %v166
  %183 = vst [vmem:[%s5 + $0x18] sm:$0xff] %v167
  %184 = vst [vmem:[%s5 + $0x20] sm:$0xff] %v168
  %185 = vst [vmem:[%s5 + $0x28] sm:$0xff] %v169
  %186 = vst [vmem:[%s5 + $0x30] sm:$0xff] %v170
  %187 = vst [vmem:[%s5 + $0x38] sm:$0xff] %v171
  %188 = vst [vmem:[%s5 + $0x40] sm:$0xff] %v172
  %189 = vst [vmem:[%s5 + $0x48] sm:$0xff] %v173
  %190 = vst [vmem:[%s5 + $0x50] sm:$0xff] %v174
  %191 = vst [vmem:[%s5 + $0x58] sm:$0xff] %v175
  %192 = vst [vmem:[%s5 + $0x60] sm:$0xff] %v176
  %193 = vst [vmem:[%s5 + $0x68] sm:$0xff] %v177
  %194 = vst [vmem:[%s5 + $0x70] sm:$0xff] %v178
  %195 = vst [vmem:[%s5 + $0x78] sm:$0xff] %v179
  // Predicated region
  $region22: #{_lambda_.10} parent=0 // pred_check
    _
  $region23: #{_lambda_.10} parent=0 // pred_check_branch
    %197 = sbr.rel (0) target = $region25
  $region24: #{_lambda_.10} parent=0 // pred_region
    _
  $region25: #{_lambda_.10} parent=0 // pred_fallthru
    _
  // Predicated region
  $region26: #{_lambda_.10} parent=0 // pred_check
    _
  $region27: #{_lambda_.10} parent=0 // pred_check_branch
    %199 = sbr.rel (0) target = $region29
  $region28: #{_lambda_.10} parent=0 // pred_region
    _
  $region29: #{_lambda_.10} parent=0 // pred_fallthru
    _

// kernel: _lambda_.9
$region0: #{_lambda_.9}
  #allocation0 [shape = 'u32[]', space=smem, size = 0x4, offset = 0x4, fixed_abs, tag = 'smem constant byte address 0x4 - core index']
  #allocation1 [shape = 'u32[72,128]{1,0:T(1,128)}', space=vmem, size = 0x9000, scoped, tag = 'internal scratch']
  %s0 = inlined_call_operand.vmem [shape: bf16[128,1024], index: 0, kind: input, shape index: {}]
  %s1 = inlined_call_operand.vmem [shape: bf16[1024,128], index: 1, kind: input, shape index: {}]
  %s2 = inlined_call_operand.vmem [shape: f32[1,128], index: 2, kind: input, shape index: {}]
  %s3 = inlined_call_operand.vmem [shape: f32[128,128], index: 3, kind: output, shape index: {0}]
  %s4 = inlined_call_operand.vmem [shape: f32[1,128], index: 4, kind: output, shape index: {1}]
  %s5 = inlined_call_operand.vmem [shape: f32[1,128], index: 5, kind: output, shape index: {2}]
  %6 = xla_tuple %s3, %s4, %s5
  %s7 = sld [smem:[#allocation0]]
  $region42: #{_lambda_.9} parent=0
    _
  %s9 = ssub.s32 1, %s7
  %s10 = scalar_select 0, %s9, %s7
  // Predicated region
  $region2: #{_lambda_.9} parent=0 // pred_check
    _
  $region3: #{_lambda_.9} parent=0 // pred_check_branch
    %12 = sbr.rel (0) target = $region5
  $region4: #{_lambda_.9} parent=0 // pred_region
    _
  $region5: #{_lambda_.9} parent=0 // pred_fallthru
    _
  // Predicated region
  $region6: #{_lambda_.9} parent=0 // pred_check
    _
  $region7: #{_lambda_.9} parent=0 // pred_check_branch
    %14 = sbr.rel (0) target = $region9
  $region8: #{_lambda_.9} parent=0 // pred_region
    _
  $region9: #{_lambda_.9} parent=0 // pred_fallthru
    _
  // Predicated region
  $region10: #{_lambda_.9} parent=0 // pred_check
    _
  $region11: #{_lambda_.9} parent=0 // pred_check_branch
    %16 = sbr.rel (0) target = $region13
  $region12: #{_lambda_.9} parent=0 // pred_region
    _
  $region13: #{_lambda_.9} parent=0 // pred_fallthru
    _
  %p17 = scmp.eq.s32.totalorder 0, 0
  // Predicated region
  $region14: #{_lambda_.9} parent=0 // pred_check
    %p18 = pneg %p17
  $region15: #{_lambda_.9} parent=0 // pred_check_branch
    %20 = sbr.rel (%p18) target = $region17
  $region16: #{_lambda_.9} parent=0 // pred_region
    %21 = vst [vmem:[%s4] sm:$0x1] 0.0
    %22 = vst [vmem:[%s5] sm:$0x1] 0.0
  $region17: #{_lambda_.9} parent=0 // pred_fallthru
    _
  %v23 = vld [vmem:[%s0] sm:$0xff]
  %v24 = vld [vmem:[%s0 + $0x8] sm:$0xff]
  %v25 = vld [vmem:[%s0 + $0x10] sm:$0xff]
  %v26 = vld [vmem:[%s0 + $0x18] sm:$0xff]
  %v27 = vld [vmem:[%s0 + $0x20] sm:$0xff]
  %v28 = vld [vmem:[%s0 + $0x28] sm:$0xff]
  %v29 = vld [vmem:[%s0 + $0x30] sm:$0xff]
  %v30 = vld [vmem:[%s0 + $0x38] sm:$0xff]
  %v31 = vld [vmem:[%s0 + $0x40] sm:$0xff]
  %v32 = vld [vmem:[%s0 + $0x48] sm:$0xff]
  %v33 = vld [vmem:[%s0 + $0x50] sm:$0xff]
  %v34 = vld [vmem:[%s0 + $0x58] sm:$0xff]
  %v35 = vld [vmem:[%s0 + $0x60] sm:$0xff]
  %v36 = vld [vmem:[%s0 + $0x68] sm:$0xff]
  %v37 = vld [vmem:[%s0 + $0x70] sm:$0xff]
  %v38 = vld [vmem:[%s0 + $0x78] sm:$0xff]
  %v39 = vld [vmem:[%s0 + $0x80] sm:$0xff]
  %v40 = vld [vmem:[%s0 + $0x88] sm:$0xff]
  %v41 = vld [vmem:[%s0 + $0x90] sm:$0xff]
  %v42 = vld [vmem:[%s0 + $0x98] sm:$0xff]
  %v43 = vld [vmem:[%s0 + $0xa0] sm:$0xff]
  %v44 = vld [vmem:[%s0 + $0xa8] sm:$0xff]
  %v45 = vld [vmem:[%s0 + $0xb0] sm:$0xff]
  %v46 = vld [vmem:[%s0 + $0xb8] sm:$0xff]
  %v47 = vld [vmem:[%s0 + $0xc0] sm:$0xff]
  %v48 = vld [vmem:[%s0 + $0xc8] sm:$0xff]
  %v49 = vld [vmem:[%s0 + $0xd0] sm:$0xff]
  %v50 = vld [vmem:[%s0 + $0xd8] sm:$0xff]
  %v51 = vld [vmem:[%s0 + $0xe0] sm:$0xff]
  %v52 = vld [vmem:[%s0 + $0xe8] sm:$0xff]
  %v53 = vld [vmem:[%s0 + $0xf0] sm:$0xff]
  %v54 = vld [vmem:[%s0 + $0xf8] sm:$0xff]
  %v55 = vld [vmem:[%s0 + $0x100] sm:$0xff]
  %v56 = vld [vmem:[%s0 + $0x108] sm:$0xff]
  %v57 = vld [vmem:[%s0 + $0x110] sm:$0xff]
  %v58 = vld [vmem:[%s0 + $0x118] sm:$0xff]
  %v59 = vld [vmem:[%s0 + $0x120] sm:$0xff]
  %v60 = vld [vmem:[%s0 + $0x128] sm:$0xff]
  %v61 = vld [vmem:[%s0 + $0x130] sm:$0xff]
  %v62 = vld [vmem:[%s0 + $0x138] sm:$0xff]
  %v63 = vld [vmem:[%s0 + $0x140] sm:$0xff]
  %v64 = vld [vmem:[%s0 + $0x148] sm:$0xff]
  %v65 = vld [vmem:[%s0 + $0x150] sm:$0xff]
  %v66 = vld [vmem:[%s0 + $0x158] sm:$0xff]
  %v67 = vld [vmem:[%s0 + $0x160] sm:$0xff]
  %v68 = vld [vmem:[%s0 + $0x168] sm:$0xff]
  %v69 = vld [vmem:[%s0 + $0x170] sm:$0xff]
  %v70 = vld [vmem:[%s0 + $0x178] sm:$0xff]
  %v71 = vld [vmem:[%s0 + $0x180] sm:$0xff]
  %v72 = vld [vmem:[%s0 + $0x188] sm:$0xff]
  %v73 = vld [vmem:[%s0 + $0x190] sm:$0xff]
  %v74 = vld [vmem:[%s0 + $0x198] sm:$0xff]
  %v75 = vld [vmem:[%s0 + $0x1a0] sm:$0xff]
  %v76 = vld [vmem:[%s0 + $0x1a8] sm:$0xff]
  %v77 = vld [vmem:[%s0 + $0x1b0] sm:$0xff]
  %v78 = vld [vmem:[%s0 + $0x1b8] sm:$0xff]
  %v79 = vld [vmem:[%s0 + $0x1c0] sm:$0xff]
  %v80 = vld [vmem:[%s0 + $0x1c8] sm:$0xff]
  %v81 = vld [vmem:[%s0 + $0x1d0] sm:$0xff]
  %v82 = vld [vmem:[%s0 + $0x1d8] sm:$0xff]
  %v83 = vld [vmem:[%s0 + $0x1e0] sm:$0xff]
  %v84 = vld [vmem:[%s0 + $0x1e8] sm:$0xff]
  %v85 = vld [vmem:[%s0 + $0x1f0] sm:$0xff]
  %v86 = vld [vmem:[%s0 + $0x1f8] sm:$0xff]
  %v87 = vld [vmem:[%s1] sm:$0xf]
  %v88 = vld [vmem:[%s1 + $0x4] sm:$0xf]
  %v89 = vld [vmem:[%s1 + $0x8] sm:$0xf]
  %v90 = vld [vmem:[%s1 + $0xc] sm:$0xf]
  %v91 = vld [vmem:[%s1 + $0x10] sm:$0xf]
  %v92 = vld [vmem:[%s1 + $0x14] sm:$0xf]
  %v93 = vld [vmem:[%s1 + $0x18] sm:$0xf]
  %v94 = vld [vmem:[%s1 + $0x1c] sm:$0xf]
  %v95 = vld [vmem:[%s1 + $0x20] sm:$0xf]
  %v96 = vld [vmem:[%s1 + $0x24] sm:$0xf]
  %v97 = vld [vmem:[%s1 + $0x28] sm:$0xf]
  %v98 = vld [vmem:[%s1 + $0x2c] sm:$0xf]
  %v99 = vld [vmem:[%s1 + $0x30] sm:$0xf]
  %v100 = vld [vmem:[%s1 + $0x34] sm:$0xf]
  %v101 = vld [vmem:[%s1 + $0x38] sm:$0xf]
  %v102 = vld [vmem:[%s1 + $0x3c] sm:$0xf]
  %v103 = vld [vmem:[%s1 + $0x40] sm:$0xf]
  %v104 = vld [vmem:[%s1 + $0x44] sm:$0xf]
  %v105 = vld [vmem:[%s1 + $0x48] sm:$0xf]
  %v106 = vld [vmem:[%s1 + $0x4c] sm:$0xf]
  %v107 = vld [vmem:[%s1 + $0x50] sm:$0xf]
  %v108 = vld [vmem:[%s1 + $0x54] sm:$0xf]
  %v109 = vld [vmem:[%s1 + $0x58] sm:$0xf]
  %v110 = vld [vmem:[%s1 + $0x5c] sm:$0xf]
  %v111 = vld [vmem:[%s1 + $0x60] sm:$0xf]
  %v112 = vld [vmem:[%s1 + $0x64] sm:$0xf]
  %v113 = vld [vmem:[%s1 + $0x68] sm:$0xf]
  %v114 = vld [vmem:[%s1 + $0x6c] sm:$0xf]
  %v115 = vld [vmem:[%s1 + $0x70] sm:$0xf]
  %v116 = vld [vmem:[%s1 + $0x74] sm:$0xf]
  %v117 = vld [vmem:[%s1 + $0x78] sm:$0xf]
  %v118 = vld [vmem:[%s1 + $0x7c] sm:$0xf]
  %v119 = vld [vmem:[%s1 + $0x80] sm:$0xf]
  %v120 = vld [vmem:[%s1 + $0x84] sm:$0xf]
  %v121 = vld [vmem:[%s1 + $0x88] sm:$0xf]
  %v122 = vld [vmem:[%s1 + $0x8c] sm:$0xf]
  %v123 = vld [vmem:[%s1 + $0x90] sm:$0xf]
  %v124 = vld [vmem:[%s1 + $0x94] sm:$0xf]
  %v125 = vld [vmem:[%s1 + $0x98] sm:$0xf]
  %v126 = vld [vmem:[%s1 + $0x9c] sm:$0xf]
  %v127 = vld [vmem:[%s1 + $0xa0] sm:$0xf]
  %v128 = vld [vmem:[%s1 + $0xa4] sm:$0xf]
  %v129 = vld [vmem:[%s1 + $0xa8] sm:$0xf]
  %v130 = vld [vmem:[%s1 + $0xac] sm:$0xf]
  %v131 = vld [vmem:[%s1 + $0xb0] sm:$0xf]
  %v132 = vld [vmem:[%s1 + $0xb4] sm:$0xf]
  %v133 = vld [vmem:[%s1 + $0xb8] sm:$0xf]
  %v134 = vld [vmem:[%s1 + $0xbc] sm:$0xf]
  %v135 = vld [vmem:[%s1 + $0xc0] sm:$0xf]
  %v136 = vld [vmem:[%s1 + $0xc4] sm:$0xf]
  %v137 = vld [vmem:[%s1 + $0xc8] sm:$0xf]
  %v138 = vld [vmem:[%s1 + $0xcc] sm:$0xf]
  %v139 = vld [vmem:[%s1 + $0xd0] sm:$0xf]
  %v140 = vld [vmem:[%s1 + $0xd4] sm:$0xf]
  %v141 = vld [vmem:[%s1 + $0xd8] sm:$0xf]
  %v142 = vld [vmem:[%s1 + $0xdc] sm:$0xf]
  %v143 = vld [vmem:[%s1 + $0xe0] sm:$0xf]
  %v144 = vld [vmem:[%s1 + $0xe4] sm:$0xf]
  %v145 = vld [vmem:[%s1 + $0xe8] sm:$0xf]
  %v146 = vld [vmem:[%s1 + $0xec] sm:$0xf]
  %v147 = vld [vmem:[%s1 + $0xf0] sm:$0xf]
  %v148 = vld [vmem:[%s1 + $0xf4] sm:$0xf]
  %v149 = vld [vmem:[%s1 + $0xf8] sm:$0xf]
  %v150 = vld [vmem:[%s1 + $0xfc] sm:$0xf]
  %v151 = vld [vmem:[%s1 + $0x100] sm:$0xf]
  %v152 = vld [vmem:[%s1 + $0x104] sm:$0xf]
  %v153 = vld [vmem:[%s1 + $0x108] sm:$0xf]
  %v154 = vld [vmem:[%s1 + $0x10c] sm:$0xf]
  %v155 = vld [vmem:[%s1 + $0x110] sm:$0xf]
  %v156 = vld [vmem:[%s1 + $0x114] sm:$0xf]
  %v157 = vld [vmem:[%s1 + $0x118] sm:$0xf]
  %v158 = vld [vmem:[%s1 + $0x11c] sm:$0xf]
  %v159 = vld [vmem:[%s1 + $0x120] sm:$0xf]
  %v160 = vld [vmem:[%s1 + $0x124] sm:$0xf]
  %v161 = vld [vmem:[%s1 + $0x128] sm:$0xf]
  %v162 = vld [vmem:[%s1 + $0x12c] sm:$0xf]
  %v163 = vld [vmem:[%s1 + $0x130] sm:$0xf]
  %v164 = vld [vmem:[%s1 + $0x134] sm:$0xf]
  %v165 = vld [vmem:[%s1 + $0x138] sm:$0xf]
  %v166 = vld [vmem:[%s1 + $0x13c] sm:$0xf]
  %v167 = vld [vmem:[%s1 + $0x140] sm:$0xf]
  %v168 = vld [vmem:[%s1 + $0x144] sm:$0xf]
  %v169 = vld [vmem:[%s1 + $0x148] sm:$0xf]
  %v170 = vld [vmem:[%s1 + $0x14c] sm:$0xf]
  %v171 = vld [vmem:[%s1 + $0x150] sm:$0xf]
  %v172 = vld [vmem:[%s1 + $0x154] sm:$0xf]
  %v173 = vld [vmem:[%s1 + $0x158] sm:$0xf]
  %v174 = vld [vmem:[%s1 + $0x15c] sm:$0xf]
  %v175 = vld [vmem:[%s1 + $0x160] sm:$0xf]
  %v176 = vld [vmem:[%s1 + $0x164] sm:$0xf]
  %v177 = vld [vmem:[%s1 + $0x168] sm:$0xf]
  %v178 = vld [vmem:[%s1 + $0x16c] sm:$0xf]
  %v179 = vld [vmem:[%s1 + $0x170] sm:$0xf]
  %v180 = vld [vmem:[%s1 + $0x174] sm:$0xf]
  %v181 = vld [vmem:[%s1 + $0x178] sm:$0xf]
  %v182 = vld [vmem:[%s1 + $0x17c] sm:$0xf]
  %v183 = vld [vmem:[%s1 + $0x180] sm:$0xf]
  %v184 = vld [vmem:[%s1 + $0x184] sm:$0xf]
  %v185 = vld [vmem:[%s1 + $0x188] sm:$0xf]
  %v186 = vld [vmem:[%s1 + $0x18c] sm:$0xf]
  %v187 = vld [vmem:[%s1 + $0x190] sm:$0xf]
  %v188 = vld [vmem:[%s1 + $0x194] sm:$0xf]
  %v189 = vld [vmem:[%s1 + $0x198] sm:$0xf]
  %v190 = vld [vmem:[%s1 + $0x19c] sm:$0xf]
  %v191 = vld [vmem:[%s1 + $0x1a0] sm:$0xf]
  %v192 = vld [vmem:[%s1 + $0x1a4] sm:$0xf]
  %v193 = vld [vmem:[%s1 + $0x1a8] sm:$0xf]
  %v194 = vld [vmem:[%s1 + $0x1ac] sm:$0xf]
  %v195 = vld [vmem:[%s1 + $0x1b0] sm:$0xf]
  %v196 = vld [vmem:[%s1 + $0x1b4] sm:$0xf]
  %v197 = vld [vmem:[%s1 + $0x1b8] sm:$0xf]
  %v198 = vld [vmem:[%s1 + $0x1bc] sm:$0xf]
  %v199 = vld [vmem:[%s1 + $0x1c0] sm:$0xf]
  %v200 = vld [vmem:[%s1 + $0x1c4] sm:$0xf]
  %v201 = vld [vmem:[%s1 + $0x1c8] sm:$0xf]
  %v202 = vld [vmem:[%s1 + $0x1cc] sm:$0xf]
  %v203 = vld [vmem:[%s1 + $0x1d0] sm:$0xf]
  %v204 = vld [vmem:[%s1 + $0x1d4] sm:$0xf]
  %v205 = vld [vmem:[%s1 + $0x1d8] sm:$0xf]
  %v206 = vld [vmem:[%s1 + $0x1dc] sm:$0xf]
  %v207 = vld [vmem:[%s1 + $0x1e0] sm:$0xf]
  %v208 = vld [vmem:[%s1 + $0x1e4] sm:$0xf]
  %v209 = vld [vmem:[%s1 + $0x1e8] sm:$0xf]
  %v210 = vld [vmem:[%s1 + $0x1ec] sm:$0xf]
  %v211 = vld [vmem:[%s1 + $0x1f0] sm:$0xf]
  %v212 = vld [vmem:[%s1 + $0x1f4] sm:$0xf]
  %v213 = vld [vmem:[%s1 + $0x1f8] sm:$0xf]
  %v214 = vld [vmem:[%s1 + $0x1fc] sm:$0xf]
  %v215 = vld [vmem:[%s2] sm:$0x1]
  %v217 = vperm.slane %v215, 0
  %v283 = vunpack.c.l.b16 %v23
  %v284 = vunpack.c.h.b16 %v23
  %v285 = vunpack.c.l.b16 %v24
  %v286 = vunpack.c.h.b16 %v24
  %v287 = vunpack.c.l.b16 %v25
  %v288 = vunpack.c.h.b16 %v25
  %v289 = vunpack.c.l.b16 %v26
  %v290 = vunpack.c.h.b16 %v26
  %v291 = vunpack.c.l.b16 %v27
  %v292 = vunpack.c.h.b16 %v27
  %v293 = vunpack.c.l.b16 %v28
  %v294 = vunpack.c.h.b16 %v28
  %v295 = vunpack.c.l.b16 %v29
  %v296 = vunpack.c.h.b16 %v29
  %v297 = vunpack.c.l.b16 %v30
  %v298 = vunpack.c.h.b16 %v30
  %v299 = vunpack.c.l.b16 %v31
  %v300 = vunpack.c.h.b16 %v31
  %v301 = vunpack.c.l.b16 %v32
  %v302 = vunpack.c.h.b16 %v32
  %v303 = vunpack.c.l.b16 %v33
  %v304 = vunpack.c.h.b16 %v33
  %v305 = vunpack.c.l.b16 %v34
  %v306 = vunpack.c.h.b16 %v34
  %v307 = vunpack.c.l.b16 %v35
  %v308 = vunpack.c.h.b16 %v35
  %v309 = vunpack.c.l.b16 %v36
  %v310 = vunpack.c.h.b16 %v36
  %v311 = vunpack.c.l.b16 %v37
  %v312 = vunpack.c.h.b16 %v37
  %v313 = vunpack.c.l.b16 %v38
  %v314 = vunpack.c.h.b16 %v38
  %v315 = vunpack.c.l.b16 %v39
  %v316 = vunpack.c.h.b16 %v39
  %v317 = vunpack.c.l.b16 %v40
  %v318 = vunpack.c.h.b16 %v40
  %v319 = vunpack.c.l.b16 %v41
  %v320 = vunpack.c.h.b16 %v41
  %v321 = vunpack.c.l.b16 %v42
  %v322 = vunpack.c.h.b16 %v42
  %v323 = vunpack.c.l.b16 %v43
  %v324 = vunpack.c.h.b16 %v43
  %v325 = vunpack.c.l.b16 %v44
  %v326 = vunpack.c.h.b16 %v44
  %v327 = vunpack.c.l.b16 %v45
  %v328 = vunpack.c.h.b16 %v45
  %v329 = vunpack.c.l.b16 %v46
  %v330 = vunpack.c.h.b16 %v46
  %v331 = vunpack.c.l.b16 %v47
  %v332 = vunpack.c.h.b16 %v47
  %v333 = vunpack.c.l.b16 %v48
  %v334 = vunpack.c.h.b16 %v48
  %v335 = vunpack.c.l.b16 %v49
  %v336 = vunpack.c.h.b16 %v49
  %v337 = vunpack.c.l.b16 %v50
  %v338 = vunpack.c.h.b16 %v50
  %v339 = vunpack.c.l.b16 %v51
  %v340 = vunpack.c.h.b16 %v51
  %v341 = vunpack.c.l.b16 %v52
  %v342 = vunpack.c.h.b16 %v52
  %v343 = vunpack.c.l.b16 %v53
  %v344 = vunpack.c.h.b16 %v53
  %v345 = vunpack.c.l.b16 %v54
  %v346 = vunpack.c.h.b16 %v54
  %v347 = vunpack.c.l.b16 %v55
  %v348 = vunpack.c.h.b16 %v55
  %v349 = vunpack.c.l.b16 %v56
  %v350 = vunpack.c.h.b16 %v56
  %v351 = vunpack.c.l.b16 %v57
  %v352 = vunpack.c.h.b16 %v57
  %v353 = vunpack.c.l.b16 %v58
  %v354 = vunpack.c.h.b16 %v58
  %v355 = vunpack.c.l.b16 %v59
  %v356 = vunpack.c.h.b16 %v59
  %v357 = vunpack.c.l.b16 %v60
  %v358 = vunpack.c.h.b16 %v60
  %v359 = vunpack.c.l.b16 %v61
  %v360 = vunpack.c.h.b16 %v61
  %v361 = vunpack.c.l.b16 %v62
  %v362 = vunpack.c.h.b16 %v62
  %v363 = vunpack.c.l.b16 %v63
  %v364 = vunpack.c.h.b16 %v63
  %v365 = vunpack.c.l.b16 %v64
  %v366 = vunpack.c.h.b16 %v64
  %v367 = vunpack.c.l.b16 %v65
  %v368 = vunpack.c.h.b16 %v65
  %v369 = vunpack.c.l.b16 %v66
  %v370 = vunpack.c.h.b16 %v66
  %v371 = vunpack.c.l.b16 %v67
  %v372 = vunpack.c.h.b16 %v67
  %v373 = vunpack.c.l.b16 %v68
  %v374 = vunpack.c.h.b16 %v68
  %v375 = vunpack.c.l.b16 %v69
  %v376 = vunpack.c.h.b16 %v69
  %v377 = vunpack.c.l.b16 %v70
  %v378 = vunpack.c.h.b16 %v70
  %v379 = vunpack.c.l.b16 %v71
  %v380 = vunpack.c.h.b16 %v71
  %v381 = vunpack.c.l.b16 %v72
  %v382 = vunpack.c.h.b16 %v72
  %v383 = vunpack.c.l.b16 %v73
  %v384 = vunpack.c.h.b16 %v73
  %v385 = vunpack.c.l.b16 %v74
  %v386 = vunpack.c.h.b16 %v74
  %v387 = vunpack.c.l.b16 %v75
  %v388 = vunpack.c.h.b16 %v75
  %v389 = vunpack.c.l.b16 %v76
  %v390 = vunpack.c.h.b16 %v76
  %v391 = vunpack.c.l.b16 %v77
  %v392 = vunpack.c.h.b16 %v77
  %v393 = vunpack.c.l.b16 %v78
  %v394 = vunpack.c.h.b16 %v78
  %v395 = vunpack.c.l.b16 %v79
  %v396 = vunpack.c.h.b16 %v79
  %v397 = vunpack.c.l.b16 %v80
  %v398 = vunpack.c.h.b16 %v80
  %v399 = vunpack.c.l.b16 %v81
  %v400 = vunpack.c.h.b16 %v81
  %v401 = vunpack.c.l.b16 %v82
  %v402 = vunpack.c.h.b16 %v82
  %v403 = vunpack.c.l.b16 %v83
  %v404 = vunpack.c.h.b16 %v83
  %v405 = vunpack.c.l.b16 %v84
  %v406 = vunpack.c.h.b16 %v84
  %v407 = vunpack.c.l.b16 %v85
  %v408 = vunpack.c.h.b16 %v85
  %v409 = vunpack.c.l.b16 %v86
  %v410 = vunpack.c.h.b16 %v86
  %v411 = vpack.c.b16 %v291, %v283
  %v412 = vpack.c.b16 %v292, %v284
  %v413 = vpack.c.b16 %v293, %v285
  %v414 = vpack.c.b16 %v294, %v286
  %v415 = vpack.c.b16 %v295, %v287
  %v416 = vpack.c.b16 %v296, %v288
  %v417 = vpack.c.b16 %v297, %v289
  %v418 = vpack.c.b16 %v298, %v290
  %v419 = vpack.c.b16 %v307, %v299
  %v420 = vpack.c.b16 %v308, %v300
  %v421 = vpack.c.b16 %v309, %v301
  %v422 = vpack.c.b16 %v310, %v302
  %v423 = vpack.c.b16 %v311, %v303
  %v424 = vpack.c.b16 %v312, %v304
  %v425 = vpack.c.b16 %v313, %v305
  %v426 = vpack.c.b16 %v314, %v306
  %v427 = vpack.c.b16 %v323, %v315
  %v428 = vpack.c.b16 %v324, %v316
  %v429 = vpack.c.b16 %v325, %v317
  %v430 = vpack.c.b16 %v326, %v318
  %v431 = vpack.c.b16 %v327, %v319
  %v432 = vpack.c.b16 %v328, %v320
  %v433 = vpack.c.b16 %v329, %v321
  %v434 = vpack.c.b16 %v330, %v322
  %v435 = vpack.c.b16 %v339, %v331
  %v436 = vpack.c.b16 %v340, %v332
  %v437 = vpack.c.b16 %v341, %v333
  %v438 = vpack.c.b16 %v342, %v334
  %v439 = vpack.c.b16 %v343, %v335
  %v440 = vpack.c.b16 %v344, %v336
  %v441 = vpack.c.b16 %v345, %v337
  %v442 = vpack.c.b16 %v346, %v338
  %v443 = vpack.c.b16 %v355, %v347
  %v444 = vpack.c.b16 %v356, %v348
  %v445 = vpack.c.b16 %v357, %v349
  %v446 = vpack.c.b16 %v358, %v350
  %v447 = vpack.c.b16 %v359, %v351
  %v448 = vpack.c.b16 %v360, %v352
  %v449 = vpack.c.b16 %v361, %v353
  %v450 = vpack.c.b16 %v362, %v354
  %v451 = vpack.c.b16 %v371, %v363
  %v452 = vpack.c.b16 %v372, %v364
  %v453 = vpack.c.b16 %v373, %v365
  %v454 = vpack.c.b16 %v374, %v366
  %v455 = vpack.c.b16 %v375, %v367
  %v456 = vpack.c.b16 %v376, %v368
  %v457 = vpack.c.b16 %v377, %v369
  %v458 = vpack.c.b16 %v378, %v370
  %v459 = vpack.c.b16 %v387, %v379
  %v460 = vpack.c.b16 %v388, %v380
  %v461 = vpack.c.b16 %v389, %v381
  %v462 = vpack.c.b16 %v390, %v382
  %v463 = vpack.c.b16 %v391, %v383
  %v464 = vpack.c.b16 %v392, %v384
  %v465 = vpack.c.b16 %v393, %v385
  %v466 = vpack.c.b16 %v394, %v386
  %v467 = vpack.c.b16 %v403, %v395
  %v468 = vpack.c.b16 %v404, %v396
  %v469 = vpack.c.b16 %v405, %v397
  %v470 = vpack.c.b16 %v406, %v398
  %v471 = vpack.c.b16 %v407, %v399
  %v472 = vpack.c.b16 %v408, %v400
  %v473 = vpack.c.b16 %v409, %v401
  %v474 = vpack.c.b16 %v410, %v402
  %v667 = vunpack.c.l.b16 %v87
  %v668 = vunpack.c.l.b16 %v88
  %v669 = vunpack.c.l.b16 %v89
  %v670 = vunpack.c.l.b16 %v90
  %v671 = vunpack.c.l.b16 %v91
  %v672 = vunpack.c.l.b16 %v92
  %v673 = vunpack.c.l.b16 %v93
  %v674 = vunpack.c.l.b16 %v94
  %v675 = vunpack.c.l.b16 %v95
  %v676 = vunpack.c.l.b16 %v96
  %v677 = vunpack.c.l.b16 %v97
  %v678 = vunpack.c.l.b16 %v98
  %v679 = vunpack.c.l.b16 %v99
  %v680 = vunpack.c.l.b16 %v100
  %v681 = vunpack.c.l.b16 %v101
  %v682 = vunpack.c.l.b16 %v102
  %v683 = vunpack.c.l.b16 %v103
  %v684 = vunpack.c.l.b16 %v104
  %v685 = vunpack.c.l.b16 %v105
  %v686 = vunpack.c.l.b16 %v106
  %v687 = vunpack.c.l.b16 %v107
  %v688 = vunpack.c.l.b16 %v108
  %v689 = vunpack.c.l.b16 %v109
  %v690 = vunpack.c.l.b16 %v110
  %v691 = vunpack.c.l.b16 %v111
  %v692 = vunpack.c.l.b16 %v112
  %v693 = vunpack.c.l.b16 %v113
  %v694 = vunpack.c.l.b16 %v114
  %v695 = vunpack.c.l.b16 %v115
  %v696 = vunpack.c.l.b16 %v116
  %v697 = vunpack.c.l.b16 %v117
  %v698 = vunpack.c.l.b16 %v118
  %v699 = vunpack.c.l.b16 %v119
  %v700 = vunpack.c.l.b16 %v120
  %v701 = vunpack.c.l.b16 %v121
  %v702 = vunpack.c.l.b16 %v122
  %v703 = vunpack.c.l.b16 %v123
  %v704 = vunpack.c.l.b16 %v124
  %v705 = vunpack.c.l.b16 %v125
  %v706 = vunpack.c.l.b16 %v126
  %v707 = vunpack.c.l.b16 %v127
  %v708 = vunpack.c.l.b16 %v128
  %v709 = vunpack.c.l.b16 %v129
  %v710 = vunpack.c.l.b16 %v130
  %v711 = vunpack.c.l.b16 %v131
  %v712 = vunpack.c.l.b16 %v132
  %v713 = vunpack.c.l.b16 %v133
  %v714 = vunpack.c.l.b16 %v134
  %v715 = vunpack.c.l.b16 %v135
  %v716 = vunpack.c.l.b16 %v136
  %v717 = vunpack.c.l.b16 %v137
  %v718 = vunpack.c.l.b16 %v138
  %v719 = vunpack.c.l.b16 %v139
  %v720 = vunpack.c.l.b16 %v140
  %v721 = vunpack.c.l.b16 %v141
  %v722 = vunpack.c.l.b16 %v142
  %v723 = vunpack.c.l.b16 %v143
  %v724 = vunpack.c.l.b16 %v144
  %v725 = vunpack.c.l.b16 %v145
  %v726 = vunpack.c.l.b16 %v146
  %v727 = vunpack.c.l.b16 %v147
  %v728 = vunpack.c.l.b16 %v148
  %v729 = vunpack.c.l.b16 %v149
  %v730 = vunpack.c.l.b16 %v150
  %v731 = vunpack.c.l.b16 %v151
  %v732 = vunpack.c.l.b16 %v152
  %v733 = vunpack.c.l.b16 %v153
  %v734 = vunpack.c.l.b16 %v154
  %v735 = vunpack.c.l.b16 %v155
  %v736 = vunpack.c.l.b16 %v156
  %v737 = vunpack.c.l.b16 %v157
  %v738 = vunpack.c.l.b16 %v158
  %v739 = vunpack.c.l.b16 %v159
  %v740 = vunpack.c.l.b16 %v160
  %v741 = vunpack.c.l.b16 %v161
  %v742 = vunpack.c.l.b16 %v162
  %v743 = vunpack.c.l.b16 %v163
  %v744 = vunpack.c.l.b16 %v164
  %v745 = vunpack.c.l.b16 %v165
  %v746 = vunpack.c.l.b16 %v166
  %v747 = vunpack.c.l.b16 %v167
  %v748 = vunpack.c.l.b16 %v168
  %v749 = vunpack.c.l.b16 %v169
  %v750 = vunpack.c.l.b16 %v170
  %v751 = vunpack.c.l.b16 %v171
  %v752 = vunpack.c.l.b16 %v172
  %v753 = vunpack.c.l.b16 %v173
  %v754 = vunpack.c.l.b16 %v174
  %v755 = vunpack.c.l.b16 %v175
  %v756 = vunpack.c.l.b16 %v176
  %v757 = vunpack.c.l.b16 %v177
  %v758 = vunpack.c.l.b16 %v178
  %v759 = vunpack.c.l.b16 %v179
  %v760 = vunpack.c.l.b16 %v180
  %v761 = vunpack.c.l.b16 %v181
  %v762 = vunpack.c.l.b16 %v182
  %v763 = vunpack.c.l.b16 %v183
  %v764 = vunpack.c.l.b16 %v184
  %v765 = vunpack.c.l.b16 %v185
  %v766 = vunpack.c.l.b16 %v186
  %v767 = vunpack.c.l.b16 %v187
  %v768 = vunpack.c.l.b16 %v188
  %v769 = vunpack.c.l.b16 %v189
  %v770 = vunpack.c.l.b16 %v190
  %v771 = vunpack.c.l.b16 %v191
  %v772 = vunpack.c.l.b16 %v192
  %v773 = vunpack.c.l.b16 %v193
  %v774 = vunpack.c.l.b16 %v194
  %v775 = vunpack.c.l.b16 %v195
  %v776 = vunpack.c.l.b16 %v196
  %v777 = vunpack.c.l.b16 %v197
  %v778 = vunpack.c.l.b16 %v198
  %v779 = vunpack.c.l.b16 %v199
  %v780 = vunpack.c.l.b16 %v200
  %v781 = vunpack.c.l.b16 %v201
  %v782 = vunpack.c.l.b16 %v202
  %v783 = vunpack.c.l.b16 %v203
  %v784 = vunpack.c.l.b16 %v204
  %v785 = vunpack.c.l.b16 %v205
  %v786 = vunpack.c.l.b16 %v206
  %v787 = vunpack.c.l.b16 %v207
  %v788 = vunpack.c.l.b16 %v208
  %v789 = vunpack.c.l.b16 %v209
  %v790 = vunpack.c.l.b16 %v210
  %v791 = vunpack.c.l.b16 %v211
  %v792 = vunpack.c.l.b16 %v212
  %v793 = vunpack.c.l.b16 %v213
  %v794 = vunpack.c.l.b16 %v214
  %v795 = vpack.c.b16 %v668, %v667
  %v796 = vpack.c.b16 %v670, %v669
  %v797 = vpack.c.b16 %v672, %v671
  %v798 = vpack.c.b16 %v674, %v673
  %v799 = vpack.c.b16 %v676, %v675
  %v800 = vpack.c.b16 %v678, %v677
  %v801 = vpack.c.b16 %v680, %v679
  %v802 = vpack.c.b16 %v682, %v681
  %v803 = vpack.c.b16 %v684, %v683
  %v804 = vpack.c.b16 %v686, %v685
  %v805 = vpack.c.b16 %v688, %v687
  %v806 = vpack.c.b16 %v690, %v689
  %v807 = vpack.c.b16 %v692, %v691
  %v808 = vpack.c.b16 %v694, %v693
  %v809 = vpack.c.b16 %v696, %v695
  %v810 = vpack.c.b16 %v698, %v697
  %v811 = vpack.c.b16 %v700, %v699
  %v812 = vpack.c.b16 %v702, %v701
  %v813 = vpack.c.b16 %v704, %v703
  %v814 = vpack.c.b16 %v706, %v705
  %v815 = vpack.c.b16 %v708, %v707
  %v816 = vpack.c.b16 %v710, %v709
  %v817 = vpack.c.b16 %v712, %v711
  %v818 = vpack.c.b16 %v714, %v713
  %v819 = vpack.c.b16 %v716, %v715
  %v820 = vpack.c.b16 %v718, %v717
  %v821 = vpack.c.b16 %v720, %v719
  %v822 = vpack.c.b16 %v722, %v721
  %v823 = vpack.c.b16 %v724, %v723
  %v824 = vpack.c.b16 %v726, %v725
  %v825 = vpack.c.b16 %v728, %v727
  %v826 = vpack.c.b16 %v730, %v729
  %v827 = vpack.c.b16 %v732, %v731
  %v828 = vpack.c.b16 %v734, %v733
  %v829 = vpack.c.b16 %v736, %v735
  %v830 = vpack.c.b16 %v738, %v737
  %v831 = vpack.c.b16 %v740, %v739
  %v832 = vpack.c.b16 %v742, %v741
  %v833 = vpack.c.b16 %v744, %v743
  %v834 = vpack.c.b16 %v746, %v745
  %v835 = vpack.c.b16 %v748, %v747
  %v836 = vpack.c.b16 %v750, %v749
  %v837 = vpack.c.b16 %v752, %v751
  %v838 = vpack.c.b16 %v754, %v753
  %v839 = vpack.c.b16 %v756, %v755
  %v840 = vpack.c.b16 %v758, %v757
  %v841 = vpack.c.b16 %v760, %v759
  %v842 = vpack.c.b16 %v762, %v761
  %v843 = vpack.c.b16 %v764, %v763
  %v844 = vpack.c.b16 %v766, %v765
  %v845 = vpack.c.b16 %v768, %v767
  %v846 = vpack.c.b16 %v770, %v769
  %v847 = vpack.c.b16 %v772, %v771
  %v848 = vpack.c.b16 %v774, %v773
  %v849 = vpack.c.b16 %v776, %v775
  %v850 = vpack.c.b16 %v778, %v777
  %v851 = vpack.c.b16 %v780, %v779
  %v852 = vpack.c.b16 %v782, %v781
  %v853 = vpack.c.b16 %v784, %v783
  %v854 = vpack.c.b16 %v786, %v785
  %v855 = vpack.c.b16 %v788, %v787
  %v856 = vpack.c.b16 %v790, %v789
  %v857 = vpack.c.b16 %v792, %v791
  %v858 = vpack.c.b16 %v794, %v793
  %923 = vmatpush.bf16.msra.mxu0 %v802
  %924 = vmatpush.bf16.msra.mxu0 %v801
  %925 = vmatpush.bf16.msra.mxu0 %v800
  %926 = vmatpush.bf16.msra.mxu0 %v799
  %927 = vmatpush.bf16.msra.mxu0 %v798
  %928 = vmatpush.bf16.msra.mxu0 %v797
  %929 = vmatpush.bf16.msra.mxu0 %v796
  %930 = vmatpush.bf16.msra.mxu0 %v795
  %931 = vmatmul.bf16.gmra.mxu0 %v411
  %v932 = vpop.f32.mrf.mxu0
  %v933 = vadd.f32 %v217, %v932
  %v934 = vpop.f32.mrf.mxu0
  %v935 = vadd.f32 %v217, %v934
  %936 = vmatmul.bf16.gmra.mxu0 %v419
  %v937 = vpop.f32.mrf.mxu0
  %v938 = vadd.f32 %v217, %v937
  %v939 = vpop.f32.mrf.mxu0
  %v940 = vadd.f32 %v217, %v939
  %941 = vmatmul.bf16.gmra.mxu0 %v427
  %v942 = vpop.f32.mrf.mxu0
  %v943 = vadd.f32 %v217, %v942
  %v944 = vpop.f32.mrf.mxu0
  %v945 = vadd.f32 %v217, %v944
  %946 = vmatmul.bf16.gmra.mxu0 %v435
  %v947 = vpop.f32.mrf.mxu0
  %v948 = vadd.f32 %v217, %v947
  %v949 = vpop.f32.mrf.mxu0
  %v950 = vadd.f32 %v217, %v949
  %951 = vmatmul.bf16.gmra.mxu0 %v443
  %v952 = vpop.f32.mrf.mxu0
  %v953 = vadd.f32 %v217, %v952
  %v954 = vpop.f32.mrf.mxu0
  %v955 = vadd.f32 %v217, %v954
  %956 = vmatmul.bf16.gmra.mxu0 %v451
  %v957 = vpop.f32.mrf.mxu0
  %v958 = vadd.f32 %v217, %v957
  %v959 = vpop.f32.mrf.mxu0
  %v960 = vadd.f32 %v217, %v959
  %961 = vmatmul.bf16.gmra.mxu0 %v459
  %v962 = vpop.f32.mrf.mxu0
  %v963 = vadd.f32 %v217, %v962
  %v964 = vpop.f32.mrf.mxu0
  %v965 = vadd.f32 %v217, %v964
  %966 = vmatmul.bf16.gmra.mxu0 %v467
  %v967 = vpop.f32.mrf.mxu0
  %v968 = vadd.f32 %v217, %v967
  %v969 = vpop.f32.mrf.mxu0
  %v970 = vadd.f32 %v217, %v969
  %971 = vdwg.mxu0
  %972 = vmatpush.bf16.msra.mxu0 %v810
  %973 = vmatpush.bf16.msra.mxu0 %v809
  %974 = vmatpush.bf16.msra.mxu0 %v808
  %975 = vmatpush.bf16.msra.mxu0 %v807
  %976 = vmatpush.bf16.msra.mxu0 %v806
  %977 = vmatpush.bf16.msra.mxu0 %v805
  %978 = vmatpush.bf16.msra.mxu0 %v804
  %979 = vmatpush.bf16.msra.mxu0 %v803
  %980 = vmatmul.bf16.gmra.mxu0 %v412
  %v981 = vpop.f32.mrf.mxu0
  %v982 = vadd.f32 %v933, %v981
  %v983 = vpop.f32.mrf.mxu0
  %v984 = vadd.f32 %v935, %v983
  %985 = vmatmul.bf16.gmra.mxu0 %v420
  %v986 = vpop.f32.mrf.mxu0
  %v987 = vadd.f32 %v938, %v986
  %v988 = vpop.f32.mrf.mxu0
  %v989 = vadd.f32 %v940, %v988
  %990 = vmatmul.bf16.gmra.mxu0 %v428
  %v991 = vpop.f32.mrf.mxu0
  %v992 = vadd.f32 %v943, %v991
  %v993 = vpop.f32.mrf.mxu0
  %v994 = vadd.f32 %v945, %v993
  %995 = vmatmul.bf16.gmra.mxu0 %v436
  %v996 = vpop.f32.mrf.mxu0
  %v997 = vadd.f32 %v948, %v996
  %v998 = vpop.f32.mrf.mxu0
  %v999 = vadd.f32 %v950, %v998
  %1000 = vmatmul.bf16.gmra.mxu0 %v444
  %v1001 = vpop.f32.mrf.mxu0
  %v1002 = vadd.f32 %v953, %v1001
  %v1003 = vpop.f32.mrf.mxu0
  %v1004 = vadd.f32 %v955, %v1003
  %1005 = vmatmul.bf16.gmra.mxu0 %v452
  %v1006 = vpop.f32.mrf.mxu0
  %v1007 = vadd.f32 %v958, %v1006
  %v1008 = vpop.f32.mrf.mxu0
  %v1009 = vadd.f32 %v960, %v1008
  %1010 = vmatmul.bf16.gmra.mxu0 %v460
  %v1011 = vpop.f32.mrf.mxu0
  %v1012 = vadd.f32 %v963, %v1011
  %v1013 = vpop.f32.mrf.mxu0
  %v1014 = vadd.f32 %v965, %v1013
  %1015 = vmatmul.bf16.gmra.mxu0 %v468
  %v1016 = vpop.f32.mrf.mxu0
  %v1017 = vadd.f32 %v968, %v1016
  %v1018 = vpop.f32.mrf.mxu0
  %v1019 = vadd.f32 %v970, %v1018
  %1020 = vdwg.mxu0
  %1021 = vmatpush.bf16.msra.mxu0 %v818
  %1022 = vmatpush.bf16.msra.mxu0 %v817
  %1023 = vmatpush.bf16.msra.mxu0 %v816
  %1024 = vmatpush.bf16.msra.mxu0 %v815
  %1025 = vmatpush.bf16.msra.mxu0 %v814
  %1026 = vmatpush.bf16.msra.mxu0 %v813
  %1027 = vmatpush.bf16.msra.mxu0 %v812
  %1028 = vmatpush.bf16.msra.mxu0 %v811
  %1029 = vmatmul.bf16.gmra.mxu0 %v413
  %v1030 = vpop.f32.mrf.mxu0
  %v1031 = vadd.f32 %v982, %v1030
  %v1032 = vpop.f32.mrf.mxu0
  %v1033 = vadd.f32 %v984, %v1032
  %1034 = vmatmul.bf16.gmra.mxu0 %v421
  %v1035 = vpop.f32.mrf.mxu0
  %v1036 = vadd.f32 %v987, %v1035
  %v1037 = vpop.f32.mrf.mxu0
  %v1038 = vadd.f32 %v989, %v1037
  %1039 = vmatmul.bf16.gmra.mxu0 %v429
  %v1040 = vpop.f32.mrf.mxu0
  %v1041 = vadd.f32 %v992, %v1040
  %v1042 = vpop.f32.mrf.mxu0
  %v1043 = vadd.f32 %v994, %v1042
  %1044 = vmatmul.bf16.gmra.mxu0 %v437
  %v1045 = vpop.f32.mrf.mxu0
  %v1046 = vadd.f32 %v997, %v1045
  %v1047 = vpop.f32.mrf.mxu0
  %v1048 = vadd.f32 %v999, %v1047
  %1049 = vmatmul.bf16.gmra.mxu0 %v445
  %v1050 = vpop.f32.mrf.mxu0
  %v1051 = vadd.f32 %v1002, %v1050
  %v1052 = vpop.f32.mrf.mxu0
  %v1053 = vadd.f32 %v1004, %v1052
  %1054 = vmatmul.bf16.gmra.mxu0 %v453
  %v1055 = vpop.f32.mrf.mxu0
  %v1056 = vadd.f32 %v1007, %v1055
  %v1057 = vpop.f32.mrf.mxu0
  %v1058 = vadd.f32 %v1009, %v1057
  %1059 = vmatmul.bf16.gmra.mxu0 %v461
  %v1060 = vpop.f32.mrf.mxu0
  %v1061 = vadd.f32 %v1012, %v1060
  %v1062 = vpop.f32.mrf.mxu0
  %v1063 = vadd.f32 %v1014, %v1062
  %1064 = vmatmul.bf16.gmra.mxu0 %v469
  %v1065 = vpop.f32.mrf.mxu0
  %v1066 = vadd.f32 %v1017, %v1065
  %v1067 = vpop.f32.mrf.mxu0
  %v1068 = vadd.f32 %v1019, %v1067
  %1069 = vdwg.mxu0
  %1070 = vmatpush.bf16.msra.mxu0 %v826
  %1071 = vmatpush.bf16.msra.mxu0 %v825
  %1072 = vmatpush.bf16.msra.mxu0 %v824
  %1073 = vmatpush.bf16.msra.mxu0 %v823
  %1074 = vmatpush.bf16.msra.mxu0 %v822
  %1075 = vmatpush.bf16.msra.mxu0 %v821
  %1076 = vmatpush.bf16.msra.mxu0 %v820
  %1077 = vmatpush.bf16.msra.mxu0 %v819
  %1078 = vmatmul.bf16.gmra.mxu0 %v414
  %v1079 = vpop.f32.mrf.mxu0
  %v1080 = vadd.f32 %v1031, %v1079
  %v1081 = vpop.f32.mrf.mxu0
  %v1082 = vadd.f32 %v1033, %v1081
  %1083 = vmatmul.bf16.gmra.mxu0 %v422
  %v1084 = vpop.f32.mrf.mxu0
  %v1085 = vadd.f32 %v1036, %v1084
  %v1086 = vpop.f32.mrf.mxu0
  %v1087 = vadd.f32 %v1038, %v1086
  %1088 = vmatmul.bf16.gmra.mxu0 %v430
  %v1089 = vpop.f32.mrf.mxu0
  %v1090 = vadd.f32 %v1041, %v1089
  %v1091 = vpop.f32.mrf.mxu0
  %v1092 = vadd.f32 %v1043, %v1091
  %1093 = vmatmul.bf16.gmra.mxu0 %v438
  %v1094 = vpop.f32.mrf.mxu0
  %v1095 = vadd.f32 %v1046, %v1094
  %v1096 = vpop.f32.mrf.mxu0
  %v1097 = vadd.f32 %v1048, %v1096
  %1098 = vmatmul.bf16.gmra.mxu0 %v446
  %v1099 = vpop.f32.mrf.mxu0
  %v1100 = vadd.f32 %v1051, %v1099
  %v1101 = vpop.f32.mrf.mxu0
  %v1102 = vadd.f32 %v1053, %v1101
  %1103 = vmatmul.bf16.gmra.mxu0 %v454
  %v1104 = vpop.f32.mrf.mxu0
  %v1105 = vadd.f32 %v1056, %v1104
  %v1106 = vpop.f32.mrf.mxu0
  %v1107 = vadd.f32 %v1058, %v1106
  %1108 = vmatmul.bf16.gmra.mxu0 %v462
  %v1109 = vpop.f32.mrf.mxu0
  %v1110 = vadd.f32 %v1061, %v1109
  %v1111 = vpop.f32.mrf.mxu0
  %v1112 = vadd.f32 %v1063, %v1111
  %1113 = vmatmul.bf16.gmra.mxu0 %v470
  %v1114 = vpop.f32.mrf.mxu0
  %v1115 = vadd.f32 %v1066, %v1114
  %v1116 = vpop.f32.mrf.mxu0
  %v1117 = vadd.f32 %v1068, %v1116
  %1118 = vdwg.mxu0
  %1119 = vmatpush.bf16.msra.mxu0 %v834
  %1120 = vmatpush.bf16.msra.mxu0 %v833
  %1121 = vmatpush.bf16.msra.mxu0 %v832
  %1122 = vmatpush.bf16.msra.mxu0 %v831
  %1123 = vmatpush.bf16.msra.mxu0 %v830
  %1124 = vmatpush.bf16.msra.mxu0 %v829
  %1125 = vmatpush.bf16.msra.mxu0 %v828
  %1126 = vmatpush.bf16.msra.mxu0 %v827
  %1127 = vmatmul.bf16.gmra.mxu0 %v415
  %v1128 = vpop.f32.mrf.mxu0
  %v1129 = vadd.f32 %v1080, %v1128
  %v1130 = vpop.f32.mrf.mxu0
  %v1131 = vadd.f32 %v1082, %v1130
  %1132 = vmatmul.bf16.gmra.mxu0 %v423
  %v1133 = vpop.f32.mrf.mxu0
  %v1134 = vadd.f32 %v1085, %v1133
  %v1135 = vpop.f32.mrf.mxu0
  %v1136 = vadd.f32 %v1087, %v1135
  %1137 = vmatmul.bf16.gmra.mxu0 %v431
  %v1138 = vpop.f32.mrf.mxu0
  %v1139 = vadd.f32 %v1090, %v1138
  %v1140 = vpop.f32.mrf.mxu0
  %v1141 = vadd.f32 %v1092, %v1140
  %1142 = vmatmul.bf16.gmra.mxu0 %v439
  %v1143 = vpop.f32.mrf.mxu0
  %v1144 = vadd.f32 %v1095, %v1143
  %v1145 = vpop.f32.mrf.mxu0
  %v1146 = vadd.f32 %v1097, %v1145
  %1147 = vmatmul.bf16.gmra.mxu0 %v447
  %v1148 = vpop.f32.mrf.mxu0
  %v1149 = vadd.f32 %v1100, %v1148
  %v1150 = vpop.f32.mrf.mxu0
  %v1151 = vadd.f32 %v1102, %v1150
  %1152 = vmatmul.bf16.gmra.mxu0 %v455
  %v1153 = vpop.f32.mrf.mxu0
  %v1154 = vadd.f32 %v1105, %v1153
  %v1155 = vpop.f32.mrf.mxu0
  %v1156 = vadd.f32 %v1107, %v1155
  %1157 = vmatmul.bf16.gmra.mxu0 %v463
  %v1158 = vpop.f32.mrf.mxu0
  %v1159 = vadd.f32 %v1110, %v1158
  %v1160 = vpop.f32.mrf.mxu0
  %v1161 = vadd.f32 %v1112, %v1160
  %1162 = vmatmul.bf16.gmra.mxu0 %v471
  %v1163 = vpop.f32.mrf.mxu0
  %v1164 = vadd.f32 %v1115, %v1163
  %v1165 = vpop.f32.mrf.mxu0
  %v1166 = vadd.f32 %v1117, %v1165
  %1167 = vdwg.mxu0
  %1168 = vmatpush.bf16.msra.mxu0 %v842
  %1169 = vmatpush.bf16.msra.mxu0 %v841
  %1170 = vmatpush.bf16.msra.mxu0 %v840
  %1171 = vmatpush.bf16.msra.mxu0 %v839
  %1172 = vmatpush.bf16.msra.mxu0 %v838
  %1173 = vmatpush.bf16.msra.mxu0 %v837
  %1174 = vmatpush.bf16.msra.mxu0 %v836
  %1175 = vmatpush.bf16.msra.mxu0 %v835
  %1176 = vmatmul.bf16.gmra.mxu0 %v416
  %v1177 = vpop.f32.mrf.mxu0
  %v1178 = vadd.f32 %v1129, %v1177
  %v1179 = vpop.f32.mrf.mxu0
  %v1180 = vadd.f32 %v1131, %v1179
  %1181 = vmatmul.bf16.gmra.mxu0 %v424
  %v1182 = vpop.f32.mrf.mxu0
  %v1183 = vadd.f32 %v1134, %v1182
  %v1184 = vpop.f32.mrf.mxu0
  %v1185 = vadd.f32 %v1136, %v1184
  %1186 = vmatmul.bf16.gmra.mxu0 %v432
  %v1187 = vpop.f32.mrf.mxu0
  %v1188 = vadd.f32 %v1139, %v1187
  %v1189 = vpop.f32.mrf.mxu0
  %v1190 = vadd.f32 %v1141, %v1189
  %1191 = vmatmul.bf16.gmra.mxu0 %v440
  %v1192 = vpop.f32.mrf.mxu0
  %v1193 = vadd.f32 %v1144, %v1192
  %v1194 = vpop.f32.mrf.mxu0
  %v1195 = vadd.f32 %v1146, %v1194
  %1196 = vmatmul.bf16.gmra.mxu0 %v448
  %v1197 = vpop.f32.mrf.mxu0
  %v1198 = vadd.f32 %v1149, %v1197
  %v1199 = vpop.f32.mrf.mxu0
  %v1200 = vadd.f32 %v1151, %v1199
  %1201 = vmatmul.bf16.gmra.mxu0 %v456
  %v1202 = vpop.f32.mrf.mxu0
  %v1203 = vadd.f32 %v1154, %v1202
  %v1204 = vpop.f32.mrf.mxu0
  %v1205 = vadd.f32 %v1156, %v1204
  %1206 = vmatmul.bf16.gmra.mxu0 %v464
  %v1207 = vpop.f32.mrf.mxu0
  %v1208 = vadd.f32 %v1159, %v1207
  %v1209 = vpop.f32.mrf.mxu0
  %v1210 = vadd.f32 %v1161, %v1209
  %1211 = vmatmul.bf16.gmra.mxu0 %v472
  %v1212 = vpop.f32.mrf.mxu0
  %v1213 = vadd.f32 %v1164, %v1212
  %v1214 = vpop.f32.mrf.mxu0
  %v1215 = vadd.f32 %v1166, %v1214
  %1216 = vdwg.mxu0
  %1217 = vmatpush.bf16.msra.mxu0 %v850
  %1218 = vmatpush.bf16.msra.mxu0 %v849
  %1219 = vmatpush.bf16.msra.mxu0 %v848
  %1220 = vmatpush.bf16.msra.mxu0 %v847
  %1221 = vmatpush.bf16.msra.mxu0 %v846
  %1222 = vmatpush.bf16.msra.mxu0 %v845
  %1223 = vmatpush.bf16.msra.mxu0 %v844
  %1224 = vmatpush.bf16.msra.mxu0 %v843
  %1225 = vmatmul.bf16.gmra.mxu0 %v417
  %v1226 = vpop.f32.mrf.mxu0
  %v1227 = vadd.f32 %v1178, %v1226
  %v1228 = vpop.f32.mrf.mxu0
  %v1229 = vadd.f32 %v1180, %v1228
  %1230 = vmatmul.bf16.gmra.mxu0 %v425
  %v1231 = vpop.f32.mrf.mxu0
  %v1232 = vadd.f32 %v1183, %v1231
  %v1233 = vpop.f32.mrf.mxu0
  %v1234 = vadd.f32 %v1185, %v1233
  %1235 = vmatmul.bf16.gmra.mxu0 %v433
  %v1236 = vpop.f32.mrf.mxu0
  %v1237 = vadd.f32 %v1188, %v1236
  %v1238 = vpop.f32.mrf.mxu0
  %v1239 = vadd.f32 %v1190, %v1238
  %1240 = vmatmul.bf16.gmra.mxu0 %v441
  %v1241 = vpop.f32.mrf.mxu0
  %v1242 = vadd.f32 %v1193, %v1241
  %v1243 = vpop.f32.mrf.mxu0
  %v1244 = vadd.f32 %v1195, %v1243
  %1245 = vmatmul.bf16.gmra.mxu0 %v449
  %v1246 = vpop.f32.mrf.mxu0
  %v1247 = vadd.f32 %v1198, %v1246
  %v1248 = vpop.f32.mrf.mxu0
  %v1249 = vadd.f32 %v1200, %v1248
  %1250 = vmatmul.bf16.gmra.mxu0 %v457
  %v1251 = vpop.f32.mrf.mxu0
  %v1252 = vadd.f32 %v1203, %v1251
  %v1253 = vpop.f32.mrf.mxu0
  %v1254 = vadd.f32 %v1205, %v1253
  %1255 = vmatmul.bf16.gmra.mxu0 %v465
  %v1256 = vpop.f32.mrf.mxu0
  %v1257 = vadd.f32 %v1208, %v1256
  %v1258 = vpop.f32.mrf.mxu0
  %v1259 = vadd.f32 %v1210, %v1258
  %1260 = vmatmul.bf16.gmra.mxu0 %v473
  %v1261 = vpop.f32.mrf.mxu0
  %v1262 = vadd.f32 %v1213, %v1261
  %v1263 = vpop.f32.mrf.mxu0
  %v1264 = vadd.f32 %v1215, %v1263
  %1265 = vdwg.mxu0
  %1266 = vmatpush.bf16.msra.mxu0 %v858
  %1267 = vmatpush.bf16.msra.mxu0 %v857
  %1268 = vmatpush.bf16.msra.mxu0 %v856
  %1269 = vmatpush.bf16.msra.mxu0 %v855
  %1270 = vmatpush.bf16.msra.mxu0 %v854
  %1271 = vmatpush.bf16.msra.mxu0 %v853
  %1272 = vmatpush.bf16.msra.mxu0 %v852
  %1273 = vmatpush.bf16.msra.mxu0 %v851
  %1274 = vmatmul.bf16.gmra.mxu0 %v418
  %v1275 = vpop.f32.mrf.mxu0
  %v1276 = vadd.f32 %v1227, %v1275
  %v1277 = vpop.f32.mrf.mxu0
  %v1278 = vadd.f32 %v1229, %v1277
  %1279 = vmatmul.bf16.gmra.mxu0 %v426
  %v1280 = vpop.f32.mrf.mxu0
  %v1281 = vadd.f32 %v1232, %v1280
  %v1282 = vpop.f32.mrf.mxu0
  %v1283 = vadd.f32 %v1234, %v1282
  %1284 = vmatmul.bf16.gmra.mxu0 %v434
  %v1285 = vpop.f32.mrf.mxu0
  %v1286 = vadd.f32 %v1237, %v1285
  %v1287 = vpop.f32.mrf.mxu0
  %v1288 = vadd.f32 %v1239, %v1287
  %1289 = vmatmul.bf16.gmra.mxu0 %v442
  %v1290 = vpop.f32.mrf.mxu0
  %v1291 = vadd.f32 %v1242, %v1290
  %v1292 = vpop.f32.mrf.mxu0
  %v1293 = vadd.f32 %v1244, %v1292
  %1294 = vmatmul.bf16.gmra.mxu0 %v450
  %v1295 = vpop.f32.mrf.mxu0
  %v1296 = vadd.f32 %v1247, %v1295
  %v1297 = vpop.f32.mrf.mxu0
  %v1298 = vadd.f32 %v1249, %v1297
  %1299 = vmatmul.bf16.gmra.mxu0 %v458
  %v1300 = vpop.f32.mrf.mxu0
  %v1301 = vadd.f32 %v1252, %v1300
  %v1302 = vpop.f32.mrf.mxu0
  %v1303 = vadd.f32 %v1254, %v1302
  %1304 = vmatmul.bf16.gmra.mxu0 %v466
  %v1305 = vpop.f32.mrf.mxu0
  %v1306 = vadd.f32 %v1257, %v1305
  %v1307 = vpop.f32.mrf.mxu0
  %v1308 = vadd.f32 %v1259, %v1307
  %1309 = vmatmul.bf16.gmra.mxu0 %v474
  %v1310 = vpop.f32.mrf.mxu0
  %v1311 = vadd.f32 %v1262, %v1310
  %v1312 = vpop.f32.mrf.mxu0
  %v1313 = vadd.f32 %v1264, %v1312
  %1314 = vdwg.mxu0
  %1315 = vst [vmem:[%s3] sm:$0xff] %v1276
  %1316 = vst [vmem:[%s3 + $0x8] sm:$0xff] %v1278
  %1317 = vst [vmem:[%s3 + $0x10] sm:$0xff] %v1281
  %1318 = vst [vmem:[%s3 + $0x18] sm:$0xff] %v1283
  %1319 = vst [vmem:[%s3 + $0x20] sm:$0xff] %v1286
  %1320 = vst [vmem:[%s3 + $0x28] sm:$0xff] %v1288
  %1321 = vst [vmem:[%s3 + $0x30] sm:$0xff] %v1291
  %1322 = vst [vmem:[%s3 + $0x38] sm:$0xff] %v1293
  %1323 = vst [vmem:[%s3 + $0x40] sm:$0xff] %v1296
  %1324 = vst [vmem:[%s3 + $0x48] sm:$0xff] %v1298
  %1325 = vst [vmem:[%s3 + $0x50] sm:$0xff] %v1301
  %1326 = vst [vmem:[%s3 + $0x58] sm:$0xff] %v1303
  %1327 = vst [vmem:[%s3 + $0x60] sm:$0xff] %v1306
  %1328 = vst [vmem:[%s3 + $0x68] sm:$0xff] %v1308
  %1329 = vst [vmem:[%s3 + $0x70] sm:$0xff] %v1311
  %1330 = vst [vmem:[%s3 + $0x78] sm:$0xff] %v1313
  %v1331 = vlaneseq
  %v1332 = vshrl.u32 %v1331, 7
  %v1333 = vadd.s32 %v1332, 8
  %v1334 = vadd.s32 %v1332, 16
  %v1335 = vadd.s32 %v1332, 24
  %v1336 = vadd.s32 %v1332, 32
  %v1337 = vadd.s32 %v1332, 40
  %v1338 = vadd.s32 %v1332, 48
  %v1339 = vadd.s32 %v1332, 56
  %v1340 = vadd.s32 %v1332, 64
  %v1341 = vadd.s32 %v1332, 72
  %v1342 = vadd.s32 %v1332, 80
  %v1343 = vadd.s32 %v1332, 88
  %v1344 = vadd.s32 %v1332, 96
  %v1345 = vadd.s32 %v1332, 104
  %v1346 = vadd.s32 %v1332, 112
  %v1347 = vadd.s32 %v1332, 120
  %s1348 = smul.u32 0, 128
  %v1349 = vstv %s1348
  %v1350 = vadd.s32 %v1332, %v1349
  %v1351 = vadd.s32 %v1333, %v1349
  %v1352 = vadd.s32 %v1334, %v1349
  %v1353 = vadd.s32 %v1335, %v1349
  %v1354 = vadd.s32 %v1336, %v1349
  %v1355 = vadd.s32 %v1337, %v1349
  %v1356 = vadd.s32 %v1338, %v1349
  %v1357 = vadd.s32 %v1339, %v1349
  %v1358 = vadd.s32 %v1340, %v1349
  %v1359 = vadd.s32 %v1341, %v1349
  %v1360 = vadd.s32 %v1342, %v1349
  %v1361 = vadd.s32 %v1343, %v1349
  %v1362 = vadd.s32 %v1344, %v1349
  %v1363 = vadd.s32 %v1345, %v1349
  %v1364 = vadd.s32 %v1346, %v1349
  %v1365 = vadd.s32 %v1347, %v1349
  %vm1366 = vcmp.lt.s32.totalorder %v1350, 128
  %vm1367 = vcmp.lt.s32.totalorder %v1351, 128
  %vm1368 = vcmp.lt.s32.totalorder %v1352, 128
  %vm1369 = vcmp.lt.s32.totalorder %v1353, 128
  %vm1370 = vcmp.lt.s32.totalorder %v1354, 128
  %vm1371 = vcmp.lt.s32.totalorder %v1355, 128
  %vm1372 = vcmp.lt.s32.totalorder %v1356, 128
  %vm1373 = vcmp.lt.s32.totalorder %v1357, 128
  %vm1374 = vcmp.lt.s32.totalorder %v1358, 128
  %vm1375 = vcmp.lt.s32.totalorder %v1359, 128
  %vm1376 = vcmp.lt.s32.totalorder %v1360, 128
  %vm1377 = vcmp.lt.s32.totalorder %v1361, 128
  %vm1378 = vcmp.lt.s32.totalorder %v1362, 128
  %vm1379 = vcmp.lt.s32.totalorder %v1363, 128
  %vm1380 = vcmp.lt.s32.totalorder %v1364, 128
  %vm1381 = vcmp.lt.s32.totalorder %v1365, 128
  %v1382 = vsel %vm1366, %v1276, 0.0
  %v1383 = vsel %vm1367, %v1278, 0.0
  %v1384 = vsel %vm1368, %v1281, 0.0
  %v1385 = vsel %vm1369, %v1283, 0.0
  %v1386 = vsel %vm1370, %v1286, 0.0
  %v1387 = vsel %vm1371, %v1288, 0.0
  %v1388 = vsel %vm1372, %v1291, 0.0
  %v1389 = vsel %vm1373, %v1293, 0.0
  %v1390 = vsel %vm1374, %v1296, 0.0
  %v1391 = vsel %vm1375, %v1298, 0.0
  %v1392 = vsel %vm1376, %v1301, 0.0
  %v1393 = vsel %vm1377, %v1303, 0.0
  %v1394 = vsel %vm1378, %v1306, 0.0
  %v1395 = vsel %vm1379, %v1308, 0.0
  %v1396 = vsel %vm1380, %v1311, 0.0
  %v1397 = vsel %vm1381, %v1313, 0.0
  %v1398 = vld [vmem:[%s4] sm:$0x1]
  %v1399 = vadd.f32 %v1382, %v1383
  %v1400 = vadd.f32 %v1399, %v1384
  %v1401 = vadd.f32 %v1400, %v1385
  %v1402 = vadd.f32 %v1401, %v1386
  %v1403 = vadd.f32 %v1402, %v1387
  %v1404 = vadd.f32 %v1403, %v1388
  %v1405 = vadd.f32 %v1404, %v1389
  %v1406 = vadd.f32 %v1405, %v1390
  %v1407 = vadd.f32 %v1406, %v1391
  %v1408 = vadd.f32 %v1407, %v1392
  %v1409 = vadd.f32 %v1408, %v1393
  %v1410 = vadd.f32 %v1409, %v1394
  %v1411 = vadd.f32 %v1410, %v1395
  %v1412 = vadd.f32 %v1411, %v1396
  %v1413 = vadd.f32 %v1412, %v1397
  %v1414 = vrot.slane %v1413, 4
  %v1415 = vadd.f32 %v1413, %v1414
  %v1416 = vrot.slane %v1415, 2
  %v1417 = vadd.f32 %v1415, %v1416
  %v1418 = vrot.slane %v1417, 1
  %v1419 = vadd.f32 %v1417, %v1418
  %v1420 = vadd.f32 %v1398, %v1419
  %1421 = vst [vmem:[%s4] sm:$0x1] %v1420
  %v1422 = vld [vmem:[%s5] sm:$0x1]
  %v1423 = vmul.f32 %v1382, %v1382
  %v1424 = vmul.f32 %v1383, %v1383
  %v1425 = vmul.f32 %v1384, %v1384
  %v1426 = vmul.f32 %v1385, %v1385
  %v1427 = vmul.f32 %v1386, %v1386
  %v1428 = vmul.f32 %v1387, %v1387
  %v1429 = vmul.f32 %v1388, %v1388
  %v1430 = vmul.f32 %v1389, %v1389
  %v1431 = vmul.f32 %v1390, %v1390
  %v1432 = vmul.f32 %v1391, %v1391
  %v1433 = vmul.f32 %v1392, %v1392
  %v1434 = vmul.f32 %v1393, %v1393
  %v1435 = vmul.f32 %v1394, %v1394
  %v1436 = vmul.f32 %v1395, %v1395
  %v1437 = vmul.f32 %v1396, %v1396
  %v1438 = vmul.f32 %v1397, %v1397
  %v1439 = vadd.f32 %v1423, %v1424
  %v1440 = vadd.f32 %v1439, %v1425
  %v1441 = vadd.f32 %v1440, %v1426
  %v1442 = vadd.f32 %v1441, %v1427
  %v1443 = vadd.f32 %v1442, %v1428
  %v1444 = vadd.f32 %v1443, %v1429
  %v1445 = vadd.f32 %v1444, %v1430
  %v1446 = vadd.f32 %v1445, %v1431
  %v1447 = vadd.f32 %v1446, %v1432
  %v1448 = vadd.f32 %v1447, %v1433
  %v1449 = vadd.f32 %v1448, %v1434
  %v1450 = vadd.f32 %v1449, %v1435
  %v1451 = vadd.f32 %v1450, %v1436
  %v1452 = vadd.f32 %v1451, %v1437
  %v1453 = vadd.f32 %v1452, %v1438
  %v1454 = vrot.slane %v1453, 4
  %v1455 = vadd.f32 %v1453, %v1454
  %v1456 = vrot.slane %v1455, 2
  %v1457 = vadd.f32 %v1455, %v1456
  %v1458 = vrot.slane %v1457, 1
  %v1459 = vadd.f32 %v1457, %v1458
  %v1460 = vadd.f32 %v1422, %v1459
  %1461 = vst [vmem:[%s5] sm:$0x1] %v1460
  // Predicated region
  $region18: #{_lambda_.9} parent=0 // pred_check
    _
  $region19: #{_lambda_.9} parent=0 // pred_check_branch
    %1463 = sbr.rel (0) target = $region21
  $region20: #{_lambda_.9} parent=0 // pred_region
    _
  $region21: #{_lambda_.9} parent=0 // pred_fallthru
    _
  // Predicated region
  $region22: #{_lambda_.9} parent=0 // pred_check
    _
  $region23: #{_lambda_.9} parent=0 // pred_check_branch
    %1465 = sbr.rel (0) target = $region25
  $region24: #{_lambda_.9} parent=0 // pred_region
    _
  $region25: #{_lambda_.9} parent=0 // pred_fallthru
    _
  // Predicated region
  $region26: #{_lambda_.9} parent=0 // pred_check
    _
  $region27: #{_lambda_.9} parent=0 // pred_check_branch
    %1467 = sbr.rel (0) target = $region29
  $region28: #{_lambda_.9} parent=0 // pred_region
    _
  $region29: #{_lambda_.9} parent=0 // pred_fallthru
    _
  // Predicated region
  $region30: #{_lambda_.9} parent=0 // pred_check
    _
  $region31: #{_lambda_.9} parent=0 // pred_check_branch
    %1469 = sbr.rel (0) target = $region33
  $region32: #{_lambda_.9} parent=0 // pred_region
    _
  $region33: #{_lambda_.9} parent=0 // pred_fallthru
    _
  // Predicated region
  $region34: #{_lambda_.9} parent=0 // pred_check
    _
  $region35: #{_lambda_.9} parent=0 // pred_check_branch
    %1471 = sbr.rel (0) target = $region37
  $region36: #{_lambda_.9} parent=0 // pred_region
    _
  $region37: #{_lambda_.9} parent=0 // pred_fallthru
    _
  // Predicated region
  $region38: #{_lambda_.9} parent=0 // pred_check
    _
  $region39: #{_lambda_.9} parent=0 // pred_check_branch
    %1473 = sbr.rel (0) target = $region41
  $region40: #{_lambda_.9} parent=0 // pred_region
    _
  $region41: #{_lambda_.9} parent=0 // pred_fallthru
    _

// kernel: _lambda_.12
$region0: #{_lambda_.12}
  #allocation0 [shape = 'u32[]', space=smem, size = 0x4, offset = 0x4, fixed_abs, tag = 'smem constant byte address 0x4 - core index']
  #allocation1 [shape = 'u32[72,128]{1,0:T(1,128)}', space=vmem, size = 0x9000, scoped, tag = 'internal scratch']
  %s0 = inlined_call_operand.vmem [shape: f32[32,256], index: 0, kind: input, shape index: {}]
  %s1 = inlined_call_operand.vmem [shape: f32[1,256], index: 1, kind: input, shape index: {}]
  %s2 = inlined_call_operand.vmem [shape: f32[1,256], index: 2, kind: input, shape index: {}]
  %s3 = inlined_call_operand.vmem [shape: f32[1,256], index: 3, kind: input, shape index: {}]
  %s4 = inlined_call_operand.vmem [shape: f32[1,256], index: 4, kind: input, shape index: {}]
  %s5 = inlined_call_operand.vmem [shape: f32[32,256], index: 5, kind: output, shape index: {}]
  %s6 = sld [smem:[#allocation0]]
  $region30: #{_lambda_.12} parent=0
    _
  %s8 = ssub.s32 1, %s6
  %s9 = scalar_select 0, %s8, %s6
  // Predicated region
  $region2: #{_lambda_.12} parent=0 // pred_check
    _
  $region3: #{_lambda_.12} parent=0 // pred_check_branch
    %11 = sbr.rel (0) target = $region5
  $region4: #{_lambda_.12} parent=0 // pred_region
    _
  $region5: #{_lambda_.12} parent=0 // pred_fallthru
    _
  // Predicated region
  $region6: #{_lambda_.12} parent=0 // pred_check
    _
  $region7: #{_lambda_.12} parent=0 // pred_check_branch
    %13 = sbr.rel (0) target = $region9
  $region8: #{_lambda_.12} parent=0 // pred_region
    _
  $region9: #{_lambda_.12} parent=0 // pred_fallthru
    _
  // Predicated region
  $region10: #{_lambda_.12} parent=0 // pred_check
    _
  $region11: #{_lambda_.12} parent=0 // pred_check_branch
    %15 = sbr.rel (0) target = $region13
  $region12: #{_lambda_.12} parent=0 // pred_region
    _
  $region13: #{_lambda_.12} parent=0 // pred_fallthru
    _
  // Predicated region
  $region14: #{_lambda_.12} parent=0 // pred_check
    _
  $region15: #{_lambda_.12} parent=0 // pred_check_branch
    %17 = sbr.rel (0) target = $region17
  $region16: #{_lambda_.12} parent=0 // pred_region
    _
  $region17: #{_lambda_.12} parent=0 // pred_fallthru
    _
  // Predicated region
  $region18: #{_lambda_.12} parent=0 // pred_check
    _
  $region19: #{_lambda_.12} parent=0 // pred_check_branch
    %19 = sbr.rel (0) target = $region21
  $region20: #{_lambda_.12} parent=0 // pred_region
    _
  $region21: #{_lambda_.12} parent=0 // pred_fallthru
    _
  %v20 = vld [vmem:[%s1] sm:$0x3]
  %v21 = vmul.f32 %v20, 0.03125
  %v22 = vld [vmem:[%s2] sm:$0x3]
  %v23 = vmul.f32 %v22, 0.03125
  %v24 = vmul.f32 %v21, %v21
  %v25 = vsub.f32 %v23, %v24
  %v26 = vmax.f32 %v25, 0.0
  %v27 = vld [vmem:[%s0] sm:$0xff]
  %v28 = vld [vmem:[%s0 + $0x8] sm:$0xff]
  %v29 = vld [vmem:[%s0 + $0x10] sm:$0xff]
  %v30 = vld [vmem:[%s0 + $0x18] sm:$0xff]
  %v31 = vld [vmem:[%s0 + $0x20] sm:$0xff]
  %v32 = vld [vmem:[%s0 + $0x28] sm:$0xff]
  %v33 = vld [vmem:[%s0 + $0x30] sm:$0xff]
  %v34 = vld [vmem:[%s0 + $0x38] sm:$0xff]
  %v36 = vperm.slane %v21, 0
  %v37 = vperm.slane %v21, 1
  %v40 = vsub.f32 %v27, %v36
  %v41 = vsub.f32 %v28, %v37
  %v42 = vsub.f32 %v29, %v36
  %v43 = vsub.f32 %v30, %v37
  %v44 = vsub.f32 %v31, %v36
  %v45 = vsub.f32 %v32, %v37
  %v46 = vsub.f32 %v33, %v36
  %v47 = vsub.f32 %v34, %v37
  %v48 = vadd.f32 %v26, 1e-05
  %v49 = vrsqrt.pop %v48
  %v50 = vmul.f32 %v49, %v48
  %v51 = vmul.f32 %v50, %v49
  %v52 = vmul.f32 0.5, %v51
  %v53 = vsub.f32 1.5, %v52
  %v54 = vmul.f32 %v49, %v53
  %vm55 = vweird.f32 %v48
  %vm56 = vweird.f32 %v49
  %vm57 = vmor %vm55, %vm56
  %v58 = vsel %vm57, %v49, %v54
  %v60 = vperm.slane %v58, 0
  %v61 = vperm.slane %v58, 1
  %v64 = vmul.f32 %v40, %v60
  %v65 = vmul.f32 %v41, %v61
  %v66 = vmul.f32 %v42, %v60
  %v67 = vmul.f32 %v43, %v61
  %v68 = vmul.f32 %v44, %v60
  %v69 = vmul.f32 %v45, %v61
  %v70 = vmul.f32 %v46, %v60
  %v71 = vmul.f32 %v47, %v61
  %v72 = vld [vmem:[%s3] sm:$0x3]
  %v74 = vperm.slane %v72, 0
  %v75 = vperm.slane %v72, 1
  %v78 = vmul.f32 %v64, %v74
  %v79 = vmul.f32 %v65, %v75
  %v80 = vmul.f32 %v66, %v74
  %v81 = vmul.f32 %v67, %v75
  %v82 = vmul.f32 %v68, %v74
  %v83 = vmul.f32 %v69, %v75
  %v84 = vmul.f32 %v70, %v74
  %v85 = vmul.f32 %v71, %v75
  %v86 = vld [vmem:[%s4] sm:$0x3]
  %v88 = vperm.slane %v86, 0
  %v89 = vperm.slane %v86, 1
  %v92 = vadd.f32 %v78, %v88
  %v93 = vadd.f32 %v79, %v89
  %v94 = vadd.f32 %v80, %v88
  %v95 = vadd.f32 %v81, %v89
  %v96 = vadd.f32 %v82, %v88
  %v97 = vadd.f32 %v83, %v89
  %v98 = vadd.f32 %v84, %v88
  %v99 = vadd.f32 %v85, %v89
  %vm100 = vcmp.ge.f32.partialorder %v92, 0.0
  %vm101 = vcmp.ge.f32.partialorder %v93, 0.0
  %vm102 = vcmp.ge.f32.partialorder %v94, 0.0
  %vm103 = vcmp.ge.f32.partialorder %v95, 0.0
  %vm104 = vcmp.ge.f32.partialorder %v96, 0.0
  %vm105 = vcmp.ge.f32.partialorder %v97, 0.0
  %vm106 = vcmp.ge.f32.partialorder %v98, 0.0
  %vm107 = vcmp.ge.f32.partialorder %v99, 0.0
  %v108 = vmul.f32 %v92, 0.2
  %v109 = vmul.f32 %v93, 0.2
  %v110 = vmul.f32 %v94, 0.2
  %v111 = vmul.f32 %v95, 0.2
  %v112 = vmul.f32 %v96, 0.2
  %v113 = vmul.f32 %v97, 0.2
  %v114 = vmul.f32 %v98, 0.2
  %v115 = vmul.f32 %v99, 0.2
  %v116 = vsel %vm100, %v92, %v108
  %v117 = vsel %vm101, %v93, %v109
  %v118 = vsel %vm102, %v94, %v110
  %v119 = vsel %vm103, %v95, %v111
  %v120 = vsel %vm104, %v96, %v112
  %v121 = vsel %vm105, %v97, %v113
  %v122 = vsel %vm106, %v98, %v114
  %v123 = vsel %vm107, %v99, %v115
  %124 = vst [vmem:[%s5] sm:$0xff] %v116
  %125 = vst [vmem:[%s5 + $0x8] sm:$0xff] %v117
  %126 = vst [vmem:[%s5 + $0x10] sm:$0xff] %v118
  %127 = vst [vmem:[%s5 + $0x18] sm:$0xff] %v119
  %128 = vst [vmem:[%s5 + $0x20] sm:$0xff] %v120
  %129 = vst [vmem:[%s5 + $0x28] sm:$0xff] %v121
  %130 = vst [vmem:[%s5 + $0x30] sm:$0xff] %v122
  %131 = vst [vmem:[%s5 + $0x38] sm:$0xff] %v123
  // Predicated region
  $region22: #{_lambda_.12} parent=0 // pred_check
    _
  $region23: #{_lambda_.12} parent=0 // pred_check_branch
    %133 = sbr.rel (0) target = $region25
  $region24: #{_lambda_.12} parent=0 // pred_region
    _
  $region25: #{_lambda_.12} parent=0 // pred_fallthru
    _
  // Predicated region
  $region26: #{_lambda_.12} parent=0 // pred_check
    _
  $region27: #{_lambda_.12} parent=0 // pred_check_branch
    %135 = sbr.rel (0) target = $region29
  $region28: #{_lambda_.12} parent=0 // pred_region
    _
  $region29: #{_lambda_.12} parent=0 // pred_fallthru
    _

// kernel: _lambda_.14
$region0: #{_lambda_.14}
  #allocation0 [shape = 'u32[]', space=smem, size = 0x4, offset = 0x4, fixed_abs, tag = 'smem constant byte address 0x4 - core index']
  #allocation1 [shape = 'u32[72,128]{1,0:T(1,128)}', space=vmem, size = 0x9000, scoped, tag = 'internal scratch']
  %s0 = inlined_call_operand.vmem [shape: f32[24,256], index: 0, kind: input, shape index: {}]
  %s1 = inlined_call_operand.vmem [shape: f32[1,256], index: 1, kind: input, shape index: {}]
  %s2 = inlined_call_operand.vmem [shape: f32[1,256], index: 2, kind: input, shape index: {}]
  %s3 = inlined_call_operand.vmem [shape: f32[1,256], index: 3, kind: input, shape index: {}]
  %s4 = inlined_call_operand.vmem [shape: f32[1,256], index: 4, kind: input, shape index: {}]
  %s5 = inlined_call_operand.vmem [shape: f32[24,256], index: 5, kind: output, shape index: {}]
  %s6 = sld [smem:[#allocation0]]
  $region30: #{_lambda_.14} parent=0
    _
  %s8 = ssub.s32 1, %s6
  %s9 = scalar_select 0, %s8, %s6
  // Predicated region
  $region2: #{_lambda_.14} parent=0 // pred_check
    _
  $region3: #{_lambda_.14} parent=0 // pred_check_branch
    %11 = sbr.rel (0) target = $region5
  $region4: #{_lambda_.14} parent=0 // pred_region
    _
  $region5: #{_lambda_.14} parent=0 // pred_fallthru
    _
  // Predicated region
  $region6: #{_lambda_.14} parent=0 // pred_check
    _
  $region7: #{_lambda_.14} parent=0 // pred_check_branch
    %13 = sbr.rel (0) target = $region9
  $region8: #{_lambda_.14} parent=0 // pred_region
    _
  $region9: #{_lambda_.14} parent=0 // pred_fallthru
    _
  // Predicated region
  $region10: #{_lambda_.14} parent=0 // pred_check
    _
  $region11: #{_lambda_.14} parent=0 // pred_check_branch
    %15 = sbr.rel (0) target = $region13
  $region12: #{_lambda_.14} parent=0 // pred_region
    _
  $region13: #{_lambda_.14} parent=0 // pred_fallthru
    _
  // Predicated region
  $region14: #{_lambda_.14} parent=0 // pred_check
    _
  $region15: #{_lambda_.14} parent=0 // pred_check_branch
    %17 = sbr.rel (0) target = $region17
  $region16: #{_lambda_.14} parent=0 // pred_region
    _
  $region17: #{_lambda_.14} parent=0 // pred_fallthru
    _
  // Predicated region
  $region18: #{_lambda_.14} parent=0 // pred_check
    _
  $region19: #{_lambda_.14} parent=0 // pred_check_branch
    %19 = sbr.rel (0) target = $region21
  $region20: #{_lambda_.14} parent=0 // pred_region
    _
  $region21: #{_lambda_.14} parent=0 // pred_fallthru
    _
  %v20 = vld [vmem:[%s1] sm:$0x3]
  %v21 = vmul.f32 %v20, 0.055555556
  %v22 = vld [vmem:[%s2] sm:$0x3]
  %v23 = vmul.f32 %v22, 0.055555556
  %v24 = vmul.f32 %v21, %v21
  %v25 = vsub.f32 %v23, %v24
  %v26 = vmax.f32 %v25, 0.0
  %v27 = vld [vmem:[%s0] sm:$0xff]
  %v28 = vld [vmem:[%s0 + $0x8] sm:$0xff]
  %v29 = vld [vmem:[%s0 + $0x10] sm:$0xff]
  %v30 = vld [vmem:[%s0 + $0x18] sm:$0xff]
  %v31 = vld [vmem:[%s0 + $0x20] sm:$0xff]
  %v32 = vld [vmem:[%s0 + $0x28] sm:$0xff]
  %v34 = vperm.slane %v21, 0
  %v35 = vperm.slane %v21, 1
  %v38 = vsub.f32 %v27, %v34
  %v39 = vsub.f32 %v28, %v35
  %v40 = vsub.f32 %v29, %v34
  %v41 = vsub.f32 %v30, %v35
  %v42 = vsub.f32 %v31, %v34
  %v43 = vsub.f32 %v32, %v35
  %v44 = vadd.f32 %v26, 1e-05
  %v45 = vrsqrt.pop %v44
  %v46 = vmul.f32 %v45, %v44
  %v47 = vmul.f32 %v46, %v45
  %v48 = vmul.f32 0.5, %v47
  %v49 = vsub.f32 1.5, %v48
  %v50 = vmul.f32 %v45, %v49
  %vm51 = vweird.f32 %v44
  %vm52 = vweird.f32 %v45
  %vm53 = vmor %vm51, %vm52
  %v54 = vsel %vm53, %v45, %v50
  %v56 = vperm.slane %v54, 0
  %v57 = vperm.slane %v54, 1
  %v60 = vmul.f32 %v38, %v56
  %v61 = vmul.f32 %v39, %v57
  %v62 = vmul.f32 %v40, %v56
  %v63 = vmul.f32 %v41, %v57
  %v64 = vmul.f32 %v42, %v56
  %v65 = vmul.f32 %v43, %v57
  %v66 = vld [vmem:[%s3] sm:$0x3]
  %v68 = vperm.slane %v66, 0
  %v69 = vperm.slane %v66, 1
  %v72 = vmul.f32 %v60, %v68
  %v73 = vmul.f32 %v61, %v69
  %v74 = vmul.f32 %v62, %v68
  %v75 = vmul.f32 %v63, %v69
  %v76 = vmul.f32 %v64, %v68
  %v77 = vmul.f32 %v65, %v69
  %v78 = vld [vmem:[%s4] sm:$0x3]
  %v80 = vperm.slane %v78, 0
  %v81 = vperm.slane %v78, 1
  %v84 = vadd.f32 %v72, %v80
  %v85 = vadd.f32 %v73, %v81
  %v86 = vadd.f32 %v74, %v80
  %v87 = vadd.f32 %v75, %v81
  %v88 = vadd.f32 %v76, %v80
  %v89 = vadd.f32 %v77, %v81
  %vm90 = vcmp.ge.f32.partialorder %v84, 0.0
  %vm91 = vcmp.ge.f32.partialorder %v85, 0.0
  %vm92 = vcmp.ge.f32.partialorder %v86, 0.0
  %vm93 = vcmp.ge.f32.partialorder %v87, 0.0
  %vm94 = vcmp.ge.f32.partialorder %v88, 0.0
  %vm95 = vcmp.ge.f32.partialorder %v89, 0.0
  %v96 = vmul.f32 %v84, 0.2
  %v97 = vmul.f32 %v85, 0.2
  %v98 = vmul.f32 %v86, 0.2
  %v99 = vmul.f32 %v87, 0.2
  %v100 = vmul.f32 %v88, 0.2
  %v101 = vmul.f32 %v89, 0.2
  %v102 = vsel %vm90, %v84, %v96
  %v103 = vsel %vm91, %v85, %v97
  %v104 = vsel %vm92, %v86, %v98
  %v105 = vsel %vm93, %v87, %v99
  %v106 = vsel %vm94, %v88, %v100
  %v107 = vsel %vm95, %v89, %v101
  %108 = vst [vmem:[%s5] sm:$0xff] %v102
  %109 = vst [vmem:[%s5 + $0x8] sm:$0xff] %v103
  %110 = vst [vmem:[%s5 + $0x10] sm:$0xff] %v104
  %111 = vst [vmem:[%s5 + $0x18] sm:$0xff] %v105
  %112 = vst [vmem:[%s5 + $0x20] sm:$0xff] %v106
  %113 = vst [vmem:[%s5 + $0x28] sm:$0xff] %v107
  // Predicated region
  $region22: #{_lambda_.14} parent=0 // pred_check
    _
  $region23: #{_lambda_.14} parent=0 // pred_check_branch
    %115 = sbr.rel (0) target = $region25
  $region24: #{_lambda_.14} parent=0 // pred_region
    _
  $region25: #{_lambda_.14} parent=0 // pred_fallthru
    _
  // Predicated region
  $region26: #{_lambda_.14} parent=0 // pred_check
    _
  $region27: #{_lambda_.14} parent=0 // pred_check_branch
    %117 = sbr.rel (0) target = $region29
  $region28: #{_lambda_.14} parent=0 // pred_region
    _
  $region29: #{_lambda_.14} parent=0 // pred_fallthru
    _

// kernel: _lambda_.11
$region0: #{_lambda_.11}
  #allocation0 [shape = 'u32[]', space=smem, size = 0x4, offset = 0x4, fixed_abs, tag = 'smem constant byte address 0x4 - core index']
  #allocation1 [shape = 'u32[72,128]{1,0:T(1,128)}', space=vmem, size = 0x9000, scoped, tag = 'internal scratch']
  %s0 = inlined_call_operand.vmem [shape: bf16[32,2048], index: 0, kind: input, shape index: {}]
  %s1 = inlined_call_operand.vmem [shape: bf16[2048,256], index: 1, kind: input, shape index: {}]
  %s2 = inlined_call_operand.vmem [shape: f32[1,256], index: 2, kind: input, shape index: {}]
  %s3 = inlined_call_operand.vmem [shape: f32[32,256], index: 3, kind: output, shape index: {0}]
  %s4 = inlined_call_operand.vmem [shape: f32[1,256], index: 4, kind: output, shape index: {1}]
  %s5 = inlined_call_operand.vmem [shape: f32[1,256], index: 5, kind: output, shape index: {2}]
  %6 = xla_tuple %s3, %s4, %s5
  %s7 = sld [smem:[#allocation0]]
  $region42: #{_lambda_.11} parent=0
    _
  %s9 = ssub.s32 1, %s7
  %s10 = scalar_select 0, %s9, %s7
  // Predicated region
  $region2: #{_lambda_.11} parent=0 // pred_check
    _
  $region3: #{_lambda_.11} parent=0 // pred_check_branch
    %12 = sbr.rel (0) target = $region5
  $region4: #{_lambda_.11} parent=0 // pred_region
    _
  $region5: #{_lambda_.11} parent=0 // pred_fallthru
    _
  // Predicated region
  $region6: #{_lambda_.11} parent=0 // pred_check
    _
  $region7: #{_lambda_.11} parent=0 // pred_check_branch
    %14 = sbr.rel (0) target = $region9
  $region8: #{_lambda_.11} parent=0 // pred_region
    _
  $region9: #{_lambda_.11} parent=0 // pred_fallthru
    _
  // Predicated region
  $region10: #{_lambda_.11} parent=0 // pred_check
    _
  $region11: #{_lambda_.11} parent=0 // pred_check_branch
    %16 = sbr.rel (0) target = $region13
  $region12: #{_lambda_.11} parent=0 // pred_region
    _
  $region13: #{_lambda_.11} parent=0 // pred_fallthru
    _
  %p17 = scmp.eq.s32.totalorder 0, 0
  // Predicated region
  $region14: #{_lambda_.11} parent=0 // pred_check
    %p18 = pneg %p17
  $region15: #{_lambda_.11} parent=0 // pred_check_branch
    %20 = sbr.rel (%p18) target = $region17
  $region16: #{_lambda_.11} parent=0 // pred_region
    %v21 = vlaneseq
    %vm22 = vcmp.ge.s32.totalorder %v21, 0
    %vm23 = vcmp.lt.s32.totalorder %v21, 256
    %vm24 = vmand %vm22, %vm23
    %25 = vst.msk [vmem:[%s4] sm:$0x3] %vm24, 0.0
    %26 = vst.msk [vmem:[%s5] sm:$0x3] %vm24, 0.0
  $region17: #{_lambda_.11} parent=0 // pred_fallthru
    _
  %v27 = vld [vmem:[%s0] sm:$0xff]
  %v28 = vld [vmem:[%s0 + $0x8] sm:$0xff]
  %v29 = vld [vmem:[%s0 + $0x10] sm:$0xff]
  %v30 = vld [vmem:[%s0 + $0x18] sm:$0xff]
  %v31 = vld [vmem:[%s0 + $0x20] sm:$0xff]
  %v32 = vld [vmem:[%s0 + $0x28] sm:$0xff]
  %v33 = vld [vmem:[%s0 + $0x30] sm:$0xff]
  %v34 = vld [vmem:[%s0 + $0x38] sm:$0xff]
  %v35 = vld [vmem:[%s0 + $0x40] sm:$0xff]
  %v36 = vld [vmem:[%s0 + $0x48] sm:$0xff]
  %v37 = vld [vmem:[%s0 + $0x50] sm:$0xff]
  %v38 = vld [vmem:[%s0 + $0x58] sm:$0xff]
  %v39 = vld [vmem:[%s0 + $0x60] sm:$0xff]
  %v40 = vld [vmem:[%s0 + $0x68] sm:$0xff]
  %v41 = vld [vmem:[%s0 + $0x70] sm:$0xff]
  %v42 = vld [vmem:[%s0 + $0x78] sm:$0xff]
  %v43 = vld [vmem:[%s0 + $0x80] sm:$0xff]
  %v44 = vld [vmem:[%s0 + $0x88] sm:$0xff]
  %v45 = vld [vmem:[%s0 + $0x90] sm:$0xff]
  %v46 = vld [vmem:[%s0 + $0x98] sm:$0xff]
  %v47 = vld [vmem:[%s0 + $0xa0] sm:$0xff]
  %v48 = vld [vmem:[%s0 + $0xa8] sm:$0xff]
  %v49 = vld [vmem:[%s0 + $0xb0] sm:$0xff]
  %v50 = vld [vmem:[%s0 + $0xb8] sm:$0xff]
  %v51 = vld [vmem:[%s0 + $0xc0] sm:$0xff]
  %v52 = vld [vmem:[%s0 + $0xc8] sm:$0xff]
  %v53 = vld [vmem:[%s0 + $0xd0] sm:$0xff]
  %v54 = vld [vmem:[%s0 + $0xd8] sm:$0xff]
  %v55 = vld [vmem:[%s0 + $0xe0] sm:$0xff]
  %v56 = vld [vmem:[%s0 + $0xe8] sm:$0xff]
  %v57 = vld [vmem:[%s0 + $0xf0] sm:$0xff]
  %v58 = vld [vmem:[%s0 + $0xf8] sm:$0xff]
  %v59 = vld [vmem:[%s1] sm:$0xff]
  %v60 = vld [vmem:[%s1 + $0x8] sm:$0xff]
  %v61 = vld [vmem:[%s1 + $0x10] sm:$0xff]
  %v62 = vld [vmem:[%s1 + $0x18] sm:$0xff]
  %v63 = vld [vmem:[%s1 + $0x20] sm:$0xff]
  %v64 = vld [vmem:[%s1 + $0x28] sm:$0xff]
  %v65 = vld [vmem:[%s1 + $0x30] sm:$0xff]
  %v66 = vld [vmem:[%s1 + $0x38] sm:$0xff]
  %v67 = vld [vmem:[%s1 + $0x40] sm:$0xff]
  %v68 = vld [vmem:[%s1 + $0x48] sm:$0xff]
  %v69 = vld [vmem:[%s1 + $0x50] sm:$0xff]
  %v70 = vld [vmem:[%s1 + $0x58] sm:$0xff]
  %v71 = vld [vmem:[%s1 + $0x60] sm:$0xff]
  %v72 = vld [vmem:[%s1 + $0x68] sm:$0xff]
  %v73 = vld [vmem:[%s1 + $0x70] sm:$0xff]
  %v74 = vld [vmem:[%s1 + $0x78] sm:$0xff]
  %v75 = vld [vmem:[%s1 + $0x80] sm:$0xff]
  %v76 = vld [vmem:[%s1 + $0x88] sm:$0xff]
  %v77 = vld [vmem:[%s1 + $0x90] sm:$0xff]
  %v78 = vld [vmem:[%s1 + $0x98] sm:$0xff]
  %v79 = vld [vmem:[%s1 + $0xa0] sm:$0xff]
  %v80 = vld [vmem:[%s1 + $0xa8] sm:$0xff]
  %v81 = vld [vmem:[%s1 + $0xb0] sm:$0xff]
  %v82 = vld [vmem:[%s1 + $0xb8] sm:$0xff]
  %v83 = vld [vmem:[%s1 + $0xc0] sm:$0xff]
  %v84 = vld [vmem:[%s1 + $0xc8] sm:$0xff]
  %v85 = vld [vmem:[%s1 + $0xd0] sm:$0xff]
  %v86 = vld [vmem:[%s1 + $0xd8] sm:$0xff]
  %v87 = vld [vmem:[%s1 + $0xe0] sm:$0xff]
  %v88 = vld [vmem:[%s1 + $0xe8] sm:$0xff]
  %v89 = vld [vmem:[%s1 + $0xf0] sm:$0xff]
  %v90 = vld [vmem:[%s1 + $0xf8] sm:$0xff]
  %v91 = vld [vmem:[%s1 + $0x100] sm:$0xff]
  %v92 = vld [vmem:[%s1 + $0x108] sm:$0xff]
  %v93 = vld [vmem:[%s1 + $0x110] sm:$0xff]
  %v94 = vld [vmem:[%s1 + $0x118] sm:$0xff]
  %v95 = vld [vmem:[%s1 + $0x120] sm:$0xff]
  %v96 = vld [vmem:[%s1 + $0x128] sm:$0xff]
  %v97 = vld [vmem:[%s1 + $0x130] sm:$0xff]
  %v98 = vld [vmem:[%s1 + $0x138] sm:$0xff]
  %v99 = vld [vmem:[%s1 + $0x140] sm:$0xff]
  %v100 = vld [vmem:[%s1 + $0x148] sm:$0xff]
  %v101 = vld [vmem:[%s1 + $0x150] sm:$0xff]
  %v102 = vld [vmem:[%s1 + $0x158] sm:$0xff]
  %v103 = vld [vmem:[%s1 + $0x160] sm:$0xff]
  %v104 = vld [vmem:[%s1 + $0x168] sm:$0xff]
  %v105 = vld [vmem:[%s1 + $0x170] sm:$0xff]
  %v106 = vld [vmem:[%s1 + $0x178] sm:$0xff]
  %v107 = vld [vmem:[%s1 + $0x180] sm:$0xff]
  %v108 = vld [vmem:[%s1 + $0x188] sm:$0xff]
  %v109 = vld [vmem:[%s1 + $0x190] sm:$0xff]
  %v110 = vld [vmem:[%s1 + $0x198] sm:$0xff]
  %v111 = vld [vmem:[%s1 + $0x1a0] sm:$0xff]
  %v112 = vld [vmem:[%s1 + $0x1a8] sm:$0xff]
  %v113 = vld [vmem:[%s1 + $0x1b0] sm:$0xff]
  %v114 = vld [vmem:[%s1 + $0x1b8] sm:$0xff]
  %v115 = vld [vmem:[%s1 + $0x1c0] sm:$0xff]
  %v116 = vld [vmem:[%s1 + $0x1c8] sm:$0xff]
  %v117 = vld [vmem:[%s1 + $0x1d0] sm:$0xff]
  %v118 = vld [vmem:[%s1 + $0x1d8] sm:$0xff]
  %v119 = vld [vmem:[%s1 + $0x1e0] sm:$0xff]
  %v120 = vld [vmem:[%s1 + $0x1e8] sm:$0xff]
  %v121 = vld [vmem:[%s1 + $0x1f0] sm:$0xff]
  %v122 = vld [vmem:[%s1 + $0x1f8] sm:$0xff]
  %v123 = vld [vmem:[%s1 + $0x200] sm:$0xff]
  %v124 = vld [vmem:[%s1 + $0x208] sm:$0xff]
  %v125 = vld [vmem:[%s1 + $0x210] sm:$0xff]
  %v126 = vld [vmem:[%s1 + $0x218] sm:$0xff]
  %v127 = vld [vmem:[%s1 + $0x220] sm:$0xff]
  %v128 = vld [vmem:[%s1 + $0x228] sm:$0xff]
  %v129 = vld [vmem:[%s1 + $0x230] sm:$0xff]
  %v130 = vld [vmem:[%s1 + $0x238] sm:$0xff]
  %v131 = vld [vmem:[%s1 + $0x240] sm:$0xff]
  %v132 = vld [vmem:[%s1 + $0x248] sm:$0xff]
  %v133 = vld [vmem:[%s1 + $0x250] sm:$0xff]
  %v134 = vld [vmem:[%s1 + $0x258] sm:$0xff]
  %v135 = vld [vmem:[%s1 + $0x260] sm:$0xff]
  %v136 = vld [vmem:[%s1 + $0x268] sm:$0xff]
  %v137 = vld [vmem:[%s1 + $0x270] sm:$0xff]
  %v138 = vld [vmem:[%s1 + $0x278] sm:$0xff]
  %v139 = vld [vmem:[%s1 + $0x280] sm:$0xff]
  %v140 = vld [vmem:[%s1 + $0x288] sm:$0xff]
  %v141 = vld [vmem:[%s1 + $0x290] sm:$0xff]
  %v142 = vld [vmem:[%s1 + $0x298] sm:$0xff]
  %v143 = vld [vmem:[%s1 + $0x2a0] sm:$0xff]
  %v144 = vld [vmem:[%s1 + $0x2a8] sm:$0xff]
  %v145 = vld [vmem:[%s1 + $0x2b0] sm:$0xff]
  %v146 = vld [vmem:[%s1 + $0x2b8] sm:$0xff]
  %v147 = vld [vmem:[%s1 + $0x2c0] sm:$0xff]
  %v148 = vld [vmem:[%s1 + $0x2c8] sm:$0xff]
  %v149 = vld [vmem:[%s1 + $0x2d0] sm:$0xff]
  %v150 = vld [vmem:[%s1 + $0x2d8] sm:$0xff]
  %v151 = vld [vmem:[%s1 + $0x2e0] sm:$0xff]
  %v152 = vld [vmem:[%s1 + $0x2e8] sm:$0xff]
  %v153 = vld [vmem:[%s1 + $0x2f0] sm:$0xff]
  %v154 = vld [vmem:[%s1 + $0x2f8] sm:$0xff]
  %v155 = vld [vmem:[%s1 + $0x300] sm:$0xff]
  %v156 = vld [vmem:[%s1 + $0x308] sm:$0xff]
  %v157 = vld [vmem:[%s1 + $0x310] sm:$0xff]
  %v158 = vld [vmem:[%s1 + $0x318] sm:$0xff]
  %v159 = vld [vmem:[%s1 + $0x320] sm:$0xff]
  %v160 = vld [vmem:[%s1 + $0x328] sm:$0xff]
  %v161 = vld [vmem:[%s1 + $0x330] sm:$0xff]
  %v162 = vld [vmem:[%s1 + $0x338] sm:$0xff]
  %v163 = vld [vmem:[%s1 + $0x340] sm:$0xff]
  %v164 = vld [vmem:[%s1 + $0x348] sm:$0xff]
  %v165 = vld [vmem:[%s1 + $0x350] sm:$0xff]
  %v166 = vld [vmem:[%s1 + $0x358] sm:$0xff]
  %v167 = vld [vmem:[%s1 + $0x360] sm:$0xff]
  %v168 = vld [vmem:[%s1 + $0x368] sm:$0xff]
  %v169 = vld [vmem:[%s1 + $0x370] sm:$0xff]
  %v170 = vld [vmem:[%s1 + $0x378] sm:$0xff]
  %v171 = vld [vmem:[%s1 + $0x380] sm:$0xff]
  %v172 = vld [vmem:[%s1 + $0x388] sm:$0xff]
  %v173 = vld [vmem:[%s1 + $0x390] sm:$0xff]
  %v174 = vld [vmem:[%s1 + $0x398] sm:$0xff]
  %v175 = vld [vmem:[%s1 + $0x3a0] sm:$0xff]
  %v176 = vld [vmem:[%s1 + $0x3a8] sm:$0xff]
  %v177 = vld [vmem:[%s1 + $0x3b0] sm:$0xff]
  %v178 = vld [vmem:[%s1 + $0x3b8] sm:$0xff]
  %v179 = vld [vmem:[%s1 + $0x3c0] sm:$0xff]
  %v180 = vld [vmem:[%s1 + $0x3c8] sm:$0xff]
  %v181 = vld [vmem:[%s1 + $0x3d0] sm:$0xff]
  %v182 = vld [vmem:[%s1 + $0x3d8] sm:$0xff]
  %v183 = vld [vmem:[%s1 + $0x3e0] sm:$0xff]
  %v184 = vld [vmem:[%s1 + $0x3e8] sm:$0xff]
  %v185 = vld [vmem:[%s1 + $0x3f0] sm:$0xff]
  %v186 = vld [vmem:[%s1 + $0x3f8] sm:$0xff]
  %v187 = vld [vmem:[%s1 + $0x400] sm:$0xff]
  %v188 = vld [vmem:[%s1 + $0x408] sm:$0xff]
  %v189 = vld [vmem:[%s1 + $0x410] sm:$0xff]
  %v190 = vld [vmem:[%s1 + $0x418] sm:$0xff]
  %v191 = vld [vmem:[%s1 + $0x420] sm:$0xff]
  %v192 = vld [vmem:[%s1 + $0x428] sm:$0xff]
  %v193 = vld [vmem:[%s1 + $0x430] sm:$0xff]
  %v194 = vld [vmem:[%s1 + $0x438] sm:$0xff]
  %v195 = vld [vmem:[%s1 + $0x440] sm:$0xff]
  %v196 = vld [vmem:[%s1 + $0x448] sm:$0xff]
  %v197 = vld [vmem:[%s1 + $0x450] sm:$0xff]
  %v198 = vld [vmem:[%s1 + $0x458] sm:$0xff]
  %v199 = vld [vmem:[%s1 + $0x460] sm:$0xff]
  %v200 = vld [vmem:[%s1 + $0x468] sm:$0xff]
  %v201 = vld [vmem:[%s1 + $0x470] sm:$0xff]
  %v202 = vld [vmem:[%s1 + $0x478] sm:$0xff]
  %v203 = vld [vmem:[%s1 + $0x480] sm:$0xff]
  %v204 = vld [vmem:[%s1 + $0x488] sm:$0xff]
  %v205 = vld [vmem:[%s1 + $0x490] sm:$0xff]
  %v206 = vld [vmem:[%s1 + $0x498] sm:$0xff]
  %v207 = vld [vmem:[%s1 + $0x4a0] sm:$0xff]
  %v208 = vld [vmem:[%s1 + $0x4a8] sm:$0xff]
  %v209 = vld [vmem:[%s1 + $0x4b0] sm:$0xff]
  %v210 = vld [vmem:[%s1 + $0x4b8] sm:$0xff]
  %v211 = vld [vmem:[%s1 + $0x4c0] sm:$0xff]
  %v212 = vld [vmem:[%s1 + $0x4c8] sm:$0xff]
  %v213 = vld [vmem:[%s1 + $0x4d0] sm:$0xff]
  %v214 = vld [vmem:[%s1 + $0x4d8] sm:$0xff]
  %v215 = vld [vmem:[%s1 + $0x4e0] sm:$0xff]
  %v216 = vld [vmem:[%s1 + $0x4e8] sm:$0xff]
  %v217 = vld [vmem:[%s1 + $0x4f0] sm:$0xff]
  %v218 = vld [vmem:[%s1 + $0x4f8] sm:$0xff]
  %v219 = vld [vmem:[%s1 + $0x500] sm:$0xff]
  %v220 = vld [vmem:[%s1 + $0x508] sm:$0xff]
  %v221 = vld [vmem:[%s1 + $0x510] sm:$0xff]
  %v222 = vld [vmem:[%s1 + $0x518] sm:$0xff]
  %v223 = vld [vmem:[%s1 + $0x520] sm:$0xff]
  %v224 = vld [vmem:[%s1 + $0x528] sm:$0xff]
  %v225 = vld [vmem:[%s1 + $0x530] sm:$0xff]
  %v226 = vld [vmem:[%s1 + $0x538] sm:$0xff]
  %v227 = vld [vmem:[%s1 + $0x540] sm:$0xff]
  %v228 = vld [vmem:[%s1 + $0x548] sm:$0xff]
  %v229 = vld [vmem:[%s1 + $0x550] sm:$0xff]
  %v230 = vld [vmem:[%s1 + $0x558] sm:$0xff]
  %v231 = vld [vmem:[%s1 + $0x560] sm:$0xff]
  %v232 = vld [vmem:[%s1 + $0x568] sm:$0xff]
  %v233 = vld [vmem:[%s1 + $0x570] sm:$0xff]
  %v234 = vld [vmem:[%s1 + $0x578] sm:$0xff]
  %v235 = vld [vmem:[%s1 + $0x580] sm:$0xff]
  %v236 = vld [vmem:[%s1 + $0x588] sm:$0xff]
  %v237 = vld [vmem:[%s1 + $0x590] sm:$0xff]
  %v238 = vld [vmem:[%s1 + $0x598] sm:$0xff]
  %v239 = vld [vmem:[%s1 + $0x5a0] sm:$0xff]
  %v240 = vld [vmem:[%s1 + $0x5a8] sm:$0xff]
  %v241 = vld [vmem:[%s1 + $0x5b0] sm:$0xff]
  %v242 = vld [vmem:[%s1 + $0x5b8] sm:$0xff]
  %v243 = vld [vmem:[%s1 + $0x5c0] sm:$0xff]
  %v244 = vld [vmem:[%s1 + $0x5c8] sm:$0xff]
  %v245 = vld [vmem:[%s1 + $0x5d0] sm:$0xff]
  %v246 = vld [vmem:[%s1 + $0x5d8] sm:$0xff]
  %v247 = vld [vmem:[%s1 + $0x5e0] sm:$0xff]
  %v248 = vld [vmem:[%s1 + $0x5e8] sm:$0xff]
  %v249 = vld [vmem:[%s1 + $0x5f0] sm:$0xff]
  %v250 = vld [vmem:[%s1 + $0x5f8] sm:$0xff]
  %v251 = vld [vmem:[%s1 + $0x600] sm:$0xff]
  %v252 = vld [vmem:[%s1 + $0x608] sm:$0xff]
  %v253 = vld [vmem:[%s1 + $0x610] sm:$0xff]
  %v254 = vld [vmem:[%s1 + $0x618] sm:$0xff]
  %v255 = vld [vmem:[%s1 + $0x620] sm:$0xff]
  %v256 = vld [vmem:[%s1 + $0x628] sm:$0xff]
  %v257 = vld [vmem:[%s1 + $0x630] sm:$0xff]
  %v258 = vld [vmem:[%s1 + $0x638] sm:$0xff]
  %v259 = vld [vmem:[%s1 + $0x640] sm:$0xff]
  %v260 = vld [vmem:[%s1 + $0x648] sm:$0xff]
  %v261 = vld [vmem:[%s1 + $0x650] sm:$0xff]
  %v262 = vld [vmem:[%s1 + $0x658] sm:$0xff]
  %v263 = vld [vmem:[%s1 + $0x660] sm:$0xff]
  %v264 = vld [vmem:[%s1 + $0x668] sm:$0xff]
  %v265 = vld [vmem:[%s1 + $0x670] sm:$0xff]
  %v266 = vld [vmem:[%s1 + $0x678] sm:$0xff]
  %v267 = vld [vmem:[%s1 + $0x680] sm:$0xff]
  %v268 = vld [vmem:[%s1 + $0x688] sm:$0xff]
  %v269 = vld [vmem:[%s1 + $0x690] sm:$0xff]
  %v270 = vld [vmem:[%s1 + $0x698] sm:$0xff]
  %v271 = vld [vmem:[%s1 + $0x6a0] sm:$0xff]
  %v272 = vld [vmem:[%s1 + $0x6a8] sm:$0xff]
  %v273 = vld [vmem:[%s1 + $0x6b0] sm:$0xff]
  %v274 = vld [vmem:[%s1 + $0x6b8] sm:$0xff]
  %v275 = vld [vmem:[%s1 + $0x6c0] sm:$0xff]
  %v276 = vld [vmem:[%s1 + $0x6c8] sm:$0xff]
  %v277 = vld [vmem:[%s1 + $0x6d0] sm:$0xff]
  %v278 = vld [vmem:[%s1 + $0x6d8] sm:$0xff]
  %v279 = vld [vmem:[%s1 + $0x6e0] sm:$0xff]
  %v280 = vld [vmem:[%s1 + $0x6e8] sm:$0xff]
  %v281 = vld [vmem:[%s1 + $0x6f0] sm:$0xff]
  %v282 = vld [vmem:[%s1 + $0x6f8] sm:$0xff]
  %v283 = vld [vmem:[%s1 + $0x700] sm:$0xff]
  %v284 = vld [vmem:[%s1 + $0x708] sm:$0xff]
  %v285 = vld [vmem:[%s1 + $0x710] sm:$0xff]
  %v286 = vld [vmem:[%s1 + $0x718] sm:$0xff]
  %v287 = vld [vmem:[%s1 + $0x720] sm:$0xff]
  %v288 = vld [vmem:[%s1 + $0x728] sm:$0xff]
  %v289 = vld [vmem:[%s1 + $0x730] sm:$0xff]
  %v290 = vld [vmem:[%s1 + $0x738] sm:$0xff]
  %v291 = vld [vmem:[%s1 + $0x740] sm:$0xff]
  %v292 = vld [vmem:[%s1 + $0x748] sm:$0xff]
  %v293 = vld [vmem:[%s1 + $0x750] sm:$0xff]
  %v294 = vld [vmem:[%s1 + $0x758] sm:$0xff]
  %v295 = vld [vmem:[%s1 + $0x760] sm:$0xff]
  %v296 = vld [vmem:[%s1 + $0x768] sm:$0xff]
  %v297 = vld [vmem:[%s1 + $0x770] sm:$0xff]
  %v298 = vld [vmem:[%s1 + $0x778] sm:$0xff]
  %v299 = vld [vmem:[%s1 + $0x780] sm:$0xff]
  %v300 = vld [vmem:[%s1 + $0x788] sm:$0xff]
  %v301 = vld [vmem:[%s1 + $0x790] sm:$0xff]
  %v302 = vld [vmem:[%s1 + $0x798] sm:$0xff]
  %v303 = vld [vmem:[%s1 + $0x7a0] sm:$0xff]
  %v304 = vld [vmem:[%s1 + $0x7a8] sm:$0xff]
  %v305 = vld [vmem:[%s1 + $0x7b0] sm:$0xff]
  %v306 = vld [vmem:[%s1 + $0x7b8] sm:$0xff]
  %v307 = vld [vmem:[%s1 + $0x7c0] sm:$0xff]
  %v308 = vld [vmem:[%s1 + $0x7c8] sm:$0xff]
  %v309 = vld [vmem:[%s1 + $0x7d0] sm:$0xff]
  %v310 = vld [vmem:[%s1 + $0x7d8] sm:$0xff]
  %v311 = vld [vmem:[%s1 + $0x7e0] sm:$0xff]
  %v312 = vld [vmem:[%s1 + $0x7e8] sm:$0xff]
  %v313 = vld [vmem:[%s1 + $0x7f0] sm:$0xff]
  %v314 = vld [vmem:[%s1 + $0x7f8] sm:$0xff]
  %v315 = vld [vmem:[%s2] sm:$0x3]
  %v317 = vperm.slane %v315, 0
  %v318 = vperm.slane %v315, 1
  %v353 = vunpack.c.l.b16 %v27
  %v354 = vunpack.c.h.b16 %v27
  %v355 = vunpack.c.l.b16 %v28
  %v356 = vunpack.c.h.b16 %v28
  %v357 = vunpack.c.l.b16 %v29
  %v358 = vunpack.c.h.b16 %v29
  %v359 = vunpack.c.l.b16 %v30
  %v360 = vunpack.c.h.b16 %v30
  %v361 = vunpack.c.l.b16 %v31
  %v362 = vunpack.c.h.b16 %v31
  %v363 = vunpack.c.l.b16 %v32
  %v364 = vunpack.c.h.b16 %v32
  %v365 = vunpack.c.l.b16 %v33
  %v366 = vunpack.c.h.b16 %v33
  %v367 = vunpack.c.l.b16 %v34
  %v368 = vunpack.c.h.b16 %v34
  %v369 = vunpack.c.l.b16 %v35
  %v370 = vunpack.c.h.b16 %v35
  %v371 = vunpack.c.l.b16 %v36
  %v372 = vunpack.c.h.b16 %v36
  %v373 = vunpack.c.l.b16 %v37
  %v374 = vunpack.c.h.b16 %v37
  %v375 = vunpack.c.l.b16 %v38
  %v376 = vunpack.c.h.b16 %v38
  %v377 = vunpack.c.l.b16 %v39
  %v378 = vunpack.c.h.b16 %v39
  %v379 = vunpack.c.l.b16 %v40
  %v380 = vunpack.c.h.b16 %v40
  %v381 = vunpack.c.l.b16 %v41
  %v382 = vunpack.c.h.b16 %v41
  %v383 = vunpack.c.l.b16 %v42
  %v384 = vunpack.c.h.b16 %v42
  %v385 = vunpack.c.l.b16 %v43
  %v386 = vunpack.c.h.b16 %v43
  %v387 = vunpack.c.l.b16 %v44
  %v388 = vunpack.c.h.b16 %v44
  %v389 = vunpack.c.l.b16 %v45
  %v390 = vunpack.c.h.b16 %v45
  %v391 = vunpack.c.l.b16 %v46
  %v392 = vunpack.c.h.b16 %v46
  %v393 = vunpack.c.l.b16 %v47
  %v394 = vunpack.c.h.b16 %v47
  %v395 = vunpack.c.l.b16 %v48
  %v396 = vunpack.c.h.b16 %v48
  %v397 = vunpack.c.l.b16 %v49
  %v398 = vunpack.c.h.b16 %v49
  %v399 = vunpack.c.l.b16 %v50
  %v400 = vunpack.c.h.b16 %v50
  %v401 = vunpack.c.l.b16 %v51
  %v402 = vunpack.c.h.b16 %v51
  %v403 = vunpack.c.l.b16 %v52
  %v404 = vunpack.c.h.b16 %v52
  %v405 = vunpack.c.l.b16 %v53
  %v406 = vunpack.c.h.b16 %v53
  %v407 = vunpack.c.l.b16 %v54
  %v408 = vunpack.c.h.b16 %v54
  %v409 = vunpack.c.l.b16 %v55
  %v410 = vunpack.c.h.b16 %v55
  %v411 = vunpack.c.l.b16 %v56
  %v412 = vunpack.c.h.b16 %v56
  %v413 = vunpack.c.l.b16 %v57
  %v414 = vunpack.c.h.b16 %v57
  %v415 = vunpack.c.l.b16 %v58
  %v416 = vunpack.c.h.b16 %v58
  %v417 = vpack.c.b16 %v369, %v353
  %v418 = vpack.c.b16 %v370, %v354
  %v419 = vpack.c.b16 %v371, %v355
  %v420 = vpack.c.b16 %v372, %v356
  %v421 = vpack.c.b16 %v373, %v357
  %v422 = vpack.c.b16 %v374, %v358
  %v423 = vpack.c.b16 %v375, %v359
  %v424 = vpack.c.b16 %v376, %v360
  %v425 = vpack.c.b16 %v377, %v361
  %v426 = vpack.c.b16 %v378, %v362
  %v427 = vpack.c.b16 %v379, %v363
  %v428 = vpack.c.b16 %v380, %v364
  %v429 = vpack.c.b16 %v381, %v365
  %v430 = vpack.c.b16 %v382, %v366
  %v431 = vpack.c.b16 %v383, %v367
  %v432 = vpack.c.b16 %v384, %v368
  %v433 = vpack.c.b16 %v401, %v385
  %v434 = vpack.c.b16 %v402, %v386
  %v435 = vpack.c.b16 %v403, %v387
  %v436 = vpack.c.b16 %v404, %v388
  %v437 = vpack.c.b16 %v405, %v389
  %v438 = vpack.c.b16 %v406, %v390
  %v439 = vpack.c.b16 %v407, %v391
  %v440 = vpack.c.b16 %v408, %v392
  %v441 = vpack.c.b16 %v409, %v393
  %v442 = vpack.c.b16 %v410, %v394
  %v443 = vpack.c.b16 %v411, %v395
  %v444 = vpack.c.b16 %v412, %v396
  %v445 = vpack.c.b16 %v413, %v397
  %v446 = vpack.c.b16 %v414, %v398
  %v447 = vpack.c.b16 %v415, %v399
  %v448 = vpack.c.b16 %v416, %v400
  %v737 = vunpack.c.l.b16 %v59
  %v738 = vunpack.c.h.b16 %v59
  %v739 = vunpack.c.l.b16 %v60
  %v740 = vunpack.c.h.b16 %v60
  %v741 = vunpack.c.l.b16 %v61
  %v742 = vunpack.c.h.b16 %v61
  %v743 = vunpack.c.l.b16 %v62
  %v744 = vunpack.c.h.b16 %v62
  %v745 = vunpack.c.l.b16 %v63
  %v746 = vunpack.c.h.b16 %v63
  %v747 = vunpack.c.l.b16 %v64
  %v748 = vunpack.c.h.b16 %v64
  %v749 = vunpack.c.l.b16 %v65
  %v750 = vunpack.c.h.b16 %v65
  %v751 = vunpack.c.l.b16 %v66
  %v752 = vunpack.c.h.b16 %v66
  %v753 = vunpack.c.l.b16 %v67
  %v754 = vunpack.c.h.b16 %v67
  %v755 = vunpack.c.l.b16 %v68
  %v756 = vunpack.c.h.b16 %v68
  %v757 = vunpack.c.l.b16 %v69
  %v758 = vunpack.c.h.b16 %v69
  %v759 = vunpack.c.l.b16 %v70
  %v760 = vunpack.c.h.b16 %v70
  %v761 = vunpack.c.l.b16 %v71
  %v762 = vunpack.c.h.b16 %v71
  %v763 = vunpack.c.l.b16 %v72
  %v764 = vunpack.c.h.b16 %v72
  %v765 = vunpack.c.l.b16 %v73
  %v766 = vunpack.c.h.b16 %v73
  %v767 = vunpack.c.l.b16 %v74
  %v768 = vunpack.c.h.b16 %v74
  %v769 = vunpack.c.l.b16 %v75
  %v770 = vunpack.c.h.b16 %v75
  %v771 = vunpack.c.l.b16 %v76
  %v772 = vunpack.c.h.b16 %v76
  %v773 = vunpack.c.l.b16 %v77
  %v774 = vunpack.c.h.b16 %v77
  %v775 = vunpack.c.l.b16 %v78
  %v776 = vunpack.c.h.b16 %v78
  %v777 = vunpack.c.l.b16 %v79
  %v778 = vunpack.c.h.b16 %v79
  %v779 = vunpack.c.l.b16 %v80
  %v780 = vunpack.c.h.b16 %v80
  %v781 = vunpack.c.l.b16 %v81
  %v782 = vunpack.c.h.b16 %v81
  %v783 = vunpack.c.l.b16 %v82
  %v784 = vunpack.c.h.b16 %v82
  %v785 = vunpack.c.l.b16 %v83
  %v786 = vunpack.c.h.b16 %v83
  %v787 = vunpack.c.l.b16 %v84
  %v788 = vunpack.c.h.b16 %v84
  %v789 = vunpack.c.l.b16 %v85
  %v790 = vunpack.c.h.b16 %v85
  %v791 = vunpack.c.l.b16 %v86
  %v792 = vunpack.c.h.b16 %v86
  %v793 = vunpack.c.l.b16 %v87
  %v794 = vunpack.c.h.b16 %v87
  %v795 = vunpack.c.l.b16 %v88
  %v796 = vunpack.c.h.b16 %v88
  %v797 = vunpack.c.l.b16 %v89
  %v798 = vunpack.c.h.b16 %v89
  %v799 = vunpack.c.l.b16 %v90
  %v800 = vunpack.c.h.b16 %v90
  %v801 = vunpack.c.l.b16 %v91
  %v802 = vunpack.c.h.b16 %v91
  %v803 = vunpack.c.l.b16 %v92
  %v804 = vunpack.c.h.b16 %v92
  %v805 = vunpack.c.l.b16 %v93
  %v806 = vunpack.c.h.b16 %v93
  %v807 = vunpack.c.l.b16 %v94
  %v808 = vunpack.c.h.b16 %v94
  %v809 = vunpack.c.l.b16 %v95
  %v810 = vunpack.c.h.b16 %v95
  %v811 = vunpack.c.l.b16 %v96
  %v812 = vunpack.c.h.b16 %v96
  %v813 = vunpack.c.l.b16 %v97
  %v814 = vunpack.c.h.b16 %v97
  %v815 = vunpack.c.l.b16 %v98
  %v816 = vunpack.c.h.b16 %v98
  %v817 = vunpack.c.l.b16 %v99
  %v818 = vunpack.c.h.b16 %v99
  %v819 = vunpack.c.l.b16 %v100
  %v820 = vunpack.c.h.b16 %v100
  %v821 = vunpack.c.l.b16 %v101
  %v822 = vunpack.c.h.b16 %v101
  %v823 = vunpack.c.l.b16 %v102
  %v824 = vunpack.c.h.b16 %v102
  %v825 = vunpack.c.l.b16 %v103
  %v826 = vunpack.c.h.b16 %v103
  %v827 = vunpack.c.l.b16 %v104
  %v828 = vunpack.c.h.b16 %v104
  %v829 = vunpack.c.l.b16 %v105
  %v830 = vunpack.c.h.b16 %v105
  %v831 = vunpack.c.l.b16 %v106
  %v832 = vunpack.c.h.b16 %v106
  %v833 = vunpack.c.l.b16 %v107
  %v834 = vunpack.c.h.b16 %v107
  %v835 = vunpack.c.l.b16 %v108
  %v836 = vunpack.c.h.b16 %v108
  %v837 = vunpack.c.l.b16 %v109
  %v838 = vunpack.c.h.b16 %v109
  %v839 = vunpack.c.l.b16 %v110
  %v840 = vunpack.c.h.b16 %v110
  %v841 = vunpack.c.l.b16 %v111
  %v842 = vunpack.c.h.b16 %v111
  %v843 = vunpack.c.l.b16 %v112
  %v844 = vunpack.c.h.b16 %v112
  %v845 = vunpack.c.l.b16 %v113
  %v846 = vunpack.c.h.b16 %v113
  %v847 = vunpack.c.l.b16 %v114
  %v848 = vunpack.c.h.b16 %v114
  %v849 = vunpack.c.l.b16 %v115
  %v850 = vunpack.c.h.b16 %v115
  %v851 = vunpack.c.l.b16 %v116
  %v852 = vunpack.c.h.b16 %v116
  %v853 = vunpack.c.l.b16 %v117
  %v854 = vunpack.c.h.b16 %v117
  %v855 = vunpack.c.l.b16 %v118
  %v856 = vunpack.c.h.b16 %v118
  %v857 = vunpack.c.l.b16 %v119
  %v858 = vunpack.c.h.b16 %v119
  %v859 = vunpack.c.l.b16 %v120
  %v860 = vunpack.c.h.b16 %v120
  %v861 = vunpack.c.l.b16 %v121
  %v862 = vunpack.c.h.b16 %v121
  %v863 = vunpack.c.l.b16 %v122
  %v864 = vunpack.c.h.b16 %v122
  %v865 = vunpack.c.l.b16 %v123
  %v866 = vunpack.c.h.b16 %v123
  %v867 = vunpack.c.l.b16 %v124
  %v868 = vunpack.c.h.b16 %v124
  %v869 = vunpack.c.l.b16 %v125
  %v870 = vunpack.c.h.b16 %v125
  %v871 = vunpack.c.l.b16 %v126
  %v872 = vunpack.c.h.b16 %v126
  %v873 = vunpack.c.l.b16 %v127
  %v874 = vunpack.c.h.b16 %v127
  %v875 = vunpack.c.l.b16 %v128
  %v876 = vunpack.c.h.b16 %v128
  %v877 = vunpack.c.l.b16 %v129
  %v878 = vunpack.c.h.b16 %v129
  %v879 = vunpack.c.l.b16 %v130
  %v880 = vunpack.c.h.b16 %v130
  %v881 = vunpack.c.l.b16 %v131
  %v882 = vunpack.c.h.b16 %v131
  %v883 = vunpack.c.l.b16 %v132
  %v884 = vunpack.c.h.b16 %v132
  %v885 = vunpack.c.l.b16 %v133
  %v886 = vunpack.c.h.b16 %v133
  %v887 = vunpack.c.l.b16 %v134
  %v888 = vunpack.c.h.b16 %v134
  %v889 = vunpack.c.l.b16 %v135
  %v890 = vunpack.c.h.b16 %v135
  %v891 = vunpack.c.l.b16 %v136
  %v892 = vunpack.c.h.b16 %v136
  %v893 = vunpack.c.l.b16 %v137
  %v894 = vunpack.c.h.b16 %v137
  %v895 = vunpack.c.l.b16 %v138
  %v896 = vunpack.c.h.b16 %v138
  %v897 = vunpack.c.l.b16 %v139
  %v898 = vunpack.c.h.b16 %v139
  %v899 = vunpack.c.l.b16 %v140
  %v900 = vunpack.c.h.b16 %v140
  %v901 = vunpack.c.l.b16 %v141
  %v902 = vunpack.c.h.b16 %v141
  %v903 = vunpack.c.l.b16 %v142
  %v904 = vunpack.c.h.b16 %v142
  %v905 = vunpack.c.l.b16 %v143
  %v906 = vunpack.c.h.b16 %v143
  %v907 = vunpack.c.l.b16 %v144
  %v908 = vunpack.c.h.b16 %v144
  %v909 = vunpack.c.l.b16 %v145
  %v910 = vunpack.c.h.b16 %v145
  %v911 = vunpack.c.l.b16 %v146
  %v912 = vunpack.c.h.b16 %v146
  %v913 = vunpack.c.l.b16 %v147
  %v914 = vunpack.c.h.b16 %v147
  %v915 = vunpack.c.l.b16 %v148
  %v916 = vunpack.c.h.b16 %v148
  %v917 = vunpack.c.l.b16 %v149
  %v918 = vunpack.c.h.b16 %v149
  %v919 = vunpack.c.l.b16 %v150
  %v920 = vunpack.c.h.b16 %v150
  %v921 = vunpack.c.l.b16 %v151
  %v922 = vunpack.c.h.b16 %v151
  %v923 = vunpack.c.l.b16 %v152
  %v924 = vunpack.c.h.b16 %v152
  %v925 = vunpack.c.l.b16 %v153
  %v926 = vunpack.c.h.b16 %v153
  %v927 = vunpack.c.l.b16 %v154
  %v928 = vunpack.c.h.b16 %v154
  %v929 = vunpack.c.l.b16 %v155
  %v930 = vunpack.c.h.b16 %v155
  %v931 = vunpack.c.l.b16 %v156
  %v932 = vunpack.c.h.b16 %v156
  %v933 = vunpack.c.l.b16 %v157
  %v934 = vunpack.c.h.b16 %v157
  %v935 = vunpack.c.l.b16 %v158
  %v936 = vunpack.c.h.b16 %v158
  %v937 = vunpack.c.l.b16 %v159
  %v938 = vunpack.c.h.b16 %v159
  %v939 = vunpack.c.l.b16 %v160
  %v940 = vunpack.c.h.b16 %v160
  %v941 = vunpack.c.l.b16 %v161
  %v942 = vunpack.c.h.b16 %v161
  %v943 = vunpack.c.l.b16 %v162
  %v944 = vunpack.c.h.b16 %v162
  %v945 = vunpack.c.l.b16 %v163
  %v946 = vunpack.c.h.b16 %v163
  %v947 = vunpack.c.l.b16 %v164
  %v948 = vunpack.c.h.b16 %v164
  %v949 = vunpack.c.l.b16 %v165
  %v950 = vunpack.c.h.b16 %v165
  %v951 = vunpack.c.l.b16 %v166
  %v952 = vunpack.c.h.b16 %v166
  %v953 = vunpack.c.l.b16 %v167
  %v954 = vunpack.c.h.b16 %v167
  %v955 = vunpack.c.l.b16 %v168
  %v956 = vunpack.c.h.b16 %v168
  %v957 = vunpack.c.l.b16 %v169
  %v958 = vunpack.c.h.b16 %v169
  %v959 = vunpack.c.l.b16 %v170
  %v960 = vunpack.c.h.b16 %v170
  %v961 = vunpack.c.l.b16 %v171
  %v962 = vunpack.c.h.b16 %v171
  %v963 = vunpack.c.l.b16 %v172
  %v964 = vunpack.c.h.b16 %v172
  %v965 = vunpack.c.l.b16 %v173
  %v966 = vunpack.c.h.b16 %v173
  %v967 = vunpack.c.l.b16 %v174
  %v968 = vunpack.c.h.b16 %v174
  %v969 = vunpack.c.l.b16 %v175
  %v970 = vunpack.c.h.b16 %v175
  %v971 = vunpack.c.l.b16 %v176
  %v972 = vunpack.c.h.b16 %v176
  %v973 = vunpack.c.l.b16 %v177
  %v974 = vunpack.c.h.b16 %v177
  %v975 = vunpack.c.l.b16 %v178
  %v976 = vunpack.c.h.b16 %v178
  %v977 = vunpack.c.l.b16 %v179
  %v978 = vunpack.c.h.b16 %v179
  %v979 = vunpack.c.l.b16 %v180
  %v980 = vunpack.c.h.b16 %v180
  %v981 = vunpack.c.l.b16 %v181
  %v982 = vunpack.c.h.b16 %v181
  %v983 = vunpack.c.l.b16 %v182
  %v984 = vunpack.c.h.b16 %v182
  %v985 = vunpack.c.l.b16 %v183
  %v986 = vunpack.c.h.b16 %v183
  %v987 = vunpack.c.l.b16 %v184
  %v988 = vunpack.c.h.b16 %v184
  %v989 = vunpack.c.l.b16 %v185
  %v990 = vunpack.c.h.b16 %v185
  %v991 = vunpack.c.l.b16 %v186
  %v992 = vunpack.c.h.b16 %v186
  %v993 = vunpack.c.l.b16 %v187
  %v994 = vunpack.c.h.b16 %v187
  %v995 = vunpack.c.l.b16 %v188
  %v996 = vunpack.c.h.b16 %v188
  %v997 = vunpack.c.l.b16 %v189
  %v998 = vunpack.c.h.b16 %v189
  %v999 = vunpack.c.l.b16 %v190
  %v1000 = vunpack.c.h.b16 %v190
  %v1001 = vunpack.c.l.b16 %v191
  %v1002 = vunpack.c.h.b16 %v191
  %v1003 = vunpack.c.l.b16 %v192
  %v1004 = vunpack.c.h.b16 %v192
  %v1005 = vunpack.c.l.b16 %v193
  %v1006 = vunpack.c.h.b16 %v193
  %v1007 = vunpack.c.l.b16 %v194
  %v1008 = vunpack.c.h.b16 %v194
  %v1009 = vunpack.c.l.b16 %v195
  %v1010 = vunpack.c.h.b16 %v195
  %v1011 = vunpack.c.l.b16 %v196
  %v1012 = vunpack.c.h.b16 %v196
  %v1013 = vunpack.c.l.b16 %v197
  %v1014 = vunpack.c.h.b16 %v197
  %v1015 = vunpack.c.l.b16 %v198
  %v1016 = vunpack.c.h.b16 %v198
  %v1017 = vunpack.c.l.b16 %v199
  %v1018 = vunpack.c.h.b16 %v199
  %v1019 = vunpack.c.l.b16 %v200
  %v1020 = vunpack.c.h.b16 %v200
  %v1021 = vunpack.c.l.b16 %v201
  %v1022 = vunpack.c.h.b16 %v201
  %v1023 = vunpack.c.l.b16 %v202
  %v1024 = vunpack.c.h.b16 %v202
  %v1025 = vunpack.c.l.b16 %v203
  %v1026 = vunpack.c.h.b16 %v203
  %v1027 = vunpack.c.l.b16 %v204
  %v1028 = vunpack.c.h.b16 %v204
  %v1029 = vunpack.c.l.b16 %v205
  %v1030 = vunpack.c.h.b16 %v205
  %v1031 = vunpack.c.l.b16 %v206
  %v1032 = vunpack.c.h.b16 %v206
  %v1033 = vunpack.c.l.b16 %v207
  %v1034 = vunpack.c.h.b16 %v207
  %v1035 = vunpack.c.l.b16 %v208
  %v1036 = vunpack.c.h.b16 %v208
  %v1037 = vunpack.c.l.b16 %v209
  %v1038 = vunpack.c.h.b16 %v209
  %v1039 = vunpack.c.l.b16 %v210
  %v1040 = vunpack.c.h.b16 %v210
  %v1041 = vunpack.c.l.b16 %v211
  %v1042 = vunpack.c.h.b16 %v211
  %v1043 = vunpack.c.l.b16 %v212
  %v1044 = vunpack.c.h.b16 %v212
  %v1045 = vunpack.c.l.b16 %v213
  %v1046 = vunpack.c.h.b16 %v213
  %v1047 = vunpack.c.l.b16 %v214
  %v1048 = vunpack.c.h.b16 %v214
  %v1049 = vunpack.c.l.b16 %v215
  %v1050 = vunpack.c.h.b16 %v215
  %v1051 = vunpack.c.l.b16 %v216
  %v1052 = vunpack.c.h.b16 %v216
  %v1053 = vunpack.c.l.b16 %v217
  %v1054 = vunpack.c.h.b16 %v217
  %v1055 = vunpack.c.l.b16 %v218
  %v1056 = vunpack.c.h.b16 %v218
  %v1057 = vunpack.c.l.b16 %v219
  %v1058 = vunpack.c.h.b16 %v219
  %v1059 = vunpack.c.l.b16 %v220
  %v1060 = vunpack.c.h.b16 %v220
  %v1061 = vunpack.c.l.b16 %v221
  %v1062 = vunpack.c.h.b16 %v221
  %v1063 = vunpack.c.l.b16 %v222
  %v1064 = vunpack.c.h.b16 %v222
  %v1065 = vunpack.c.l.b16 %v223
  %v1066 = vunpack.c.h.b16 %v223
  %v1067 = vunpack.c.l.b16 %v224
  %v1068 = vunpack.c.h.b16 %v224
  %v1069 = vunpack.c.l.b16 %v225
  %v1070 = vunpack.c.h.b16 %v225
  %v1071 = vunpack.c.l.b16 %v226
  %v1072 = vunpack.c.h.b16 %v226
  %v1073 = vunpack.c.l.b16 %v227
  %v1074 = vunpack.c.h.b16 %v227
  %v1075 = vunpack.c.l.b16 %v228
  %v1076 = vunpack.c.h.b16 %v228
  %v1077 = vunpack.c.l.b16 %v229
  %v1078 = vunpack.c.h.b16 %v229
  %v1079 = vunpack.c.l.b16 %v230
  %v1080 = vunpack.c.h.b16 %v230
  %v1081 = vunpack.c.l.b16 %v231
  %v1082 = vunpack.c.h.b16 %v231
  %v1083 = vunpack.c.l.b16 %v232
  %v1084 = vunpack.c.h.b16 %v232
  %v1085 = vunpack.c.l.b16 %v233
  %v1086 = vunpack.c.h.b16 %v233
  %v1087 = vunpack.c.l.b16 %v234
  %v1088 = vunpack.c.h.b16 %v234
  %v1089 = vunpack.c.l.b16 %v235
  %v1090 = vunpack.c.h.b16 %v235
  %v1091 = vunpack.c.l.b16 %v236
  %v1092 = vunpack.c.h.b16 %v236
  %v1093 = vunpack.c.l.b16 %v237
  %v1094 = vunpack.c.h.b16 %v237
  %v1095 = vunpack.c.l.b16 %v238
  %v1096 = vunpack.c.h.b16 %v238
  %v1097 = vunpack.c.l.b16 %v239
  %v1098 = vunpack.c.h.b16 %v239
  %v1099 = vunpack.c.l.b16 %v240
  %v1100 = vunpack.c.h.b16 %v240
  %v1101 = vunpack.c.l.b16 %v241
  %v1102 = vunpack.c.h.b16 %v241
  %v1103 = vunpack.c.l.b16 %v242
  %v1104 = vunpack.c.h.b16 %v242
  %v1105 = vunpack.c.l.b16 %v243
  %v1106 = vunpack.c.h.b16 %v243
  %v1107 = vunpack.c.l.b16 %v244
  %v1108 = vunpack.c.h.b16 %v244
  %v1109 = vunpack.c.l.b16 %v245
  %v1110 = vunpack.c.h.b16 %v245
  %v1111 = vunpack.c.l.b16 %v246
  %v1112 = vunpack.c.h.b16 %v246
  %v1113 = vunpack.c.l.b16 %v247
  %v1114 = vunpack.c.h.b16 %v247
  %v1115 = vunpack.c.l.b16 %v248
  %v1116 = vunpack.c.h.b16 %v248
  %v1117 = vunpack.c.l.b16 %v249
  %v1118 = vunpack.c.h.b16 %v249
  %v1119 = vunpack.c.l.b16 %v250
  %v1120 = vunpack.c.h.b16 %v250
  %v1121 = vunpack.c.l.b16 %v251
  %v1122 = vunpack.c.h.b16 %v251
  %v1123 = vunpack.c.l.b16 %v252
  %v1124 = vunpack.c.h.b16 %v252
  %v1125 = vunpack.c.l.b16 %v253
  %v1126 = vunpack.c.h.b16 %v253
  %v1127 = vunpack.c.l.b16 %v254
  %v1128 = vunpack.c.h.b16 %v254
  %v1129 = vunpack.c.l.b16 %v255
  %v1130 = vunpack.c.h.b16 %v255
  %v1131 = vunpack.c.l.b16 %v256
  %v1132 = vunpack.c.h.b16 %v256
  %v1133 = vunpack.c.l.b16 %v257
  %v1134 = vunpack.c.h.b16 %v257
  %v1135 = vunpack.c.l.b16 %v258
  %v1136 = vunpack.c.h.b16 %v258
  %v1137 = vunpack.c.l.b16 %v259
  %v1138 = vunpack.c.h.b16 %v259
  %v1139 = vunpack.c.l.b16 %v260
  %v1140 = vunpack.c.h.b16 %v260
  %v1141 = vunpack.c.l.b16 %v261
  %v1142 = vunpack.c.h.b16 %v261
  %v1143 = vunpack.c.l.b16 %v262
  %v1144 = vunpack.c.h.b16 %v262
  %v1145 = vunpack.c.l.b16 %v263
  %v1146 = vunpack.c.h.b16 %v263
  %v1147 = vunpack.c.l.b16 %v264
  %v1148 = vunpack.c.h.b16 %v264
  %v1149 = vunpack.c.l.b16 %v265
  %v1150 = vunpack.c.h.b16 %v265
  %v1151 = vunpack.c.l.b16 %v266
  %v1152 = vunpack.c.h.b16 %v266
  %v1153 = vunpack.c.l.b16 %v267
  %v1154 = vunpack.c.h.b16 %v267
  %v1155 = vunpack.c.l.b16 %v268
  %v1156 = vunpack.c.h.b16 %v268
  %v1157 = vunpack.c.l.b16 %v269
  %v1158 = vunpack.c.h.b16 %v269
  %v1159 = vunpack.c.l.b16 %v270
  %v1160 = vunpack.c.h.b16 %v270
  %v1161 = vunpack.c.l.b16 %v271
  %v1162 = vunpack.c.h.b16 %v271
  %v1163 = vunpack.c.l.b16 %v272
  %v1164 = vunpack.c.h.b16 %v272
  %v1165 = vunpack.c.l.b16 %v273
  %v1166 = vunpack.c.h.b16 %v273
  %v1167 = vunpack.c.l.b16 %v274
  %v1168 = vunpack.c.h.b16 %v274
  %v1169 = vunpack.c.l.b16 %v275
  %v1170 = vunpack.c.h.b16 %v275
  %v1171 = vunpack.c.l.b16 %v276
  %v1172 = vunpack.c.h.b16 %v276
  %v1173 = vunpack.c.l.b16 %v277
  %v1174 = vunpack.c.h.b16 %v277
  %v1175 = vunpack.c.l.b16 %v278
  %v1176 = vunpack.c.h.b16 %v278
  %v1177 = vunpack.c.l.b16 %v279
  %v1178 = vunpack.c.h.b16 %v279
  %v1179 = vunpack.c.l.b16 %v280
  %v1180 = vunpack.c.h.b16 %v280
  %v1181 = vunpack.c.l.b16 %v281
  %v1182 = vunpack.c.h.b16 %v281
  %v1183 = vunpack.c.l.b16 %v282
  %v1184 = vunpack.c.h.b16 %v282
  %v1185 = vunpack.c.l.b16 %v283
  %v1186 = vunpack.c.h.b16 %v283
  %v1187 = vunpack.c.l.b16 %v284
  %v1188 = vunpack.c.h.b16 %v284
  %v1189 = vunpack.c.l.b16 %v285
  %v1190 = vunpack.c.h.b16 %v285
  %v1191 = vunpack.c.l.b16 %v286
  %v1192 = vunpack.c.h.b16 %v286
  %v1193 = vunpack.c.l.b16 %v287
  %v1194 = vunpack.c.h.b16 %v287
  %v1195 = vunpack.c.l.b16 %v288
  %v1196 = vunpack.c.h.b16 %v288
  %v1197 = vunpack.c.l.b16 %v289
  %v1198 = vunpack.c.h.b16 %v289
  %v1199 = vunpack.c.l.b16 %v290
  %v1200 = vunpack.c.h.b16 %v290
  %v1201 = vunpack.c.l.b16 %v291
  %v1202 = vunpack.c.h.b16 %v291
  %v1203 = vunpack.c.l.b16 %v292
  %v1204 = vunpack.c.h.b16 %v292
  %v1205 = vunpack.c.l.b16 %v293
  %v1206 = vunpack.c.h.b16 %v293
  %v1207 = vunpack.c.l.b16 %v294
  %v1208 = vunpack.c.h.b16 %v294
  %v1209 = vunpack.c.l.b16 %v295
  %v1210 = vunpack.c.h.b16 %v295
  %v1211 = vunpack.c.l.b16 %v296
  %v1212 = vunpack.c.h.b16 %v296
  %v1213 = vunpack.c.l.b16 %v297
  %v1214 = vunpack.c.h.b16 %v297
  %v1215 = vunpack.c.l.b16 %v298
  %v1216 = vunpack.c.h.b16 %v298
  %v1217 = vunpack.c.l.b16 %v299
  %v1218 = vunpack.c.h.b16 %v299
  %v1219 = vunpack.c.l.b16 %v300
  %v1220 = vunpack.c.h.b16 %v300
  %v1221 = vunpack.c.l.b16 %v301
  %v1222 = vunpack.c.h.b16 %v301
  %v1223 = vunpack.c.l.b16 %v302
  %v1224 = vunpack.c.h.b16 %v302
  %v1225 = vunpack.c.l.b16 %v303
  %v1226 = vunpack.c.h.b16 %v303
  %v1227 = vunpack.c.l.b16 %v304
  %v1228 = vunpack.c.h.b16 %v304
  %v1229 = vunpack.c.l.b16 %v305
  %v1230 = vunpack.c.h.b16 %v305
  %v1231 = vunpack.c.l.b16 %v306
  %v1232 = vunpack.c.h.b16 %v306
  %v1233 = vunpack.c.l.b16 %v307
  %v1234 = vunpack.c.h.b16 %v307
  %v1235 = vunpack.c.l.b16 %v308
  %v1236 = vunpack.c.h.b16 %v308
  %v1237 = vunpack.c.l.b16 %v309
  %v1238 = vunpack.c.h.b16 %v309
  %v1239 = vunpack.c.l.b16 %v310
  %v1240 = vunpack.c.h.b16 %v310
  %v1241 = vunpack.c.l.b16 %v311
  %v1242 = vunpack.c.h.b16 %v311
  %v1243 = vunpack.c.l.b16 %v312
  %v1244 = vunpack.c.h.b16 %v312
  %v1245 = vunpack.c.l.b16 %v313
  %v1246 = vunpack.c.h.b16 %v313
  %v1247 = vunpack.c.l.b16 %v314
  %v1248 = vunpack.c.h.b16 %v314
  %v1249 = vpack.c.b16 %v739, %v737
  %v1250 = vpack.c.b16 %v740, %v738
  %v1251 = vpack.c.b16 %v743, %v741
  %v1252 = vpack.c.b16 %v744, %v742
  %v1253 = vpack.c.b16 %v747, %v745
  %v1254 = vpack.c.b16 %v748, %v746
  %v1255 = vpack.c.b16 %v751, %v749
  %v1256 = vpack.c.b16 %v752, %v750
  %v1257 = vpack.c.b16 %v755, %v753
  %v1258 = vpack.c.b16 %v756, %v754
  %v1259 = vpack.c.b16 %v759, %v757
  %v1260 = vpack.c.b16 %v760, %v758
  %v1261 = vpack.c.b16 %v763, %v761
  %v1262 = vpack.c.b16 %v764, %v762
  %v1263 = vpack.c.b16 %v767, %v765
  %v1264 = vpack.c.b16 %v768, %v766
  %v1265 = vpack.c.b16 %v771, %v769
  %v1266 = vpack.c.b16 %v772, %v770
  %v1267 = vpack.c.b16 %v775, %v773
  %v1268 = vpack.c.b16 %v776, %v774
  %v1269 = vpack.c.b16 %v779, %v777
  %v1270 = vpack.c.b16 %v780, %v778
  %v1271 = vpack.c.b16 %v783, %v781
  %v1272 = vpack.c.b16 %v784, %v782
  %v1273 = vpack.c.b16 %v787, %v785
  %v1274 = vpack.c.b16 %v788, %v786
  %v1275 = vpack.c.b16 %v791, %v789
  %v1276 = vpack.c.b16 %v792, %v790
  %v1277 = vpack.c.b16 %v795, %v793
  %v1278 = vpack.c.b16 %v796, %v794
  %v1279 = vpack.c.b16 %v799, %v797
  %v1280 = vpack.c.b16 %v800, %v798
  %v1281 = vpack.c.b16 %v803, %v801
  %v1282 = vpack.c.b16 %v804, %v802
  %v1283 = vpack.c.b16 %v807, %v805
  %v1284 = vpack.c.b16 %v808, %v806
  %v1285 = vpack.c.b16 %v811, %v809
  %v1286 = vpack.c.b16 %v812, %v810
  %v1287 = vpack.c.b16 %v815, %v813
  %v1288 = vpack.c.b16 %v816, %v814
  %v1289 = vpack.c.b16 %v819, %v817
  %v1290 = vpack.c.b16 %v820, %v818
  %v1291 = vpack.c.b16 %v823, %v821
  %v1292 = vpack.c.b16 %v824, %v822
  %v1293 = vpack.c.b16 %v827, %v825
  %v1294 = vpack.c.b16 %v828, %v826
  %v1295 = vpack.c.b16 %v831, %v829
  %v1296 = vpack.c.b16 %v832, %v830
  %v1297 = vpack.c.b16 %v835, %v833
  %v1298 = vpack.c.b16 %v836, %v834
  %v1299 = vpack.c.b16 %v839, %v837
  %v1300 = vpack.c.b16 %v840, %v838
  %v1301 = vpack.c.b16 %v843, %v841
  %v1302 = vpack.c.b16 %v844, %v842
  %v1303 = vpack.c.b16 %v847, %v845
  %v1304 = vpack.c.b16 %v848, %v846
  %v1305 = vpack.c.b16 %v851, %v849
  %v1306 = vpack.c.b16 %v852, %v850
  %v1307 = vpack.c.b16 %v855, %v853
  %v1308 = vpack.c.b16 %v856, %v854
  %v1309 = vpack.c.b16 %v859, %v857
  %v1310 = vpack.c.b16 %v860, %v858
  %v1311 = vpack.c.b16 %v863, %v861
  %v1312 = vpack.c.b16 %v864, %v862
  %v1313 = vpack.c.b16 %v867, %v865
  %v1314 = vpack.c.b16 %v868, %v866
  %v1315 = vpack.c.b16 %v871, %v869
  %v1316 = vpack.c.b16 %v872, %v870
  %v1317 = vpack.c.b16 %v875, %v873
  %v1318 = vpack.c.b16 %v876, %v874
  %v1319 = vpack.c.b16 %v879, %v877
  %v1320 = vpack.c.b16 %v880, %v878
  %v1321 = vpack.c.b16 %v883, %v881
  %v1322 = vpack.c.b16 %v884, %v882
  %v1323 = vpack.c.b16 %v887, %v885
  %v1324 = vpack.c.b16 %v888, %v886
  %v1325 = vpack.c.b16 %v891, %v889
  %v1326 = vpack.c.b16 %v892, %v890
  %v1327 = vpack.c.b16 %v895, %v893
  %v1328 = vpack.c.b16 %v896, %v894
  %v1329 = vpack.c.b16 %v899, %v897
  %v1330 = vpack.c.b16 %v900, %v898
  %v1331 = vpack.c.b16 %v903, %v901
  %v1332 = vpack.c.b16 %v904, %v902
  %v1333 = vpack.c.b16 %v907, %v905
  %v1334 = vpack.c.b16 %v908, %v906
  %v1335 = vpack.c.b16 %v911, %v909
  %v1336 = vpack.c.b16 %v912, %v910
  %v1337 = vpack.c.b16 %v915, %v913
  %v1338 = vpack.c.b16 %v916, %v914
  %v1339 = vpack.c.b16 %v919, %v917
  %v1340 = vpack.c.b16 %v920, %v918
  %v1341 = vpack.c.b16 %v923, %v921
  %v1342 = vpack.c.b16 %v924, %v922
  %v1343 = vpack.c.b16 %v927, %v925
  %v1344 = vpack.c.b16 %v928, %v926
  %v1345 = vpack.c.b16 %v931, %v929
  %v1346 = vpack.c.b16 %v932, %v930
  %v1347 = vpack.c.b16 %v935, %v933
  %v1348 = vpack.c.b16 %v936, %v934
  %v1349 = vpack.c.b16 %v939, %v937
  %v1350 = vpack.c.b16 %v940, %v938
  %v1351 = vpack.c.b16 %v943, %v941
  %v1352 = vpack.c.b16 %v944, %v942
  %v1353 = vpack.c.b16 %v947, %v945
  %v1354 = vpack.c.b16 %v948, %v946
  %v1355 = vpack.c.b16 %v951, %v949
  %v1356 = vpack.c.b16 %v952, %v950
  %v1357 = vpack.c.b16 %v955, %v953
  %v1358 = vpack.c.b16 %v956, %v954
  %v1359 = vpack.c.b16 %v959, %v957
  %v1360 = vpack.c.b16 %v960, %v958
  %v1361 = vpack.c.b16 %v963, %v961
  %v1362 = vpack.c.b16 %v964, %v962
  %v1363 = vpack.c.b16 %v967, %v965
  %v1364 = vpack.c.b16 %v968, %v966
  %v1365 = vpack.c.b16 %v971, %v969
  %v1366 = vpack.c.b16 %v972, %v970
  %v1367 = vpack.c.b16 %v975, %v973
  %v1368 = vpack.c.b16 %v976, %v974
  %v1369 = vpack.c.b16 %v979, %v977
  %v1370 = vpack.c.b16 %v980, %v978
  %v1371 = vpack.c.b16 %v983, %v981
  %v1372 = vpack.c.b16 %v984, %v982
  %v1373 = vpack.c.b16 %v987, %v985
  %v1374 = vpack.c.b16 %v988, %v986
  %v1375 = vpack.c.b16 %v991, %v989
  %v1376 = vpack.c.b16 %v992, %v990
  %v1377 = vpack.c.b16 %v995, %v993
  %v1378 = vpack.c.b16 %v996, %v994
  %v1379 = vpack.c.b16 %v999, %v997
  %v1380 = vpack.c.b16 %v1000, %v998
  %v1381 = vpack.c.b16 %v1003, %v1001
  %v1382 = vpack.c.b16 %v1004, %v1002
  %v1383 = vpack.c.b16 %v1007, %v1005
  %v1384 = vpack.c.b16 %v1008, %v1006
  %v1385 = vpack.c.b16 %v1011, %v1009
  %v1386 = vpack.c.b16 %v1012, %v1010
  %v1387 = vpack.c.b16 %v1015, %v1013
  %v1388 = vpack.c.b16 %v1016, %v1014
  %v1389 = vpack.c.b16 %v1019, %v1017
  %v1390 = vpack.c.b16 %v1020, %v1018
  %v1391 = vpack.c.b16 %v1023, %v1021
  %v1392 = vpack.c.b16 %v1024, %v1022
  %v1393 = vpack.c.b16 %v1027, %v1025
  %v1394 = vpack.c.b16 %v1028, %v1026
  %v1395 = vpack.c.b16 %v1031, %v1029
  %v1396 = vpack.c.b16 %v1032, %v1030
  %v1397 = vpack.c.b16 %v1035, %v1033
  %v1398 = vpack.c.b16 %v1036, %v1034
  %v1399 = vpack.c.b16 %v1039, %v1037
  %v1400 = vpack.c.b16 %v1040, %v1038
  %v1401 = vpack.c.b16 %v1043, %v1041
  %v1402 = vpack.c.b16 %v1044, %v1042
  %v1403 = vpack.c.b16 %v1047, %v1045
  %v1404 = vpack.c.b16 %v1048, %v1046
  %v1405 = vpack.c.b16 %v1051, %v1049
  %v1406 = vpack.c.b16 %v1052, %v1050
  %v1407 = vpack.c.b16 %v1055, %v1053
  %v1408 = vpack.c.b16 %v1056, %v1054
  %v1409 = vpack.c.b16 %v1059, %v1057
  %v1410 = vpack.c.b16 %v1060, %v1058
  %v1411 = vpack.c.b16 %v1063, %v1061
  %v1412 = vpack.c.b16 %v1064, %v1062
  %v1413 = vpack.c.b16 %v1067, %v1065
  %v1414 = vpack.c.b16 %v1068, %v1066
  %v1415 = vpack.c.b16 %v1071, %v1069
  %v1416 = vpack.c.b16 %v1072, %v1070
  %v1417 = vpack.c.b16 %v1075, %v1073
  %v1418 = vpack.c.b16 %v1076, %v1074
  %v1419 = vpack.c.b16 %v1079, %v1077
  %v1420 = vpack.c.b16 %v1080, %v1078
  %v1421 = vpack.c.b16 %v1083, %v1081
  %v1422 = vpack.c.b16 %v1084, %v1082
  %v1423 = vpack.c.b16 %v1087, %v1085
  %v1424 = vpack.c.b16 %v1088, %v1086
  %v1425 = vpack.c.b16 %v1091, %v1089
  %v1426 = vpack.c.b16 %v1092, %v1090
  %v1427 = vpack.c.b16 %v1095, %v1093
  %v1428 = vpack.c.b16 %v1096, %v1094
  %v1429 = vpack.c.b16 %v1099, %v1097
  %v1430 = vpack.c.b16 %v1100, %v1098
  %v1431 = vpack.c.b16 %v1103, %v1101
  %v1432 = vpack.c.b16 %v1104, %v1102
  %v1433 = vpack.c.b16 %v1107, %v1105
  %v1434 = vpack.c.b16 %v1108, %v1106
  %v1435 = vpack.c.b16 %v1111, %v1109
  %v1436 = vpack.c.b16 %v1112, %v1110
  %v1437 = vpack.c.b16 %v1115, %v1113
  %v1438 = vpack.c.b16 %v1116, %v1114
  %v1439 = vpack.c.b16 %v1119, %v1117
  %v1440 = vpack.c.b16 %v1120, %v1118
  %v1441 = vpack.c.b16 %v1123, %v1121
  %v1442 = vpack.c.b16 %v1124, %v1122
  %v1443 = vpack.c.b16 %v1127, %v1125
  %v1444 = vpack.c.b16 %v1128, %v1126
  %v1445 = vpack.c.b16 %v1131, %v1129
  %v1446 = vpack.c.b16 %v1132, %v1130
  %v1447 = vpack.c.b16 %v1135, %v1133
  %v1448 = vpack.c.b16 %v1136, %v1134
  %v1449 = vpack.c.b16 %v1139, %v1137
  %v1450 = vpack.c.b16 %v1140, %v1138
  %v1451 = vpack.c.b16 %v1143, %v1141
  %v1452 = vpack.c.b16 %v1144, %v1142
  %v1453 = vpack.c.b16 %v1147, %v1145
  %v1454 = vpack.c.b16 %v1148, %v1146
  %v1455 = vpack.c.b16 %v1151, %v1149
  %v1456 = vpack.c.b16 %v1152, %v1150
  %v1457 = vpack.c.b16 %v1155, %v1153
  %v1458 = vpack.c.b16 %v1156, %v1154
  %v1459 = vpack.c.b16 %v1159, %v1157
  %v1460 = vpack.c.b16 %v1160, %v1158
  %v1461 = vpack.c.b16 %v1163, %v1161
  %v1462 = vpack.c.b16 %v1164, %v1162
  %v1463 = vpack.c.b16 %v1167, %v1165
  %v1464 = vpack.c.b16 %v1168, %v1166
  %v1465 = vpack.c.b16 %v1171, %v1169
  %v1466 = vpack.c.b16 %v1172, %v1170
  %v1467 = vpack.c.b16 %v1175, %v1173
  %v1468 = vpack.c.b16 %v1176, %v1174
  %v1469 = vpack.c.b16 %v1179, %v1177
  %v1470 = vpack.c.b16 %v1180, %v1178
  %v1471 = vpack.c.b16 %v1183, %v1181
  %v1472 = vpack.c.b16 %v1184, %v1182
  %v1473 = vpack.c.b16 %v1187, %v1185
  %v1474 = vpack.c.b16 %v1188, %v1186
  %v1475 = vpack.c.b16 %v1191, %v1189
  %v1476 = vpack.c.b16 %v1192, %v1190
  %v1477 = vpack.c.b16 %v1195, %v1193
  %v1478 = vpack.c.b16 %v1196, %v1194
  %v1479 = vpack.c.b16 %v1199, %v1197
  %v1480 = vpack.c.b16 %v1200, %v1198
  %v1481 = vpack.c.b16 %v1203, %v1201
  %v1482 = vpack.c.b16 %v1204, %v1202
  %v1483 = vpack.c.b16 %v1207, %v1205
  %v1484 = vpack.c.b16 %v1208, %v1206
  %v1485 = vpack.c.b16 %v1211, %v1209
  %v1486 = vpack.c.b16 %v1212, %v1210
  %v1487 = vpack.c.b16 %v1215, %v1213
  %v1488 = vpack.c.b16 %v1216, %v1214
  %v1489 = vpack.c.b16 %v1219, %v1217
  %v1490 = vpack.c.b16 %v1220, %v1218
  %v1491 = vpack.c.b16 %v1223, %v1221
  %v1492 = vpack.c.b16 %v1224, %v1222
  %v1493 = vpack.c.b16 %v1227, %v1225
  %v1494 = vpack.c.b16 %v1228, %v1226
  %v1495 = vpack.c.b16 %v1231, %v1229
  %v1496 = vpack.c.b16 %v1232, %v1230
  %v1497 = vpack.c.b16 %v1235, %v1233
  %v1498 = vpack.c.b16 %v1236, %v1234
  %v1499 = vpack.c.b16 %v1239, %v1237
  %v1500 = vpack.c.b16 %v1240, %v1238
  %v1501 = vpack.c.b16 %v1243, %v1241
  %v1502 = vpack.c.b16 %v1244, %v1242
  %v1503 = vpack.c.b16 %v1247, %v1245
  %v1504 = vpack.c.b16 %v1248, %v1246
  %1761 = vmatpush.bf16.msra.mxu0 %v1263
  %1762 = vmatpush.bf16.msra.mxu0 %v1261
  %1763 = vmatpush.bf16.msra.mxu0 %v1259
  %1764 = vmatpush.bf16.msra.mxu0 %v1257
  %1765 = vmatpush.bf16.msra.mxu0 %v1255
  %1766 = vmatpush.bf16.msra.mxu0 %v1253
  %1767 = vmatpush.bf16.msra.mxu0 %v1251
  %1768 = vmatpush.bf16.msra.mxu0 %v1249
  %1769 = vmatmul.bf16.gmra.mxu0 %v417
  %v1770 = vpop.f32.mrf.mxu0
  %v1771 = vadd.f32 %v317, %v1770
  %v1772 = vpop.f32.mrf.mxu0
  %v1773 = vadd.f32 %v317, %v1772
  %1774 = vmatmul.bf16.gmra.mxu0 %v433
  %v1775 = vpop.f32.mrf.mxu0
  %v1776 = vadd.f32 %v317, %v1775
  %v1777 = vpop.f32.mrf.mxu0
  %v1778 = vadd.f32 %v317, %v1777
  %1779 = vdwg.mxu0
  %1780 = vmatpush.bf16.msra.mxu0 %v1279
  %1781 = vmatpush.bf16.msra.mxu0 %v1277
  %1782 = vmatpush.bf16.msra.mxu0 %v1275
  %1783 = vmatpush.bf16.msra.mxu0 %v1273
  %1784 = vmatpush.bf16.msra.mxu0 %v1271
  %1785 = vmatpush.bf16.msra.mxu0 %v1269
  %1786 = vmatpush.bf16.msra.mxu0 %v1267
  %1787 = vmatpush.bf16.msra.mxu0 %v1265
  %1788 = vmatmul.bf16.gmra.mxu0 %v418
  %v1789 = vpop.f32.mrf.mxu0
  %v1790 = vadd.f32 %v1771, %v1789
  %v1791 = vpop.f32.mrf.mxu0
  %v1792 = vadd.f32 %v1773, %v1791
  %1793 = vmatmul.bf16.gmra.mxu0 %v434
  %v1794 = vpop.f32.mrf.mxu0
  %v1795 = vadd.f32 %v1776, %v1794
  %v1796 = vpop.f32.mrf.mxu0
  %v1797 = vadd.f32 %v1778, %v1796
  %1798 = vdwg.mxu0
  %1799 = vmatpush.bf16.msra.mxu0 %v1295
  %1800 = vmatpush.bf16.msra.mxu0 %v1293
  %1801 = vmatpush.bf16.msra.mxu0 %v1291
  %1802 = vmatpush.bf16.msra.mxu0 %v1289
  %1803 = vmatpush.bf16.msra.mxu0 %v1287
  %1804 = vmatpush.bf16.msra.mxu0 %v1285
  %1805 = vmatpush.bf16.msra.mxu0 %v1283
  %1806 = vmatpush.bf16.msra.mxu0 %v1281
  %1807 = vmatmul.bf16.gmra.mxu0 %v419
  %v1808 = vpop.f32.mrf.mxu0
  %v1809 = vadd.f32 %v1790, %v1808
  %v1810 = vpop.f32.mrf.mxu0
  %v1811 = vadd.f32 %v1792, %v1810
  %1812 = vmatmul.bf16.gmra.mxu0 %v435
  %v1813 = vpop.f32.mrf.mxu0
  %v1814 = vadd.f32 %v1795, %v1813
  %v1815 = vpop.f32.mrf.mxu0
  %v1816 = vadd.f32 %v1797, %v1815
  %1817 = vdwg.mxu0
  %1818 = vmatpush.bf16.msra.mxu0 %v1311
  %1819 = vmatpush.bf16.msra.mxu0 %v1309
  %1820 = vmatpush.bf16.msra.mxu0 %v1307
  %1821 = vmatpush.bf16.msra.mxu0 %v1305
  %1822 = vmatpush.bf16.msra.mxu0 %v1303
  %1823 = vmatpush.bf16.msra.mxu0 %v1301
  %1824 = vmatpush.bf16.msra.mxu0 %v1299
  %1825 = vmatpush.bf16.msra.mxu0 %v1297
  %1826 = vmatmul.bf16.gmra.mxu0 %v420
  %v1827 = vpop.f32.mrf.mxu0
  %v1828 = vadd.f32 %v1809, %v1827
  %v1829 = vpop.f32.mrf.mxu0
  %v1830 = vadd.f32 %v1811, %v1829
  %1831 = vmatmul.bf16.gmra.mxu0 %v436
  %v1832 = vpop.f32.mrf.mxu0
  %v1833 = vadd.f32 %v1814, %v1832
  %v1834 = vpop.f32.mrf.mxu0
  %v1835 = vadd.f32 %v1816, %v1834
  %1836 = vdwg.mxu0
  %1837 = vmatpush.bf16.msra.mxu0 %v1327
  %1838 = vmatpush.bf16.msra.mxu0 %v1325
  %1839 = vmatpush.bf16.msra.mxu0 %v1323
  %1840 = vmatpush.bf16.msra.mxu0 %v1321
  %1841 = vmatpush.bf16.msra.mxu0 %v1319
  %1842 = vmatpush.bf16.msra.mxu0 %v1317
  %1843 = vmatpush.bf16.msra.mxu0 %v1315
  %1844 = vmatpush.bf16.msra.mxu0 %v1313
  %1845 = vmatmul.bf16.gmra.mxu0 %v421
  %v1846 = vpop.f32.mrf.mxu0
  %v1847 = vadd.f32 %v1828, %v1846
  %v1848 = vpop.f32.mrf.mxu0
  %v1849 = vadd.f32 %v1830, %v1848
  %1850 = vmatmul.bf16.gmra.mxu0 %v437
  %v1851 = vpop.f32.mrf.mxu0
  %v1852 = vadd.f32 %v1833, %v1851
  %v1853 = vpop.f32.mrf.mxu0
  %v1854 = vadd.f32 %v1835, %v1853
  %1855 = vdwg.mxu0
  %1856 = vmatpush.bf16.msra.mxu0 %v1343
  %1857 = vmatpush.bf16.msra.mxu0 %v1341
  %1858 = vmatpush.bf16.msra.mxu0 %v1339
  %1859 = vmatpush.bf16.msra.mxu0 %v1337
  %1860 = vmatpush.bf16.msra.mxu0 %v1335
  %1861 = vmatpush.bf16.msra.mxu0 %v1333
  %1862 = vmatpush.bf16.msra.mxu0 %v1331
  %1863 = vmatpush.bf16.msra.mxu0 %v1329
  %1864 = vmatmul.bf16.gmra.mxu0 %v422
  %v1865 = vpop.f32.mrf.mxu0
  %v1866 = vadd.f32 %v1847, %v1865
  %v1867 = vpop.f32.mrf.mxu0
  %v1868 = vadd.f32 %v1849, %v1867
  %1869 = vmatmul.bf16.gmra.mxu0 %v438
  %v1870 = vpop.f32.mrf.mxu0
  %v1871 = vadd.f32 %v1852, %v1870
  %v1872 = vpop.f32.mrf.mxu0
  %v1873 = vadd.f32 %v1854, %v1872
  %1874 = vdwg.mxu0
  %1875 = vmatpush.bf16.msra.mxu0 %v1359
  %1876 = vmatpush.bf16.msra.mxu0 %v1357
  %1877 = vmatpush.bf16.msra.mxu0 %v1355
  %1878 = vmatpush.bf16.msra.mxu0 %v1353
  %1879 = vmatpush.bf16.msra.mxu0 %v1351
  %1880 = vmatpush.bf16.msra.mxu0 %v1349
  %1881 = vmatpush.bf16.msra.mxu0 %v1347
  %1882 = vmatpush.bf16.msra.mxu0 %v1345
  %1883 = vmatmul.bf16.gmra.mxu0 %v423
  %v1884 = vpop.f32.mrf.mxu0
  %v1885 = vadd.f32 %v1866, %v1884
  %v1886 = vpop.f32.mrf.mxu0
  %v1887 = vadd.f32 %v1868, %v1886
  %1888 = vmatmul.bf16.gmra.mxu0 %v439
  %v1889 = vpop.f32.mrf.mxu0
  %v1890 = vadd.f32 %v1871, %v1889
  %v1891 = vpop.f32.mrf.mxu0
  %v1892 = vadd.f32 %v1873, %v1891
  %1893 = vdwg.mxu0
  %1894 = vmatpush.bf16.msra.mxu0 %v1375
  %1895 = vmatpush.bf16.msra.mxu0 %v1373
  %1896 = vmatpush.bf16.msra.mxu0 %v1371
  %1897 = vmatpush.bf16.msra.mxu0 %v1369
  %1898 = vmatpush.bf16.msra.mxu0 %v1367
  %1899 = vmatpush.bf16.msra.mxu0 %v1365
  %1900 = vmatpush.bf16.msra.mxu0 %v1363
  %1901 = vmatpush.bf16.msra.mxu0 %v1361
  %1902 = vmatmul.bf16.gmra.mxu0 %v424
  %v1903 = vpop.f32.mrf.mxu0
  %v1904 = vadd.f32 %v1885, %v1903
  %v1905 = vpop.f32.mrf.mxu0
  %v1906 = vadd.f32 %v1887, %v1905
  %1907 = vmatmul.bf16.gmra.mxu0 %v440
  %v1908 = vpop.f32.mrf.mxu0
  %v1909 = vadd.f32 %v1890, %v1908
  %v1910 = vpop.f32.mrf.mxu0
  %v1911 = vadd.f32 %v1892, %v1910
  %1912 = vdwg.mxu0
  %1913 = vmatpush.bf16.msra.mxu0 %v1391
  %1914 = vmatpush.bf16.msra.mxu0 %v1389
  %1915 = vmatpush.bf16.msra.mxu0 %v1387
  %1916 = vmatpush.bf16.msra.mxu0 %v1385
  %1917 = vmatpush.bf16.msra.mxu0 %v1383
  %1918 = vmatpush.bf16.msra.mxu0 %v1381
  %1919 = vmatpush.bf16.msra.mxu0 %v1379
  %1920 = vmatpush.bf16.msra.mxu0 %v1377
  %1921 = vmatmul.bf16.gmra.mxu0 %v425
  %v1922 = vpop.f32.mrf.mxu0
  %v1923 = vadd.f32 %v1904, %v1922
  %v1924 = vpop.f32.mrf.mxu0
  %v1925 = vadd.f32 %v1906, %v1924
  %1926 = vmatmul.bf16.gmra.mxu0 %v441
  %v1927 = vpop.f32.mrf.mxu0
  %v1928 = vadd.f32 %v1909, %v1927
  %v1929 = vpop.f32.mrf.mxu0
  %v1930 = vadd.f32 %v1911, %v1929
  %1931 = vdwg.mxu0
  %1932 = vmatpush.bf16.msra.mxu0 %v1407
  %1933 = vmatpush.bf16.msra.mxu0 %v1405
  %1934 = vmatpush.bf16.msra.mxu0 %v1403
  %1935 = vmatpush.bf16.msra.mxu0 %v1401
  %1936 = vmatpush.bf16.msra.mxu0 %v1399
  %1937 = vmatpush.bf16.msra.mxu0 %v1397
  %1938 = vmatpush.bf16.msra.mxu0 %v1395
  %1939 = vmatpush.bf16.msra.mxu0 %v1393
  %1940 = vmatmul.bf16.gmra.mxu0 %v426
  %v1941 = vpop.f32.mrf.mxu0
  %v1942 = vadd.f32 %v1923, %v1941
  %v1943 = vpop.f32.mrf.mxu0
  %v1944 = vadd.f32 %v1925, %v1943
  %1945 = vmatmul.bf16.gmra.mxu0 %v442
  %v1946 = vpop.f32.mrf.mxu0
  %v1947 = vadd.f32 %v1928, %v1946
  %v1948 = vpop.f32.mrf.mxu0
  %v1949 = vadd.f32 %v1930, %v1948
  %1950 = vdwg.mxu0
  %1951 = vmatpush.bf16.msra.mxu0 %v1423
  %1952 = vmatpush.bf16.msra.mxu0 %v1421
  %1953 = vmatpush.bf16.msra.mxu0 %v1419
  %1954 = vmatpush.bf16.msra.mxu0 %v1417
  %1955 = vmatpush.bf16.msra.mxu0 %v1415
  %1956 = vmatpush.bf16.msra.mxu0 %v1413
  %1957 = vmatpush.bf16.msra.mxu0 %v1411
  %1958 = vmatpush.bf16.msra.mxu0 %v1409
  %1959 = vmatmul.bf16.gmra.mxu0 %v427
  %v1960 = vpop.f32.mrf.mxu0
  %v1961 = vadd.f32 %v1942, %v1960
  %v1962 = vpop.f32.mrf.mxu0
  %v1963 = vadd.f32 %v1944, %v1962
  %1964 = vmatmul.bf16.gmra.mxu0 %v443
  %v1965 = vpop.f32.mrf.mxu0
  %v1966 = vadd.f32 %v1947, %v1965
  %v1967 = vpop.f32.mrf.mxu0
  %v1968 = vadd.f32 %v1949, %v1967
  %1969 = vdwg.mxu0
  %1970 = vmatpush.bf16.msra.mxu0 %v1439
  %1971 = vmatpush.bf16.msra.mxu0 %v1437
  %1972 = vmatpush.bf16.msra.mxu0 %v1435
  %1973 = vmatpush.bf16.msra.mxu0 %v1433
  %1974 = vmatpush.bf16.msra.mxu0 %v1431
  %1975 = vmatpush.bf16.msra.mxu0 %v1429
  %1976 = vmatpush.bf16.msra.mxu0 %v1427
  %1977 = vmatpush.bf16.msra.mxu0 %v1425
  %1978 = vmatmul.bf16.gmra.mxu0 %v428
  %v1979 = vpop.f32.mrf.mxu0
  %v1980 = vadd.f32 %v1961, %v1979
  %v1981 = vpop.f32.mrf.mxu0
  %v1982 = vadd.f32 %v1963, %v1981
  %1983 = vmatmul.bf16.gmra.mxu0 %v444
  %v1984 = vpop.f32.mrf.mxu0
  %v1985 = vadd.f32 %v1966, %v1984
  %v1986 = vpop.f32.mrf.mxu0
  %v1987 = vadd.f32 %v1968, %v1986
  %1988 = vdwg.mxu0
  %1989 = vmatpush.bf16.msra.mxu0 %v1455
  %1990 = vmatpush.bf16.msra.mxu0 %v1453
  %1991 = vmatpush.bf16.msra.mxu0 %v1451
  %1992 = vmatpush.bf16.msra.mxu0 %v1449
  %1993 = vmatpush.bf16.msra.mxu0 %v1447
  %1994 = vmatpush.bf16.msra.mxu0 %v1445
  %1995 = vmatpush.bf16.msra.mxu0 %v1443
  %1996 = vmatpush.bf16.msra.mxu0 %v1441
  %1997 = vmatmul.bf16.gmra.mxu0 %v429
  %v1998 = vpop.f32.mrf.mxu0
  %v1999 = vadd.f32 %v1980, %v1998
  %v2000 = vpop.f32.mrf.mxu0
  %v2001 = vadd.f32 %v1982, %v2000
  %2002 = vmatmul.bf16.gmra.mxu0 %v445
  %v2003 = vpop.f32.mrf.mxu0
  %v2004 = vadd.f32 %v1985, %v2003
  %v2005 = vpop.f32.mrf.mxu0
  %v2006 = vadd.f32 %v1987, %v2005
  %2007 = vdwg.mxu0
  %2008 = vmatpush.bf16.msra.mxu0 %v1471
  %2009 = vmatpush.bf16.msra.mxu0 %v1469
  %2010 = vmatpush.bf16.msra.mxu0 %v1467
  %2011 = vmatpush.bf16.msra.mxu0 %v1465
  %2012 = vmatpush.bf16.msra.mxu0 %v1463
  %2013 = vmatpush.bf16.msra.mxu0 %v1461
  %2014 = vmatpush.bf16.msra.mxu0 %v1459
  %2015 = vmatpush.bf16.msra.mxu0 %v1457
  %2016 = vmatmul.bf16.gmra.mxu0 %v430
  %v2017 = vpop.f32.mrf.mxu0
  %v2018 = vadd.f32 %v1999, %v2017
  %v2019 = vpop.f32.mrf.mxu0
  %v2020 = vadd.f32 %v2001, %v2019
  %2021 = vmatmul.bf16.gmra.mxu0 %v446
  %v2022 = vpop.f32.mrf.mxu0
  %v2023 = vadd.f32 %v2004, %v2022
  %v2024 = vpop.f32.mrf.mxu0
  %v2025 = vadd.f32 %v2006, %v2024
  %2026 = vdwg.mxu0
  %2027 = vmatpush.bf16.msra.mxu0 %v1487
  %2028 = vmatpush.bf16.msra.mxu0 %v1485
  %2029 = vmatpush.bf16.msra.mxu0 %v1483
  %2030 = vmatpush.bf16.msra.mxu0 %v1481
  %2031 = vmatpush.bf16.msra.mxu0 %v1479
  %2032 = vmatpush.bf16.msra.mxu0 %v1477
  %2033 = vmatpush.bf16.msra.mxu0 %v1475
  %2034 = vmatpush.bf16.msra.mxu0 %v1473
  %2035 = vmatmul.bf16.gmra.mxu0 %v431
  %v2036 = vpop.f32.mrf.mxu0
  %v2037 = vadd.f32 %v2018, %v2036
  %v2038 = vpop.f32.mrf.mxu0
  %v2039 = vadd.f32 %v2020, %v2038
  %2040 = vmatmul.bf16.gmra.mxu0 %v447
  %v2041 = vpop.f32.mrf.mxu0
  %v2042 = vadd.f32 %v2023, %v2041
  %v2043 = vpop.f32.mrf.mxu0
  %v2044 = vadd.f32 %v2025, %v2043
  %2045 = vdwg.mxu0
  %2046 = vmatpush.bf16.msra.mxu0 %v1503
  %2047 = vmatpush.bf16.msra.mxu0 %v1501
  %2048 = vmatpush.bf16.msra.mxu0 %v1499
  %2049 = vmatpush.bf16.msra.mxu0 %v1497
  %2050 = vmatpush.bf16.msra.mxu0 %v1495
  %2051 = vmatpush.bf16.msra.mxu0 %v1493
  %2052 = vmatpush.bf16.msra.mxu0 %v1491
  %2053 = vmatpush.bf16.msra.mxu0 %v1489
  %2054 = vmatmul.bf16.gmra.mxu0 %v432
  %v2055 = vpop.f32.mrf.mxu0
  %v2056 = vadd.f32 %v2037, %v2055
  %v2057 = vpop.f32.mrf.mxu0
  %v2058 = vadd.f32 %v2039, %v2057
  %2059 = vmatmul.bf16.gmra.mxu0 %v448
  %v2060 = vpop.f32.mrf.mxu0
  %v2061 = vadd.f32 %v2042, %v2060
  %v2062 = vpop.f32.mrf.mxu0
  %v2063 = vadd.f32 %v2044, %v2062
  %2064 = vdwg.mxu0
  %2065 = vmatpush.bf16.msra.mxu0 %v1264
  %2066 = vmatpush.bf16.msra.mxu0 %v1262
  %2067 = vmatpush.bf16.msra.mxu0 %v1260
  %2068 = vmatpush.bf16.msra.mxu0 %v1258
  %2069 = vmatpush.bf16.msra.mxu0 %v1256
  %2070 = vmatpush.bf16.msra.mxu0 %v1254
  %2071 = vmatpush.bf16.msra.mxu0 %v1252
  %2072 = vmatpush.bf16.msra.mxu0 %v1250
  %2073 = vmatmul.bf16.gmra.mxu0 %v417
  %v2074 = vpop.f32.mrf.mxu0
  %v2075 = vadd.f32 %v318, %v2074
  %v2076 = vpop.f32.mrf.mxu0
  %v2077 = vadd.f32 %v318, %v2076
  %2078 = vmatmul.bf16.gmra.mxu0 %v433
  %v2079 = vpop.f32.mrf.mxu0
  %v2080 = vadd.f32 %v318, %v2079
  %v2081 = vpop.f32.mrf.mxu0
  %v2082 = vadd.f32 %v318, %v2081
  %2083 = vdwg.mxu0
  %2084 = vmatpush.bf16.msra.mxu0 %v1280
  %2085 = vmatpush.bf16.msra.mxu0 %v1278
  %2086 = vmatpush.bf16.msra.mxu0 %v1276
  %2087 = vmatpush.bf16.msra.mxu0 %v1274
  %2088 = vmatpush.bf16.msra.mxu0 %v1272
  %2089 = vmatpush.bf16.msra.mxu0 %v1270
  %2090 = vmatpush.bf16.msra.mxu0 %v1268
  %2091 = vmatpush.bf16.msra.mxu0 %v1266
  %2092 = vmatmul.bf16.gmra.mxu0 %v418
  %v2093 = vpop.f32.mrf.mxu0
  %v2094 = vadd.f32 %v2075, %v2093
  %v2095 = vpop.f32.mrf.mxu0
  %v2096 = vadd.f32 %v2077, %v2095
  %2097 = vmatmul.bf16.gmra.mxu0 %v434
  %v2098 = vpop.f32.mrf.mxu0
  %v2099 = vadd.f32 %v2080, %v2098
  %v2100 = vpop.f32.mrf.mxu0
  %v2101 = vadd.f32 %v2082, %v2100
  %2102 = vdwg.mxu0
  %2103 = vmatpush.bf16.msra.mxu0 %v1296
  %2104 = vmatpush.bf16.msra.mxu0 %v1294
  %2105 = vmatpush.bf16.msra.mxu0 %v1292
  %2106 = vmatpush.bf16.msra.mxu0 %v1290
  %2107 = vmatpush.bf16.msra.mxu0 %v1288
  %2108 = vmatpush.bf16.msra.mxu0 %v1286
  %2109 = vmatpush.bf16.msra.mxu0 %v1284
  %2110 = vmatpush.bf16.msra.mxu0 %v1282
  %2111 = vmatmul.bf16.gmra.mxu0 %v419
  %v2112 = vpop.f32.mrf.mxu0
  %v2113 = vadd.f32 %v2094, %v2112
  %v2114 = vpop.f32.mrf.mxu0
  %v2115 = vadd.f32 %v2096, %v2114
  %2116 = vmatmul.bf16.gmra.mxu0 %v435
  %v2117 = vpop.f32.mrf.mxu0
  %v2118 = vadd.f32 %v2099, %v2117
  %v2119 = vpop.f32.mrf.mxu0
  %v2120 = vadd.f32 %v2101, %v2119
  %2121 = vdwg.mxu0
  %2122 = vmatpush.bf16.msra.mxu0 %v1312
  %2123 = vmatpush.bf16.msra.mxu0 %v1310
  %2124 = vmatpush.bf16.msra.mxu0 %v1308
  %2125 = vmatpush.bf16.msra.mxu0 %v1306
  %2126 = vmatpush.bf16.msra.mxu0 %v1304
  %2127 = vmatpush.bf16.msra.mxu0 %v1302
  %2128 = vmatpush.bf16.msra.mxu0 %v1300
  %2129 = vmatpush.bf16.msra.mxu0 %v1298
  %2130 = vmatmul.bf16.gmra.mxu0 %v420
  %v2131 = vpop.f32.mrf.mxu0
  %v2132 = vadd.f32 %v2113, %v2131
  %v2133 = vpop.f32.mrf.mxu0
  %v2134 = vadd.f32 %v2115, %v2133
  %2135 = vmatmul.bf16.gmra.mxu0 %v436
  %v2136 = vpop.f32.mrf.mxu0
  %v2137 = vadd.f32 %v2118, %v2136
  %v2138 = vpop.f32.mrf.mxu0
  %v2139 = vadd.f32 %v2120, %v2138
  %2140 = vdwg.mxu0
  %2141 = vmatpush.bf16.msra.mxu0 %v1328
  %2142 = vmatpush.bf16.msra.mxu0 %v1326
  %2143 = vmatpush.bf16.msra.mxu0 %v1324
  %2144 = vmatpush.bf16.msra.mxu0 %v1322
  %2145 = vmatpush.bf16.msra.mxu0 %v1320
  %2146 = vmatpush.bf16.msra.mxu0 %v1318
  %2147 = vmatpush.bf16.msra.mxu0 %v1316
  %2148 = vmatpush.bf16.msra.mxu0 %v1314
  %2149 = vmatmul.bf16.gmra.mxu0 %v421
  %v2150 = vpop.f32.mrf.mxu0
  %v2151 = vadd.f32 %v2132, %v2150
  %v2152 = vpop.f32.mrf.mxu0
  %v2153 = vadd.f32 %v2134, %v2152
  %2154 = vmatmul.bf16.gmra.mxu0 %v437
  %v2155 = vpop.f32.mrf.mxu0
  %v2156 = vadd.f32 %v2137, %v2155
  %v2157 = vpop.f32.mrf.mxu0
  %v2158 = vadd.f32 %v2139, %v2157
  %2159 = vdwg.mxu0
  %2160 = vmatpush.bf16.msra.mxu0 %v1344
  %2161 = vmatpush.bf16.msra.mxu0 %v1342
  %2162 = vmatpush.bf16.msra.mxu0 %v1340
  %2163 = vmatpush.bf16.msra.mxu0 %v1338
  %2164 = vmatpush.bf16.msra.mxu0 %v1336
  %2165 = vmatpush.bf16.msra.mxu0 %v1334
  %2166 = vmatpush.bf16.msra.mxu0 %v1332
  %2167 = vmatpush.bf16.msra.mxu0 %v1330
  %2168 = vmatmul.bf16.gmra.mxu0 %v422
  %v2169 = vpop.f32.mrf.mxu0
  %v2170 = vadd.f32 %v2151, %v2169
  %v2171 = vpop.f32.mrf.mxu0
  %v2172 = vadd.f32 %v2153, %v2171
  %2173 = vmatmul.bf16.gmra.mxu0 %v438
  %v2174 = vpop.f32.mrf.mxu0
  %v2175 = vadd.f32 %v2156, %v2174
  %v2176 = vpop.f32.mrf.mxu0
  %v2177 = vadd.f32 %v2158, %v2176
  %2178 = vdwg.mxu0
  %2179 = vmatpush.bf16.msra.mxu0 %v1360
  %2180 = vmatpush.bf16.msra.mxu0 %v1358
  %2181 = vmatpush.bf16.msra.mxu0 %v1356
  %2182 = vmatpush.bf16.msra.mxu0 %v1354
  %2183 = vmatpush.bf16.msra.mxu0 %v1352
  %2184 = vmatpush.bf16.msra.mxu0 %v1350
  %2185 = vmatpush.bf16.msra.mxu0 %v1348
  %2186 = vmatpush.bf16.msra.mxu0 %v1346
  %2187 = vmatmul.bf16.gmra.mxu0 %v423
  %v2188 = vpop.f32.mrf.mxu0
  %v2189 = vadd.f32 %v2170, %v2188
  %v2190 = vpop.f32.mrf.mxu0
  %v2191 = vadd.f32 %v2172, %v2190
  %2192 = vmatmul.bf16.gmra.mxu0 %v439
  %v2193 = vpop.f32.mrf.mxu0
  %v2194 = vadd.f32 %v2175, %v2193
  %v2195 = vpop.f32.mrf.mxu0
  %v2196 = vadd.f32 %v2177, %v2195
  %2197 = vdwg.mxu0
  %2198 = vmatpush.bf16.msra.mxu0 %v1376
  %2199 = vmatpush.bf16.msra.mxu0 %v1374
  %2200 = vmatpush.bf16.msra.mxu0 %v1372
  %2201 = vmatpush.bf16.msra.mxu0 %v1370
  %2202 = vmatpush.bf16.msra.mxu0 %v1368
  %2203 = vmatpush.bf16.msra.mxu0 %v1366
  %2204 = vmatpush.bf16.msra.mxu0 %v1364
  %2205 = vmatpush.bf16.msra.mxu0 %v1362
  %2206 = vmatmul.bf16.gmra.mxu0 %v424
  %v2207 = vpop.f32.mrf.mxu0
  %v2208 = vadd.f32 %v2189, %v2207
  %v2209 = vpop.f32.mrf.mxu0
  %v2210 = vadd.f32 %v2191, %v2209
  %2211 = vmatmul.bf16.gmra.mxu0 %v440
  %v2212 = vpop.f32.mrf.mxu0
  %v2213 = vadd.f32 %v2194, %v2212
  %v2214 = vpop.f32.mrf.mxu0
  %v2215 = vadd.f32 %v2196, %v2214
  %2216 = vdwg.mxu0
  %2217 = vmatpush.bf16.msra.mxu0 %v1392
  %2218 = vmatpush.bf16.msra.mxu0 %v1390
  %2219 = vmatpush.bf16.msra.mxu0 %v1388
  %2220 = vmatpush.bf16.msra.mxu0 %v1386
  %2221 = vmatpush.bf16.msra.mxu0 %v1384
  %2222 = vmatpush.bf16.msra.mxu0 %v1382
  %2223 = vmatpush.bf16.msra.mxu0 %v1380
  %2224 = vmatpush.bf16.msra.mxu0 %v1378
  %2225 = vmatmul.bf16.gmra.mxu0 %v425
  %v2226 = vpop.f32.mrf.mxu0
  %v2227 = vadd.f32 %v2208, %v2226
  %v2228 = vpop.f32.mrf.mxu0
  %v2229 = vadd.f32 %v2210, %v2228
  %2230 = vmatmul.bf16.gmra.mxu0 %v441
  %v2231 = vpop.f32.mrf.mxu0
  %v2232 = vadd.f32 %v2213, %v2231
  %v2233 = vpop.f32.mrf.mxu0
  %v2234 = vadd.f32 %v2215, %v2233
  %2235 = vdwg.mxu0
  %2236 = vmatpush.bf16.msra.mxu0 %v1408
  %2237 = vmatpush.bf16.msra.mxu0 %v1406
  %2238 = vmatpush.bf16.msra.mxu0 %v1404
  %2239 = vmatpush.bf16.msra.mxu0 %v1402
  %2240 = vmatpush.bf16.msra.mxu0 %v1400
  %2241 = vmatpush.bf16.msra.mxu0 %v1398
  %2242 = vmatpush.bf16.msra.mxu0 %v1396
  %2243 = vmatpush.bf16.msra.mxu0 %v1394
  %2244 = vmatmul.bf16.gmra.mxu0 %v426
  %v2245 = vpop.f32.mrf.mxu0
  %v2246 = vadd.f32 %v2227, %v2245
  %v2247 = vpop.f32.mrf.mxu0
  %v2248 = vadd.f32 %v2229, %v2247
  %2249 = vmatmul.bf16.gmra.mxu0 %v442
  %v2250 = vpop.f32.mrf.mxu0
  %v2251 = vadd.f32 %v2232, %v2250
  %v2252 = vpop.f32.mrf.mxu0
  %v2253 = vadd.f32 %v2234, %v2252
  %2254 = vdwg.mxu0
  %2255 = vmatpush.bf16.msra.mxu0 %v1424
  %2256 = vmatpush.bf16.msra.mxu0 %v1422
  %2257 = vmatpush.bf16.msra.mxu0 %v1420
  %2258 = vmatpush.bf16.msra.mxu0 %v1418
  %2259 = vmatpush.bf16.msra.mxu0 %v1416
  %2260 = vmatpush.bf16.msra.mxu0 %v1414
  %2261 = vmatpush.bf16.msra.mxu0 %v1412
  %2262 = vmatpush.bf16.msra.mxu0 %v1410
  %2263 = vmatmul.bf16.gmra.mxu0 %v427
  %v2264 = vpop.f32.mrf.mxu0
  %v2265 = vadd.f32 %v2246, %v2264
  %v2266 = vpop.f32.mrf.mxu0
  %v2267 = vadd.f32 %v2248, %v2266
  %2268 = vmatmul.bf16.gmra.mxu0 %v443
  %v2269 = vpop.f32.mrf.mxu0
  %v2270 = vadd.f32 %v2251, %v2269
  %v2271 = vpop.f32.mrf.mxu0
  %v2272 = vadd.f32 %v2253, %v2271
  %2273 = vdwg.mxu0
  %2274 = vmatpush.bf16.msra.mxu0 %v1440
  %2275 = vmatpush.bf16.msra.mxu0 %v1438
  %2276 = vmatpush.bf16.msra.mxu0 %v1436
  %2277 = vmatpush.bf16.msra.mxu0 %v1434
  %2278 = vmatpush.bf16.msra.mxu0 %v1432
  %2279 = vmatpush.bf16.msra.mxu0 %v1430
  %2280 = vmatpush.bf16.msra.mxu0 %v1428
  %2281 = vmatpush.bf16.msra.mxu0 %v1426
  %2282 = vmatmul.bf16.gmra.mxu0 %v428
  %v2283 = vpop.f32.mrf.mxu0
  %v2284 = vadd.f32 %v2265, %v2283
  %v2285 = vpop.f32.mrf.mxu0
  %v2286 = vadd.f32 %v2267, %v2285
  %2287 = vmatmul.bf16.gmra.mxu0 %v444
  %v2288 = vpop.f32.mrf.mxu0
  %v2289 = vadd.f32 %v2270, %v2288
  %v2290 = vpop.f32.mrf.mxu0
  %v2291 = vadd.f32 %v2272, %v2290
  %2292 = vdwg.mxu0
  %2293 = vmatpush.bf16.msra.mxu0 %v1456
  %2294 = vmatpush.bf16.msra.mxu0 %v1454
  %2295 = vmatpush.bf16.msra.mxu0 %v1452
  %2296 = vmatpush.bf16.msra.mxu0 %v1450
  %2297 = vmatpush.bf16.msra.mxu0 %v1448
  %2298 = vmatpush.bf16.msra.mxu0 %v1446
  %2299 = vmatpush.bf16.msra.mxu0 %v1444
  %2300 = vmatpush.bf16.msra.mxu0 %v1442
  %2301 = vmatmul.bf16.gmra.mxu0 %v429
  %v2302 = vpop.f32.mrf.mxu0
  %v2303 = vadd.f32 %v2284, %v2302
  %v2304 = vpop.f32.mrf.mxu0
  %v2305 = vadd.f32 %v2286, %v2304
  %2306 = vmatmul.bf16.gmra.mxu0 %v445
  %v2307 = vpop.f32.mrf.mxu0
  %v2308 = vadd.f32 %v2289, %v2307
  %v2309 = vpop.f32.mrf.mxu0
  %v2310 = vadd.f32 %v2291, %v2309
  %2311 = vdwg.mxu0
  %2312 = vmatpush.bf16.msra.mxu0 %v1472
  %2313 = vmatpush.bf16.msra.mxu0 %v1470
  %2314 = vmatpush.bf16.msra.mxu0 %v1468
  %2315 = vmatpush.bf16.msra.mxu0 %v1466
  %2316 = vmatpush.bf16.msra.mxu0 %v1464
  %2317 = vmatpush.bf16.msra.mxu0 %v1462
  %2318 = vmatpush.bf16.msra.mxu0 %v1460
  %2319 = vmatpush.bf16.msra.mxu0 %v1458
  %2320 = vmatmul.bf16.gmra.mxu0 %v430
  %v2321 = vpop.f32.mrf.mxu0
  %v2322 = vadd.f32 %v2303, %v2321
  %v2323 = vpop.f32.mrf.mxu0
  %v2324 = vadd.f32 %v2305, %v2323
  %2325 = vmatmul.bf16.gmra.mxu0 %v446
  %v2326 = vpop.f32.mrf.mxu0
  %v2327 = vadd.f32 %v2308, %v2326
  %v2328 = vpop.f32.mrf.mxu0
  %v2329 = vadd.f32 %v2310, %v2328
  %2330 = vdwg.mxu0
  %2331 = vmatpush.bf16.msra.mxu0 %v1488
  %2332 = vmatpush.bf16.msra.mxu0 %v1486
  %2333 = vmatpush.bf16.msra.mxu0 %v1484
  %2334 = vmatpush.bf16.msra.mxu0 %v1482
  %2335 = vmatpush.bf16.msra.mxu0 %v1480
  %2336 = vmatpush.bf16.msra.mxu0 %v1478
  %2337 = vmatpush.bf16.msra.mxu0 %v1476
  %2338 = vmatpush.bf16.msra.mxu0 %v1474
  %2339 = vmatmul.bf16.gmra.mxu0 %v431
  %v2340 = vpop.f32.mrf.mxu0
  %v2341 = vadd.f32 %v2322, %v2340
  %v2342 = vpop.f32.mrf.mxu0
  %v2343 = vadd.f32 %v2324, %v2342
  %2344 = vmatmul.bf16.gmra.mxu0 %v447
  %v2345 = vpop.f32.mrf.mxu0
  %v2346 = vadd.f32 %v2327, %v2345
  %v2347 = vpop.f32.mrf.mxu0
  %v2348 = vadd.f32 %v2329, %v2347
  %2349 = vdwg.mxu0
  %2350 = vmatpush.bf16.msra.mxu0 %v1504
  %2351 = vmatpush.bf16.msra.mxu0 %v1502
  %2352 = vmatpush.bf16.msra.mxu0 %v1500
  %2353 = vmatpush.bf16.msra.mxu0 %v1498
  %2354 = vmatpush.bf16.msra.mxu0 %v1496
  %2355 = vmatpush.bf16.msra.mxu0 %v1494
  %2356 = vmatpush.bf16.msra.mxu0 %v1492
  %2357 = vmatpush.bf16.msra.mxu0 %v1490
  %2358 = vmatmul.bf16.gmra.mxu0 %v432
  %v2359 = vpop.f32.mrf.mxu0
  %v2360 = vadd.f32 %v2341, %v2359
  %v2361 = vpop.f32.mrf.mxu0
  %v2362 = vadd.f32 %v2343, %v2361
  %2363 = vmatmul.bf16.gmra.mxu0 %v448
  %v2364 = vpop.f32.mrf.mxu0
  %v2365 = vadd.f32 %v2346, %v2364
  %v2366 = vpop.f32.mrf.mxu0
  %v2367 = vadd.f32 %v2348, %v2366
  %2368 = vdwg.mxu0
  %2369 = vst [vmem:[%s3] sm:$0xff] %v2056
  %2370 = vst [vmem:[%s3 + $0x8] sm:$0xff] %v2360
  %2371 = vst [vmem:[%s3 + $0x10] sm:$0xff] %v2058
  %2372 = vst [vmem:[%s3 + $0x18] sm:$0xff] %v2362
  %2373 = vst [vmem:[%s3 + $0x20] sm:$0xff] %v2061
  %2374 = vst [vmem:[%s3 + $0x28] sm:$0xff] %v2365
  %2375 = vst [vmem:[%s3 + $0x30] sm:$0xff] %v2063
  %2376 = vst [vmem:[%s3 + $0x38] sm:$0xff] %v2367
  %v2377 = vlaneseq
  %v2378 = vshrl.u32 %v2377, 7
  %v2379 = vadd.s32 %v2378, 8
  %v2380 = vadd.s32 %v2378, 16
  %v2381 = vadd.s32 %v2378, 24
  %s2382 = smul.u32 0, 32
  %v2383 = vstv %s2382
  %v2384 = vadd.s32 %v2378, %v2383
  %v2385 = vadd.s32 %v2379, %v2383
  %v2386 = vadd.s32 %v2380, %v2383
  %v2387 = vadd.s32 %v2381, %v2383
  %vm2388 = vcmp.lt.s32.totalorder %v2384, 32
  %vm2389 = vcmp.lt.s32.totalorder %v2385, 32
  %vm2390 = vcmp.lt.s32.totalorder %v2386, 32
  %vm2391 = vcmp.lt.s32.totalorder %v2387, 32
  %v2392 = vsel %vm2388, %v2056, 0.0
  %v2393 = vsel %vm2388, %v2360, 0.0
  %v2394 = vsel %vm2389, %v2058, 0.0
  %v2395 = vsel %vm2389, %v2362, 0.0
  %v2396 = vsel %vm2390, %v2061, 0.0
  %v2397 = vsel %vm2390, %v2365, 0.0
  %v2398 = vsel %vm2391, %v2063, 0.0
  %v2399 = vsel %vm2391, %v2367, 0.0
  %v2400 = vld [vmem:[%s4] sm:$0x3]
  %v2401 = vadd.f32 %v2392, %v2394
  %v2402 = vadd.f32 %v2401, %v2396
  %v2403 = vadd.f32 %v2402, %v2398
  %v2404 = vrot.slane %v2403, 4
  %v2405 = vadd.f32 %v2403, %v2404
  %v2406 = vrot.slane %v2405, 2
  %v2407 = vadd.f32 %v2405, %v2406
  %v2408 = vrot.slane %v2407, 1
  %v2409 = vadd.f32 %v2407, %v2408
  %v2410 = vadd.f32 %v2393, %v2395
  %v2411 = vadd.f32 %v2410, %v2397
  %v2412 = vadd.f32 %v2411, %v2399
  %v2413 = vrot.slane %v2412, 4
  %v2414 = vadd.f32 %v2412, %v2413
  %v2415 = vrot.slane %v2414, 2
  %v2416 = vadd.f32 %v2414, %v2415
  %v2417 = vrot.slane %v2416, 1
  %v2418 = vadd.f32 %v2416, %v2417
  %v2421 = vrot.slane %v2418, 7
  %vm2422 = vcmask 1040384
  %v2423 = vsel %vm2422, %v2409, %v2421
  %v2425 = vadd.f32 %v2400, %v2423
  %v2426 = vlaneseq
  %vm2427 = vcmp.ge.s32.totalorder %v2426, 0
  %vm2428 = vcmp.lt.s32.totalorder %v2426, 256
  %vm2429 = vmand %vm2427, %vm2428
  %2430 = vst.msk [vmem:[%s4] sm:$0x3] %vm2429, %v2425
  %v2431 = vld [vmem:[%s5] sm:$0x3]
  %v2432 = vmul.f32 %v2392, %v2392
  %v2433 = vmul.f32 %v2393, %v2393
  %v2434 = vmul.f32 %v2394, %v2394
  %v2435 = vmul.f32 %v2395, %v2395
  %v2436 = vmul.f32 %v2396, %v2396
  %v2437 = vmul.f32 %v2397, %v2397
  %v2438 = vmul.f32 %v2398, %v2398
  %v2439 = vmul.f32 %v2399, %v2399
  %v2440 = vadd.f32 %v2432, %v2434
  %v2441 = vadd.f32 %v2440, %v2436
  %v2442 = vadd.f32 %v2441, %v2438
  %v2443 = vrot.slane %v2442, 4
  %v2444 = vadd.f32 %v2442, %v2443
  %v2445 = vrot.slane %v2444, 2
  %v2446 = vadd.f32 %v2444, %v2445
  %v2447 = vrot.slane %v2446, 1
  %v2448 = vadd.f32 %v2446, %v2447
  %v2449 = vadd.f32 %v2433, %v2435
  %v2450 = vadd.f32 %v2449, %v2437
  %v2451 = vadd.f32 %v2450, %v2439
  %v2452 = vrot.slane %v2451, 4
  %v2453 = vadd.f32 %v2451, %v2452
  %v2454 = vrot.slane %v2453, 2
  %v2455 = vadd.f32 %v2453, %v2454
  %v2456 = vrot.slane %v2455, 1
  %v2457 = vadd.f32 %v2455, %v2456
  %v2460 = vrot.slane %v2457, 7
  %v2461 = vsel %vm2422, %v2448, %v2460
  %v2463 = vadd.f32 %v2431, %v2461
  %2464 = vst.msk [vmem:[%s5] sm:$0x3] %vm2429, %v2463
  // Predicated region
  $region18: #{_lambda_.11} parent=0 // pred_check
    _
  $region19: #{_lambda_.11} parent=0 // pred_check_branch
    %2466 = sbr.rel (0) target = $region21
  $region20: #{_lambda_.11} parent=0 // pred_region
    _
  $region21: #{_lambda_.11} parent=0 // pred_fallthru
    _
  // Predicated region
  $region22: #{_lambda_.11} parent=0 // pred_check
    _
  $region23: #{_lambda_.11} parent=0 // pred_check_branch
    %2468 = sbr.rel (0) target = $region25
  $region24: #{_lambda_.11} parent=0 // pred_region
    _
  $region25: #{_lambda_.11} parent=0 // pred_fallthru
    _
  // Predicated region
  $region26: #{_lambda_.11} parent=0 // pred_check
    _
  $region27: #{_lambda_.11} parent=0 // pred_check_branch
    %2470 = sbr.rel (0) target = $region29
  $region28: #{_lambda_.11} parent=0 // pred_region
    _
  $region29: #{_lambda_.11} parent=0 // pred_fallthru
    _
  // Predicated region
  $region30: #{_lambda_.11} parent=0 // pred_check
    _
  $region31: #{_lambda_.11} parent=0 // pred_check_branch
    %2472 = sbr.rel (0) target = $region33
  $region32: #{_lambda_.11} parent=0 // pred_region
    _
  $region33: #{_lambda_.11} parent=0 // pred_fallthru
    _
  // Predicated region
  $region34: #{_lambda_.11} parent=0 // pred_check
    _
  $region35: #{_lambda_.11} parent=0 // pred_check_branch
    %2474 = sbr.rel (0) target = $region37
  $region36: #{_lambda_.11} parent=0 // pred_region
    _
  $region37: #{_lambda_.11} parent=0 // pred_fallthru
    _
  // Predicated region
  $region38: #{_lambda_.11} parent=0 // pred_check
    _
  $region39: #{_lambda_.11} parent=0 // pred_check_branch
    %2476 = sbr.rel (0) target = $region41
  $region40: #{_lambda_.11} parent=0 // pred_region
    _
  $region41: #{_lambda_.11} parent=0 // pred_fallthru
    _

// kernel: _lambda_.13
$region0: #{_lambda_.13}
  #allocation0 [shape = 'u32[]', space=smem, size = 0x4, offset = 0x4, fixed_abs, tag = 'smem constant byte address 0x4 - core index']
  #allocation1 [shape = 'u32[72,128]{1,0:T(1,128)}', space=vmem, size = 0x9000, scoped, tag = 'internal scratch']
  %s0 = inlined_call_operand.vmem [shape: bf16[24,4096], index: 0, kind: input, shape index: {}]
  %s1 = inlined_call_operand.vmem [shape: bf16[4096,256], index: 1, kind: input, shape index: {}]
  %s2 = inlined_call_operand.vmem [shape: f32[1,256], index: 2, kind: input, shape index: {}]
  %s3 = inlined_call_operand.vmem [shape: f32[24,256], index: 3, kind: output, shape index: {0}]
  %s4 = inlined_call_operand.vmem [shape: f32[1,256], index: 4, kind: output, shape index: {1}]
  %s5 = inlined_call_operand.vmem [shape: f32[1,256], index: 5, kind: output, shape index: {2}]
  %6 = xla_tuple %s3, %s4, %s5
  %s7 = sld [smem:[#allocation0]]
  $region42: #{_lambda_.13} parent=0
    _
  %s9 = ssub.s32 1, %s7
  %s10 = scalar_select 0, %s9, %s7
  // Predicated region
  $region2: #{_lambda_.13} parent=0 // pred_check
    _
  $region3: #{_lambda_.13} parent=0 // pred_check_branch
    %12 = sbr.rel (0) target = $region5
  $region4: #{_lambda_.13} parent=0 // pred_region
    _
  $region5: #{_lambda_.13} parent=0 // pred_fallthru
    _
  // Predicated region
  $region6: #{_lambda_.13} parent=0 // pred_check
    _
  $region7: #{_lambda_.13} parent=0 // pred_check_branch
    %14 = sbr.rel (0) target = $region9
  $region8: #{_lambda_.13} parent=0 // pred_region
    _
  $region9: #{_lambda_.13} parent=0 // pred_fallthru
    _
  // Predicated region
  $region10: #{_lambda_.13} parent=0 // pred_check
    _
  $region11: #{_lambda_.13} parent=0 // pred_check_branch
    %16 = sbr.rel (0) target = $region13
  $region12: #{_lambda_.13} parent=0 // pred_region
    _
  $region13: #{_lambda_.13} parent=0 // pred_fallthru
    _
  %p17 = scmp.eq.s32.totalorder 0, 0
  // Predicated region
  $region14: #{_lambda_.13} parent=0 // pred_check
    %p18 = pneg %p17
  $region15: #{_lambda_.13} parent=0 // pred_check_branch
    %20 = sbr.rel (%p18) target = $region17
  $region16: #{_lambda_.13} parent=0 // pred_region
    %v21 = vlaneseq
    %vm22 = vcmp.ge.s32.totalorder %v21, 0
    %vm23 = vcmp.lt.s32.totalorder %v21, 256
    %vm24 = vmand %vm22, %vm23
    %25 = vst.msk [vmem:[%s4] sm:$0x3] %vm24, 0.0
    %26 = vst.msk [vmem:[%s5] sm:$0x3] %vm24, 0.0
  $region17: #{_lambda_.13} parent=0 // pred_fallthru
    _
  %v27 = vld [vmem:[%s0] sm:$0xff]
  %v28 = vld [vmem:[%s0 + $0x8] sm:$0xff]
  %v29 = vld [vmem:[%s0 + $0x10] sm:$0xff]
  %v30 = vld [vmem:[%s0 + $0x18] sm:$0xff]
  %v31 = vld [vmem:[%s0 + $0x20] sm:$0xff]
  %v32 = vld [vmem:[%s0 + $0x28] sm:$0xff]
  %v33 = vld [vmem:[%s0 + $0x30] sm:$0xff]
  %v34 = vld [vmem:[%s0 + $0x38] sm:$0xff]
  %v35 = vld [vmem:[%s0 + $0x40] sm:$0xff]
  %v36 = vld [vmem:[%s0 + $0x48] sm:$0xff]
  %v37 = vld [vmem:[%s0 + $0x50] sm:$0xff]
  %v38 = vld [vmem:[%s0 + $0x58] sm:$0xff]
  %v39 = vld [vmem:[%s0 + $0x60] sm:$0xff]
  %v40 = vld [vmem:[%s0 + $0x68] sm:$0xff]
  %v41 = vld [vmem:[%s0 + $0x70] sm:$0xff]
  %v42 = vld [vmem:[%s0 + $0x78] sm:$0xff]
  %v43 = vld [vmem:[%s0 + $0x80] sm:$0xff]
  %v44 = vld [vmem:[%s0 + $0x88] sm:$0xff]
  %v45 = vld [vmem:[%s0 + $0x90] sm:$0xff]
  %v46 = vld [vmem:[%s0 + $0x98] sm:$0xff]
  %v47 = vld [vmem:[%s0 + $0xa0] sm:$0xff]
  %v48 = vld [vmem:[%s0 + $0xa8] sm:$0xff]
  %v49 = vld [vmem:[%s0 + $0xb0] sm:$0xff]
  %v50 = vld [vmem:[%s0 + $0xb8] sm:$0xff]
  %v51 = vld [vmem:[%s0 + $0xc0] sm:$0xff]
  %v52 = vld [vmem:[%s0 + $0xc8] sm:$0xff]
  %v53 = vld [vmem:[%s0 + $0xd0] sm:$0xff]
  %v54 = vld [vmem:[%s0 + $0xd8] sm:$0xff]
  %v55 = vld [vmem:[%s0 + $0xe0] sm:$0xff]
  %v56 = vld [vmem:[%s0 + $0xe8] sm:$0xff]
  %v57 = vld [vmem:[%s0 + $0xf0] sm:$0xff]
  %v58 = vld [vmem:[%s0 + $0xf8] sm:$0xff]
  %v59 = vld [vmem:[%s0 + $0x100] sm:$0xff]
  %v60 = vld [vmem:[%s0 + $0x108] sm:$0xff]
  %v61 = vld [vmem:[%s0 + $0x110] sm:$0xff]
  %v62 = vld [vmem:[%s0 + $0x118] sm:$0xff]
  %v63 = vld [vmem:[%s0 + $0x120] sm:$0xff]
  %v64 = vld [vmem:[%s0 + $0x128] sm:$0xff]
  %v65 = vld [vmem:[%s0 + $0x130] sm:$0xff]
  %v66 = vld [vmem:[%s0 + $0x138] sm:$0xff]
  %v67 = vld [vmem:[%s0 + $0x140] sm:$0xff]
  %v68 = vld [vmem:[%s0 + $0x148] sm:$0xff]
  %v69 = vld [vmem:[%s0 + $0x150] sm:$0xff]
  %v70 = vld [vmem:[%s0 + $0x158] sm:$0xff]
  %v71 = vld [vmem:[%s0 + $0x160] sm:$0xff]
  %v72 = vld [vmem:[%s0 + $0x168] sm:$0xff]
  %v73 = vld [vmem:[%s0 + $0x170] sm:$0xff]
  %v74 = vld [vmem:[%s0 + $0x178] sm:$0xff]
  %v75 = vld [vmem:[%s1] sm:$0xff]
  %v76 = vld [vmem:[%s1 + $0x8] sm:$0xff]
  %v77 = vld [vmem:[%s1 + $0x10] sm:$0xff]
  %v78 = vld [vmem:[%s1 + $0x18] sm:$0xff]
  %v79 = vld [vmem:[%s1 + $0x20] sm:$0xff]
  %v80 = vld [vmem:[%s1 + $0x28] sm:$0xff]
  %v81 = vld [vmem:[%s1 + $0x30] sm:$0xff]
  %v82 = vld [vmem:[%s1 + $0x38] sm:$0xff]
  %v83 = vld [vmem:[%s1 + $0x40] sm:$0xff]
  %v84 = vld [vmem:[%s1 + $0x48] sm:$0xff]
  %v85 = vld [vmem:[%s1 + $0x50] sm:$0xff]
  %v86 = vld [vmem:[%s1 + $0x58] sm:$0xff]
  %v87 = vld [vmem:[%s1 + $0x60] sm:$0xff]
  %v88 = vld [vmem:[%s1 + $0x68] sm:$0xff]
  %v89 = vld [vmem:[%s1 + $0x70] sm:$0xff]
  %v90 = vld [vmem:[%s1 + $0x78] sm:$0xff]
  %v91 = vld [vmem:[%s1 + $0x80] sm:$0xff]
  %v92 = vld [vmem:[%s1 + $0x88] sm:$0xff]
  %v93 = vld [vmem:[%s1 + $0x90] sm:$0xff]
  %v94 = vld [vmem:[%s1 + $0x98] sm:$0xff]
  %v95 = vld [vmem:[%s1 + $0xa0] sm:$0xff]
  %v96 = vld [vmem:[%s1 + $0xa8] sm:$0xff]
  %v97 = vld [vmem:[%s1 + $0xb0] sm:$0xff]
  %v98 = vld [vmem:[%s1 + $0xb8] sm:$0xff]
  %v99 = vld [vmem:[%s1 + $0xc0] sm:$0xff]
  %v100 = vld [vmem:[%s1 + $0xc8] sm:$0xff]
  %v101 = vld [vmem:[%s1 + $0xd0] sm:$0xff]
  %v102 = vld [vmem:[%s1 + $0xd8] sm:$0xff]
  %v103 = vld [vmem:[%s1 + $0xe0] sm:$0xff]
  %v104 = vld [vmem:[%s1 + $0xe8] sm:$0xff]
  %v105 = vld [vmem:[%s1 + $0xf0] sm:$0xff]
  %v106 = vld [vmem:[%s1 + $0xf8] sm:$0xff]
  %v107 = vld [vmem:[%s1 + $0x100] sm:$0xff]
  %v108 = vld [vmem:[%s1 + $0x108] sm:$0xff]
  %v109 = vld [vmem:[%s1 + $0x110] sm:$0xff]
  %v110 = vld [vmem:[%s1 + $0x118] sm:$0xff]
  %v111 = vld [vmem:[%s1 + $0x120] sm:$0xff]
  %v112 = vld [vmem:[%s1 + $0x128] sm:$0xff]
  %v113 = vld [vmem:[%s1 + $0x130] sm:$0xff]
  %v114 = vld [vmem:[%s1 + $0x138] sm:$0xff]
  %v115 = vld [vmem:[%s1 + $0x140] sm:$0xff]
  %v116 = vld [vmem:[%s1 + $0x148] sm:$0xff]
  %v117 = vld [vmem:[%s1 + $0x150] sm:$0xff]
  %v118 = vld [vmem:[%s1 + $0x158] sm:$0xff]
  %v119 = vld [vmem:[%s1 + $0x160] sm:$0xff]
  %v120 = vld [vmem:[%s1 + $0x168] sm:$0xff]
  %v121 = vld [vmem:[%s1 + $0x170] sm:$0xff]
  %v122 = vld [vmem:[%s1 + $0x178] sm:$0xff]
  %v123 = vld [vmem:[%s1 + $0x180] sm:$0xff]
  %v124 = vld [vmem:[%s1 + $0x188] sm:$0xff]
  %v125 = vld [vmem:[%s1 + $0x190] sm:$0xff]
  %v126 = vld [vmem:[%s1 + $0x198] sm:$0xff]
  %v127 = vld [vmem:[%s1 + $0x1a0] sm:$0xff]
  %v128 = vld [vmem:[%s1 + $0x1a8] sm:$0xff]
  %v129 = vld [vmem:[%s1 + $0x1b0] sm:$0xff]
  %v130 = vld [vmem:[%s1 + $0x1b8] sm:$0xff]
  %v131 = vld [vmem:[%s1 + $0x1c0] sm:$0xff]
  %v132 = vld [vmem:[%s1 + $0x1c8] sm:$0xff]
  %v133 = vld [vmem:[%s1 + $0x1d0] sm:$0xff]
  %v134 = vld [vmem:[%s1 + $0x1d8] sm:$0xff]
  %v135 = vld [vmem:[%s1 + $0x1e0] sm:$0xff]
  %v136 = vld [vmem:[%s1 + $0x1e8] sm:$0xff]
  %v137 = vld [vmem:[%s1 + $0x1f0] sm:$0xff]
  %v138 = vld [vmem:[%s1 + $0x1f8] sm:$0xff]
  %v139 = vld [vmem:[%s1 + $0x200] sm:$0xff]
  %v140 = vld [vmem:[%s1 + $0x208] sm:$0xff]
  %v141 = vld [vmem:[%s1 + $0x210] sm:$0xff]
  %v142 = vld [vmem:[%s1 + $0x218] sm:$0xff]
  %v143 = vld [vmem:[%s1 + $0x220] sm:$0xff]
  %v144 = vld [vmem:[%s1 + $0x228] sm:$0xff]
  %v145 = vld [vmem:[%s1 + $0x230] sm:$0xff]
  %v146 = vld [vmem:[%s1 + $0x238] sm:$0xff]
  %v147 = vld [vmem:[%s1 + $0x240] sm:$0xff]
  %v148 = vld [vmem:[%s1 + $0x248] sm:$0xff]
  %v149 = vld [vmem:[%s1 + $0x250] sm:$0xff]
  %v150 = vld [vmem:[%s1 + $0x258] sm:$0xff]
  %v151 = vld [vmem:[%s1 + $0x260] sm:$0xff]
  %v152 = vld [vmem:[%s1 + $0x268] sm:$0xff]
  %v153 = vld [vmem:[%s1 + $0x270] sm:$0xff]
  %v154 = vld [vmem:[%s1 + $0x278] sm:$0xff]
  %v155 = vld [vmem:[%s1 + $0x280] sm:$0xff]
  %v156 = vld [vmem:[%s1 + $0x288] sm:$0xff]
  %v157 = vld [vmem:[%s1 + $0x290] sm:$0xff]
  %v158 = vld [vmem:[%s1 + $0x298] sm:$0xff]
  %v159 = vld [vmem:[%s1 + $0x2a0] sm:$0xff]
  %v160 = vld [vmem:[%s1 + $0x2a8] sm:$0xff]
  %v161 = vld [vmem:[%s1 + $0x2b0] sm:$0xff]
  %v162 = vld [vmem:[%s1 + $0x2b8] sm:$0xff]
  %v163 = vld [vmem:[%s1 + $0x2c0] sm:$0xff]
  %v164 = vld [vmem:[%s1 + $0x2c8] sm:$0xff]
  %v165 = vld [vmem:[%s1 + $0x2d0] sm:$0xff]
  %v166 = vld [vmem:[%s1 + $0x2d8] sm:$0xff]
  %v167 = vld [vmem:[%s1 + $0x2e0] sm:$0xff]
  %v168 = vld [vmem:[%s1 + $0x2e8] sm:$0xff]
  %v169 = vld [vmem:[%s1 + $0x2f0] sm:$0xff]
  %v170 = vld [vmem:[%s1 + $0x2f8] sm:$0xff]
  %v171 = vld [vmem:[%s1 + $0x300] sm:$0xff]
  %v172 = vld [vmem:[%s1 + $0x308] sm:$0xff]
  %v173 = vld [vmem:[%s1 + $0x310] sm:$0xff]
  %v174 = vld [vmem:[%s1 + $0x318] sm:$0xff]
  %v175 = vld [vmem:[%s1 + $0x320] sm:$0xff]
  %v176 = vld [vmem:[%s1 + $0x328] sm:$0xff]
  %v177 = vld [vmem:[%s1 + $0x330] sm:$0xff]
  %v178 = vld [vmem:[%s1 + $0x338] sm:$0xff]
  %v179 = vld [vmem:[%s1 + $0x340] sm:$0xff]
  %v180 = vld [vmem:[%s1 + $0x348] sm:$0xff]
  %v181 = vld [vmem:[%s1 + $0x350] sm:$0xff]
  %v182 = vld [vmem:[%s1 + $0x358] sm:$0xff]
  %v183 = vld [vmem:[%s1 + $0x360] sm:$0xff]
  %v184 = vld [vmem:[%s1 + $0x368] sm:$0xff]
  %v185 = vld [vmem:[%s1 + $0x370] sm:$0xff]
  %v186 = vld [vmem:[%s1 + $0x378] sm:$0xff]
  %v187 = vld [vmem:[%s1 + $0x380] sm:$0xff]
  %v188 = vld [vmem:[%s1 + $0x388] sm:$0xff]
  %v189 = vld [vmem:[%s1 + $0x390] sm:$0xff]
  %v190 = vld [vmem:[%s1 + $0x398] sm:$0xff]
  %v191 = vld [vmem:[%s1 + $0x3a0] sm:$0xff]
  %v192 = vld [vmem:[%s1 + $0x3a8] sm:$0xff]
  %v193 = vld [vmem:[%s1 + $0x3b0] sm:$0xff]
  %v194 = vld [vmem:[%s1 + $0x3b8] sm:$0xff]
  %v195 = vld [vmem:[%s1 + $0x3c0] sm:$0xff]
  %v196 = vld [vmem:[%s1 + $0x3c8] sm:$0xff]
  %v197 = vld [vmem:[%s1 + $0x3d0] sm:$0xff]
  %v198 = vld [vmem:[%s1 + $0x3d8] sm:$0xff]
  %v199 = vld [vmem:[%s1 + $0x3e0] sm:$0xff]
  %v200 = vld [vmem:[%s1 + $0x3e8] sm:$0xff]
  %v201 = vld [vmem:[%s1 + $0x3f0] sm:$0xff]
  %v202 = vld [vmem:[%s1 + $0x3f8] sm:$0xff]
  %v203 = vld [vmem:[%s1 + $0x400] sm:$0xff]
  %v204 = vld [vmem:[%s1 + $0x408] sm:$0xff]
  %v205 = vld [vmem:[%s1 + $0x410] sm:$0xff]
  %v206 = vld [vmem:[%s1 + $0x418] sm:$0xff]
  %v207 = vld [vmem:[%s1 + $0x420] sm:$0xff]
  %v208 = vld [vmem:[%s1 + $0x428] sm:$0xff]
  %v209 = vld [vmem:[%s1 + $0x430] sm:$0xff]
  %v210 = vld [vmem:[%s1 + $0x438] sm:$0xff]
  %v211 = vld [vmem:[%s1 + $0x440] sm:$0xff]
  %v212 = vld [vmem:[%s1 + $0x448] sm:$0xff]
  %v213 = vld [vmem:[%s1 + $0x450] sm:$0xff]
  %v214 = vld [vmem:[%s1 + $0x458] sm:$0xff]
  %v215 = vld [vmem:[%s1 + $0x460] sm:$0xff]
  %v216 = vld [vmem:[%s1 + $0x468] sm:$0xff]
  %v217 = vld [vmem:[%s1 + $0x470] sm:$0xff]
  %v218 = vld [vmem:[%s1 + $0x478] sm:$0xff]
  %v219 = vld [vmem:[%s1 + $0x480] sm:$0xff]
  %v220 = vld [vmem:[%s1 + $0x488] sm:$0xff]
  %v221 = vld [vmem:[%s1 + $0x490] sm:$0xff]
  %v222 = vld [vmem:[%s1 + $0x498] sm:$0xff]
  %v223 = vld [vmem:[%s1 + $0x4a0] sm:$0xff]
  %v224 = vld [vmem:[%s1 + $0x4a8] sm:$0xff]
  %v225 = vld [vmem:[%s1 + $0x4b0] sm:$0xff]
  %v226 = vld [vmem:[%s1 + $0x4b8] sm:$0xff]
  %v227 = vld [vmem:[%s1 + $0x4c0] sm:$0xff]
  %v228 = vld [vmem:[%s1 + $0x4c8] sm:$0xff]
  %v229 = vld [vmem:[%s1 + $0x4d0] sm:$0xff]
  %v230 = vld [vmem:[%s1 + $0x4d8] sm:$0xff]
  %v231 = vld [vmem:[%s1 + $0x4e0] sm:$0xff]
  %v232 = vld [vmem:[%s1 + $0x4e8] sm:$0xff]
  %v233 = vld [vmem:[%s1 + $0x4f0] sm:$0xff]
  %v234 = vld [vmem:[%s1 + $0x4f8] sm:$0xff]
  %v235 = vld [vmem:[%s1 + $0x500] sm:$0xff]
  %v236 = vld [vmem:[%s1 + $0x508] sm:$0xff]
  %v237 = vld [vmem:[%s1 + $0x510] sm:$0xff]
  %v238 = vld [vmem:[%s1 + $0x518] sm:$0xff]
  %v239 = vld [vmem:[%s1 + $0x520] sm:$0xff]
  %v240 = vld [vmem:[%s1 + $0x528] sm:$0xff]
  %v241 = vld [vmem:[%s1 + $0x530] sm:$0xff]
  %v242 = vld [vmem:[%s1 + $0x538] sm:$0xff]
  %v243 = vld [vmem:[%s1 + $0x540] sm:$0xff]
  %v244 = vld [vmem:[%s1 + $0x548] sm:$0xff]
  %v245 = vld [vmem:[%s1 + $0x550] sm:$0xff]
  %v246 = vld [vmem:[%s1 + $0x558] sm:$0xff]
  %v247 = vld [vmem:[%s1 + $0x560] sm:$0xff]
  %v248 = vld [vmem:[%s1 + $0x568] sm:$0xff]
  %v249 = vld [vmem:[%s1 + $0x570] sm:$0xff]
  %v250 = vld [vmem:[%s1 + $0x578] sm:$0xff]
  %v251 = vld [vmem:[%s1 + $0x580] sm:$0xff]
  %v252 = vld [vmem:[%s1 + $0x588] sm:$0xff]
  %v253 = vld [vmem:[%s1 + $0x590] sm:$0xff]
  %v254 = vld [vmem:[%s1 + $0x598] sm:$0xff]
  %v255 = vld [vmem:[%s1 + $0x5a0] sm:$0xff]
  %v256 = vld [vmem:[%s1 + $0x5a8] sm:$0xff]
  %v257 = vld [vmem:[%s1 + $0x5b0] sm:$0xff]
  %v258 = vld [vmem:[%s1 + $0x5b8] sm:$0xff]
  %v259 = vld [vmem:[%s1 + $0x5c0] sm:$0xff]
  %v260 = vld [vmem:[%s1 + $0x5c8] sm:$0xff]
  %v261 = vld [vmem:[%s1 + $0x5d0] sm:$0xff]
  %v262 = vld [vmem:[%s1 + $0x5d8] sm:$0xff]
  %v263 = vld [vmem:[%s1 + $0x5e0] sm:$0xff]
  %v264 = vld [vmem:[%s1 + $0x5e8] sm:$0xff]
  %v265 = vld [vmem:[%s1 + $0x5f0] sm:$0xff]
  %v266 = vld [vmem:[%s1 + $0x5f8] sm:$0xff]
  %v267 = vld [vmem:[%s1 + $0x600] sm:$0xff]
  %v268 = vld [vmem:[%s1 + $0x608] sm:$0xff]
  %v269 = vld [vmem:[%s1 + $0x610] sm:$0xff]
  %v270 = vld [vmem:[%s1 + $0x618] sm:$0xff]
  %v271 = vld [vmem:[%s1 + $0x620] sm:$0xff]
  %v272 = vld [vmem:[%s1 + $0x628] sm:$0xff]
  %v273 = vld [vmem:[%s1 + $0x630] sm:$0xff]
  %v274 = vld [vmem:[%s1 + $0x638] sm:$0xff]
  %v275 = vld [vmem:[%s1 + $0x640] sm:$0xff]
  %v276 = vld [vmem:[%s1 + $0x648] sm:$0xff]
  %v277 = vld [vmem:[%s1 + $0x650] sm:$0xff]
  %v278 = vld [vmem:[%s1 + $0x658] sm:$0xff]
  %v279 = vld [vmem:[%s1 + $0x660] sm:$0xff]
  %v280 = vld [vmem:[%s1 + $0x668] sm:$0xff]
  %v281 = vld [vmem:[%s1 + $0x670] sm:$0xff]
  %v282 = vld [vmem:[%s1 + $0x678] sm:$0xff]
  %v283 = vld [vmem:[%s1 + $0x680] sm:$0xff]
  %v284 = vld [vmem:[%s1 + $0x688] sm:$0xff]
  %v285 = vld [vmem:[%s1 + $0x690] sm:$0xff]
  %v286 = vld [vmem:[%s1 + $0x698] sm:$0xff]
  %v287 = vld [vmem:[%s1 + $0x6a0] sm:$0xff]
  %v288 = vld [vmem:[%s1 + $0x6a8] sm:$0xff]
  %v289 = vld [vmem:[%s1 + $0x6b0] sm:$0xff]
  %v290 = vld [vmem:[%s1 + $0x6b8] sm:$0xff]
  %v291 = vld [vmem:[%s1 + $0x6c0] sm:$0xff]
  %v292 = vld [vmem:[%s1 + $0x6c8] sm:$0xff]
  %v293 = vld [vmem:[%s1 + $0x6d0] sm:$0xff]
  %v294 = vld [vmem:[%s1 + $0x6d8] sm:$0xff]
  %v295 = vld [vmem:[%s1 + $0x6e0] sm:$0xff]
  %v296 = vld [vmem:[%s1 + $0x6e8] sm:$0xff]
  %v297 = vld [vmem:[%s1 + $0x6f0] sm:$0xff]
  %v298 = vld [vmem:[%s1 + $0x6f8] sm:$0xff]
  %v299 = vld [vmem:[%s1 + $0x700] sm:$0xff]
  %v300 = vld [vmem:[%s1 + $0x708] sm:$0xff]
  %v301 = vld [vmem:[%s1 + $0x710] sm:$0xff]
  %v302 = vld [vmem:[%s1 + $0x718] sm:$0xff]
  %v303 = vld [vmem:[%s1 + $0x720] sm:$0xff]
  %v304 = vld [vmem:[%s1 + $0x728] sm:$0xff]
  %v305 = vld [vmem:[%s1 + $0x730] sm:$0xff]
  %v306 = vld [vmem:[%s1 + $0x738] sm:$0xff]
  %v307 = vld [vmem:[%s1 + $0x740] sm:$0xff]
  %v308 = vld [vmem:[%s1 + $0x748] sm:$0xff]
  %v309 = vld [vmem:[%s1 + $0x750] sm:$0xff]
  %v310 = vld [vmem:[%s1 + $0x758] sm:$0xff]
  %v311 = vld [vmem:[%s1 + $0x760] sm:$0xff]
  %v312 = vld [vmem:[%s1 + $0x768] sm:$0xff]
  %v313 = vld [vmem:[%s1 + $0x770] sm:$0xff]
  %v314 = vld [vmem:[%s1 + $0x778] sm:$0xff]
  %v315 = vld [vmem:[%s1 + $0x780] sm:$0xff]
  %v316 = vld [vmem:[%s1 + $0x788] sm:$0xff]
  %v317 = vld [vmem:[%s1 + $0x790] sm:$0xff]
  %v318 = vld [vmem:[%s1 + $0x798] sm:$0xff]
  %v319 = vld [vmem:[%s1 + $0x7a0] sm:$0xff]
  %v320 = vld [vmem:[%s1 + $0x7a8] sm:$0xff]
  %v321 = vld [vmem:[%s1 + $0x7b0] sm:$0xff]
  %v322 = vld [vmem:[%s1 + $0x7b8] sm:$0xff]
  %v323 = vld [vmem:[%s1 + $0x7c0] sm:$0xff]
  %v324 = vld [vmem:[%s1 + $0x7c8] sm:$0xff]
  %v325 = vld [vmem:[%s1 + $0x7d0] sm:$0xff]
  %v326 = vld [vmem:[%s1 + $0x7d8] sm:$0xff]
  %v327 = vld [vmem:[%s1 + $0x7e0] sm:$0xff]
  %v328 = vld [vmem:[%s1 + $0x7e8] sm:$0xff]
  %v329 = vld [vmem:[%s1 + $0x7f0] sm:$0xff]
  %v330 = vld [vmem:[%s1 + $0x7f8] sm:$0xff]
  %v331 = vld [vmem:[%s1 + $0x800] sm:$0xff]
  %v332 = vld [vmem:[%s1 + $0x808] sm:$0xff]
  %v333 = vld [vmem:[%s1 + $0x810] sm:$0xff]
  %v334 = vld [vmem:[%s1 + $0x818] sm:$0xff]
  %v335 = vld [vmem:[%s1 + $0x820] sm:$0xff]
  %v336 = vld [vmem:[%s1 + $0x828] sm:$0xff]
  %v337 = vld [vmem:[%s1 + $0x830] sm:$0xff]
  %v338 = vld [vmem:[%s1 + $0x838] sm:$0xff]
  %v339 = vld [vmem:[%s1 + $0x840] sm:$0xff]
  %v340 = vld [vmem:[%s1 + $0x848] sm:$0xff]
  %v341 = vld [vmem:[%s1 + $0x850] sm:$0xff]
  %v342 = vld [vmem:[%s1 + $0x858] sm:$0xff]
  %v343 = vld [vmem:[%s1 + $0x860] sm:$0xff]
  %v344 = vld [vmem:[%s1 + $0x868] sm:$0xff]
  %v345 = vld [vmem:[%s1 + $0x870] sm:$0xff]
  %v346 = vld [vmem:[%s1 + $0x878] sm:$0xff]
  %v347 = vld [vmem:[%s1 + $0x880] sm:$0xff]
  %v348 = vld [vmem:[%s1 + $0x888] sm:$0xff]
  %v349 = vld [vmem:[%s1 + $0x890] sm:$0xff]
  %v350 = vld [vmem:[%s1 + $0x898] sm:$0xff]
  %v351 = vld [vmem:[%s1 + $0x8a0] sm:$0xff]
  %v352 = vld [vmem:[%s1 + $0x8a8] sm:$0xff]
  %v353 = vld [vmem:[%s1 + $0x8b0] sm:$0xff]
  %v354 = vld [vmem:[%s1 + $0x8b8] sm:$0xff]
  %v355 = vld [vmem:[%s1 + $0x8c0] sm:$0xff]
  %v356 = vld [vmem:[%s1 + $0x8c8] sm:$0xff]
  %v357 = vld [vmem:[%s1 + $0x8d0] sm:$0xff]
  %v358 = vld [vmem:[%s1 + $0x8d8] sm:$0xff]
  %v359 = vld [vmem:[%s1 + $0x8e0] sm:$0xff]
  %v360 = vld [vmem:[%s1 + $0x8e8] sm:$0xff]
  %v361 = vld [vmem:[%s1 + $0x8f0] sm:$0xff]
  %v362 = vld [vmem:[%s1 + $0x8f8] sm:$0xff]
  %v363 = vld [vmem:[%s1 + $0x900] sm:$0xff]
  %v364 = vld [vmem:[%s1 + $0x908] sm:$0xff]
  %v365 = vld [vmem:[%s1 + $0x910] sm:$0xff]
  %v366 = vld [vmem:[%s1 + $0x918] sm:$0xff]
  %v367 = vld [vmem:[%s1 + $0x920] sm:$0xff]
  %v368 = vld [vmem:[%s1 + $0x928] sm:$0xff]
  %v369 = vld [vmem:[%s1 + $0x930] sm:$0xff]
  %v370 = vld [vmem:[%s1 + $0x938] sm:$0xff]
  %v371 = vld [vmem:[%s1 + $0x940] sm:$0xff]
  %v372 = vld [vmem:[%s1 + $0x948] sm:$0xff]
  %v373 = vld [vmem:[%s1 + $0x950] sm:$0xff]
  %v374 = vld [vmem:[%s1 + $0x958] sm:$0xff]
  %v375 = vld [vmem:[%s1 + $0x960] sm:$0xff]
  %v376 = vld [vmem:[%s1 + $0x968] sm:$0xff]
  %v377 = vld [vmem:[%s1 + $0x970] sm:$0xff]
  %v378 = vld [vmem:[%s1 + $0x978] sm:$0xff]
  %v379 = vld [vmem:[%s1 + $0x980] sm:$0xff]
  %v380 = vld [vmem:[%s1 + $0x988] sm:$0xff]
  %v381 = vld [vmem:[%s1 + $0x990] sm:$0xff]
  %v382 = vld [vmem:[%s1 + $0x998] sm:$0xff]
  %v383 = vld [vmem:[%s1 + $0x9a0] sm:$0xff]
  %v384 = vld [vmem:[%s1 + $0x9a8] sm:$0xff]
  %v385 = vld [vmem:[%s1 + $0x9b0] sm:$0xff]
  %v386 = vld [vmem:[%s1 + $0x9b8] sm:$0xff]
  %v387 = vld [vmem:[%s1 + $0x9c0] sm:$0xff]
  %v388 = vld [vmem:[%s1 + $0x9c8] sm:$0xff]
  %v389 = vld [vmem:[%s1 + $0x9d0] sm:$0xff]
  %v390 = vld [vmem:[%s1 + $0x9d8] sm:$0xff]
  %v391 = vld [vmem:[%s1 + $0x9e0] sm:$0xff]
  %v392 = vld [vmem:[%s1 + $0x9e8] sm:$0xff]
  %v393 = vld [vmem:[%s1 + $0x9f0] sm:$0xff]
  %v394 = vld [vmem:[%s1 + $0x9f8] sm:$0xff]
  %v395 = vld [vmem:[%s1 + $0xa00] sm:$0xff]
  %v396 = vld [vmem:[%s1 + $0xa08] sm:$0xff]
  %v397 = vld [vmem:[%s1 + $0xa10] sm:$0xff]
  %v398 = vld [vmem:[%s1 + $0xa18] sm:$0xff]
  %v399 = vld [vmem:[%s1 + $0xa20] sm:$0xff]
  %v400 = vld [vmem:[%s1 + $0xa28] sm:$0xff]
  %v401 = vld [vmem:[%s1 + $0xa30] sm:$0xff]
  %v402 = vld [vmem:[%s1 + $0xa38] sm:$0xff]
  %v403 = vld [vmem:[%s1 + $0xa40] sm:$0xff]
  %v404 = vld [vmem:[%s1 + $0xa48] sm:$0xff]
  %v405 = vld [vmem:[%s1 + $0xa50] sm:$0xff]
  %v406 = vld [vmem:[%s1 + $0xa58] sm:$0xff]
  %v407 = vld [vmem:[%s1 + $0xa60] sm:$0xff]
  %v408 = vld [vmem:[%s1 + $0xa68] sm:$0xff]
  %v409 = vld [vmem:[%s1 + $0xa70] sm:$0xff]
  %v410 = vld [vmem:[%s1 + $0xa78] sm:$0xff]
  %v411 = vld [vmem:[%s1 + $0xa80] sm:$0xff]
  %v412 = vld [vmem:[%s1 + $0xa88] sm:$0xff]
  %v413 = vld [vmem:[%s1 + $0xa90] sm:$0xff]
  %v414 = vld [vmem:[%s1 + $0xa98] sm:$0xff]
  %v415 = vld [vmem:[%s1 + $0xaa0] sm:$0xff]
  %v416 = vld [vmem:[%s1 + $0xaa8] sm:$0xff]
  %v417 = vld [vmem:[%s1 + $0xab0] sm:$0xff]
  %v418 = vld [vmem:[%s1 + $0xab8] sm:$0xff]
  %v419 = vld [vmem:[%s1 + $0xac0] sm:$0xff]
  %v420 = vld [vmem:[%s1 + $0xac8] sm:$0xff]
  %v421 = vld [vmem:[%s1 + $0xad0] sm:$0xff]
  %v422 = vld [vmem:[%s1 + $0xad8] sm:$0xff]
  %v423 = vld [vmem:[%s1 + $0xae0] sm:$0xff]
  %v424 = vld [vmem:[%s1 + $0xae8] sm:$0xff]
  %v425 = vld [vmem:[%s1 + $0xaf0] sm:$0xff]
  %v426 = vld [vmem:[%s1 + $0xaf8] sm:$0xff]
  %v427 = vld [vmem:[%s1 + $0xb00] sm:$0xff]
  %v428 = vld [vmem:[%s1 + $0xb08] sm:$0xff]
  %v429 = vld [vmem:[%s1 + $0xb10] sm:$0xff]
  %v430 = vld [vmem:[%s1 + $0xb18] sm:$0xff]
  %v431 = vld [vmem:[%s1 + $0xb20] sm:$0xff]
  %v432 = vld [vmem:[%s1 + $0xb28] sm:$0xff]
  %v433 = vld [vmem:[%s1 + $0xb30] sm:$0xff]
  %v434 = vld [vmem:[%s1 + $0xb38] sm:$0xff]
  %v435 = vld [vmem:[%s1 + $0xb40] sm:$0xff]
  %v436 = vld [vmem:[%s1 + $0xb48] sm:$0xff]
  %v437 = vld [vmem:[%s1 + $0xb50] sm:$0xff]
  %v438 = vld [vmem:[%s1 + $0xb58] sm:$0xff]
  %v439 = vld [vmem:[%s1 + $0xb60] sm:$0xff]
  %v440 = vld [vmem:[%s1 + $0xb68] sm:$0xff]
  %v441 = vld [vmem:[%s1 + $0xb70] sm:$0xff]
  %v442 = vld [vmem:[%s1 + $0xb78] sm:$0xff]
  %v443 = vld [vmem:[%s1 + $0xb80] sm:$0xff]
  %v444 = vld [vmem:[%s1 + $0xb88] sm:$0xff]
  %v445 = vld [vmem:[%s1 + $0xb90] sm:$0xff]
  %v446 = vld [vmem:[%s1 + $0xb98] sm:$0xff]
  %v447 = vld [vmem:[%s1 + $0xba0] sm:$0xff]
  %v448 = vld [vmem:[%s1 + $0xba8] sm:$0xff]
  %v449 = vld [vmem:[%s1 + $0xbb0] sm:$0xff]
  %v450 = vld [vmem:[%s1 + $0xbb8] sm:$0xff]
  %v451 = vld [vmem:[%s1 + $0xbc0] sm:$0xff]
  %v452 = vld [vmem:[%s1 + $0xbc8] sm:$0xff]
  %v453 = vld [vmem:[%s1 + $0xbd0] sm:$0xff]
  %v454 = vld [vmem:[%s1 + $0xbd8] sm:$0xff]
  %v455 = vld [vmem:[%s1 + $0xbe0] sm:$0xff]
  %v456 = vld [vmem:[%s1 + $0xbe8] sm:$0xff]
  %v457 = vld [vmem:[%s1 + $0xbf0] sm:$0xff]
  %v458 = vld [vmem:[%s1 + $0xbf8] sm:$0xff]
  %v459 = vld [vmem:[%s1 + $0xc00] sm:$0xff]
  %v460 = vld [vmem:[%s1 + $0xc08] sm:$0xff]
  %v461 = vld [vmem:[%s1 + $0xc10] sm:$0xff]
  %v462 = vld [vmem:[%s1 + $0xc18] sm:$0xff]
  %v463 = vld [vmem:[%s1 + $0xc20] sm:$0xff]
  %v464 = vld [vmem:[%s1 + $0xc28] sm:$0xff]
  %v465 = vld [vmem:[%s1 + $0xc30] sm:$0xff]
  %v466 = vld [vmem:[%s1 + $0xc38] sm:$0xff]
  %v467 = vld [vmem:[%s1 + $0xc40] sm:$0xff]
  %v468 = vld [vmem:[%s1 + $0xc48] sm:$0xff]
  %v469 = vld [vmem:[%s1 + $0xc50] sm:$0xff]
  %v470 = vld [vmem:[%s1 + $0xc58] sm:$0xff]
  %v471 = vld [vmem:[%s1 + $0xc60] sm:$0xff]
  %v472 = vld [vmem:[%s1 + $0xc68] sm:$0xff]
  %v473 = vld [vmem:[%s1 + $0xc70] sm:$0xff]
  %v474 = vld [vmem:[%s1 + $0xc78] sm:$0xff]
  %v475 = vld [vmem:[%s1 + $0xc80] sm:$0xff]
  %v476 = vld [vmem:[%s1 + $0xc88] sm:$0xff]
  %v477 = vld [vmem:[%s1 + $0xc90] sm:$0xff]
  %v478 = vld [vmem:[%s1 + $0xc98] sm:$0xff]
  %v479 = vld [vmem:[%s1 + $0xca0] sm:$0xff]
  %v480 = vld [vmem:[%s1 + $0xca8] sm:$0xff]
  %v481 = vld [vmem:[%s1 + $0xcb0] sm:$0xff]
  %v482 = vld [vmem:[%s1 + $0xcb8] sm:$0xff]
  %v483 = vld [vmem:[%s1 + $0xcc0] sm:$0xff]
  %v484 = vld [vmem:[%s1 + $0xcc8] sm:$0xff]
  %v485 = vld [vmem:[%s1 + $0xcd0] sm:$0xff]
  %v486 = vld [vmem:[%s1 + $0xcd8] sm:$0xff]
  %v487 = vld [vmem:[%s1 + $0xce0] sm:$0xff]
  %v488 = vld [vmem:[%s1 + $0xce8] sm:$0xff]
  %v489 = vld [vmem:[%s1 + $0xcf0] sm:$0xff]
  %v490 = vld [vmem:[%s1 + $0xcf8] sm:$0xff]
  %v491 = vld [vmem:[%s1 + $0xd00] sm:$0xff]
  %v492 = vld [vmem:[%s1 + $0xd08] sm:$0xff]
  %v493 = vld [vmem:[%s1 + $0xd10] sm:$0xff]
  %v494 = vld [vmem:[%s1 + $0xd18] sm:$0xff]
  %v495 = vld [vmem:[%s1 + $0xd20] sm:$0xff]
  %v496 = vld [vmem:[%s1 + $0xd28] sm:$0xff]
  %v497 = vld [vmem:[%s1 + $0xd30] sm:$0xff]
  %v498 = vld [vmem:[%s1 + $0xd38] sm:$0xff]
  %v499 = vld [vmem:[%s1 + $0xd40] sm:$0xff]
  %v500 = vld [vmem:[%s1 + $0xd48] sm:$0xff]
  %v501 = vld [vmem:[%s1 + $0xd50] sm:$0xff]
  %v502 = vld [vmem:[%s1 + $0xd58] sm:$0xff]
  %v503 = vld [vmem:[%s1 + $0xd60] sm:$0xff]
  %v504 = vld [vmem:[%s1 + $0xd68] sm:$0xff]
  %v505 = vld [vmem:[%s1 + $0xd70] sm:$0xff]
  %v506 = vld [vmem:[%s1 + $0xd78] sm:$0xff]
  %v507 = vld [vmem:[%s1 + $0xd80] sm:$0xff]
  %v508 = vld [vmem:[%s1 + $0xd88] sm:$0xff]
  %v509 = vld [vmem:[%s1 + $0xd90] sm:$0xff]
  %v510 = vld [vmem:[%s1 + $0xd98] sm:$0xff]
  %v511 = vld [vmem:[%s1 + $0xda0] sm:$0xff]
  %v512 = vld [vmem:[%s1 + $0xda8] sm:$0xff]
  %v513 = vld [vmem:[%s1 + $0xdb0] sm:$0xff]
  %v514 = vld [vmem:[%s1 + $0xdb8] sm:$0xff]
  %v515 = vld [vmem:[%s1 + $0xdc0] sm:$0xff]
  %v516 = vld [vmem:[%s1 + $0xdc8] sm:$0xff]
  %v517 = vld [vmem:[%s1 + $0xdd0] sm:$0xff]
  %v518 = vld [vmem:[%s1 + $0xdd8] sm:$0xff]
  %v519 = vld [vmem:[%s1 + $0xde0] sm:$0xff]
  %v520 = vld [vmem:[%s1 + $0xde8] sm:$0xff]
  %v521 = vld [vmem:[%s1 + $0xdf0] sm:$0xff]
  %v522 = vld [vmem:[%s1 + $0xdf8] sm:$0xff]
  %v523 = vld [vmem:[%s1 + $0xe00] sm:$0xff]
  %v524 = vld [vmem:[%s1 + $0xe08] sm:$0xff]
  %v525 = vld [vmem:[%s1 + $0xe10] sm:$0xff]
  %v526 = vld [vmem:[%s1 + $0xe18] sm:$0xff]
  %v527 = vld [vmem:[%s1 + $0xe20] sm:$0xff]
  %v528 = vld [vmem:[%s1 + $0xe28] sm:$0xff]
  %v529 = vld [vmem:[%s1 + $0xe30] sm:$0xff]
  %v530 = vld [vmem:[%s1 + $0xe38] sm:$0xff]
  %v531 = vld [vmem:[%s1 + $0xe40] sm:$0xff]
  %v532 = vld [vmem:[%s1 + $0xe48] sm:$0xff]
  %v533 = vld [vmem:[%s1 + $0xe50] sm:$0xff]
  %v534 = vld [vmem:[%s1 + $0xe58] sm:$0xff]
  %v535 = vld [vmem:[%s1 + $0xe60] sm:$0xff]
  %v536 = vld [vmem:[%s1 + $0xe68] sm:$0xff]
  %v537 = vld [vmem:[%s1 + $0xe70] sm:$0xff]
  %v538 = vld [vmem:[%s1 + $0xe78] sm:$0xff]
  %v539 = vld [vmem:[%s1 + $0xe80] sm:$0xff]
  %v540 = vld [vmem:[%s1 + $0xe88] sm:$0xff]
  %v541 = vld [vmem:[%s1 + $0xe90] sm:$0xff]
  %v542 = vld [vmem:[%s1 + $0xe98] sm:$0xff]
  %v543 = vld [vmem:[%s1 + $0xea0] sm:$0xff]
  %v544 = vld [vmem:[%s1 + $0xea8] sm:$0xff]
  %v545 = vld [vmem:[%s1 + $0xeb0] sm:$0xff]
  %v546 = vld [vmem:[%s1 + $0xeb8] sm:$0xff]
  %v547 = vld [vmem:[%s1 + $0xec0] sm:$0xff]
  %v548 = vld [vmem:[%s1 + $0xec8] sm:$0xff]
  %v549 = vld [vmem:[%s1 + $0xed0] sm:$0xff]
  %v550 = vld [vmem:[%s1 + $0xed8] sm:$0xff]
  %v551 = vld [vmem:[%s1 + $0xee0] sm:$0xff]
  %v552 = vld [vmem:[%s1 + $0xee8] sm:$0xff]
  %v553 = vld [vmem:[%s1 + $0xef0] sm:$0xff]
  %v554 = vld [vmem:[%s1 + $0xef8] sm:$0xff]
  %v555 = vld [vmem:[%s1 + $0xf00] sm:$0xff]
  %v556 = vld [vmem:[%s1 + $0xf08] sm:$0xff]
  %v557 = vld [vmem:[%s1 + $0xf10] sm:$0xff]
  %v558 = vld [vmem:[%s1 + $0xf18] sm:$0xff]
  %v559 = vld [vmem:[%s1 + $0xf20] sm:$0xff]
  %v560 = vld [vmem:[%s1 + $0xf28] sm:$0xff]
  %v561 = vld [vmem:[%s1 + $0xf30] sm:$0xff]
  %v562 = vld [vmem:[%s1 + $0xf38] sm:$0xff]
  %v563 = vld [vmem:[%s1 + $0xf40] sm:$0xff]
  %v564 = vld [vmem:[%s1 + $0xf48] sm:$0xff]
  %v565 = vld [vmem:[%s1 + $0xf50] sm:$0xff]
  %v566 = vld [vmem:[%s1 + $0xf58] sm:$0xff]
  %v567 = vld [vmem:[%s1 + $0xf60] sm:$0xff]
  %v568 = vld [vmem:[%s1 + $0xf68] sm:$0xff]
  %v569 = vld [vmem:[%s1 + $0xf70] sm:$0xff]
  %v570 = vld [vmem:[%s1 + $0xf78] sm:$0xff]
  %v571 = vld [vmem:[%s1 + $0xf80] sm:$0xff]
  %v572 = vld [vmem:[%s1 + $0xf88] sm:$0xff]
  %v573 = vld [vmem:[%s1 + $0xf90] sm:$0xff]
  %v574 = vld [vmem:[%s1 + $0xf98] sm:$0xff]
  %v575 = vld [vmem:[%s1 + $0xfa0] sm:$0xff]
  %v576 = vld [vmem:[%s1 + $0xfa8] sm:$0xff]
  %v577 = vld [vmem:[%s1 + $0xfb0] sm:$0xff]
  %v578 = vld [vmem:[%s1 + $0xfb8] sm:$0xff]
  %v579 = vld [vmem:[%s1 + $0xfc0] sm:$0xff]
  %v580 = vld [vmem:[%s1 + $0xfc8] sm:$0xff]
  %v581 = vld [vmem:[%s1 + $0xfd0] sm:$0xff]
  %v582 = vld [vmem:[%s1 + $0xfd8] sm:$0xff]
  %v583 = vld [vmem:[%s1 + $0xfe0] sm:$0xff]
  %v584 = vld [vmem:[%s1 + $0xfe8] sm:$0xff]
  %v585 = vld [vmem:[%s1 + $0xff0] sm:$0xff]
  %v586 = vld [vmem:[%s1 + $0xff8] sm:$0xff]
  %v587 = vld [vmem:[%s2] sm:$0x3]
  %v589 = vperm.slane %v587, 0
  %v590 = vperm.slane %v587, 1
  %v641 = vunpack.c.l.b16 %v27
  %v642 = vunpack.c.h.b16 %v27
  %v643 = vunpack.c.l.b16 %v28
  %v644 = vunpack.c.h.b16 %v28
  %v645 = vunpack.c.l.b16 %v29
  %v646 = vunpack.c.h.b16 %v29
  %v647 = vunpack.c.l.b16 %v30
  %v648 = vunpack.c.h.b16 %v30
  %v649 = vunpack.c.l.b16 %v31
  %v650 = vunpack.c.h.b16 %v31
  %v651 = vunpack.c.l.b16 %v32
  %v652 = vunpack.c.h.b16 %v32
  %v653 = vunpack.c.l.b16 %v33
  %v654 = vunpack.c.h.b16 %v33
  %v655 = vunpack.c.l.b16 %v34
  %v656 = vunpack.c.h.b16 %v34
  %v657 = vunpack.c.l.b16 %v35
  %v658 = vunpack.c.h.b16 %v35
  %v659 = vunpack.c.l.b16 %v36
  %v660 = vunpack.c.h.b16 %v36
  %v661 = vunpack.c.l.b16 %v37
  %v662 = vunpack.c.h.b16 %v37
  %v663 = vunpack.c.l.b16 %v38
  %v664 = vunpack.c.h.b16 %v38
  %v665 = vunpack.c.l.b16 %v39
  %v666 = vunpack.c.h.b16 %v39
  %v667 = vunpack.c.l.b16 %v40
  %v668 = vunpack.c.h.b16 %v40
  %v669 = vunpack.c.l.b16 %v41
  %v670 = vunpack.c.h.b16 %v41
  %v671 = vunpack.c.l.b16 %v42
  %v672 = vunpack.c.h.b16 %v42
  %v673 = vunpack.c.l.b16 %v43
  %v674 = vunpack.c.h.b16 %v43
  %v675 = vunpack.c.l.b16 %v44
  %v676 = vunpack.c.h.b16 %v44
  %v677 = vunpack.c.l.b16 %v45
  %v678 = vunpack.c.h.b16 %v45
  %v679 = vunpack.c.l.b16 %v46
  %v680 = vunpack.c.h.b16 %v46
  %v681 = vunpack.c.l.b16 %v47
  %v682 = vunpack.c.h.b16 %v47
  %v683 = vunpack.c.l.b16 %v48
  %v684 = vunpack.c.h.b16 %v48
  %v685 = vunpack.c.l.b16 %v49
  %v686 = vunpack.c.h.b16 %v49
  %v687 = vunpack.c.l.b16 %v50
  %v688 = vunpack.c.h.b16 %v50
  %v689 = vunpack.c.l.b16 %v51
  %v690 = vunpack.c.h.b16 %v51
  %v691 = vunpack.c.l.b16 %v52
  %v692 = vunpack.c.h.b16 %v52
  %v693 = vunpack.c.l.b16 %v53
  %v694 = vunpack.c.h.b16 %v53
  %v695 = vunpack.c.l.b16 %v54
  %v696 = vunpack.c.h.b16 %v54
  %v697 = vunpack.c.l.b16 %v55
  %v698 = vunpack.c.h.b16 %v55
  %v699 = vunpack.c.l.b16 %v56
  %v700 = vunpack.c.h.b16 %v56
  %v701 = vunpack.c.l.b16 %v57
  %v702 = vunpack.c.h.b16 %v57
  %v703 = vunpack.c.l.b16 %v58
  %v704 = vunpack.c.h.b16 %v58
  %v705 = vunpack.c.l.b16 %v59
  %v706 = vunpack.c.h.b16 %v59
  %v707 = vunpack.c.l.b16 %v60
  %v708 = vunpack.c.h.b16 %v60
  %v709 = vunpack.c.l.b16 %v61
  %v710 = vunpack.c.h.b16 %v61
  %v711 = vunpack.c.l.b16 %v62
  %v712 = vunpack.c.h.b16 %v62
  %v713 = vunpack.c.l.b16 %v63
  %v714 = vunpack.c.h.b16 %v63
  %v715 = vunpack.c.l.b16 %v64
  %v716 = vunpack.c.h.b16 %v64
  %v717 = vunpack.c.l.b16 %v65
  %v718 = vunpack.c.h.b16 %v65
  %v719 = vunpack.c.l.b16 %v66
  %v720 = vunpack.c.h.b16 %v66
  %v721 = vunpack.c.l.b16 %v67
  %v722 = vunpack.c.h.b16 %v67
  %v723 = vunpack.c.l.b16 %v68
  %v724 = vunpack.c.h.b16 %v68
  %v725 = vunpack.c.l.b16 %v69
  %v726 = vunpack.c.h.b16 %v69
  %v727 = vunpack.c.l.b16 %v70
  %v728 = vunpack.c.h.b16 %v70
  %v729 = vunpack.c.l.b16 %v71
  %v730 = vunpack.c.h.b16 %v71
  %v731 = vunpack.c.l.b16 %v72
  %v732 = vunpack.c.h.b16 %v72
  %v733 = vunpack.c.l.b16 %v73
  %v734 = vunpack.c.h.b16 %v73
  %v735 = vunpack.c.l.b16 %v74
  %v736 = vunpack.c.h.b16 %v74
  %v737 = vpack.c.b16 %v673, %v641
  %v738 = vpack.c.b16 %v674, %v642
  %v739 = vpack.c.b16 %v675, %v643
  %v740 = vpack.c.b16 %v676, %v644
  %v741 = vpack.c.b16 %v677, %v645
  %v742 = vpack.c.b16 %v678, %v646
  %v743 = vpack.c.b16 %v679, %v647
  %v744 = vpack.c.b16 %v680, %v648
  %v745 = vpack.c.b16 %v681, %v649
  %v746 = vpack.c.b16 %v682, %v650
  %v747 = vpack.c.b16 %v683, %v651
  %v748 = vpack.c.b16 %v684, %v652
  %v749 = vpack.c.b16 %v685, %v653
  %v750 = vpack.c.b16 %v686, %v654
  %v751 = vpack.c.b16 %v687, %v655
  %v752 = vpack.c.b16 %v688, %v656
  %v753 = vpack.c.b16 %v689, %v657
  %v754 = vpack.c.b16 %v690, %v658
  %v755 = vpack.c.b16 %v691, %v659
  %v756 = vpack.c.b16 %v692, %v660
  %v757 = vpack.c.b16 %v693, %v661
  %v758 = vpack.c.b16 %v694, %v662
  %v759 = vpack.c.b16 %v695, %v663
  %v760 = vpack.c.b16 %v696, %v664
  %v761 = vpack.c.b16 %v697, %v665
  %v762 = vpack.c.b16 %v698, %v666
  %v763 = vpack.c.b16 %v699, %v667
  %v764 = vpack.c.b16 %v700, %v668
  %v765 = vpack.c.b16 %v701, %v669
  %v766 = vpack.c.b16 %v702, %v670
  %v767 = vpack.c.b16 %v703, %v671
  %v768 = vpack.c.b16 %v704, %v672
  %v769 = vpack.c.b16 %v705, %v705
  %v770 = vpack.c.b16 %v706, %v706
  %v771 = vpack.c.b16 %v707, %v707
  %v772 = vpack.c.b16 %v708, %v708
  %v773 = vpack.c.b16 %v709, %v709
  %v774 = vpack.c.b16 %v710, %v710
  %v775 = vpack.c.b16 %v711, %v711
  %v776 = vpack.c.b16 %v712, %v712
  %v777 = vpack.c.b16 %v713, %v713
  %v778 = vpack.c.b16 %v714, %v714
  %v779 = vpack.c.b16 %v715, %v715
  %v780 = vpack.c.b16 %v716, %v716
  %v781 = vpack.c.b16 %v717, %v717
  %v782 = vpack.c.b16 %v718, %v718
  %v783 = vpack.c.b16 %v719, %v719
  %v784 = vpack.c.b16 %v720, %v720
  %v785 = vpack.c.b16 %v721, %v721
  %v786 = vpack.c.b16 %v722, %v722
  %v787 = vpack.c.b16 %v723, %v723
  %v788 = vpack.c.b16 %v724, %v724
  %v789 = vpack.c.b16 %v725, %v725
  %v790 = vpack.c.b16 %v726, %v726
  %v791 = vpack.c.b16 %v727, %v727
  %v792 = vpack.c.b16 %v728, %v728
  %v793 = vpack.c.b16 %v729, %v729
  %v794 = vpack.c.b16 %v730, %v730
  %v795 = vpack.c.b16 %v731, %v731
  %v796 = vpack.c.b16 %v732, %v732
  %v797 = vpack.c.b16 %v733, %v733
  %v798 = vpack.c.b16 %v734, %v734
  %v799 = vpack.c.b16 %v735, %v735
  %v800 = vpack.c.b16 %v736, %v736
  %v1377 = vunpack.c.l.b16 %v75
  %v1378 = vunpack.c.h.b16 %v75
  %v1379 = vunpack.c.l.b16 %v76
  %v1380 = vunpack.c.h.b16 %v76
  %v1381 = vunpack.c.l.b16 %v77
  %v1382 = vunpack.c.h.b16 %v77
  %v1383 = vunpack.c.l.b16 %v78
  %v1384 = vunpack.c.h.b16 %v78
  %v1385 = vunpack.c.l.b16 %v79
  %v1386 = vunpack.c.h.b16 %v79
  %v1387 = vunpack.c.l.b16 %v80
  %v1388 = vunpack.c.h.b16 %v80
  %v1389 = vunpack.c.l.b16 %v81
  %v1390 = vunpack.c.h.b16 %v81
  %v1391 = vunpack.c.l.b16 %v82
  %v1392 = vunpack.c.h.b16 %v82
  %v1393 = vunpack.c.l.b16 %v83
  %v1394 = vunpack.c.h.b16 %v83
  %v1395 = vunpack.c.l.b16 %v84
  %v1396 = vunpack.c.h.b16 %v84
  %v1397 = vunpack.c.l.b16 %v85
  %v1398 = vunpack.c.h.b16 %v85
  %v1399 = vunpack.c.l.b16 %v86
  %v1400 = vunpack.c.h.b16 %v86
  %v1401 = vunpack.c.l.b16 %v87
  %v1402 = vunpack.c.h.b16 %v87
  %v1403 = vunpack.c.l.b16 %v88
  %v1404 = vunpack.c.h.b16 %v88
  %v1405 = vunpack.c.l.b16 %v89
  %v1406 = vunpack.c.h.b16 %v89
  %v1407 = vunpack.c.l.b16 %v90
  %v1408 = vunpack.c.h.b16 %v90
  %v1409 = vunpack.c.l.b16 %v91
  %v1410 = vunpack.c.h.b16 %v91
  %v1411 = vunpack.c.l.b16 %v92
  %v1412 = vunpack.c.h.b16 %v92
  %v1413 = vunpack.c.l.b16 %v93
  %v1414 = vunpack.c.h.b16 %v93
  %v1415 = vunpack.c.l.b16 %v94
  %v1416 = vunpack.c.h.b16 %v94
  %v1417 = vunpack.c.l.b16 %v95
  %v1418 = vunpack.c.h.b16 %v95
  %v1419 = vunpack.c.l.b16 %v96
  %v1420 = vunpack.c.h.b16 %v96
  %v1421 = vunpack.c.l.b16 %v97
  %v1422 = vunpack.c.h.b16 %v97
  %v1423 = vunpack.c.l.b16 %v98
  %v1424 = vunpack.c.h.b16 %v98
  %v1425 = vunpack.c.l.b16 %v99
  %v1426 = vunpack.c.h.b16 %v99
  %v1427 = vunpack.c.l.b16 %v100
  %v1428 = vunpack.c.h.b16 %v100
  %v1429 = vunpack.c.l.b16 %v101
  %v1430 = vunpack.c.h.b16 %v101
  %v1431 = vunpack.c.l.b16 %v102
  %v1432 = vunpack.c.h.b16 %v102
  %v1433 = vunpack.c.l.b16 %v103
  %v1434 = vunpack.c.h.b16 %v103
  %v1435 = vunpack.c.l.b16 %v104
  %v1436 = vunpack.c.h.b16 %v104
  %v1437 = vunpack.c.l.b16 %v105
  %v1438 = vunpack.c.h.b16 %v105
  %v1439 = vunpack.c.l.b16 %v106
  %v1440 = vunpack.c.h.b16 %v106
  %v1441 = vunpack.c.l.b16 %v107
  %v1442 = vunpack.c.h.b16 %v107
  %v1443 = vunpack.c.l.b16 %v108
  %v1444 = vunpack.c.h.b16 %v108
  %v1445 = vunpack.c.l.b16 %v109
  %v1446 = vunpack.c.h.b16 %v109
  %v1447 = vunpack.c.l.b16 %v110
  %v1448 = vunpack.c.h.b16 %v110
  %v1449 = vunpack.c.l.b16 %v111
  %v1450 = vunpack.c.h.b16 %v111
  %v1451 = vunpack.c.l.b16 %v112
  %v1452 = vunpack.c.h.b16 %v112
  %v1453 = vunpack.c.l.b16 %v113
  %v1454 = vunpack.c.h.b16 %v113
  %v1455 = vunpack.c.l.b16 %v114
  %v1456 = vunpack.c.h.b16 %v114
  %v1457 = vunpack.c.l.b16 %v115
  %v1458 = vunpack.c.h.b16 %v115
  %v1459 = vunpack.c.l.b16 %v116
  %v1460 = vunpack.c.h.b16 %v116
  %v1461 = vunpack.c.l.b16 %v117
  %v1462 = vunpack.c.h.b16 %v117
  %v1463 = vunpack.c.l.b16 %v118
  %v1464 = vunpack.c.h.b16 %v118
  %v1465 = vunpack.c.l.b16 %v119
  %v1466 = vunpack.c.h.b16 %v119
  %v1467 = vunpack.c.l.b16 %v120
  %v1468 = vunpack.c.h.b16 %v120
  %v1469 = vunpack.c.l.b16 %v121
  %v1470 = vunpack.c.h.b16 %v121
  %v1471 = vunpack.c.l.b16 %v122
  %v1472 = vunpack.c.h.b16 %v122
  %v1473 = vunpack.c.l.b16 %v123
  %v1474 = vunpack.c.h.b16 %v123
  %v1475 = vunpack.c.l.b16 %v124
  %v1476 = vunpack.c.h.b16 %v124
  %v1477 = vunpack.c.l.b16 %v125
  %v1478 = vunpack.c.h.b16 %v125
  %v1479 = vunpack.c.l.b16 %v126
  %v1480 = vunpack.c.h.b16 %v126
  %v1481 = vunpack.c.l.b16 %v127
  %v1482 = vunpack.c.h.b16 %v127
  %v1483 = vunpack.c.l.b16 %v128
  %v1484 = vunpack.c.h.b16 %v128
  %v1485 = vunpack.c.l.b16 %v129
  %v1486 = vunpack.c.h.b16 %v129
  %v1487 = vunpack.c.l.b16 %v130
  %v1488 = vunpack.c.h.b16 %v130
  %v1489 = vunpack.c.l.b16 %v131
  %v1490 = vunpack.c.h.b16 %v131
  %v1491 = vunpack.c.l.b16 %v132
  %v1492 = vunpack.c.h.b16 %v132
  %v1493 = vunpack.c.l.b16 %v133
  %v1494 = vunpack.c.h.b16 %v133
  %v1495 = vunpack.c.l.b16 %v134
  %v1496 = vunpack.c.h.b16 %v134
  %v1497 = vunpack.c.l.b16 %v135
  %v1498 = vunpack.c.h.b16 %v135
  %v1499 = vunpack.c.l.b16 %v136
  %v1500 = vunpack.c.h.b16 %v136
  %v1501 = vunpack.c.l.b16 %v137
  %v1502 = vunpack.c.h.b16 %v137
  %v1503 = vunpack.c.l.b16 %v138
  %v1504 = vunpack.c.h.b16 %v138
  %v1505 = vunpack.c.l.b16 %v139
  %v1506 = vunpack.c.h.b16 %v139
  %v1507 = vunpack.c.l.b16 %v140
  %v1508 = vunpack.c.h.b16 %v140
  %v1509 = vunpack.c.l.b16 %v141
  %v1510 = vunpack.c.h.b16 %v141
  %v1511 = vunpack.c.l.b16 %v142
  %v1512 = vunpack.c.h.b16 %v142
  %v1513 = vunpack.c.l.b16 %v143
  %v1514 = vunpack.c.h.b16 %v143
  %v1515 = vunpack.c.l.b16 %v144
  %v1516 = vunpack.c.h.b16 %v144
  %v1517 = vunpack.c.l.b16 %v145
  %v1518 = vunpack.c.h.b16 %v145
  %v1519 = vunpack.c.l.b16 %v146
  %v1520 = vunpack.c.h.b16 %v146
  %v1521 = vunpack.c.l.b16 %v147
  %v1522 = vunpack.c.h.b16 %v147
  %v1523 = vunpack.c.l.b16 %v148
  %v1524 = vunpack.c.h.b16 %v148
  %v1525 = vunpack.c.l.b16 %v149
  %v1526 = vunpack.c.h.b16 %v149
  %v1527 = vunpack.c.l.b16 %v150
  %v1528 = vunpack.c.h.b16 %v150
  %v1529 = vunpack.c.l.b16 %v151
  %v1530 = vunpack.c.h.b16 %v151
  %v1531 = vunpack.c.l.b16 %v152
  %v1532 = vunpack.c.h.b16 %v152
  %v1533 = vunpack.c.l.b16 %v153
  %v1534 = vunpack.c.h.b16 %v153
  %v1535 = vunpack.c.l.b16 %v154
  %v1536 = vunpack.c.h.b16 %v154
  %v1537 = vunpack.c.l.b16 %v155
  %v1538 = vunpack.c.h.b16 %v155
  %v1539 = vunpack.c.l.b16 %v156
  %v1540 = vunpack.c.h.b16 %v156
  %v1541 = vunpack.c.l.b16 %v157
  %v1542 = vunpack.c.h.b16 %v157
  %v1543 = vunpack.c.l.b16 %v158
  %v1544 = vunpack.c.h.b16 %v158
  %v1545 = vunpack.c.l.b16 %v159
  %v1546 = vunpack.c.h.b16 %v159
  %v1547 = vunpack.c.l.b16 %v160
  %v1548 = vunpack.c.h.b16 %v160
  %v1549 = vunpack.c.l.b16 %v161
  %v1550 = vunpack.c.h.b16 %v161
  %v1551 = vunpack.c.l.b16 %v162
  %v1552 = vunpack.c.h.b16 %v162
  %v1553 = vunpack.c.l.b16 %v163
  %v1554 = vunpack.c.h.b16 %v163
  %v1555 = vunpack.c.l.b16 %v164
  %v1556 = vunpack.c.h.b16 %v164
  %v1557 = vunpack.c.l.b16 %v165
  %v1558 = vunpack.c.h.b16 %v165
  %v1559 = vunpack.c.l.b16 %v166
  %v1560 = vunpack.c.h.b16 %v166
  %v1561 = vunpack.c.l.b16 %v167
  %v1562 = vunpack.c.h.b16 %v167
  %v1563 = vunpack.c.l.b16 %v168
  %v1564 = vunpack.c.h.b16 %v168
  %v1565 = vunpack.c.l.b16 %v169
  %v1566 = vunpack.c.h.b16 %v169
  %v1567 = vunpack.c.l.b16 %v170
  %v1568 = vunpack.c.h.b16 %v170
  %v1569 = vunpack.c.l.b16 %v171
  %v1570 = vunpack.c.h.b16 %v171
  %v1571 = vunpack.c.l.b16 %v172
  %v1572 = vunpack.c.h.b16 %v172
  %v1573 = vunpack.c.l.b16 %v173
  %v1574 = vunpack.c.h.b16 %v173
  %v1575 = vunpack.c.l.b16 %v174
  %v1576 = vunpack.c.h.b16 %v174
  %v1577 = vunpack.c.l.b16 %v175
  %v1578 = vunpack.c.h.b16 %v175
  %v1579 = vunpack.c.l.b16 %v176
  %v1580 = vunpack.c.h.b16 %v176
  %v1581 = vunpack.c.l.b16 %v177
  %v1582 = vunpack.c.h.b16 %v177
  %v1583 = vunpack.c.l.b16 %v178
  %v1584 = vunpack.c.h.b16 %v178
  %v1585 = vunpack.c.l.b16 %v179
  %v1586 = vunpack.c.h.b16 %v179
  %v1587 = vunpack.c.l.b16 %v180
  %v1588 = vunpack.c.h.b16 %v180
  %v1589 = vunpack.c.l.b16 %v181
  %v1590 = vunpack.c.h.b16 %v181
  %v1591 = vunpack.c.l.b16 %v182
  %v1592 = vunpack.c.h.b16 %v182
  %v1593 = vunpack.c.l.b16 %v183
  %v1594 = vunpack.c.h.b16 %v183
  %v1595 = vunpack.c.l.b16 %v184
  %v1596 = vunpack.c.h.b16 %v184
  %v1597 = vunpack.c.l.b16 %v185
  %v1598 = vunpack.c.h.b16 %v185
  %v1599 = vunpack.c.l.b16 %v186
  %v1600 = vunpack.c.h.b16 %v186
  %v1601 = vunpack.c.l.b16 %v187
  %v1602 = vunpack.c.h.b16 %v187
  %v1603 = vunpack.c.l.b16 %v188
  %v1604 = vunpack.c.h.b16 %v188
  %v1605 = vunpack.c.l.b16 %v189
  %v1606 = vunpack.c.h.b16 %v189
  %v1607 = vunpack.c.l.b16 %v190
  %v1608 = vunpack.c.h.b16 %v190
  %v1609 = vunpack.c.l.b16 %v191
  %v1610 = vunpack.c.h.b16 %v191
  %v1611 = vunpack.c.l.b16 %v192
  %v1612 = vunpack.c.h.b16 %v192
  %v1613 = vunpack.c.l.b16 %v193
  %v1614 = vunpack.c.h.b16 %v193
  %v1615 = vunpack.c.l.b16 %v194
  %v1616 = vunpack.c.h.b16 %v194
  %v1617 = vunpack.c.l.b16 %v195
  %v1618 = vunpack.c.h.b16 %v195
  %v1619 = vunpack.c.l.b16 %v196
  %v1620 = vunpack.c.h.b16 %v196
  %v1621 = vunpack.c.l.b16 %v197
  %v1622 = vunpack.c.h.b16 %v197
  %v1623 = vunpack.c.l.b16 %v198
  %v1624 = vunpack.c.h.b16 %v198
  %v1625 = vunpack.c.l.b16 %v199
  %v1626 = vunpack.c.h.b16 %v199
  %v1627 = vunpack.c.l.b16 %v200
  %v1628 = vunpack.c.h.b16 %v200
  %v1629 = vunpack.c.l.b16 %v201
  %v1630 = vunpack.c.h.b16 %v201
  %v1631 = vunpack.c.l.b16 %v202
  %v1632 = vunpack.c.h.b16 %v202
  %v1633 = vunpack.c.l.b16 %v203
  %v1634 = vunpack.c.h.b16 %v203
  %v1635 = vunpack.c.l.b16 %v204
  %v1636 = vunpack.c.h.b16 %v204
  %v1637 = vunpack.c.l.b16 %v205
  %v1638 = vunpack.c.h.b16 %v205
  %v1639 = vunpack.c.l.b16 %v206
  %v1640 = vunpack.c.h.b16 %v206
  %v1641 = vunpack.c.l.b16 %v207
  %v1642 = vunpack.c.h.b16 %v207
  %v1643 = vunpack.c.l.b16 %v208
  %v1644 = vunpack.c.h.b16 %v208
  %v1645 = vunpack.c.l.b16 %v209
  %v1646 = vunpack.c.h.b16 %v209
  %v1647 = vunpack.c.l.b16 %v210
  %v1648 = vunpack.c.h.b16 %v210
  %v1649 = vunpack.c.l.b16 %v211
  %v1650 = vunpack.c.h.b16 %v211
  %v1651 = vunpack.c.l.b16 %v212
  %v1652 = vunpack.c.h.b16 %v212
  %v1653 = vunpack.c.l.b16 %v213
  %v1654 = vunpack.c.h.b16 %v213
  %v1655 = vunpack.c.l.b16 %v214
  %v1656 = vunpack.c.h.b16 %v214
  %v1657 = vunpack.c.l.b16 %v215
  %v1658 = vunpack.c.h.b16 %v215
  %v1659 = vunpack.c.l.b16 %v216
  %v1660 = vunpack.c.h.b16 %v216
  %v1661 = vunpack.c.l.b16 %v217
  %v1662 = vunpack.c.h.b16 %v217
  %v1663 = vunpack.c.l.b16 %v218
  %v1664 = vunpack.c.h.b16 %v218
  %v1665 = vunpack.c.l.b16 %v219
  %v1666 = vunpack.c.h.b16 %v219
  %v1667 = vunpack.c.l.b16 %v220
  %v1668 = vunpack.c.h.b16 %v220
  %v1669 = vunpack.c.l.b16 %v221
  %v1670 = vunpack.c.h.b16 %v221
  %v1671 = vunpack.c.l.b16 %v222
  %v1672 = vunpack.c.h.b16 %v222
  %v1673 = vunpack.c.l.b16 %v223
  %v1674 = vunpack.c.h.b16 %v223
  %v1675 = vunpack.c.l.b16 %v224
  %v1676 = vunpack.c.h.b16 %v224
  %v1677 = vunpack.c.l.b16 %v225
  %v1678 = vunpack.c.h.b16 %v225
  %v1679 = vunpack.c.l.b16 %v226
  %v1680 = vunpack.c.h.b16 %v226
  %v1681 = vunpack.c.l.b16 %v227
  %v1682 = vunpack.c.h.b16 %v227
  %v1683 = vunpack.c.l.b16 %v228
  %v1684 = vunpack.c.h.b16 %v228
  %v1685 = vunpack.c.l.b16 %v229
  %v1686 = vunpack.c.h.b16 %v229
  %v1687 = vunpack.c.l.b16 %v230
  %v1688 = vunpack.c.h.b16 %v230
  %v1689 = vunpack.c.l.b16 %v231
  %v1690 = vunpack.c.h.b16 %v231
  %v1691 = vunpack.c.l.b16 %v232
  %v1692 = vunpack.c.h.b16 %v232
  %v1693 = vunpack.c.l.b16 %v233
  %v1694 = vunpack.c.h.b16 %v233
  %v1695 = vunpack.c.l.b16 %v234
  %v1696 = vunpack.c.h.b16 %v234
  %v1697 = vunpack.c.l.b16 %v235
  %v1698 = vunpack.c.h.b16 %v235
  %v1699 = vunpack.c.l.b16 %v236
  %v1700 = vunpack.c.h.b16 %v236
  %v1701 = vunpack.c.l.b16 %v237
  %v1702 = vunpack.c.h.b16 %v237
  %v1703 = vunpack.c.l.b16 %v238
  %v1704 = vunpack.c.h.b16 %v238
  %v1705 = vunpack.c.l.b16 %v239
  %v1706 = vunpack.c.h.b16 %v239
  %v1707 = vunpack.c.l.b16 %v240
  %v1708 = vunpack.c.h.b16 %v240
  %v1709 = vunpack.c.l.b16 %v241
  %v1710 = vunpack.c.h.b16 %v241
  %v1711 = vunpack.c.l.b16 %v242
  %v1712 = vunpack.c.h.b16 %v242
  %v1713 = vunpack.c.l.b16 %v243
  %v1714 = vunpack.c.h.b16 %v243
  %v1715 = vunpack.c.l.b16 %v244
  %v1716 = vunpack.c.h.b16 %v244
  %v1717 = vunpack.c.l.b16 %v245
  %v1718 = vunpack.c.h.b16 %v245
  %v1719 = vunpack.c.l.b16 %v246
  %v1720 = vunpack.c.h.b16 %v246
  %v1721 = vunpack.c.l.b16 %v247
  %v1722 = vunpack.c.h.b16 %v247
  %v1723 = vunpack.c.l.b16 %v248
  %v1724 = vunpack.c.h.b16 %v248
  %v1725 = vunpack.c.l.b16 %v249
  %v1726 = vunpack.c.h.b16 %v249
  %v1727 = vunpack.c.l.b16 %v250
  %v1728 = vunpack.c.h.b16 %v250
  %v1729 = vunpack.c.l.b16 %v251
  %v1730 = vunpack.c.h.b16 %v251
  %v1731 = vunpack.c.l.b16 %v252
  %v1732 = vunpack.c.h.b16 %v252
  %v1733 = vunpack.c.l.b16 %v253
  %v1734 = vunpack.c.h.b16 %v253
  %v1735 = vunpack.c.l.b16 %v254
  %v1736 = vunpack.c.h.b16 %v254
  %v1737 = vunpack.c.l.b16 %v255
  %v1738 = vunpack.c.h.b16 %v255
  %v1739 = vunpack.c.l.b16 %v256
  %v1740 = vunpack.c.h.b16 %v256
  %v1741 = vunpack.c.l.b16 %v257
  %v1742 = vunpack.c.h.b16 %v257
  %v1743 = vunpack.c.l.b16 %v258
  %v1744 = vunpack.c.h.b16 %v258
  %v1745 = vunpack.c.l.b16 %v259
  %v1746 = vunpack.c.h.b16 %v259
  %v1747 = vunpack.c.l.b16 %v260
  %v1748 = vunpack.c.h.b16 %v260
  %v1749 = vunpack.c.l.b16 %v261
  %v1750 = vunpack.c.h.b16 %v261
  %v1751 = vunpack.c.l.b16 %v262
  %v1752 = vunpack.c.h.b16 %v262
  %v1753 = vunpack.c.l.b16 %v263
  %v1754 = vunpack.c.h.b16 %v263
  %v1755 = vunpack.c.l.b16 %v264
  %v1756 = vunpack.c.h.b16 %v264
  %v1757 = vunpack.c.l.b16 %v265
  %v1758 = vunpack.c.h.b16 %v265
  %v1759 = vunpack.c.l.b16 %v266
  %v1760 = vunpack.c.h.b16 %v266
  %v1761 = vunpack.c.l.b16 %v267
  %v1762 = vunpack.c.h.b16 %v267
  %v1763 = vunpack.c.l.b16 %v268
  %v1764 = vunpack.c.h.b16 %v268
  %v1765 = vunpack.c.l.b16 %v269
  %v1766 = vunpack.c.h.b16 %v269
  %v1767 = vunpack.c.l.b16 %v270
  %v1768 = vunpack.c.h.b16 %v270
  %v1769 = vunpack.c.l.b16 %v271
  %v1770 = vunpack.c.h.b16 %v271
  %v1771 = vunpack.c.l.b16 %v272
  %v1772 = vunpack.c.h.b16 %v272
  %v1773 = vunpack.c.l.b16 %v273
  %v1774 = vunpack.c.h.b16 %v273
  %v1775 = vunpack.c.l.b16 %v274
  %v1776 = vunpack.c.h.b16 %v274
  %v1777 = vunpack.c.l.b16 %v275
  %v1778 = vunpack.c.h.b16 %v275
  %v1779 = vunpack.c.l.b16 %v276
  %v1780 = vunpack.c.h.b16 %v276
  %v1781 = vunpack.c.l.b16 %v277
  %v1782 = vunpack.c.h.b16 %v277
  %v1783 = vunpack.c.l.b16 %v278
  %v1784 = vunpack.c.h.b16 %v278
  %v1785 = vunpack.c.l.b16 %v279
  %v1786 = vunpack.c.h.b16 %v279
  %v1787 = vunpack.c.l.b16 %v280
  %v1788 = vunpack.c.h.b16 %v280
  %v1789 = vunpack.c.l.b16 %v281
  %v1790 = vunpack.c.h.b16 %v281
  %v1791 = vunpack.c.l.b16 %v282
  %v1792 = vunpack.c.h.b16 %v282
  %v1793 = vunpack.c.l.b16 %v283
  %v1794 = vunpack.c.h.b16 %v283
  %v1795 = vunpack.c.l.b16 %v284
  %v1796 = vunpack.c.h.b16 %v284
  %v1797 = vunpack.c.l.b16 %v285
  %v1798 = vunpack.c.h.b16 %v285
  %v1799 = vunpack.c.l.b16 %v286
  %v1800 = vunpack.c.h.b16 %v286
  %v1801 = vunpack.c.l.b16 %v287
  %v1802 = vunpack.c.h.b16 %v287
  %v1803 = vunpack.c.l.b16 %v288
  %v1804 = vunpack.c.h.b16 %v288
  %v1805 = vunpack.c.l.b16 %v289
  %v1806 = vunpack.c.h.b16 %v289
  %v1807 = vunpack.c.l.b16 %v290
  %v1808 = vunpack.c.h.b16 %v290
  %v1809 = vunpack.c.l.b16 %v291
  %v1810 = vunpack.c.h.b16 %v291
  %v1811 = vunpack.c.l.b16 %v292
  %v1812 = vunpack.c.h.b16 %v292
  %v1813 = vunpack.c.l.b16 %v293
  %v1814 = vunpack.c.h.b16 %v293
  %v1815 = vunpack.c.l.b16 %v294
  %v1816 = vunpack.c.h.b16 %v294
  %v1817 = vunpack.c.l.b16 %v295
  %v1818 = vunpack.c.h.b16 %v295
  %v1819 = vunpack.c.l.b16 %v296
  %v1820 = vunpack.c.h.b16 %v296
  %v1821 = vunpack.c.l.b16 %v297
  %v1822 = vunpack.c.h.b16 %v297
  %v1823 = vunpack.c.l.b16 %v298
  %v1824 = vunpack.c.h.b16 %v298
  %v1825 = vunpack.c.l.b16 %v299
  %v1826 = vunpack.c.h.b16 %v299
  %v1827 = vunpack.c.l.b16 %v300
  %v1828 = vunpack.c.h.b16 %v300
  %v1829 = vunpack.c.l.b16 %v301
  %v1830 = vunpack.c.h.b16 %v301
  %v1831 = vunpack.c.l.b16 %v302
  %v1832 = vunpack.c.h.b16 %v302
  %v1833 = vunpack.c.l.b16 %v303
  %v1834 = vunpack.c.h.b16 %v303
  %v1835 = vunpack.c.l.b16 %v304
  %v1836 = vunpack.c.h.b16 %v304
  %v1837 = vunpack.c.l.b16 %v305
  %v1838 = vunpack.c.h.b16 %v305
  %v1839 = vunpack.c.l.b16 %v306
  %v1840 = vunpack.c.h.b16 %v306
  %v1841 = vunpack.c.l.b16 %v307
  %v1842 = vunpack.c.h.b16 %v307
  %v1843 = vunpack.c.l.b16 %v308
  %v1844 = vunpack.c.h.b16 %v308
  %v1845 = vunpack.c.l.b16 %v309
  %v1846 = vunpack.c.h.b16 %v309
  %v1847 = vunpack.c.l.b16 %v310
  %v1848 = vunpack.c.h.b16 %v310
  %v1849 = vunpack.c.l.b16 %v311
  %v1850 = vunpack.c.h.b16 %v311
  %v1851 = vunpack.c.l.b16 %v312
  %v1852 = vunpack.c.h.b16 %v312
  %v1853 = vunpack.c.l.b16 %v313
  %v1854 = vunpack.c.h.b16 %v313
  %v1855 = vunpack.c.l.b16 %v314
  %v1856 = vunpack.c.h.b16 %v314
  %v1857 = vunpack.c.l.b16 %v315
  %v1858 = vunpack.c.h.b16 %v315
  %v1859 = vunpack.c.l.b16 %v316
  %v1860 = vunpack.c.h.b16 %v316
  %v1861 = vunpack.c.l.b16 %v317
  %v1862 = vunpack.c.h.b16 %v317
  %v1863 = vunpack.c.l.b16 %v318
  %v1864 = vunpack.c.h.b16 %v318
  %v1865 = vunpack.c.l.b16 %v319
  %v1866 = vunpack.c.h.b16 %v319
  %v1867 = vunpack.c.l.b16 %v320
  %v1868 = vunpack.c.h.b16 %v320
  %v1869 = vunpack.c.l.b16 %v321
  %v1870 = vunpack.c.h.b16 %v321
  %v1871 = vunpack.c.l.b16 %v322
  %v1872 = vunpack.c.h.b16 %v322
  %v1873 = vunpack.c.l.b16 %v323
  %v1874 = vunpack.c.h.b16 %v323
  %v1875 = vunpack.c.l.b16 %v324
  %v1876 = vunpack.c.h.b16 %v324
  %v1877 = vunpack.c.l.b16 %v325
  %v1878 = vunpack.c.h.b16 %v325
  %v1879 = vunpack.c.l.b16 %v326
  %v1880 = vunpack.c.h.b16 %v326
  %v1881 = vunpack.c.l.b16 %v327
  %v1882 = vunpack.c.h.b16 %v327
  %v1883 = vunpack.c.l.b16 %v328
  %v1884 = vunpack.c.h.b16 %v328
  %v1885 = vunpack.c.l.b16 %v329
  %v1886 = vunpack.c.h.b16 %v329
  %v1887 = vunpack.c.l.b16 %v330
  %v1888 = vunpack.c.h.b16 %v330
  %v1889 = vunpack.c.l.b16 %v331
  %v1890 = vunpack.c.h.b16 %v331
  %v1891 = vunpack.c.l.b16 %v332
  %v1892 = vunpack.c.h.b16 %v332
  %v1893 = vunpack.c.l.b16 %v333
  %v1894 = vunpack.c.h.b16 %v333
  %v1895 = vunpack.c.l.b16 %v334
  %v1896 = vunpack.c.h.b16 %v334
  %v1897 = vunpack.c.l.b16 %v335
  %v1898 = vunpack.c.h.b16 %v335
  %v1899 = vunpack.c.l.b16 %v336
  %v1900 = vunpack.c.h.b16 %v336
  %v1901 = vunpack.c.l.b16 %v337
  %v1902 = vunpack.c.h.b16 %v337
  %v1903 = vunpack.c.l.b16 %v338
  %v1904 = vunpack.c.h.b16 %v338
  %v1905 = vunpack.c.l.b16 %v339
  %v1906 = vunpack.c.h.b16 %v339
  %v1907 = vunpack.c.l.b16 %v340
  %v1908 = vunpack.c.h.b16 %v340
  %v1909 = vunpack.c.l.b16 %v341
  %v1910 = vunpack.c.h.b16 %v341
  %v1911 = vunpack.c.l.b16 %v342
  %v1912 = vunpack.c.h.b16 %v342
  %v1913 = vunpack.c.l.b16 %v343
  %v1914 = vunpack.c.h.b16 %v343
  %v1915 = vunpack.c.l.b16 %v344
  %v1916 = vunpack.c.h.b16 %v344
  %v1917 = vunpack.c.l.b16 %v345
  %v1918 = vunpack.c.h.b16 %v345
  %v1919 = vunpack.c.l.b16 %v346
  %v1920 = vunpack.c.h.b16 %v346
  %v1921 = vunpack.c.l.b16 %v347
  %v1922 = vunpack.c.h.b16 %v347
  %v1923 = vunpack.c.l.b16 %v348
  %v1924 = vunpack.c.h.b16 %v348
  %v1925 = vunpack.c.l.b16 %v349
  %v1926 = vunpack.c.h.b16 %v349
  %v1927 = vunpack.c.l.b16 %v350
  %v1928 = vunpack.c.h.b16 %v350
  %v1929 = vunpack.c.l.b16 %v351
  %v1930 = vunpack.c.h.b16 %v351
  %v1931 = vunpack.c.l.b16 %v352
  %v1932 = vunpack.c.h.b16 %v352
  %v1933 = vunpack.c.l.b16 %v353
  %v1934 = vunpack.c.h.b16 %v353
  %v1935 = vunpack.c.l.b16 %v354
  %v1936 = vunpack.c.h.b16 %v354
  %v1937 = vunpack.c.l.b16 %v355
  %v1938 = vunpack.c.h.b16 %v355
  %v1939 = vunpack.c.l.b16 %v356
  %v1940 = vunpack.c.h.b16 %v356
  %v1941 = vunpack.c.l.b16 %v357
  %v1942 = vunpack.c.h.b16 %v357
  %v1943 = vunpack.c.l.b16 %v358
  %v1944 = vunpack.c.h.b16 %v358
  %v1945 = vunpack.c.l.b16 %v359
  %v1946 = vunpack.c.h.b16 %v359
  %v1947 = vunpack.c.l.b16 %v360
  %v1948 = vunpack.c.h.b16 %v360
  %v1949 = vunpack.c.l.b16 %v361
  %v1950 = vunpack.c.h.b16 %v361
  %v1951 = vunpack.c.l.b16 %v362
  %v1952 = vunpack.c.h.b16 %v362
  %v1953 = vunpack.c.l.b16 %v363
  %v1954 = vunpack.c.h.b16 %v363
  %v1955 = vunpack.c.l.b16 %v364
  %v1956 = vunpack.c.h.b16 %v364
  %v1957 = vunpack.c.l.b16 %v365
  %v1958 = vunpack.c.h.b16 %v365
  %v1959 = vunpack.c.l.b16 %v366
  %v1960 = vunpack.c.h.b16 %v366
  %v1961 = vunpack.c.l.b16 %v367
  %v1962 = vunpack.c.h.b16 %v367
  %v1963 = vunpack.c.l.b16 %v368
  %v1964 = vunpack.c.h.b16 %v368
  %v1965 = vunpack.c.l.b16 %v369
  %v1966 = vunpack.c.h.b16 %v369
  %v1967 = vunpack.c.l.b16 %v370
  %v1968 = vunpack.c.h.b16 %v370
  %v1969 = vunpack.c.l.b16 %v371
  %v1970 = vunpack.c.h.b16 %v371
  %v1971 = vunpack.c.l.b16 %v372
  %v1972 = vunpack.c.h.b16 %v372
  %v1973 = vunpack.c.l.b16 %v373
  %v1974 = vunpack.c.h.b16 %v373
  %v1975 = vunpack.c.l.b16 %v374
  %v1976 = vunpack.c.h.b16 %v374
  %v1977 = vunpack.c.l.b16 %v375
  %v1978 = vunpack.c.h.b16 %v375
  %v1979 = vunpack.c.l.b16 %v376
  %v1980 = vunpack.c.h.b16 %v376
  %v1981 = vunpack.c.l.b16 %v377
  %v1982 = vunpack.c.h.b16 %v377
  %v1983 = vunpack.c.l.b16 %v378
  %v1984 = vunpack.c.h.b16 %v378
  %v1985 = vunpack.c.l.b16 %v379
  %v1986 = vunpack.c.h.b16 %v379
  %v1987 = vunpack.c.l.b16 %v380
  %v1988 = vunpack.c.h.b16 %v380
  %v1989 = vunpack.c.l.b16 %v381
  %v1990 = vunpack.c.h.b16 %v381
  %v1991 = vunpack.c.l.b16 %v382
  %v1992 = vunpack.c.h.b16 %v382
  %v1993 = vunpack.c.l.b16 %v383
  %v1994 = vunpack.c.h.b16 %v383
  %v1995 = vunpack.c.l.b16 %v384
  %v1996 = vunpack.c.h.b16 %v384
  %v1997 = vunpack.c.l.b16 %v385
  %v1998 = vunpack.c.h.b16 %v385
  %v1999 = vunpack.c.l.b16 %v386
  %v2000 = vunpack.c.h.b16 %v386
  %v2001 = vunpack.c.l.b16 %v387
  %v2002 = vunpack.c.h.b16 %v387
  %v2003 = vunpack.c.l.b16 %v388
  %v2004 = vunpack.c.h.b16 %v388
  %v2005 = vunpack.c.l.b16 %v389
  %v2006 = vunpack.c.h.b16 %v389
  %v2007 = vunpack.c.l.b16 %v390
  %v2008 = vunpack.c.h.b16 %v390
  %v2009 = vunpack.c.l.b16 %v391
  %v2010 = vunpack.c.h.b16 %v391
  %v2011 = vunpack.c.l.b16 %v392
  %v2012 = vunpack.c.h.b16 %v392
  %v2013 = vunpack.c.l.b16 %v393
  %v2014 = vunpack.c.h.b16 %v393
  %v2015 = vunpack.c.l.b16 %v394
  %v2016 = vunpack.c.h.b16 %v394
  %v2017 = vunpack.c.l.b16 %v395
  %v2018 = vunpack.c.h.b16 %v395
  %v2019 = vunpack.c.l.b16 %v396
  %v2020 = vunpack.c.h.b16 %v396
  %v2021 = vunpack.c.l.b16 %v397
  %v2022 = vunpack.c.h.b16 %v397
  %v2023 = vunpack.c.l.b16 %v398
  %v2024 = vunpack.c.h.b16 %v398
  %v2025 = vunpack.c.l.b16 %v399
  %v2026 = vunpack.c.h.b16 %v399
  %v2027 = vunpack.c.l.b16 %v400
  %v2028 = vunpack.c.h.b16 %v400
  %v2029 = vunpack.c.l.b16 %v401
  %v2030 = vunpack.c.h.b16 %v401
  %v2031 = vunpack.c.l.b16 %v402
  %v2032 = vunpack.c.h.b16 %v402
  %v2033 = vunpack.c.l.b16 %v403
  %v2034 = vunpack.c.h.b16 %v403
  %v2035 = vunpack.c.l.b16 %v404
  %v2036 = vunpack.c.h.b16 %v404
  %v2037 = vunpack.c.l.b16 %v405
  %v2038 = vunpack.c.h.b16 %v405
  %v2039 = vunpack.c.l.b16 %v406
  %v2040 = vunpack.c.h.b16 %v406
  %v2041 = vunpack.c.l.b16 %v407
  %v2042 = vunpack.c.h.b16 %v407
  %v2043 = vunpack.c.l.b16 %v408
  %v2044 = vunpack.c.h.b16 %v408
  %v2045 = vunpack.c.l.b16 %v409
  %v2046 = vunpack.c.h.b16 %v409
  %v2047 = vunpack.c.l.b16 %v410
  %v2048 = vunpack.c.h.b16 %v410
  %v2049 = vunpack.c.l.b16 %v411
  %v2050 = vunpack.c.h.b16 %v411
  %v2051 = vunpack.c.l.b16 %v412
  %v2052 = vunpack.c.h.b16 %v412
  %v2053 = vunpack.c.l.b16 %v413
  %v2054 = vunpack.c.h.b16 %v413
  %v2055 = vunpack.c.l.b16 %v414
  %v2056 = vunpack.c.h.b16 %v414
  %v2057 = vunpack.c.l.b16 %v415
  %v2058 = vunpack.c.h.b16 %v415
  %v2059 = vunpack.c.l.b16 %v416
  %v2060 = vunpack.c.h.b16 %v416
  %v2061 = vunpack.c.l.b16 %v417
  %v2062 = vunpack.c.h.b16 %v417
  %v2063 = vunpack.c.l.b16 %v418
  %v2064 = vunpack.c.h.b16 %v418
  %v2065 = vunpack.c.l.b16 %v419
  %v2066 = vunpack.c.h.b16 %v419
  %v2067 = vunpack.c.l.b16 %v420
  %v2068 = vunpack.c.h.b16 %v420
  %v2069 = vunpack.c.l.b16 %v421
  %v2070 = vunpack.c.h.b16 %v421
  %v2071 = vunpack.c.l.b16 %v422
  %v2072 = vunpack.c.h.b16 %v422
  %v2073 = vunpack.c.l.b16 %v423
  %v2074 = vunpack.c.h.b16 %v423
  %v2075 = vunpack.c.l.b16 %v424
  %v2076 = vunpack.c.h.b16 %v424
  %v2077 = vunpack.c.l.b16 %v425
  %v2078 = vunpack.c.h.b16 %v425
  %v2079 = vunpack.c.l.b16 %v426
  %v2080 = vunpack.c.h.b16 %v426
  %v2081 = vunpack.c.l.b16 %v427
  %v2082 = vunpack.c.h.b16 %v427
  %v2083 = vunpack.c.l.b16 %v428
  %v2084 = vunpack.c.h.b16 %v428
  %v2085 = vunpack.c.l.b16 %v429
  %v2086 = vunpack.c.h.b16 %v429
  %v2087 = vunpack.c.l.b16 %v430
  %v2088 = vunpack.c.h.b16 %v430
  %v2089 = vunpack.c.l.b16 %v431
  %v2090 = vunpack.c.h.b16 %v431
  %v2091 = vunpack.c.l.b16 %v432
  %v2092 = vunpack.c.h.b16 %v432
  %v2093 = vunpack.c.l.b16 %v433
  %v2094 = vunpack.c.h.b16 %v433
  %v2095 = vunpack.c.l.b16 %v434
  %v2096 = vunpack.c.h.b16 %v434
  %v2097 = vunpack.c.l.b16 %v435
  %v2098 = vunpack.c.h.b16 %v435
  %v2099 = vunpack.c.l.b16 %v436
  %v2100 = vunpack.c.h.b16 %v436
  %v2101 = vunpack.c.l.b16 %v437
  %v2102 = vunpack.c.h.b16 %v437
  %v2103 = vunpack.c.l.b16 %v438
  %v2104 = vunpack.c.h.b16 %v438
  %v2105 = vunpack.c.l.b16 %v439
  %v2106 = vunpack.c.h.b16 %v439
  %v2107 = vunpack.c.l.b16 %v440
  %v2108 = vunpack.c.h.b16 %v440
  %v2109 = vunpack.c.l.b16 %v441
  %v2110 = vunpack.c.h.b16 %v441
  %v2111 = vunpack.c.l.b16 %v442
  %v2112 = vunpack.c.h.b16 %v442
  %v2113 = vunpack.c.l.b16 %v443
  %v2114 = vunpack.c.h.b16 %v443
  %v2115 = vunpack.c.l.b16 %v444
  %v2116 = vunpack.c.h.b16 %v444
  %v2117 = vunpack.c.l.b16 %v445
  %v2118 = vunpack.c.h.b16 %v445
  %v2119 = vunpack.c.l.b16 %v446
  %v2120 = vunpack.c.h.b16 %v446
  %v2121 = vunpack.c.l.b16 %v447
  %v2122 = vunpack.c.h.b16 %v447
  %v2123 = vunpack.c.l.b16 %v448
  %v2124 = vunpack.c.h.b16 %v448
  %v2125 = vunpack.c.l.b16 %v449
  %v2126 = vunpack.c.h.b16 %v449
  %v2127 = vunpack.c.l.b16 %v450
  %v2128 = vunpack.c.h.b16 %v450
  %v2129 = vunpack.c.l.b16 %v451
  %v2130 = vunpack.c.h.b16 %v451
  %v2131 = vunpack.c.l.b16 %v452
  %v2132 = vunpack.c.h.b16 %v452
  %v2133 = vunpack.c.l.b16 %v453
  %v2134 = vunpack.c.h.b16 %v453
  %v2135 = vunpack.c.l.b16 %v454
  %v2136 = vunpack.c.h.b16 %v454
  %v2137 = vunpack.c.l.b16 %v455
  %v2138 = vunpack.c.h.b16 %v455
  %v2139 = vunpack.c.l.b16 %v456
  %v2140 = vunpack.c.h.b16 %v456
  %v2141 = vunpack.c.l.b16 %v457
  %v2142 = vunpack.c.h.b16 %v457
  %v2143 = vunpack.c.l.b16 %v458
  %v2144 = vunpack.c.h.b16 %v458
  %v2145 = vunpack.c.l.b16 %v459
  %v2146 = vunpack.c.h.b16 %v459
  %v2147 = vunpack.c.l.b16 %v460
  %v2148 = vunpack.c.h.b16 %v460
  %v2149 = vunpack.c.l.b16 %v461
  %v2150 = vunpack.c.h.b16 %v461
  %v2151 = vunpack.c.l.b16 %v462
  %v2152 = vunpack.c.h.b16 %v462
  %v2153 = vunpack.c.l.b16 %v463
  %v2154 = vunpack.c.h.b16 %v463
  %v2155 = vunpack.c.l.b16 %v464
  %v2156 = vunpack.c.h.b16 %v464
  %v2157 = vunpack.c.l.b16 %v465
  %v2158 = vunpack.c.h.b16 %v465
  %v2159 = vunpack.c.l.b16 %v466
  %v2160 = vunpack.c.h.b16 %v466
  %v2161 = vunpack.c.l.b16 %v467
  %v2162 = vunpack.c.h.b16 %v467
  %v2163 = vunpack.c.l.b16 %v468
  %v2164 = vunpack.c.h.b16 %v468
  %v2165 = vunpack.c.l.b16 %v469
  %v2166 = vunpack.c.h.b16 %v469
  %v2167 = vunpack.c.l.b16 %v470
  %v2168 = vunpack.c.h.b16 %v470
  %v2169 = vunpack.c.l.b16 %v471
  %v2170 = vunpack.c.h.b16 %v471
  %v2171 = vunpack.c.l.b16 %v472
  %v2172 = vunpack.c.h.b16 %v472
  %v2173 = vunpack.c.l.b16 %v473
  %v2174 = vunpack.c.h.b16 %v473
  %v2175 = vunpack.c.l.b16 %v474
  %v2176 = vunpack.c.h.b16 %v474
  %v2177 = vunpack.c.l.b16 %v475
  %v2178 = vunpack.c.h.b16 %v475
  %v2179 = vunpack.c.l.b16 %v476
  %v2180 = vunpack.c.h.b16 %v476
  %v2181 = vunpack.c.l.b16 %v477
  %v2182 = vunpack.c.h.b16 %v477
  %v2183 = vunpack.c.l.b16 %v478
  %v2184 = vunpack.c.h.b16 %v478
  %v2185 = vunpack.c.l.b16 %v479
  %v2186 = vunpack.c.h.b16 %v479
  %v2187 = vunpack.c.l.b16 %v480
  %v2188 = vunpack.c.h.b16 %v480
  %v2189 = vunpack.c.l.b16 %v481
  %v2190 = vunpack.c.h.b16 %v481
  %v2191 = vunpack.c.l.b16 %v482
  %v2192 = vunpack.c.h.b16 %v482
  %v2193 = vunpack.c.l.b16 %v483
  %v2194 = vunpack.c.h.b16 %v483
  %v2195 = vunpack.c.l.b16 %v484
  %v2196 = vunpack.c.h.b16 %v484
  %v2197 = vunpack.c.l.b16 %v485
  %v2198 = vunpack.c.h.b16 %v485
  %v2199 = vunpack.c.l.b16 %v486
  %v2200 = vunpack.c.h.b16 %v486
  %v2201 = vunpack.c.l.b16 %v487
  %v2202 = vunpack.c.h.b16 %v487
  %v2203 = vunpack.c.l.b16 %v488
  %v2204 = vunpack.c.h.b16 %v488
  %v2205 = vunpack.c.l.b16 %v489
  %v2206 = vunpack.c.h.b16 %v489
  %v2207 = vunpack.c.l.b16 %v490
  %v2208 = vunpack.c.h.b16 %v490
  %v2209 = vunpack.c.l.b16 %v491
  %v2210 = vunpack.c.h.b16 %v491
  %v2211 = vunpack.c.l.b16 %v492
  %v2212 = vunpack.c.h.b16 %v492
  %v2213 = vunpack.c.l.b16 %v493
  %v2214 = vunpack.c.h.b16 %v493
  %v2215 = vunpack.c.l.b16 %v494
  %v2216 = vunpack.c.h.b16 %v494
  %v2217 = vunpack.c.l.b16 %v495
  %v2218 = vunpack.c.h.b16 %v495
  %v2219 = vunpack.c.l.b16 %v496
  %v2220 = vunpack.c.h.b16 %v496
  %v2221 = vunpack.c.l.b16 %v497
  %v2222 = vunpack.c.h.b16 %v497
  %v2223 = vunpack.c.l.b16 %v498
  %v2224 = vunpack.c.h.b16 %v498
  %v2225 = vunpack.c.l.b16 %v499
  %v2226 = vunpack.c.h.b16 %v499
  %v2227 = vunpack.c.l.b16 %v500
  %v2228 = vunpack.c.h.b16 %v500
  %v2229 = vunpack.c.l.b16 %v501
  %v2230 = vunpack.c.h.b16 %v501
  %v2231 = vunpack.c.l.b16 %v502
  %v2232 = vunpack.c.h.b16 %v502
  %v2233 = vunpack.c.l.b16 %v503
  %v2234 = vunpack.c.h.b16 %v503
  %v2235 = vunpack.c.l.b16 %v504
  %v2236 = vunpack.c.h.b16 %v504
  %v2237 = vunpack.c.l.b16 %v505
  %v2238 = vunpack.c.h.b16 %v505
  %v2239 = vunpack.c.l.b16 %v506
  %v2240 = vunpack.c.h.b16 %v506
  %v2241 = vunpack.c.l.b16 %v507
  %v2242 = vunpack.c.h.b16 %v507
  %v2243 = vunpack.c.l.b16 %v508
  %v2244 = vunpack.c.h.b16 %v508
  %v2245 = vunpack.c.l.b16 %v509
  %v2246 = vunpack.c.h.b16 %v509
  %v2247 = vunpack.c.l.b16 %v510
  %v2248 = vunpack.c.h.b16 %v510
  %v2249 = vunpack.c.l.b16 %v511
  %v2250 = vunpack.c.h.b16 %v511
  %v2251 = vunpack.c.l.b16 %v512
  %v2252 = vunpack.c.h.b16 %v512
  %v2253 = vunpack.c.l.b16 %v513
  %v2254 = vunpack.c.h.b16 %v513
  %v2255 = vunpack.c.l.b16 %v514
  %v2256 = vunpack.c.h.b16 %v514
  %v2257 = vunpack.c.l.b16 %v515
  %v2258 = vunpack.c.h.b16 %v515
  %v2259 = vunpack.c.l.b16 %v516
  %v2260 = vunpack.c.h.b16 %v516
  %v2261 = vunpack.c.l.b16 %v517
  %v2262 = vunpack.c.h.b16 %v517
  %v2263 = vunpack.c.l.b16 %v518
  %v2264 = vunpack.c.h.b16 %v518
  %v2265 = vunpack.c.l.b16 %v519
  %v2266 = vunpack.c.h.b16 %v519
  %v2267 = vunpack.c.l.b16 %v520
  %v2268 = vunpack.c.h.b16 %v520
  %v2269 = vunpack.c.l.b16 %v521
  %v2270 = vunpack.c.h.b16 %v521
  %v2271 = vunpack.c.l.b16 %v522
  %v2272 = vunpack.c.h.b16 %v522
  %v2273 = vunpack.c.l.b16 %v523
  %v2274 = vunpack.c.h.b16 %v523
  %v2275 = vunpack.c.l.b16 %v524
  %v2276 = vunpack.c.h.b16 %v524
  %v2277 = vunpack.c.l.b16 %v525
  %v2278 = vunpack.c.h.b16 %v525
  %v2279 = vunpack.c.l.b16 %v526
  %v2280 = vunpack.c.h.b16 %v526
  %v2281 = vunpack.c.l.b16 %v527
  %v2282 = vunpack.c.h.b16 %v527
  %v2283 = vunpack.c.l.b16 %v528
  %v2284 = vunpack.c.h.b16 %v528
  %v2285 = vunpack.c.l.b16 %v529
  %v2286 = vunpack.c.h.b16 %v529
  %v2287 = vunpack.c.l.b16 %v530
  %v2288 = vunpack.c.h.b16 %v530
  %v2289 = vunpack.c.l.b16 %v531
  %v2290 = vunpack.c.h.b16 %v531
  %v2291 = vunpack.c.l.b16 %v532
  %v2292 = vunpack.c.h.b16 %v532
  %v2293 = vunpack.c.l.b16 %v533
  %v2294 = vunpack.c.h.b16 %v533
  %v2295 = vunpack.c.l.b16 %v534
  %v2296 = vunpack.c.h.b16 %v534
  %v2297 = vunpack.c.l.b16 %v535
  %v2298 = vunpack.c.h.b16 %v535
  %v2299 = vunpack.c.l.b16 %v536
  %v2300 = vunpack.c.h.b16 %v536
  %v2301 = vunpack.c.l.b16 %v537
  %v2302 = vunpack.c.h.b16 %v537
  %v2303 = vunpack.c.l.b16 %v538
  %v2304 = vunpack.c.h.b16 %v538
  %v2305 = vunpack.c.l.b16 %v539
  %v2306 = vunpack.c.h.b16 %v539
  %v2307 = vunpack.c.l.b16 %v540
  %v2308 = vunpack.c.h.b16 %v540
  %v2309 = vunpack.c.l.b16 %v541
  %v2310 = vunpack.c.h.b16 %v541
  %v2311 = vunpack.c.l.b16 %v542
  %v2312 = vunpack.c.h.b16 %v542
  %v2313 = vunpack.c.l.b16 %v543
  %v2314 = vunpack.c.h.b16 %v543
  %v2315 = vunpack.c.l.b16 %v544
  %v2316 = vunpack.c.h.b16 %v544
  %v2317 = vunpack.c.l.b16 %v545
  %v2318 = vunpack.c.h.b16 %v545
  %v2319 = vunpack.c.l.b16 %v546
  %v2320 = vunpack.c.h.b16 %v546
  %v2321 = vunpack.c.l.b16 %v547
  %v2322 = vunpack.c.h.b16 %v547
  %v2323 = vunpack.c.l.b16 %v548
  %v2324 = vunpack.c.h.b16 %v548
  %v2325 = vunpack.c.l.b16 %v549
  %v2326 = vunpack.c.h.b16 %v549
  %v2327 = vunpack.c.l.b16 %v550
  %v2328 = vunpack.c.h.b16 %v550
  %v2329 = vunpack.c.l.b16 %v551
  %v2330 = vunpack.c.h.b16 %v551
  %v2331 = vunpack.c.l.b16 %v552
  %v2332 = vunpack.c.h.b16 %v552
  %v2333 = vunpack.c.l.b16 %v553
  %v2334 = vunpack.c.h.b16 %v553
  %v2335 = vunpack.c.l.b16 %v554
  %v2336 = vunpack.c.h.b16 %v554
  %v2337 = vunpack.c.l.b16 %v555
  %v2338 = vunpack.c.h.b16 %v555
  %v2339 = vunpack.c.l.b16 %v556
  %v2340 = vunpack.c.h.b16 %v556
  %v2341 = vunpack.c.l.b16 %v557
  %v2342 = vunpack.c.h.b16 %v557
  %v2343 = vunpack.c.l.b16 %v558
  %v2344 = vunpack.c.h.b16 %v558
  %v2345 = vunpack.c.l.b16 %v559
  %v2346 = vunpack.c.h.b16 %v559
  %v2347 = vunpack.c.l.b16 %v560
  %v2348 = vunpack.c.h.b16 %v560
  %v2349 = vunpack.c.l.b16 %v561
  %v2350 = vunpack.c.h.b16 %v561
  %v2351 = vunpack.c.l.b16 %v562
  %v2352 = vunpack.c.h.b16 %v562
  %v2353 = vunpack.c.l.b16 %v563
  %v2354 = vunpack.c.h.b16 %v563
  %v2355 = vunpack.c.l.b16 %v564
  %v2356 = vunpack.c.h.b16 %v564
  %v2357 = vunpack.c.l.b16 %v565
  %v2358 = vunpack.c.h.b16 %v565
  %v2359 = vunpack.c.l.b16 %v566
  %v2360 = vunpack.c.h.b16 %v566
  %v2361 = vunpack.c.l.b16 %v567
  %v2362 = vunpack.c.h.b16 %v567
  %v2363 = vunpack.c.l.b16 %v568
  %v2364 = vunpack.c.h.b16 %v568
  %v2365 = vunpack.c.l.b16 %v569
  %v2366 = vunpack.c.h.b16 %v569
  %v2367 = vunpack.c.l.b16 %v570
  %v2368 = vunpack.c.h.b16 %v570
  %v2369 = vunpack.c.l.b16 %v571
  %v2370 = vunpack.c.h.b16 %v571
  %v2371 = vunpack.c.l.b16 %v572
  %v2372 = vunpack.c.h.b16 %v572
  %v2373 = vunpack.c.l.b16 %v573
  %v2374 = vunpack.c.h.b16 %v573
  %v2375 = vunpack.c.l.b16 %v574
  %v2376 = vunpack.c.h.b16 %v574
  %v2377 = vunpack.c.l.b16 %v575
  %v2378 = vunpack.c.h.b16 %v575
  %v2379 = vunpack.c.l.b16 %v576
  %v2380 = vunpack.c.h.b16 %v576
  %v2381 = vunpack.c.l.b16 %v577
  %v2382 = vunpack.c.h.b16 %v577
  %v2383 = vunpack.c.l.b16 %v578
  %v2384 = vunpack.c.h.b16 %v578
  %v2385 = vunpack.c.l.b16 %v579
  %v2386 = vunpack.c.h.b16 %v579
  %v2387 = vunpack.c.l.b16 %v580
  %v2388 = vunpack.c.h.b16 %v580
  %v2389 = vunpack.c.l.b16 %v581
  %v2390 = vunpack.c.h.b16 %v581
  %v2391 = vunpack.c.l.b16 %v582
  %v2392 = vunpack.c.h.b16 %v582
  %v2393 = vunpack.c.l.b16 %v583
  %v2394 = vunpack.c.h.b16 %v583
  %v2395 = vunpack.c.l.b16 %v584
  %v2396 = vunpack.c.h.b16 %v584
  %v2397 = vunpack.c.l.b16 %v585
  %v2398 = vunpack.c.h.b16 %v585
  %v2399 = vunpack.c.l.b16 %v586
  %v2400 = vunpack.c.h.b16 %v586
  %v2401 = vpack.c.b16 %v1379, %v1377
  %v2402 = vpack.c.b16 %v1380, %v1378
  %v2403 = vpack.c.b16 %v1383, %v1381
  %v2404 = vpack.c.b16 %v1384, %v1382
  %v2405 = vpack.c.b16 %v1387, %v1385
  %v2406 = vpack.c.b16 %v1388, %v1386
  %v2407 = vpack.c.b16 %v1391, %v1389
  %v2408 = vpack.c.b16 %v1392, %v1390
  %v2409 = vpack.c.b16 %v1395, %v1393
  %v2410 = vpack.c.b16 %v1396, %v1394
  %v2411 = vpack.c.b16 %v1399, %v1397
  %v2412 = vpack.c.b16 %v1400, %v1398
  %v2413 = vpack.c.b16 %v1403, %v1401
  %v2414 = vpack.c.b16 %v1404, %v1402
  %v2415 = vpack.c.b16 %v1407, %v1405
  %v2416 = vpack.c.b16 %v1408, %v1406
  %v2417 = vpack.c.b16 %v1411, %v1409
  %v2418 = vpack.c.b16 %v1412, %v1410
  %v2419 = vpack.c.b16 %v1415, %v1413
  %v2420 = vpack.c.b16 %v1416, %v1414
  %v2421 = vpack.c.b16 %v1419, %v1417
  %v2422 = vpack.c.b16 %v1420, %v1418
  %v2423 = vpack.c.b16 %v1423, %v1421
  %v2424 = vpack.c.b16 %v1424, %v1422
  %v2425 = vpack.c.b16 %v1427, %v1425
  %v2426 = vpack.c.b16 %v1428, %v1426
  %v2427 = vpack.c.b16 %v1431, %v1429
  %v2428 = vpack.c.b16 %v1432, %v1430
  %v2429 = vpack.c.b16 %v1435, %v1433
  %v2430 = vpack.c.b16 %v1436, %v1434
  %v2431 = vpack.c.b16 %v1439, %v1437
  %v2432 = vpack.c.b16 %v1440, %v1438
  %v2433 = vpack.c.b16 %v1443, %v1441
  %v2434 = vpack.c.b16 %v1444, %v1442
  %v2435 = vpack.c.b16 %v1447, %v1445
  %v2436 = vpack.c.b16 %v1448, %v1446
  %v2437 = vpack.c.b16 %v1451, %v1449
  %v2438 = vpack.c.b16 %v1452, %v1450
  %v2439 = vpack.c.b16 %v1455, %v1453
  %v2440 = vpack.c.b16 %v1456, %v1454
  %v2441 = vpack.c.b16 %v1459, %v1457
  %v2442 = vpack.c.b16 %v1460, %v1458
  %v2443 = vpack.c.b16 %v1463, %v1461
  %v2444 = vpack.c.b16 %v1464, %v1462
  %v2445 = vpack.c.b16 %v1467, %v1465
  %v2446 = vpack.c.b16 %v1468, %v1466
  %v2447 = vpack.c.b16 %v1471, %v1469
  %v2448 = vpack.c.b16 %v1472, %v1470
  %v2449 = vpack.c.b16 %v1475, %v1473
  %v2450 = vpack.c.b16 %v1476, %v1474
  %v2451 = vpack.c.b16 %v1479, %v1477
  %v2452 = vpack.c.b16 %v1480, %v1478
  %v2453 = vpack.c.b16 %v1483, %v1481
  %v2454 = vpack.c.b16 %v1484, %v1482
  %v2455 = vpack.c.b16 %v1487, %v1485
  %v2456 = vpack.c.b16 %v1488, %v1486
  %v2457 = vpack.c.b16 %v1491, %v1489
  %v2458 = vpack.c.b16 %v1492, %v1490
  %v2459 = vpack.c.b16 %v1495, %v1493
  %v2460 = vpack.c.b16 %v1496, %v1494
  %v2461 = vpack.c.b16 %v1499, %v1497
  %v2462 = vpack.c.b16 %v1500, %v1498
  %v2463 = vpack.c.b16 %v1503, %v1501
  %v2464 = vpack.c.b16 %v1504, %v1502
  %v2465 = vpack.c.b16 %v1507, %v1505
  %v2466 = vpack.c.b16 %v1508, %v1506
  %v2467 = vpack.c.b16 %v1511, %v1509
  %v2468 = vpack.c.b16 %v1512, %v1510
  %v2469 = vpack.c.b16 %v1515, %v1513
  %v2470 = vpack.c.b16 %v1516, %v1514
  %v2471 = vpack.c.b16 %v1519, %v1517
  %v2472 = vpack.c.b16 %v1520, %v1518
  %v2473 = vpack.c.b16 %v1523, %v1521
  %v2474 = vpack.c.b16 %v1524, %v1522
  %v2475 = vpack.c.b16 %v1527, %v1525
  %v2476 = vpack.c.b16 %v1528, %v1526
  %v2477 = vpack.c.b16 %v1531, %v1529
  %v2478 = vpack.c.b16 %v1532, %v1530
  %v2479 = vpack.c.b16 %v1535, %v1533
  %v2480 = vpack.c.b16 %v1536, %v1534
  %v2481 = vpack.c.b16 %v1539, %v1537
  %v2482 = vpack.c.b16 %v1540, %v1538
  %v2483 = vpack.c.b16 %v1543, %v1541
  %v2484 = vpack.c.b16 %v1544, %v1542
  %v2485 = vpack.c.b16 %v1547, %v1545
  %v2486 = vpack.c.b16 %v1548, %v1546
  %v2487 = vpack.c.b16 %v1551, %v1549
  %v2488 = vpack.c.b16 %v1552, %v1550
  %v2489 = vpack.c.b16 %v1555, %v1553
  %v2490 = vpack.c.b16 %v1556, %v1554
  %v2491 = vpack.c.b16 %v1559, %v1557
  %v2492 = vpack.c.b16 %v1560, %v1558
  %v2493 = vpack.c.b16 %v1563, %v1561
  %v2494 = vpack.c.b16 %v1564, %v1562
  %v2495 = vpack.c.b16 %v1567, %v1565
  %v2496 = vpack.c.b16 %v1568, %v1566
  %v2497 = vpack.c.b16 %v1571, %v1569
  %v2498 = vpack.c.b16 %v1572, %v1570
  %v2499 = vpack.c.b16 %v1575, %v1573
  %v2500 = vpack.c.b16 %v1576, %v1574
  %v2501 = vpack.c.b16 %v1579, %v1577
  %v2502 = vpack.c.b16 %v1580, %v1578
  %v2503 = vpack.c.b16 %v1583, %v1581
  %v2504 = vpack.c.b16 %v1584, %v1582
  %v2505 = vpack.c.b16 %v1587, %v1585
  %v2506 = vpack.c.b16 %v1588, %v1586
  %v2507 = vpack.c.b16 %v1591, %v1589
  %v2508 = vpack.c.b16 %v1592, %v1590
  %v2509 = vpack.c.b16 %v1595, %v1593
  %v2510 = vpack.c.b16 %v1596, %v1594
  %v2511 = vpack.c.b16 %v1599, %v1597
  %v2512 = vpack.c.b16 %v1600, %v1598
  %v2513 = vpack.c.b16 %v1603, %v1601
  %v2514 = vpack.c.b16 %v1604, %v1602
  %v2515 = vpack.c.b16 %v1607, %v1605
  %v2516 = vpack.c.b16 %v1608, %v1606
  %v2517 = vpack.c.b16 %v1611, %v1609
  %v2518 = vpack.c.b16 %v1612, %v1610
  %v2519 = vpack.c.b16 %v1615, %v1613
  %v2520 = vpack.c.b16 %v1616, %v1614
  %v2521 = vpack.c.b16 %v1619, %v1617
  %v2522 = vpack.c.b16 %v1620, %v1618
  %v2523 = vpack.c.b16 %v1623, %v1621
  %v2524 = vpack.c.b16 %v1624, %v1622
  %v2525 = vpack.c.b16 %v1627, %v1625
  %v2526 = vpack.c.b16 %v1628, %v1626
  %v2527 = vpack.c.b16 %v1631, %v1629
  %v2528 = vpack.c.b16 %v1632, %v1630
  %v2529 = vpack.c.b16 %v1635, %v1633
  %v2530 = vpack.c.b16 %v1636, %v1634
  %v2531 = vpack.c.b16 %v1639, %v1637
  %v2532 = vpack.c.b16 %v1640, %v1638
  %v2533 = vpack.c.b16 %v1643, %v1641
  %v2534 = vpack.c.b16 %v1644, %v1642
  %v2535 = vpack.c.b16 %v1647, %v1645
  %v2536 = vpack.c.b16 %v1648, %v1646
  %v2537 = vpack.c.b16 %v1651, %v1649
  %v2538 = vpack.c.b16 %v1652, %v1650
  %v2539 = vpack.c.b16 %v1655, %v1653
  %v2540 = vpack.c.b16 %v1656, %v1654
  %v2541 = vpack.c.b16 %v1659, %v1657
  %v2542 = vpack.c.b16 %v1660, %v1658
  %v2543 = vpack.c.b16 %v1663, %v1661
  %v2544 = vpack.c.b16 %v1664, %v1662
  %v2545 = vpack.c.b16 %v1667, %v1665
  %v2546 = vpack.c.b16 %v1668, %v1666
  %v2547 = vpack.c.b16 %v1671, %v1669
  %v2548 = vpack.c.b16 %v1672, %v1670
  %v2549 = vpack.c.b16 %v1675, %v1673
  %v2550 = vpack.c.b16 %v1676, %v1674
  %v2551 = vpack.c.b16 %v1679, %v1677
  %v2552 = vpack.c.b16 %v1680, %v1678
  %v2553 = vpack.c.b16 %v1683, %v1681
  %v2554 = vpack.c.b16 %v1684, %v1682
  %v2555 = vpack.c.b16 %v1687, %v1685
  %v2556 = vpack.c.b16 %v1688, %v1686
  %v2557 = vpack.c.b16 %v1691, %v1689
  %v2558 = vpack.c.b16 %v1692, %v1690
  %v2559 = vpack.c.b16 %v1695, %v1693
  %v2560 = vpack.c.b16 %v1696, %v1694
  %v2561 = vpack.c.b16 %v1699, %v1697
  %v2562 = vpack.c.b16 %v1700, %v1698
  %v2563 = vpack.c.b16 %v1703, %v1701
  %v2564 = vpack.c.b16 %v1704, %v1702
  %v2565 = vpack.c.b16 %v1707, %v1705
  %v2566 = vpack.c.b16 %v1708, %v1706
  %v2567 = vpack.c.b16 %v1711, %v1709
  %v2568 = vpack.c.b16 %v1712, %v1710
  %v2569 = vpack.c.b16 %v1715, %v1713
  %v2570 = vpack.c.b16 %v1716, %v1714
  %v2571 = vpack.c.b16 %v1719, %v1717
  %v2572 = vpack.c.b16 %v1720, %v1718
  %v2573 = vpack.c.b16 %v1723, %v1721
  %v2574 = vpack.c.b16 %v1724, %v1722
  %v2575 = vpack.c.b16 %v1727, %v1725
  %v2576 = vpack.c.b16 %v1728, %v1726
  %v2577 = vpack.c.b16 %v1731, %v1729
  %v2578 = vpack.c.b16 %v1732, %v1730
  %v2579 = vpack.c.b16 %v1735, %v1733
  %v2580 = vpack.c.b16 %v1736, %v1734
  %v2581 = vpack.c.b16 %v1739, %v1737
  %v2582 = vpack.c.b16 %v1740, %v1738
  %v2583 = vpack.c.b16 %v1743, %v1741
  %v2584 = vpack.c.b16 %v1744, %v1742
  %v2585 = vpack.c.b16 %v1747, %v1745
  %v2586 = vpack.c.b16 %v1748, %v1746
  %v2587 = vpack.c.b16 %v1751, %v1749
  %v2588 = vpack.c.b16 %v1752, %v1750
  %v2589 = vpack.c.b16 %v1755, %v1753
  %v2590 = vpack.c.b16 %v1756, %v1754
  %v2591 = vpack.c.b16 %v1759, %v1757
  %v2592 = vpack.c.b16 %v1760, %v1758
  %v2593 = vpack.c.b16 %v1763, %v1761
  %v2594 = vpack.c.b16 %v1764, %v1762
  %v2595 = vpack.c.b16 %v1767, %v1765
  %v2596 = vpack.c.b16 %v1768, %v1766
  %v2597 = vpack.c.b16 %v1771, %v1769
  %v2598 = vpack.c.b16 %v1772, %v1770
  %v2599 = vpack.c.b16 %v1775, %v1773
  %v2600 = vpack.c.b16 %v1776, %v1774
  %v2601 = vpack.c.b16 %v1779, %v1777
  %v2602 = vpack.c.b16 %v1780, %v1778
  %v2603 = vpack.c.b16 %v1783, %v1781
  %v2604 = vpack.c.b16 %v1784, %v1782
  %v2605 = vpack.c.b16 %v1787, %v1785
  %v2606 = vpack.c.b16 %v1788, %v1786
  %v2607 = vpack.c.b16 %v1791, %v1789
  %v2608 = vpack.c.b16 %v1792, %v1790
  %v2609 = vpack.c.b16 %v1795, %v1793
  %v2610 = vpack.c.b16 %v1796, %v1794
  %v2611 = vpack.c.b16 %v1799, %v1797
  %v2612 = vpack.c.b16 %v1800, %v1798
  %v2613 = vpack.c.b16 %v1803, %v1801
  %v2614 = vpack.c.b16 %v1804, %v1802
  %v2615 = vpack.c.b16 %v1807, %v1805
  %v2616 = vpack.c.b16 %v1808, %v1806
  %v2617 = vpack.c.b16 %v1811, %v1809
  %v2618 = vpack.c.b16 %v1812, %v1810
  %v2619 = vpack.c.b16 %v1815, %v1813
  %v2620 = vpack.c.b16 %v1816, %v1814
  %v2621 = vpack.c.b16 %v1819, %v1817
  %v2622 = vpack.c.b16 %v1820, %v1818
  %v2623 = vpack.c.b16 %v1823, %v1821
  %v2624 = vpack.c.b16 %v1824, %v1822
  %v2625 = vpack.c.b16 %v1827, %v1825
  %v2626 = vpack.c.b16 %v1828, %v1826
  %v2627 = vpack.c.b16 %v1831, %v1829
  %v2628 = vpack.c.b16 %v1832, %v1830
  %v2629 = vpack.c.b16 %v1835, %v1833
  %v2630 = vpack.c.b16 %v1836, %v1834
  %v2631 = vpack.c.b16 %v1839, %v1837
  %v2632 = vpack.c.b16 %v1840, %v1838
  %v2633 = vpack.c.b16 %v1843, %v1841
  %v2634 = vpack.c.b16 %v1844, %v1842
  %v2635 = vpack.c.b16 %v1847, %v1845
  %v2636 = vpack.c.b16 %v1848, %v1846
  %v2637 = vpack.c.b16 %v1851, %v1849
  %v2638 = vpack.c.b16 %v1852, %v1850
  %v2639 = vpack.c.b16 %v1855, %v1853
  %v2640 = vpack.c.b16 %v1856, %v1854
  %v2641 = vpack.c.b16 %v1859, %v1857
  %v2642 = vpack.c.b16 %v1860, %v1858
  %v2643 = vpack.c.b16 %v1863, %v1861
  %v2644 = vpack.c.b16 %v1864, %v1862
  %v2645 = vpack.c.b16 %v1867, %v1865
  %v2646 = vpack.c.b16 %v1868, %v1866
  %v2647 = vpack.c.b16 %v1871, %v1869
  %v2648 = vpack.c.b16 %v1872, %v1870
  %v2649 = vpack.c.b16 %v1875, %v1873
  %v2650 = vpack.c.b16 %v1876, %v1874
  %v2651 = vpack.c.b16 %v1879, %v1877
  %v2652 = vpack.c.b16 %v1880, %v1878
  %v2653 = vpack.c.b16 %v1883, %v1881
  %v2654 = vpack.c.b16 %v1884, %v1882
  %v2655 = vpack.c.b16 %v1887, %v1885
  %v2656 = vpack.c.b16 %v1888, %v1886
  %v2657 = vpack.c.b16 %v1891, %v1889
  %v2658 = vpack.c.b16 %v1892, %v1890
  %v2659 = vpack.c.b16 %v1895, %v1893
  %v2660 = vpack.c.b16 %v1896, %v1894
  %v2661 = vpack.c.b16 %v1899, %v1897
  %v2662 = vpack.c.b16 %v1900, %v1898
  %v2663 = vpack.c.b16 %v1903, %v1901
  %v2664 = vpack.c.b16 %v1904, %v1902
  %v2665 = vpack.c.b16 %v1907, %v1905
  %v2666 = vpack.c.b16 %v1908, %v1906
  %v2667 = vpack.c.b16 %v1911, %v1909
  %v2668 = vpack.c.b16 %v1912, %v1910
  %v2669 = vpack.c.b16 %v1915, %v1913
  %v2670 = vpack.c.b16 %v1916, %v1914
  %v2671 = vpack.c.b16 %v1919, %v1917
  %v2672 = vpack.c.b16 %v1920, %v1918
  %v2673 = vpack.c.b16 %v1923, %v1921
  %v2674 = vpack.c.b16 %v1924, %v1922
  %v2675 = vpack.c.b16 %v1927, %v1925
  %v2676 = vpack.c.b16 %v1928, %v1926
  %v2677 = vpack.c.b16 %v1931, %v1929
  %v2678 = vpack.c.b16 %v1932, %v1930
  %v2679 = vpack.c.b16 %v1935, %v1933
  %v2680 = vpack.c.b16 %v1936, %v1934
  %v2681 = vpack.c.b16 %v1939, %v1937
  %v2682 = vpack.c.b16 %v1940, %v1938
  %v2683 = vpack.c.b16 %v1943, %v1941
  %v2684 = vpack.c.b16 %v1944, %v1942
  %v2685 = vpack.c.b16 %v1947, %v1945
  %v2686 = vpack.c.b16 %v1948, %v1946
  %v2687 = vpack.c.b16 %v1951, %v1949
  %v2688 = vpack.c.b16 %v1952, %v1950
  %v2689 = vpack.c.b16 %v1955, %v1953
  %v2690 = vpack.c.b16 %v1956, %v1954
  %v2691 = vpack.c.b16 %v1959, %v1957
  %v2692 = vpack.c.b16 %v1960, %v1958
  %v2693 = vpack.c.b16 %v1963, %v1961
  %v2694 = vpack.c.b16 %v1964, %v1962
  %v2695 = vpack.c.b16 %v1967, %v1965
  %v2696 = vpack.c.b16 %v1968, %v1966
  %v2697 = vpack.c.b16 %v1971, %v1969
  %v2698 = vpack.c.b16 %v1972, %v1970
  %v2699 = vpack.c.b16 %v1975, %v1973
  %v2700 = vpack.c.b16 %v1976, %v1974
  %v2701 = vpack.c.b16 %v1979, %v1977
  %v2702 = vpack.c.b16 %v1980, %v1978
  %v2703 = vpack.c.b16 %v1983, %v1981
  %v2704 = vpack.c.b16 %v1984, %v1982
  %v2705 = vpack.c.b16 %v1987, %v1985
  %v2706 = vpack.c.b16 %v1988, %v1986
  %v2707 = vpack.c.b16 %v1991, %v1989
  %v2708 = vpack.c.b16 %v1992, %v1990
  %v2709 = vpack.c.b16 %v1995, %v1993
  %v2710 = vpack.c.b16 %v1996, %v1994
  %v2711 = vpack.c.b16 %v1999, %v1997
  %v2712 = vpack.c.b16 %v2000, %v1998
  %v2713 = vpack.c.b16 %v2003, %v2001
  %v2714 = vpack.c.b16 %v2004, %v2002
  %v2715 = vpack.c.b16 %v2007, %v2005
  %v2716 = vpack.c.b16 %v2008, %v2006
  %v2717 = vpack.c.b16 %v2011, %v2009
  %v2718 = vpack.c.b16 %v2012, %v2010
  %v2719 = vpack.c.b16 %v2015, %v2013
  %v2720 = vpack.c.b16 %v2016, %v2014
  %v2721 = vpack.c.b16 %v2019, %v2017
  %v2722 = vpack.c.b16 %v2020, %v2018
  %v2723 = vpack.c.b16 %v2023, %v2021
  %v2724 = vpack.c.b16 %v2024, %v2022
  %v2725 = vpack.c.b16 %v2027, %v2025
  %v2726 = vpack.c.b16 %v2028, %v2026
  %v2727 = vpack.c.b16 %v2031, %v2029
  %v2728 = vpack.c.b16 %v2032, %v2030
  %v2729 = vpack.c.b16 %v2035, %v2033
  %v2730 = vpack.c.b16 %v2036, %v2034
  %v2731 = vpack.c.b16 %v2039, %v2037
  %v2732 = vpack.c.b16 %v2040, %v2038
  %v2733 = vpack.c.b16 %v2043, %v2041
  %v2734 = vpack.c.b16 %v2044, %v2042
  %v2735 = vpack.c.b16 %v2047, %v2045
  %v2736 = vpack.c.b16 %v2048, %v2046
  %v2737 = vpack.c.b16 %v2051, %v2049
  %v2738 = vpack.c.b16 %v2052, %v2050
  %v2739 = vpack.c.b16 %v2055, %v2053
  %v2740 = vpack.c.b16 %v2056, %v2054
  %v2741 = vpack.c.b16 %v2059, %v2057
  %v2742 = vpack.c.b16 %v2060, %v2058
  %v2743 = vpack.c.b16 %v2063, %v2061
  %v2744 = vpack.c.b16 %v2064, %v2062
  %v2745 = vpack.c.b16 %v2067, %v2065
  %v2746 = vpack.c.b16 %v2068, %v2066
  %v2747 = vpack.c.b16 %v2071, %v2069
  %v2748 = vpack.c.b16 %v2072, %v2070
  %v2749 = vpack.c.b16 %v2075, %v2073
  %v2750 = vpack.c.b16 %v2076, %v2074
  %v2751 = vpack.c.b16 %v2079, %v2077
  %v2752 = vpack.c.b16 %v2080, %v2078
  %v2753 = vpack.c.b16 %v2083, %v2081
  %v2754 = vpack.c.b16 %v2084, %v2082
  %v2755 = vpack.c.b16 %v2087, %v2085
  %v2756 = vpack.c.b16 %v2088, %v2086
  %v2757 = vpack.c.b16 %v2091, %v2089
  %v2758 = vpack.c.b16 %v2092, %v2090
  %v2759 = vpack.c.b16 %v2095, %v2093
  %v2760 = vpack.c.b16 %v2096, %v2094
  %v2761 = vpack.c.b16 %v2099, %v2097
  %v2762 = vpack.c.b16 %v2100, %v2098
  %v2763 = vpack.c.b16 %v2103, %v2101
  %v2764 = vpack.c.b16 %v2104, %v2102
  %v2765 = vpack.c.b16 %v2107, %v2105
  %v2766 = vpack.c.b16 %v2108, %v2106
  %v2767 = vpack.c.b16 %v2111, %v2109
  %v2768 = vpack.c.b16 %v2112, %v2110
  %v2769 = vpack.c.b16 %v2115, %v2113
  %v2770 = vpack.c.b16 %v2116, %v2114
  %v2771 = vpack.c.b16 %v2119, %v2117
  %v2772 = vpack.c.b16 %v2120, %v2118
  %v2773 = vpack.c.b16 %v2123, %v2121
  %v2774 = vpack.c.b16 %v2124, %v2122
  %v2775 = vpack.c.b16 %v2127, %v2125
  %v2776 = vpack.c.b16 %v2128, %v2126
  %v2777 = vpack.c.b16 %v2131, %v2129
  %v2778 = vpack.c.b16 %v2132, %v2130
  %v2779 = vpack.c.b16 %v2135, %v2133
  %v2780 = vpack.c.b16 %v2136, %v2134
  %v2781 = vpack.c.b16 %v2139, %v2137
  %v2782 = vpack.c.b16 %v2140, %v2138
  %v2783 = vpack.c.b16 %v2143, %v2141
  %v2784 = vpack.c.b16 %v2144, %v2142
  %v2785 = vpack.c.b16 %v2147, %v2145
  %v2786 = vpack.c.b16 %v2148, %v2146
  %v2787 = vpack.c.b16 %v2151, %v2149
  %v2788 = vpack.c.b16 %v2152, %v2150
  %v2789 = vpack.c.b16 %v2155, %v2153
  %v2790 = vpack.c.b16 %v2156, %v2154
  %v2791 = vpack.c.b16 %v2159, %v2157
  %v2792 = vpack.c.b16 %v2160, %v2158
  %v2793 = vpack.c.b16 %v2163, %v2161
  %v2794 = vpack.c.b16 %v2164, %v2162
  %v2795 = vpack.c.b16 %v2167, %v2165
  %v2796 = vpack.c.b16 %v2168, %v2166
  %v2797 = vpack.c.b16 %v2171, %v2169
  %v2798 = vpack.c.b16 %v2172, %v2170
  %v2799 = vpack.c.b16 %v2175, %v2173
  %v2800 = vpack.c.b16 %v2176, %v2174
  %v2801 = vpack.c.b16 %v2179, %v2177
  %v2802 = vpack.c.b16 %v2180, %v2178
  %v2803 = vpack.c.b16 %v2183, %v2181
  %v2804 = vpack.c.b16 %v2184, %v2182
  %v2805 = vpack.c.b16 %v2187, %v2185
  %v2806 = vpack.c.b16 %v2188, %v2186
  %v2807 = vpack.c.b16 %v2191, %v2189
  %v2808 = vpack.c.b16 %v2192, %v2190
  %v2809 = vpack.c.b16 %v2195, %v2193
  %v2810 = vpack.c.b16 %v2196, %v2194
  %v2811 = vpack.c.b16 %v2199, %v2197
  %v2812 = vpack.c.b16 %v2200, %v2198
  %v2813 = vpack.c.b16 %v2203, %v2201
  %v2814 = vpack.c.b16 %v2204, %v2202
  %v2815 = vpack.c.b16 %v2207, %v2205
  %v2816 = vpack.c.b16 %v2208, %v2206
  %v2817 = vpack.c.b16 %v2211, %v2209
  %v2818 = vpack.c.b16 %v2212, %v2210
  %v2819 = vpack.c.b16 %v2215, %v2213
  %v2820 = vpack.c.b16 %v2216, %v2214
  %v2821 = vpack.c.b16 %v2219, %v2217
  %v2822 = vpack.c.b16 %v2220, %v2218
  %v2823 = vpack.c.b16 %v2223, %v2221
  %v2824 = vpack.c.b16 %v2224, %v2222
  %v2825 = vpack.c.b16 %v2227, %v2225
  %v2826 = vpack.c.b16 %v2228, %v2226
  %v2827 = vpack.c.b16 %v2231, %v2229
  %v2828 = vpack.c.b16 %v2232, %v2230
  %v2829 = vpack.c.b16 %v2235, %v2233
  %v2830 = vpack.c.b16 %v2236, %v2234
  %v2831 = vpack.c.b16 %v2239, %v2237
  %v2832 = vpack.c.b16 %v2240, %v2238
  %v2833 = vpack.c.b16 %v2243, %v2241
  %v2834 = vpack.c.b16 %v2244, %v2242
  %v2835 = vpack.c.b16 %v2247, %v2245
  %v2836 = vpack.c.b16 %v2248, %v2246
  %v2837 = vpack.c.b16 %v2251, %v2249
  %v2838 = vpack.c.b16 %v2252, %v2250
  %v2839 = vpack.c.b16 %v2255, %v2253
  %v2840 = vpack.c.b16 %v2256, %v2254
  %v2841 = vpack.c.b16 %v2259, %v2257
  %v2842 = vpack.c.b16 %v2260, %v2258
  %v2843 = vpack.c.b16 %v2263, %v2261
  %v2844 = vpack.c.b16 %v2264, %v2262
  %v2845 = vpack.c.b16 %v2267, %v2265
  %v2846 = vpack.c.b16 %v2268, %v2266
  %v2847 = vpack.c.b16 %v2271, %v2269
  %v2848 = vpack.c.b16 %v2272, %v2270
  %v2849 = vpack.c.b16 %v2275, %v2273
  %v2850 = vpack.c.b16 %v2276, %v2274
  %v2851 = vpack.c.b16 %v2279, %v2277
  %v2852 = vpack.c.b16 %v2280, %v2278
  %v2853 = vpack.c.b16 %v2283, %v2281
  %v2854 = vpack.c.b16 %v2284, %v2282
  %v2855 = vpack.c.b16 %v2287, %v2285
  %v2856 = vpack.c.b16 %v2288, %v2286
  %v2857 = vpack.c.b16 %v2291, %v2289
  %v2858 = vpack.c.b16 %v2292, %v2290
  %v2859 = vpack.c.b16 %v2295, %v2293
  %v2860 = vpack.c.b16 %v2296, %v2294
  %v2861 = vpack.c.b16 %v2299, %v2297
  %v2862 = vpack.c.b16 %v2300, %v2298
  %v2863 = vpack.c.b16 %v2303, %v2301
  %v2864 = vpack.c.b16 %v2304, %v2302
  %v2865 = vpack.c.b16 %v2307, %v2305
  %v2866 = vpack.c.b16 %v2308, %v2306
  %v2867 = vpack.c.b16 %v2311, %v2309
  %v2868 = vpack.c.b16 %v2312, %v2310
  %v2869 = vpack.c.b16 %v2315, %v2313
  %v2870 = vpack.c.b16 %v2316, %v2314
  %v2871 = vpack.c.b16 %v2319, %v2317
  %v2872 = vpack.c.b16 %v2320, %v2318
  %v2873 = vpack.c.b16 %v2323, %v2321
  %v2874 = vpack.c.b16 %v2324, %v2322
  %v2875 = vpack.c.b16 %v2327, %v2325
  %v2876 = vpack.c.b16 %v2328, %v2326
  %v2877 = vpack.c.b16 %v2331, %v2329
  %v2878 = vpack.c.b16 %v2332, %v2330
  %v2879 = vpack.c.b16 %v2335, %v2333
  %v2880 = vpack.c.b16 %v2336, %v2334
  %v2881 = vpack.c.b16 %v2339, %v2337
  %v2882 = vpack.c.b16 %v2340, %v2338
  %v2883 = vpack.c.b16 %v2343, %v2341
  %v2884 = vpack.c.b16 %v2344, %v2342
  %v2885 = vpack.c.b16 %v2347, %v2345
  %v2886 = vpack.c.b16 %v2348, %v2346
  %v2887 = vpack.c.b16 %v2351, %v2349
  %v2888 = vpack.c.b16 %v2352, %v2350
  %v2889 = vpack.c.b16 %v2355, %v2353
  %v2890 = vpack.c.b16 %v2356, %v2354
  %v2891 = vpack.c.b16 %v2359, %v2357
  %v2892 = vpack.c.b16 %v2360, %v2358
  %v2893 = vpack.c.b16 %v2363, %v2361
  %v2894 = vpack.c.b16 %v2364, %v2362
  %v2895 = vpack.c.b16 %v2367, %v2365
  %v2896 = vpack.c.b16 %v2368, %v2366
  %v2897 = vpack.c.b16 %v2371, %v2369
  %v2898 = vpack.c.b16 %v2372, %v2370
  %v2899 = vpack.c.b16 %v2375, %v2373
  %v2900 = vpack.c.b16 %v2376, %v2374
  %v2901 = vpack.c.b16 %v2379, %v2377
  %v2902 = vpack.c.b16 %v2380, %v2378
  %v2903 = vpack.c.b16 %v2383, %v2381
  %v2904 = vpack.c.b16 %v2384, %v2382
  %v2905 = vpack.c.b16 %v2387, %v2385
  %v2906 = vpack.c.b16 %v2388, %v2386
  %v2907 = vpack.c.b16 %v2391, %v2389
  %v2908 = vpack.c.b16 %v2392, %v2390
  %v2909 = vpack.c.b16 %v2395, %v2393
  %v2910 = vpack.c.b16 %v2396, %v2394
  %v2911 = vpack.c.b16 %v2399, %v2397
  %v2912 = vpack.c.b16 %v2400, %v2398
  %3425 = vmatpush.bf16.msra.mxu0 %v2415
  %3426 = vmatpush.bf16.msra.mxu0 %v2413
  %3427 = vmatpush.bf16.msra.mxu0 %v2411
  %3428 = vmatpush.bf16.msra.mxu0 %v2409
  %3429 = vmatpush.bf16.msra.mxu0 %v2407
  %3430 = vmatpush.bf16.msra.mxu0 %v2405
  %3431 = vmatpush.bf16.msra.mxu0 %v2403
  %3432 = vmatpush.bf16.msra.mxu0 %v2401
  %3433 = vmatmul.bf16.gmra.mxu0 %v737
  %v3434 = vpop.f32.mrf.mxu0
  %v3435 = vadd.f32 %v589, %v3434
  %v3436 = vpop.f32.mrf.mxu0
  %v3437 = vadd.f32 %v589, %v3436
  %3438 = vmatmul.bf16.gmra.mxu0 %v769
  %v3439 = vpop.f32.mrf.mxu0
  %v3440 = vadd.f32 %v589, %v3439
  %v3441 = vpop.f32.mrf.mxu0
  %3442 = vdwg.mxu0
  %3443 = vmatpush.bf16.msra.mxu0 %v2431
  %3444 = vmatpush.bf16.msra.mxu0 %v2429
  %3445 = vmatpush.bf16.msra.mxu0 %v2427
  %3446 = vmatpush.bf16.msra.mxu0 %v2425
  %3447 = vmatpush.bf16.msra.mxu0 %v2423
  %3448 = vmatpush.bf16.msra.mxu0 %v2421
  %3449 = vmatpush.bf16.msra.mxu0 %v2419
  %3450 = vmatpush.bf16.msra.mxu0 %v2417
  %3451 = vmatmul.bf16.gmra.mxu0 %v738
  %v3452 = vpop.f32.mrf.mxu0
  %v3453 = vadd.f32 %v3435, %v3452
  %v3454 = vpop.f32.mrf.mxu0
  %v3455 = vadd.f32 %v3437, %v3454
  %3456 = vmatmul.bf16.gmra.mxu0 %v770
  %v3457 = vpop.f32.mrf.mxu0
  %v3458 = vadd.f32 %v3440, %v3457
  %v3459 = vpop.f32.mrf.mxu0
  %3460 = vdwg.mxu0
  %3461 = vmatpush.bf16.msra.mxu0 %v2447
  %3462 = vmatpush.bf16.msra.mxu0 %v2445
  %3463 = vmatpush.bf16.msra.mxu0 %v2443
  %3464 = vmatpush.bf16.msra.mxu0 %v2441
  %3465 = vmatpush.bf16.msra.mxu0 %v2439
  %3466 = vmatpush.bf16.msra.mxu0 %v2437
  %3467 = vmatpush.bf16.msra.mxu0 %v2435
  %3468 = vmatpush.bf16.msra.mxu0 %v2433
  %3469 = vmatmul.bf16.gmra.mxu0 %v739
  %v3470 = vpop.f32.mrf.mxu0
  %v3471 = vadd.f32 %v3453, %v3470
  %v3472 = vpop.f32.mrf.mxu0
  %v3473 = vadd.f32 %v3455, %v3472
  %3474 = vmatmul.bf16.gmra.mxu0 %v771
  %v3475 = vpop.f32.mrf.mxu0
  %v3476 = vadd.f32 %v3458, %v3475
  %v3477 = vpop.f32.mrf.mxu0
  %3478 = vdwg.mxu0
  %3479 = vmatpush.bf16.msra.mxu0 %v2463
  %3480 = vmatpush.bf16.msra.mxu0 %v2461
  %3481 = vmatpush.bf16.msra.mxu0 %v2459
  %3482 = vmatpush.bf16.msra.mxu0 %v2457
  %3483 = vmatpush.bf16.msra.mxu0 %v2455
  %3484 = vmatpush.bf16.msra.mxu0 %v2453
  %3485 = vmatpush.bf16.msra.mxu0 %v2451
  %3486 = vmatpush.bf16.msra.mxu0 %v2449
  %3487 = vmatmul.bf16.gmra.mxu0 %v740
  %v3488 = vpop.f32.mrf.mxu0
  %v3489 = vadd.f32 %v3471, %v3488
  %v3490 = vpop.f32.mrf.mxu0
  %v3491 = vadd.f32 %v3473, %v3490
  %3492 = vmatmul.bf16.gmra.mxu0 %v772
  %v3493 = vpop.f32.mrf.mxu0
  %v3494 = vadd.f32 %v3476, %v3493
  %v3495 = vpop.f32.mrf.mxu0
  %3496 = vdwg.mxu0
  %3497 = vmatpush.bf16.msra.mxu0 %v2479
  %3498 = vmatpush.bf16.msra.mxu0 %v2477
  %3499 = vmatpush.bf16.msra.mxu0 %v2475
  %3500 = vmatpush.bf16.msra.mxu0 %v2473
  %3501 = vmatpush.bf16.msra.mxu0 %v2471
  %3502 = vmatpush.bf16.msra.mxu0 %v2469
  %3503 = vmatpush.bf16.msra.mxu0 %v2467
  %3504 = vmatpush.bf16.msra.mxu0 %v2465
  %3505 = vmatmul.bf16.gmra.mxu0 %v741
  %v3506 = vpop.f32.mrf.mxu0
  %v3507 = vadd.f32 %v3489, %v3506
  %v3508 = vpop.f32.mrf.mxu0
  %v3509 = vadd.f32 %v3491, %v3508
  %3510 = vmatmul.bf16.gmra.mxu0 %v773
  %v3511 = vpop.f32.mrf.mxu0
  %v3512 = vadd.f32 %v3494, %v3511
  %v3513 = vpop.f32.mrf.mxu0
  %3514 = vdwg.mxu0
  %3515 = vmatpush.bf16.msra.mxu0 %v2495
  %3516 = vmatpush.bf16.msra.mxu0 %v2493
  %3517 = vmatpush.bf16.msra.mxu0 %v2491
  %3518 = vmatpush.bf16.msra.mxu0 %v2489
  %3519 = vmatpush.bf16.msra.mxu0 %v2487
  %3520 = vmatpush.bf16.msra.mxu0 %v2485
  %3521 = vmatpush.bf16.msra.mxu0 %v2483
  %3522 = vmatpush.bf16.msra.mxu0 %v2481
  %3523 = vmatmul.bf16.gmra.mxu0 %v742
  %v3524 = vpop.f32.mrf.mxu0
  %v3525 = vadd.f32 %v3507, %v3524
  %v3526 = vpop.f32.mrf.mxu0
  %v3527 = vadd.f32 %v3509, %v3526
  %3528 = vmatmul.bf16.gmra.mxu0 %v774
  %v3529 = vpop.f32.mrf.mxu0
  %v3530 = vadd.f32 %v3512, %v3529
  %v3531 = vpop.f32.mrf.mxu0
  %3532 = vdwg.mxu0
  %3533 = vmatpush.bf16.msra.mxu0 %v2511
  %3534 = vmatpush.bf16.msra.mxu0 %v2509
  %3535 = vmatpush.bf16.msra.mxu0 %v2507
  %3536 = vmatpush.bf16.msra.mxu0 %v2505
  %3537 = vmatpush.bf16.msra.mxu0 %v2503
  %3538 = vmatpush.bf16.msra.mxu0 %v2501
  %3539 = vmatpush.bf16.msra.mxu0 %v2499
  %3540 = vmatpush.bf16.msra.mxu0 %v2497
  %3541 = vmatmul.bf16.gmra.mxu0 %v743
  %v3542 = vpop.f32.mrf.mxu0
  %v3543 = vadd.f32 %v3525, %v3542
  %v3544 = vpop.f32.mrf.mxu0
  %v3545 = vadd.f32 %v3527, %v3544
  %3546 = vmatmul.bf16.gmra.mxu0 %v775
  %v3547 = vpop.f32.mrf.mxu0
  %v3548 = vadd.f32 %v3530, %v3547
  %v3549 = vpop.f32.mrf.mxu0
  %3550 = vdwg.mxu0
  %3551 = vmatpush.bf16.msra.mxu0 %v2527
  %3552 = vmatpush.bf16.msra.mxu0 %v2525
  %3553 = vmatpush.bf16.msra.mxu0 %v2523
  %3554 = vmatpush.bf16.msra.mxu0 %v2521
  %3555 = vmatpush.bf16.msra.mxu0 %v2519
  %3556 = vmatpush.bf16.msra.mxu0 %v2517
  %3557 = vmatpush.bf16.msra.mxu0 %v2515
  %3558 = vmatpush.bf16.msra.mxu0 %v2513
  %3559 = vmatmul.bf16.gmra.mxu0 %v744
  %v3560 = vpop.f32.mrf.mxu0
  %v3561 = vadd.f32 %v3543, %v3560
  %v3562 = vpop.f32.mrf.mxu0
  %v3563 = vadd.f32 %v3545, %v3562
  %3564 = vmatmul.bf16.gmra.mxu0 %v776
  %v3565 = vpop.f32.mrf.mxu0
  %v3566 = vadd.f32 %v3548, %v3565
  %v3567 = vpop.f32.mrf.mxu0
  %3568 = vdwg.mxu0
  %3569 = vmatpush.bf16.msra.mxu0 %v2543
  %3570 = vmatpush.bf16.msra.mxu0 %v2541
  %3571 = vmatpush.bf16.msra.mxu0 %v2539
  %3572 = vmatpush.bf16.msra.mxu0 %v2537
  %3573 = vmatpush.bf16.msra.mxu0 %v2535
  %3574 = vmatpush.bf16.msra.mxu0 %v2533
  %3575 = vmatpush.bf16.msra.mxu0 %v2531
  %3576 = vmatpush.bf16.msra.mxu0 %v2529
  %3577 = vmatmul.bf16.gmra.mxu0 %v745
  %v3578 = vpop.f32.mrf.mxu0
  %v3579 = vadd.f32 %v3561, %v3578
  %v3580 = vpop.f32.mrf.mxu0
  %v3581 = vadd.f32 %v3563, %v3580
  %3582 = vmatmul.bf16.gmra.mxu0 %v777
  %v3583 = vpop.f32.mrf.mxu0
  %v3584 = vadd.f32 %v3566, %v3583
  %v3585 = vpop.f32.mrf.mxu0
  %3586 = vdwg.mxu0
  %3587 = vmatpush.bf16.msra.mxu0 %v2559
  %3588 = vmatpush.bf16.msra.mxu0 %v2557
  %3589 = vmatpush.bf16.msra.mxu0 %v2555
  %3590 = vmatpush.bf16.msra.mxu0 %v2553
  %3591 = vmatpush.bf16.msra.mxu0 %v2551
  %3592 = vmatpush.bf16.msra.mxu0 %v2549
  %3593 = vmatpush.bf16.msra.mxu0 %v2547
  %3594 = vmatpush.bf16.msra.mxu0 %v2545
  %3595 = vmatmul.bf16.gmra.mxu0 %v746
  %v3596 = vpop.f32.mrf.mxu0
  %v3597 = vadd.f32 %v3579, %v3596
  %v3598 = vpop.f32.mrf.mxu0
  %v3599 = vadd.f32 %v3581, %v3598
  %3600 = vmatmul.bf16.gmra.mxu0 %v778
  %v3601 = vpop.f32.mrf.mxu0
  %v3602 = vadd.f32 %v3584, %v3601
  %v3603 = vpop.f32.mrf.mxu0
  %3604 = vdwg.mxu0
  %3605 = vmatpush.bf16.msra.mxu0 %v2575
  %3606 = vmatpush.bf16.msra.mxu0 %v2573
  %3607 = vmatpush.bf16.msra.mxu0 %v2571
  %3608 = vmatpush.bf16.msra.mxu0 %v2569
  %3609 = vmatpush.bf16.msra.mxu0 %v2567
  %3610 = vmatpush.bf16.msra.mxu0 %v2565
  %3611 = vmatpush.bf16.msra.mxu0 %v2563
  %3612 = vmatpush.bf16.msra.mxu0 %v2561
  %3613 = vmatmul.bf16.gmra.mxu0 %v747
  %v3614 = vpop.f32.mrf.mxu0
  %v3615 = vadd.f32 %v3597, %v3614
  %v3616 = vpop.f32.mrf.mxu0
  %v3617 = vadd.f32 %v3599, %v3616
  %3618 = vmatmul.bf16.gmra.mxu0 %v779
  %v3619 = vpop.f32.mrf.mxu0
  %v3620 = vadd.f32 %v3602, %v3619
  %v3621 = vpop.f32.mrf.mxu0
  %3622 = vdwg.mxu0
  %3623 = vmatpush.bf16.msra.mxu0 %v2591
  %3624 = vmatpush.bf16.msra.mxu0 %v2589
  %3625 = vmatpush.bf16.msra.mxu0 %v2587
  %3626 = vmatpush.bf16.msra.mxu0 %v2585
  %3627 = vmatpush.bf16.msra.mxu0 %v2583
  %3628 = vmatpush.bf16.msra.mxu0 %v2581
  %3629 = vmatpush.bf16.msra.mxu0 %v2579
  %3630 = vmatpush.bf16.msra.mxu0 %v2577
  %3631 = vmatmul.bf16.gmra.mxu0 %v748
  %v3632 = vpop.f32.mrf.mxu0
  %v3633 = vadd.f32 %v3615, %v3632
  %v3634 = vpop.f32.mrf.mxu0
  %v3635 = vadd.f32 %v3617, %v3634
  %3636 = vmatmul.bf16.gmra.mxu0 %v780
  %v3637 = vpop.f32.mrf.mxu0
  %v3638 = vadd.f32 %v3620, %v3637
  %v3639 = vpop.f32.mrf.mxu0
  %3640 = vdwg.mxu0
  %3641 = vmatpush.bf16.msra.mxu0 %v2607
  %3642 = vmatpush.bf16.msra.mxu0 %v2605
  %3643 = vmatpush.bf16.msra.mxu0 %v2603
  %3644 = vmatpush.bf16.msra.mxu0 %v2601
  %3645 = vmatpush.bf16.msra.mxu0 %v2599
  %3646 = vmatpush.bf16.msra.mxu0 %v2597
  %3647 = vmatpush.bf16.msra.mxu0 %v2595
  %3648 = vmatpush.bf16.msra.mxu0 %v2593
  %3649 = vmatmul.bf16.gmra.mxu0 %v749
  %v3650 = vpop.f32.mrf.mxu0
  %v3651 = vadd.f32 %v3633, %v3650
  %v3652 = vpop.f32.mrf.mxu0
  %v3653 = vadd.f32 %v3635, %v3652
  %3654 = vmatmul.bf16.gmra.mxu0 %v781
  %v3655 = vpop.f32.mrf.mxu0
  %v3656 = vadd.f32 %v3638, %v3655
  %v3657 = vpop.f32.mrf.mxu0
  %3658 = vdwg.mxu0
  %3659 = vmatpush.bf16.msra.mxu0 %v2623
  %3660 = vmatpush.bf16.msra.mxu0 %v2621
  %3661 = vmatpush.bf16.msra.mxu0 %v2619
  %3662 = vmatpush.bf16.msra.mxu0 %v2617
  %3663 = vmatpush.bf16.msra.mxu0 %v2615
  %3664 = vmatpush.bf16.msra.mxu0 %v2613
  %3665 = vmatpush.bf16.msra.mxu0 %v2611
  %3666 = vmatpush.bf16.msra.mxu0 %v2609
  %3667 = vmatmul.bf16.gmra.mxu0 %v750
  %v3668 = vpop.f32.mrf.mxu0
  %v3669 = vadd.f32 %v3651, %v3668
  %v3670 = vpop.f32.mrf.mxu0
  %v3671 = vadd.f32 %v3653, %v3670
  %3672 = vmatmul.bf16.gmra.mxu0 %v782
  %v3673 = vpop.f32.mrf.mxu0
  %v3674 = vadd.f32 %v3656, %v3673
  %v3675 = vpop.f32.mrf.mxu0
  %3676 = vdwg.mxu0
  %3677 = vmatpush.bf16.msra.mxu0 %v2639
  %3678 = vmatpush.bf16.msra.mxu0 %v2637
  %3679 = vmatpush.bf16.msra.mxu0 %v2635
  %3680 = vmatpush.bf16.msra.mxu0 %v2633
  %3681 = vmatpush.bf16.msra.mxu0 %v2631
  %3682 = vmatpush.bf16.msra.mxu0 %v2629
  %3683 = vmatpush.bf16.msra.mxu0 %v2627
  %3684 = vmatpush.bf16.msra.mxu0 %v2625
  %3685 = vmatmul.bf16.gmra.mxu0 %v751
  %v3686 = vpop.f32.mrf.mxu0
  %v3687 = vadd.f32 %v3669, %v3686
  %v3688 = vpop.f32.mrf.mxu0
  %v3689 = vadd.f32 %v3671, %v3688
  %3690 = vmatmul.bf16.gmra.mxu0 %v783
  %v3691 = vpop.f32.mrf.mxu0
  %v3692 = vadd.f32 %v3674, %v3691
  %v3693 = vpop.f32.mrf.mxu0
  %3694 = vdwg.mxu0
  %3695 = vmatpush.bf16.msra.mxu0 %v2655
  %3696 = vmatpush.bf16.msra.mxu0 %v2653
  %3697 = vmatpush.bf16.msra.mxu0 %v2651
  %3698 = vmatpush.bf16.msra.mxu0 %v2649
  %3699 = vmatpush.bf16.msra.mxu0 %v2647
  %3700 = vmatpush.bf16.msra.mxu0 %v2645
  %3701 = vmatpush.bf16.msra.mxu0 %v2643
  %3702 = vmatpush.bf16.msra.mxu0 %v2641
  %3703 = vmatmul.bf16.gmra.mxu0 %v752
  %v3704 = vpop.f32.mrf.mxu0
  %v3705 = vadd.f32 %v3687, %v3704
  %v3706 = vpop.f32.mrf.mxu0
  %v3707 = vadd.f32 %v3689, %v3706
  %3708 = vmatmul.bf16.gmra.mxu0 %v784
  %v3709 = vpop.f32.mrf.mxu0
  %v3710 = vadd.f32 %v3692, %v3709
  %v3711 = vpop.f32.mrf.mxu0
  %3712 = vdwg.mxu0
  %3713 = vmatpush.bf16.msra.mxu0 %v2671
  %3714 = vmatpush.bf16.msra.mxu0 %v2669
  %3715 = vmatpush.bf16.msra.mxu0 %v2667
  %3716 = vmatpush.bf16.msra.mxu0 %v2665
  %3717 = vmatpush.bf16.msra.mxu0 %v2663
  %3718 = vmatpush.bf16.msra.mxu0 %v2661
  %3719 = vmatpush.bf16.msra.mxu0 %v2659
  %3720 = vmatpush.bf16.msra.mxu0 %v2657
  %3721 = vmatmul.bf16.gmra.mxu0 %v753
  %v3722 = vpop.f32.mrf.mxu0
  %v3723 = vadd.f32 %v3705, %v3722
  %v3724 = vpop.f32.mrf.mxu0
  %v3725 = vadd.f32 %v3707, %v3724
  %3726 = vmatmul.bf16.gmra.mxu0 %v785
  %v3727 = vpop.f32.mrf.mxu0
  %v3728 = vadd.f32 %v3710, %v3727
  %v3729 = vpop.f32.mrf.mxu0
  %3730 = vdwg.mxu0
  %3731 = vmatpush.bf16.msra.mxu0 %v2687
  %3732 = vmatpush.bf16.msra.mxu0 %v2685
  %3733 = vmatpush.bf16.msra.mxu0 %v2683
  %3734 = vmatpush.bf16.msra.mxu0 %v2681
  %3735 = vmatpush.bf16.msra.mxu0 %v2679
  %3736 = vmatpush.bf16.msra.mxu0 %v2677
  %3737 = vmatpush.bf16.msra.mxu0 %v2675
  %3738 = vmatpush.bf16.msra.mxu0 %v2673
  %3739 = vmatmul.bf16.gmra.mxu0 %v754
  %v3740 = vpop.f32.mrf.mxu0
  %v3741 = vadd.f32 %v3723, %v3740
  %v3742 = vpop.f32.mrf.mxu0
  %v3743 = vadd.f32 %v3725, %v3742
  %3744 = vmatmul.bf16.gmra.mxu0 %v786
  %v3745 = vpop.f32.mrf.mxu0
  %v3746 = vadd.f32 %v3728, %v3745
  %v3747 = vpop.f32.mrf.mxu0
  %3748 = vdwg.mxu0
  %3749 = vmatpush.bf16.msra.mxu0 %v2703
  %3750 = vmatpush.bf16.msra.mxu0 %v2701
  %3751 = vmatpush.bf16.msra.mxu0 %v2699
  %3752 = vmatpush.bf16.msra.mxu0 %v2697
  %3753 = vmatpush.bf16.msra.mxu0 %v2695
  %3754 = vmatpush.bf16.msra.mxu0 %v2693
  %3755 = vmatpush.bf16.msra.mxu0 %v2691
  %3756 = vmatpush.bf16.msra.mxu0 %v2689
  %3757 = vmatmul.bf16.gmra.mxu0 %v755
  %v3758 = vpop.f32.mrf.mxu0
  %v3759 = vadd.f32 %v3741, %v3758
  %v3760 = vpop.f32.mrf.mxu0
  %v3761 = vadd.f32 %v3743, %v3760
  %3762 = vmatmul.bf16.gmra.mxu0 %v787
  %v3763 = vpop.f32.mrf.mxu0
  %v3764 = vadd.f32 %v3746, %v3763
  %v3765 = vpop.f32.mrf.mxu0
  %3766 = vdwg.mxu0
  %3767 = vmatpush.bf16.msra.mxu0 %v2719
  %3768 = vmatpush.bf16.msra.mxu0 %v2717
  %3769 = vmatpush.bf16.msra.mxu0 %v2715
  %3770 = vmatpush.bf16.msra.mxu0 %v2713
  %3771 = vmatpush.bf16.msra.mxu0 %v2711
  %3772 = vmatpush.bf16.msra.mxu0 %v2709
  %3773 = vmatpush.bf16.msra.mxu0 %v2707
  %3774 = vmatpush.bf16.msra.mxu0 %v2705
  %3775 = vmatmul.bf16.gmra.mxu0 %v756
  %v3776 = vpop.f32.mrf.mxu0
  %v3777 = vadd.f32 %v3759, %v3776
  %v3778 = vpop.f32.mrf.mxu0
  %v3779 = vadd.f32 %v3761, %v3778
  %3780 = vmatmul.bf16.gmra.mxu0 %v788
  %v3781 = vpop.f32.mrf.mxu0
  %v3782 = vadd.f32 %v3764, %v3781
  %v3783 = vpop.f32.mrf.mxu0
  %3784 = vdwg.mxu0
  %3785 = vmatpush.bf16.msra.mxu0 %v2735
  %3786 = vmatpush.bf16.msra.mxu0 %v2733
  %3787 = vmatpush.bf16.msra.mxu0 %v2731
  %3788 = vmatpush.bf16.msra.mxu0 %v2729
  %3789 = vmatpush.bf16.msra.mxu0 %v2727
  %3790 = vmatpush.bf16.msra.mxu0 %v2725
  %3791 = vmatpush.bf16.msra.mxu0 %v2723
  %3792 = vmatpush.bf16.msra.mxu0 %v2721
  %3793 = vmatmul.bf16.gmra.mxu0 %v757
  %v3794 = vpop.f32.mrf.mxu0
  %v3795 = vadd.f32 %v3777, %v3794
  %v3796 = vpop.f32.mrf.mxu0
  %v3797 = vadd.f32 %v3779, %v3796
  %3798 = vmatmul.bf16.gmra.mxu0 %v789
  %v3799 = vpop.f32.mrf.mxu0
  %v3800 = vadd.f32 %v3782, %v3799
  %v3801 = vpop.f32.mrf.mxu0
  %3802 = vdwg.mxu0
  %3803 = vmatpush.bf16.msra.mxu0 %v2751
  %3804 = vmatpush.bf16.msra.mxu0 %v2749
  %3805 = vmatpush.bf16.msra.mxu0 %v2747
  %3806 = vmatpush.bf16.msra.mxu0 %v2745
  %3807 = vmatpush.bf16.msra.mxu0 %v2743
  %3808 = vmatpush.bf16.msra.mxu0 %v2741
  %3809 = vmatpush.bf16.msra.mxu0 %v2739
  %3810 = vmatpush.bf16.msra.mxu0 %v2737
  %3811 = vmatmul.bf16.gmra.mxu0 %v758
  %v3812 = vpop.f32.mrf.mxu0
  %v3813 = vadd.f32 %v3795, %v3812
  %v3814 = vpop.f32.mrf.mxu0
  %v3815 = vadd.f32 %v3797, %v3814
  %3816 = vmatmul.bf16.gmra.mxu0 %v790
  %v3817 = vpop.f32.mrf.mxu0
  %v3818 = vadd.f32 %v3800, %v3817
  %v3819 = vpop.f32.mrf.mxu0
  %3820 = vdwg.mxu0
  %3821 = vmatpush.bf16.msra.mxu0 %v2767
  %3822 = vmatpush.bf16.msra.mxu0 %v2765
  %3823 = vmatpush.bf16.msra.mxu0 %v2763
  %3824 = vmatpush.bf16.msra.mxu0 %v2761
  %3825 = vmatpush.bf16.msra.mxu0 %v2759
  %3826 = vmatpush.bf16.msra.mxu0 %v2757
  %3827 = vmatpush.bf16.msra.mxu0 %v2755
  %3828 = vmatpush.bf16.msra.mxu0 %v2753
  %3829 = vmatmul.bf16.gmra.mxu0 %v759
  %v3830 = vpop.f32.mrf.mxu0
  %v3831 = vadd.f32 %v3813, %v3830
  %v3832 = vpop.f32.mrf.mxu0
  %v3833 = vadd.f32 %v3815, %v3832
  %3834 = vmatmul.bf16.gmra.mxu0 %v791
  %v3835 = vpop.f32.mrf.mxu0
  %v3836 = vadd.f32 %v3818, %v3835
  %v3837 = vpop.f32.mrf.mxu0
  %3838 = vdwg.mxu0
  %3839 = vmatpush.bf16.msra.mxu0 %v2783
  %3840 = vmatpush.bf16.msra.mxu0 %v2781
  %3841 = vmatpush.bf16.msra.mxu0 %v2779
  %3842 = vmatpush.bf16.msra.mxu0 %v2777
  %3843 = vmatpush.bf16.msra.mxu0 %v2775
  %3844 = vmatpush.bf16.msra.mxu0 %v2773
  %3845 = vmatpush.bf16.msra.mxu0 %v2771
  %3846 = vmatpush.bf16.msra.mxu0 %v2769
  %3847 = vmatmul.bf16.gmra.mxu0 %v760
  %v3848 = vpop.f32.mrf.mxu0
  %v3849 = vadd.f32 %v3831, %v3848
  %v3850 = vpop.f32.mrf.mxu0
  %v3851 = vadd.f32 %v3833, %v3850
  %3852 = vmatmul.bf16.gmra.mxu0 %v792
  %v3853 = vpop.f32.mrf.mxu0
  %v3854 = vadd.f32 %v3836, %v3853
  %v3855 = vpop.f32.mrf.mxu0
  %3856 = vdwg.mxu0
  %3857 = vmatpush.bf16.msra.mxu0 %v2799
  %3858 = vmatpush.bf16.msra.mxu0 %v2797
  %3859 = vmatpush.bf16.msra.mxu0 %v2795
  %3860 = vmatpush.bf16.msra.mxu0 %v2793
  %3861 = vmatpush.bf16.msra.mxu0 %v2791
  %3862 = vmatpush.bf16.msra.mxu0 %v2789
  %3863 = vmatpush.bf16.msra.mxu0 %v2787
  %3864 = vmatpush.bf16.msra.mxu0 %v2785
  %3865 = vmatmul.bf16.gmra.mxu0 %v761
  %v3866 = vpop.f32.mrf.mxu0
  %v3867 = vadd.f32 %v3849, %v3866
  %v3868 = vpop.f32.mrf.mxu0
  %v3869 = vadd.f32 %v3851, %v3868
  %3870 = vmatmul.bf16.gmra.mxu0 %v793
  %v3871 = vpop.f32.mrf.mxu0
  %v3872 = vadd.f32 %v3854, %v3871
  %v3873 = vpop.f32.mrf.mxu0
  %3874 = vdwg.mxu0
  %3875 = vmatpush.bf16.msra.mxu0 %v2815
  %3876 = vmatpush.bf16.msra.mxu0 %v2813
  %3877 = vmatpush.bf16.msra.mxu0 %v2811
  %3878 = vmatpush.bf16.msra.mxu0 %v2809
  %3879 = vmatpush.bf16.msra.mxu0 %v2807
  %3880 = vmatpush.bf16.msra.mxu0 %v2805
  %3881 = vmatpush.bf16.msra.mxu0 %v2803
  %3882 = vmatpush.bf16.msra.mxu0 %v2801
  %3883 = vmatmul.bf16.gmra.mxu0 %v762
  %v3884 = vpop.f32.mrf.mxu0
  %v3885 = vadd.f32 %v3867, %v3884
  %v3886 = vpop.f32.mrf.mxu0
  %v3887 = vadd.f32 %v3869, %v3886
  %3888 = vmatmul.bf16.gmra.mxu0 %v794
  %v3889 = vpop.f32.mrf.mxu0
  %v3890 = vadd.f32 %v3872, %v3889
  %v3891 = vpop.f32.mrf.mxu0
  %3892 = vdwg.mxu0
  %3893 = vmatpush.bf16.msra.mxu0 %v2831
  %3894 = vmatpush.bf16.msra.mxu0 %v2829
  %3895 = vmatpush.bf16.msra.mxu0 %v2827
  %3896 = vmatpush.bf16.msra.mxu0 %v2825
  %3897 = vmatpush.bf16.msra.mxu0 %v2823
  %3898 = vmatpush.bf16.msra.mxu0 %v2821
  %3899 = vmatpush.bf16.msra.mxu0 %v2819
  %3900 = vmatpush.bf16.msra.mxu0 %v2817
  %3901 = vmatmul.bf16.gmra.mxu0 %v763
  %v3902 = vpop.f32.mrf.mxu0
  %v3903 = vadd.f32 %v3885, %v3902
  %v3904 = vpop.f32.mrf.mxu0
  %v3905 = vadd.f32 %v3887, %v3904
  %3906 = vmatmul.bf16.gmra.mxu0 %v795
  %v3907 = vpop.f32.mrf.mxu0
  %v3908 = vadd.f32 %v3890, %v3907
  %v3909 = vpop.f32.mrf.mxu0
  %3910 = vdwg.mxu0
  %3911 = vmatpush.bf16.msra.mxu0 %v2847
  %3912 = vmatpush.bf16.msra.mxu0 %v2845
  %3913 = vmatpush.bf16.msra.mxu0 %v2843
  %3914 = vmatpush.bf16.msra.mxu0 %v2841
  %3915 = vmatpush.bf16.msra.mxu0 %v2839
  %3916 = vmatpush.bf16.msra.mxu0 %v2837
  %3917 = vmatpush.bf16.msra.mxu0 %v2835
  %3918 = vmatpush.bf16.msra.mxu0 %v2833
  %3919 = vmatmul.bf16.gmra.mxu0 %v764
  %v3920 = vpop.f32.mrf.mxu0
  %v3921 = vadd.f32 %v3903, %v3920
  %v3922 = vpop.f32.mrf.mxu0
  %v3923 = vadd.f32 %v3905, %v3922
  %3924 = vmatmul.bf16.gmra.mxu0 %v796
  %v3925 = vpop.f32.mrf.mxu0
  %v3926 = vadd.f32 %v3908, %v3925
  %v3927 = vpop.f32.mrf.mxu0
  %3928 = vdwg.mxu0
  %3929 = vmatpush.bf16.msra.mxu0 %v2863
  %3930 = vmatpush.bf16.msra.mxu0 %v2861
  %3931 = vmatpush.bf16.msra.mxu0 %v2859
  %3932 = vmatpush.bf16.msra.mxu0 %v2857
  %3933 = vmatpush.bf16.msra.mxu0 %v2855
  %3934 = vmatpush.bf16.msra.mxu0 %v2853
  %3935 = vmatpush.bf16.msra.mxu0 %v2851
  %3936 = vmatpush.bf16.msra.mxu0 %v2849
  %3937 = vmatmul.bf16.gmra.mxu0 %v765
  %v3938 = vpop.f32.mrf.mxu0
  %v3939 = vadd.f32 %v3921, %v3938
  %v3940 = vpop.f32.mrf.mxu0
  %v3941 = vadd.f32 %v3923, %v3940
  %3942 = vmatmul.bf16.gmra.mxu0 %v797
  %v3943 = vpop.f32.mrf.mxu0
  %v3944 = vadd.f32 %v3926, %v3943
  %v3945 = vpop.f32.mrf.mxu0
  %3946 = vdwg.mxu0
  %3947 = vmatpush.bf16.msra.mxu0 %v2879
  %3948 = vmatpush.bf16.msra.mxu0 %v2877
  %3949 = vmatpush.bf16.msra.mxu0 %v2875
  %3950 = vmatpush.bf16.msra.mxu0 %v2873
  %3951 = vmatpush.bf16.msra.mxu0 %v2871
  %3952 = vmatpush.bf16.msra.mxu0 %v2869
  %3953 = vmatpush.bf16.msra.mxu0 %v2867
  %3954 = vmatpush.bf16.msra.mxu0 %v2865
  %3955 = vmatmul.bf16.gmra.mxu0 %v766
  %v3956 = vpop.f32.mrf.mxu0
  %v3957 = vadd.f32 %v3939, %v3956
  %v3958 = vpop.f32.mrf.mxu0
  %v3959 = vadd.f32 %v3941, %v3958
  %3960 = vmatmul.bf16.gmra.mxu0 %v798
  %v3961 = vpop.f32.mrf.mxu0
  %v3962 = vadd.f32 %v3944, %v3961
  %v3963 = vpop.f32.mrf.mxu0
  %3964 = vdwg.mxu0
  %3965 = vmatpush.bf16.msra.mxu0 %v2895
  %3966 = vmatpush.bf16.msra.mxu0 %v2893
  %3967 = vmatpush.bf16.msra.mxu0 %v2891
  %3968 = vmatpush.bf16.msra.mxu0 %v2889
  %3969 = vmatpush.bf16.msra.mxu0 %v2887
  %3970 = vmatpush.bf16.msra.mxu0 %v2885
  %3971 = vmatpush.bf16.msra.mxu0 %v2883
  %3972 = vmatpush.bf16.msra.mxu0 %v2881
  %3973 = vmatmul.bf16.gmra.mxu0 %v767
  %v3974 = vpop.f32.mrf.mxu0
  %v3975 = vadd.f32 %v3957, %v3974
  %v3976 = vpop.f32.mrf.mxu0
  %v3977 = vadd.f32 %v3959, %v3976
  %3978 = vmatmul.bf16.gmra.mxu0 %v799
  %v3979 = vpop.f32.mrf.mxu0
  %v3980 = vadd.f32 %v3962, %v3979
  %v3981 = vpop.f32.mrf.mxu0
  %3982 = vdwg.mxu0
  %3983 = vmatpush.bf16.msra.mxu0 %v2911
  %3984 = vmatpush.bf16.msra.mxu0 %v2909
  %3985 = vmatpush.bf16.msra.mxu0 %v2907
  %3986 = vmatpush.bf16.msra.mxu0 %v2905
  %3987 = vmatpush.bf16.msra.mxu0 %v2903
  %3988 = vmatpush.bf16.msra.mxu0 %v2901
  %3989 = vmatpush.bf16.msra.mxu0 %v2899
  %3990 = vmatpush.bf16.msra.mxu0 %v2897
  %3991 = vmatmul.bf16.gmra.mxu0 %v768
  %v3992 = vpop.f32.mrf.mxu0
  %v3993 = vadd.f32 %v3975, %v3992
  %v3994 = vpop.f32.mrf.mxu0
  %v3995 = vadd.f32 %v3977, %v3994
  %3996 = vmatmul.bf16.gmra.mxu0 %v800
  %v3997 = vpop.f32.mrf.mxu0
  %v3998 = vadd.f32 %v3980, %v3997
  %v3999 = vpop.f32.mrf.mxu0
  %4000 = vdwg.mxu0
  %4001 = vmatpush.bf16.msra.mxu0 %v2416
  %4002 = vmatpush.bf16.msra.mxu0 %v2414
  %4003 = vmatpush.bf16.msra.mxu0 %v2412
  %4004 = vmatpush.bf16.msra.mxu0 %v2410
  %4005 = vmatpush.bf16.msra.mxu0 %v2408
  %4006 = vmatpush.bf16.msra.mxu0 %v2406
  %4007 = vmatpush.bf16.msra.mxu0 %v2404
  %4008 = vmatpush.bf16.msra.mxu0 %v2402
  %4009 = vmatmul.bf16.gmra.mxu0 %v737
  %v4010 = vpop.f32.mrf.mxu0
  %v4011 = vadd.f32 %v590, %v4010
  %v4012 = vpop.f32.mrf.mxu0
  %v4013 = vadd.f32 %v590, %v4012
  %4014 = vmatmul.bf16.gmra.mxu0 %v769
  %v4015 = vpop.f32.mrf.mxu0
  %v4016 = vadd.f32 %v590, %v4015
  %v4017 = vpop.f32.mrf.mxu0
  %4018 = vdwg.mxu0
  %4019 = vmatpush.bf16.msra.mxu0 %v2432
  %4020 = vmatpush.bf16.msra.mxu0 %v2430
  %4021 = vmatpush.bf16.msra.mxu0 %v2428
  %4022 = vmatpush.bf16.msra.mxu0 %v2426
  %4023 = vmatpush.bf16.msra.mxu0 %v2424
  %4024 = vmatpush.bf16.msra.mxu0 %v2422
  %4025 = vmatpush.bf16.msra.mxu0 %v2420
  %4026 = vmatpush.bf16.msra.mxu0 %v2418
  %4027 = vmatmul.bf16.gmra.mxu0 %v738
  %v4028 = vpop.f32.mrf.mxu0
  %v4029 = vadd.f32 %v4011, %v4028
  %v4030 = vpop.f32.mrf.mxu0
  %v4031 = vadd.f32 %v4013, %v4030
  %4032 = vmatmul.bf16.gmra.mxu0 %v770
  %v4033 = vpop.f32.mrf.mxu0
  %v4034 = vadd.f32 %v4016, %v4033
  %v4035 = vpop.f32.mrf.mxu0
  %4036 = vdwg.mxu0
  %4037 = vmatpush.bf16.msra.mxu0 %v2448
  %4038 = vmatpush.bf16.msra.mxu0 %v2446
  %4039 = vmatpush.bf16.msra.mxu0 %v2444
  %4040 = vmatpush.bf16.msra.mxu0 %v2442
  %4041 = vmatpush.bf16.msra.mxu0 %v2440
  %4042 = vmatpush.bf16.msra.mxu0 %v2438
  %4043 = vmatpush.bf16.msra.mxu0 %v2436
  %4044 = vmatpush.bf16.msra.mxu0 %v2434
  %4045 = vmatmul.bf16.gmra.mxu0 %v739
  %v4046 = vpop.f32.mrf.mxu0
  %v4047 = vadd.f32 %v4029, %v4046
  %v4048 = vpop.f32.mrf.mxu0
  %v4049 = vadd.f32 %v4031, %v4048
  %4050 = vmatmul.bf16.gmra.mxu0 %v771
  %v4051 = vpop.f32.mrf.mxu0
  %v4052 = vadd.f32 %v4034, %v4051
  %v4053 = vpop.f32.mrf.mxu0
  %4054 = vdwg.mxu0
  %4055 = vmatpush.bf16.msra.mxu0 %v2464
  %4056 = vmatpush.bf16.msra.mxu0 %v2462
  %4057 = vmatpush.bf16.msra.mxu0 %v2460
  %4058 = vmatpush.bf16.msra.mxu0 %v2458
  %4059 = vmatpush.bf16.msra.mxu0 %v2456
  %4060 = vmatpush.bf16.msra.mxu0 %v2454
  %4061 = vmatpush.bf16.msra.mxu0 %v2452
  %4062 = vmatpush.bf16.msra.mxu0 %v2450
  %4063 = vmatmul.bf16.gmra.mxu0 %v740
  %v4064 = vpop.f32.mrf.mxu0
  %v4065 = vadd.f32 %v4047, %v4064
  %v4066 = vpop.f32.mrf.mxu0
  %v4067 = vadd.f32 %v4049, %v4066
  %4068 = vmatmul.bf16.gmra.mxu0 %v772
  %v4069 = vpop.f32.mrf.mxu0
  %v4070 = vadd.f32 %v4052, %v4069
  %v4071 = vpop.f32.mrf.mxu0
  %4072 = vdwg.mxu0
  %4073 = vmatpush.bf16.msra.mxu0 %v2480
  %4074 = vmatpush.bf16.msra.mxu0 %v2478
  %4075 = vmatpush.bf16.msra.mxu0 %v2476
  %4076 = vmatpush.bf16.msra.mxu0 %v2474
  %4077 = vmatpush.bf16.msra.mxu0 %v2472
  %4078 = vmatpush.bf16.msra.mxu0 %v2470
  %4079 = vmatpush.bf16.msra.mxu0 %v2468
  %4080 = vmatpush.bf16.msra.mxu0 %v2466
  %4081 = vmatmul.bf16.gmra.mxu0 %v741
  %v4082 = vpop.f32.mrf.mxu0
  %v4083 = vadd.f32 %v4065, %v4082
  %v4084 = vpop.f32.mrf.mxu0
  %v4085 = vadd.f32 %v4067, %v4084
  %4086 = vmatmul.bf16.gmra.mxu0 %v773
  %v4087 = vpop.f32.mrf.mxu0
  %v4088 = vadd.f32 %v4070, %v4087
  %v4089 = vpop.f32.mrf.mxu0
  %4090 = vdwg.mxu0
  %4091 = vmatpush.bf16.msra.mxu0 %v2496
  %4092 = vmatpush.bf16.msra.mxu0 %v2494
  %4093 = vmatpush.bf16.msra.mxu0 %v2492
  %4094 = vmatpush.bf16.msra.mxu0 %v2490
  %4095 = vmatpush.bf16.msra.mxu0 %v2488
  %4096 = vmatpush.bf16.msra.mxu0 %v2486
  %4097 = vmatpush.bf16.msra.mxu0 %v2484
  %4098 = vmatpush.bf16.msra.mxu0 %v2482
  %4099 = vmatmul.bf16.gmra.mxu0 %v742
  %v4100 = vpop.f32.mrf.mxu0
  %v4101 = vadd.f32 %v4083, %v4100
  %v4102 = vpop.f32.mrf.mxu0
  %v4103 = vadd.f32 %v4085, %v4102
  %4104 = vmatmul.bf16.gmra.mxu0 %v774
  %v4105 = vpop.f32.mrf.mxu0
  %v4106 = vadd.f32 %v4088, %v4105
  %v4107 = vpop.f32.mrf.mxu0
  %4108 = vdwg.mxu0
  %4109 = vmatpush.bf16.msra.mxu0 %v2512
  %4110 = vmatpush.bf16.msra.mxu0 %v2510
  %4111 = vmatpush.bf16.msra.mxu0 %v2508
  %4112 = vmatpush.bf16.msra.mxu0 %v2506
  %4113 = vmatpush.bf16.msra.mxu0 %v2504
  %4114 = vmatpush.bf16.msra.mxu0 %v2502
  %4115 = vmatpush.bf16.msra.mxu0 %v2500
  %4116 = vmatpush.bf16.msra.mxu0 %v2498
  %4117 = vmatmul.bf16.gmra.mxu0 %v743
  %v4118 = vpop.f32.mrf.mxu0
  %v4119 = vadd.f32 %v4101, %v4118
  %v4120 = vpop.f32.mrf.mxu0
  %v4121 = vadd.f32 %v4103, %v4120
  %4122 = vmatmul.bf16.gmra.mxu0 %v775
  %v4123 = vpop.f32.mrf.mxu0
  %v4124 = vadd.f32 %v4106, %v4123
  %v4125 = vpop.f32.mrf.mxu0
  %4126 = vdwg.mxu0
  %4127 = vmatpush.bf16.msra.mxu0 %v2528
  %4128 = vmatpush.bf16.msra.mxu0 %v2526
  %4129 = vmatpush.bf16.msra.mxu0 %v2524
  %4130 = vmatpush.bf16.msra.mxu0 %v2522
  %4131 = vmatpush.bf16.msra.mxu0 %v2520
  %4132 = vmatpush.bf16.msra.mxu0 %v2518
  %4133 = vmatpush.bf16.msra.mxu0 %v2516
  %4134 = vmatpush.bf16.msra.mxu0 %v2514
  %4135 = vmatmul.bf16.gmra.mxu0 %v744
  %v4136 = vpop.f32.mrf.mxu0
  %v4137 = vadd.f32 %v4119, %v4136
  %v4138 = vpop.f32.mrf.mxu0
  %v4139 = vadd.f32 %v4121, %v4138
  %4140 = vmatmul.bf16.gmra.mxu0 %v776
  %v4141 = vpop.f32.mrf.mxu0
  %v4142 = vadd.f32 %v4124, %v4141
  %v4143 = vpop.f32.mrf.mxu0
  %4144 = vdwg.mxu0
  %4145 = vmatpush.bf16.msra.mxu0 %v2544
  %4146 = vmatpush.bf16.msra.mxu0 %v2542
  %4147 = vmatpush.bf16.msra.mxu0 %v2540
  %4148 = vmatpush.bf16.msra.mxu0 %v2538
  %4149 = vmatpush.bf16.msra.mxu0 %v2536
  %4150 = vmatpush.bf16.msra.mxu0 %v2534
  %4151 = vmatpush.bf16.msra.mxu0 %v2532
  %4152 = vmatpush.bf16.msra.mxu0 %v2530
  %4153 = vmatmul.bf16.gmra.mxu0 %v745
  %v4154 = vpop.f32.mrf.mxu0
  %v4155 = vadd.f32 %v4137, %v4154
  %v4156 = vpop.f32.mrf.mxu0
  %v4157 = vadd.f32 %v4139, %v4156
  %4158 = vmatmul.bf16.gmra.mxu0 %v777
  %v4159 = vpop.f32.mrf.mxu0
  %v4160 = vadd.f32 %v4142, %v4159
  %v4161 = vpop.f32.mrf.mxu0
  %4162 = vdwg.mxu0
  %4163 = vmatpush.bf16.msra.mxu0 %v2560
  %4164 = vmatpush.bf16.msra.mxu0 %v2558
  %4165 = vmatpush.bf16.msra.mxu0 %v2556
  %4166 = vmatpush.bf16.msra.mxu0 %v2554
  %4167 = vmatpush.bf16.msra.mxu0 %v2552
  %4168 = vmatpush.bf16.msra.mxu0 %v2550
  %4169 = vmatpush.bf16.msra.mxu0 %v2548
  %4170 = vmatpush.bf16.msra.mxu0 %v2546
  %4171 = vmatmul.bf16.gmra.mxu0 %v746
  %v4172 = vpop.f32.mrf.mxu0
  %v4173 = vadd.f32 %v4155, %v4172
  %v4174 = vpop.f32.mrf.mxu0
  %v4175 = vadd.f32 %v4157, %v4174
  %4176 = vmatmul.bf16.gmra.mxu0 %v778
  %v4177 = vpop.f32.mrf.mxu0
  %v4178 = vadd.f32 %v4160, %v4177
  %v4179 = vpop.f32.mrf.mxu0
  %4180 = vdwg.mxu0
  %4181 = vmatpush.bf16.msra.mxu0 %v2576
  %4182 = vmatpush.bf16.msra.mxu0 %v2574
  %4183 = vmatpush.bf16.msra.mxu0 %v2572
  %4184 = vmatpush.bf16.msra.mxu0 %v2570
  %4185 = vmatpush.bf16.msra.mxu0 %v2568
  %4186 = vmatpush.bf16.msra.mxu0 %v2566
  %4187 = vmatpush.bf16.msra.mxu0 %v2564
  %4188 = vmatpush.bf16.msra.mxu0 %v2562
  %4189 = vmatmul.bf16.gmra.mxu0 %v747
  %v4190 = vpop.f32.mrf.mxu0
  %v4191 = vadd.f32 %v4173, %v4190
  %v4192 = vpop.f32.mrf.mxu0
  %v4193 = vadd.f32 %v4175, %v4192
  %4194 = vmatmul.bf16.gmra.mxu0 %v779
  %v4195 = vpop.f32.mrf.mxu0
  %v4196 = vadd.f32 %v4178, %v4195
  %v4197 = vpop.f32.mrf.mxu0
  %4198 = vdwg.mxu0
  %4199 = vmatpush.bf16.msra.mxu0 %v2592
  %4200 = vmatpush.bf16.msra.mxu0 %v2590
  %4201 = vmatpush.bf16.msra.mxu0 %v2588
  %4202 = vmatpush.bf16.msra.mxu0 %v2586
  %4203 = vmatpush.bf16.msra.mxu0 %v2584
  %4204 = vmatpush.bf16.msra.mxu0 %v2582
  %4205 = vmatpush.bf16.msra.mxu0 %v2580
  %4206 = vmatpush.bf16.msra.mxu0 %v2578
  %4207 = vmatmul.bf16.gmra.mxu0 %v748
  %v4208 = vpop.f32.mrf.mxu0
  %v4209 = vadd.f32 %v4191, %v4208
  %v4210 = vpop.f32.mrf.mxu0
  %v4211 = vadd.f32 %v4193, %v4210
  %4212 = vmatmul.bf16.gmra.mxu0 %v780
  %v4213 = vpop.f32.mrf.mxu0
  %v4214 = vadd.f32 %v4196, %v4213
  %v4215 = vpop.f32.mrf.mxu0
  %4216 = vdwg.mxu0
  %4217 = vmatpush.bf16.msra.mxu0 %v2608
  %4218 = vmatpush.bf16.msra.mxu0 %v2606
  %4219 = vmatpush.bf16.msra.mxu0 %v2604
  %4220 = vmatpush.bf16.msra.mxu0 %v2602
  %4221 = vmatpush.bf16.msra.mxu0 %v2600
  %4222 = vmatpush.bf16.msra.mxu0 %v2598
  %4223 = vmatpush.bf16.msra.mxu0 %v2596
  %4224 = vmatpush.bf16.msra.mxu0 %v2594
  %4225 = vmatmul.bf16.gmra.mxu0 %v749
  %v4226 = vpop.f32.mrf.mxu0
  %v4227 = vadd.f32 %v4209, %v4226
  %v4228 = vpop.f32.mrf.mxu0
  %v4229 = vadd.f32 %v4211, %v4228
  %4230 = vmatmul.bf16.gmra.mxu0 %v781
  %v4231 = vpop.f32.mrf.mxu0
  %v4232 = vadd.f32 %v4214, %v4231
  %v4233 = vpop.f32.mrf.mxu0
  %4234 = vdwg.mxu0
  %4235 = vmatpush.bf16.msra.mxu0 %v2624
  %4236 = vmatpush.bf16.msra.mxu0 %v2622
  %4237 = vmatpush.bf16.msra.mxu0 %v2620
  %4238 = vmatpush.bf16.msra.mxu0 %v2618
  %4239 = vmatpush.bf16.msra.mxu0 %v2616
  %4240 = vmatpush.bf16.msra.mxu0 %v2614
  %4241 = vmatpush.bf16.msra.mxu0 %v2612
  %4242 = vmatpush.bf16.msra.mxu0 %v2610
  %4243 = vmatmul.bf16.gmra.mxu0 %v750
  %v4244 = vpop.f32.mrf.mxu0
  %v4245 = vadd.f32 %v4227, %v4244
  %v4246 = vpop.f32.mrf.mxu0
  %v4247 = vadd.f32 %v4229, %v4246
  %4248 = vmatmul.bf16.gmra.mxu0 %v782
  %v4249 = vpop.f32.mrf.mxu0
  %v4250 = vadd.f32 %v4232, %v4249
  %v4251 = vpop.f32.mrf.mxu0
  %4252 = vdwg.mxu0
  %4253 = vmatpush.bf16.msra.mxu0 %v2640
  %4254 = vmatpush.bf16.msra.mxu0 %v2638
  %4255 = vmatpush.bf16.msra.mxu0 %v2636
  %4256 = vmatpush.bf16.msra.mxu0 %v2634
  %4257 = vmatpush.bf16.msra.mxu0 %v2632
  %4258 = vmatpush.bf16.msra.mxu0 %v2630
  %4259 = vmatpush.bf16.msra.mxu0 %v2628
  %4260 = vmatpush.bf16.msra.mxu0 %v2626
  %4261 = vmatmul.bf16.gmra.mxu0 %v751
  %v4262 = vpop.f32.mrf.mxu0
  %v4263 = vadd.f32 %v4245, %v4262
  %v4264 = vpop.f32.mrf.mxu0
  %v4265 = vadd.f32 %v4247, %v4264
  %4266 = vmatmul.bf16.gmra.mxu0 %v783
  %v4267 = vpop.f32.mrf.mxu0
  %v4268 = vadd.f32 %v4250, %v4267
  %v4269 = vpop.f32.mrf.mxu0
  %4270 = vdwg.mxu0
  %4271 = vmatpush.bf16.msra.mxu0 %v2656
  %4272 = vmatpush.bf16.msra.mxu0 %v2654
  %4273 = vmatpush.bf16.msra.mxu0 %v2652
  %4274 = vmatpush.bf16.msra.mxu0 %v2650
  %4275 = vmatpush.bf16.msra.mxu0 %v2648
  %4276 = vmatpush.bf16.msra.mxu0 %v2646
  %4277 = vmatpush.bf16.msra.mxu0 %v2644
  %4278 = vmatpush.bf16.msra.mxu0 %v2642
  %4279 = vmatmul.bf16.gmra.mxu0 %v752
  %v4280 = vpop.f32.mrf.mxu0
  %v4281 = vadd.f32 %v4263, %v4280
  %v4282 = vpop.f32.mrf.mxu0
  %v4283 = vadd.f32 %v4265, %v4282
  %4284 = vmatmul.bf16.gmra.mxu0 %v784
  %v4285 = vpop.f32.mrf.mxu0
  %v4286 = vadd.f32 %v4268, %v4285
  %v4287 = vpop.f32.mrf.mxu0
  %4288 = vdwg.mxu0
  %4289 = vmatpush.bf16.msra.mxu0 %v2672
  %4290 = vmatpush.bf16.msra.mxu0 %v2670
  %4291 = vmatpush.bf16.msra.mxu0 %v2668
  %4292 = vmatpush.bf16.msra.mxu0 %v2666
  %4293 = vmatpush.bf16.msra.mxu0 %v2664
  %4294 = vmatpush.bf16.msra.mxu0 %v2662
  %4295 = vmatpush.bf16.msra.mxu0 %v2660
  %4296 = vmatpush.bf16.msra.mxu0 %v2658
  %4297 = vmatmul.bf16.gmra.mxu0 %v753
  %v4298 = vpop.f32.mrf.mxu0
  %v4299 = vadd.f32 %v4281, %v4298
  %v4300 = vpop.f32.mrf.mxu0
  %v4301 = vadd.f32 %v4283, %v4300
  %4302 = vmatmul.bf16.gmra.mxu0 %v785
  %v4303 = vpop.f32.mrf.mxu0
  %v4304 = vadd.f32 %v4286, %v4303
  %v4305 = vpop.f32.mrf.mxu0
  %4306 = vdwg.mxu0
  %4307 = vmatpush.bf16.msra.mxu0 %v2688
  %4308 = vmatpush.bf16.msra.mxu0 %v2686
  %4309 = vmatpush.bf16.msra.mxu0 %v2684
  %4310 = vmatpush.bf16.msra.mxu0 %v2682
  %4311 = vmatpush.bf16.msra.mxu0 %v2680
  %4312 = vmatpush.bf16.msra.mxu0 %v2678
  %4313 = vmatpush.bf16.msra.mxu0 %v2676
  %4314 = vmatpush.bf16.msra.mxu0 %v2674
  %4315 = vmatmul.bf16.gmra.mxu0 %v754
  %v4316 = vpop.f32.mrf.mxu0
  %v4317 = vadd.f32 %v4299, %v4316
  %v4318 = vpop.f32.mrf.mxu0
  %v4319 = vadd.f32 %v4301, %v4318
  %4320 = vmatmul.bf16.gmra.mxu0 %v786
  %v4321 = vpop.f32.mrf.mxu0
  %v4322 = vadd.f32 %v4304, %v4321
  %v4323 = vpop.f32.mrf.mxu0
  %4324 = vdwg.mxu0
  %4325 = vmatpush.bf16.msra.mxu0 %v2704
  %4326 = vmatpush.bf16.msra.mxu0 %v2702
  %4327 = vmatpush.bf16.msra.mxu0 %v2700
  %4328 = vmatpush.bf16.msra.mxu0 %v2698
  %4329 = vmatpush.bf16.msra.mxu0 %v2696
  %4330 = vmatpush.bf16.msra.mxu0 %v2694
  %4331 = vmatpush.bf16.msra.mxu0 %v2692
  %4332 = vmatpush.bf16.msra.mxu0 %v2690
  %4333 = vmatmul.bf16.gmra.mxu0 %v755
  %v4334 = vpop.f32.mrf.mxu0
  %v4335 = vadd.f32 %v4317, %v4334
  %v4336 = vpop.f32.mrf.mxu0
  %v4337 = vadd.f32 %v4319, %v4336
  %4338 = vmatmul.bf16.gmra.mxu0 %v787
  %v4339 = vpop.f32.mrf.mxu0
  %v4340 = vadd.f32 %v4322, %v4339
  %v4341 = vpop.f32.mrf.mxu0
  %4342 = vdwg.mxu0
  %4343 = vmatpush.bf16.msra.mxu0 %v2720
  %4344 = vmatpush.bf16.msra.mxu0 %v2718
  %4345 = vmatpush.bf16.msra.mxu0 %v2716
  %4346 = vmatpush.bf16.msra.mxu0 %v2714
  %4347 = vmatpush.bf16.msra.mxu0 %v2712
  %4348 = vmatpush.bf16.msra.mxu0 %v2710
  %4349 = vmatpush.bf16.msra.mxu0 %v2708
  %4350 = vmatpush.bf16.msra.mxu0 %v2706
  %4351 = vmatmul.bf16.gmra.mxu0 %v756
  %v4352 = vpop.f32.mrf.mxu0
  %v4353 = vadd.f32 %v4335, %v4352
  %v4354 = vpop.f32.mrf.mxu0
  %v4355 = vadd.f32 %v4337, %v4354
  %4356 = vmatmul.bf16.gmra.mxu0 %v788
  %v4357 = vpop.f32.mrf.mxu0
  %v4358 = vadd.f32 %v4340, %v4357
  %v4359 = vpop.f32.mrf.mxu0
  %4360 = vdwg.mxu0
  %4361 = vmatpush.bf16.msra.mxu0 %v2736
  %4362 = vmatpush.bf16.msra.mxu0 %v2734
  %4363 = vmatpush.bf16.msra.mxu0 %v2732
  %4364 = vmatpush.bf16.msra.mxu0 %v2730
  %4365 = vmatpush.bf16.msra.mxu0 %v2728
  %4366 = vmatpush.bf16.msra.mxu0 %v2726
  %4367 = vmatpush.bf16.msra.mxu0 %v2724
  %4368 = vmatpush.bf16.msra.mxu0 %v2722
  %4369 = vmatmul.bf16.gmra.mxu0 %v757
  %v4370 = vpop.f32.mrf.mxu0
  %v4371 = vadd.f32 %v4353, %v4370
  %v4372 = vpop.f32.mrf.mxu0
  %v4373 = vadd.f32 %v4355, %v4372
  %4374 = vmatmul.bf16.gmra.mxu0 %v789
  %v4375 = vpop.f32.mrf.mxu0
  %v4376 = vadd.f32 %v4358, %v4375
  %v4377 = vpop.f32.mrf.mxu0
  %4378 = vdwg.mxu0
  %4379 = vmatpush.bf16.msra.mxu0 %v2752
  %4380 = vmatpush.bf16.msra.mxu0 %v2750
  %4381 = vmatpush.bf16.msra.mxu0 %v2748
  %4382 = vmatpush.bf16.msra.mxu0 %v2746
  %4383 = vmatpush.bf16.msra.mxu0 %v2744
  %4384 = vmatpush.bf16.msra.mxu0 %v2742
  %4385 = vmatpush.bf16.msra.mxu0 %v2740
  %4386 = vmatpush.bf16.msra.mxu0 %v2738
  %4387 = vmatmul.bf16.gmra.mxu0 %v758
  %v4388 = vpop.f32.mrf.mxu0
  %v4389 = vadd.f32 %v4371, %v4388
  %v4390 = vpop.f32.mrf.mxu0
  %v4391 = vadd.f32 %v4373, %v4390
  %4392 = vmatmul.bf16.gmra.mxu0 %v790
  %v4393 = vpop.f32.mrf.mxu0
  %v4394 = vadd.f32 %v4376, %v4393
  %v4395 = vpop.f32.mrf.mxu0
  %4396 = vdwg.mxu0
  %4397 = vmatpush.bf16.msra.mxu0 %v2768
  %4398 = vmatpush.bf16.msra.mxu0 %v2766
  %4399 = vmatpush.bf16.msra.mxu0 %v2764
  %4400 = vmatpush.bf16.msra.mxu0 %v2762
  %4401 = vmatpush.bf16.msra.mxu0 %v2760
  %4402 = vmatpush.bf16.msra.mxu0 %v2758
  %4403 = vmatpush.bf16.msra.mxu0 %v2756
  %4404 = vmatpush.bf16.msra.mxu0 %v2754
  %4405 = vmatmul.bf16.gmra.mxu0 %v759
  %v4406 = vpop.f32.mrf.mxu0
  %v4407 = vadd.f32 %v4389, %v4406
  %v4408 = vpop.f32.mrf.mxu0
  %v4409 = vadd.f32 %v4391, %v4408
  %4410 = vmatmul.bf16.gmra.mxu0 %v791
  %v4411 = vpop.f32.mrf.mxu0
  %v4412 = vadd.f32 %v4394, %v4411
  %v4413 = vpop.f32.mrf.mxu0
  %4414 = vdwg.mxu0
  %4415 = vmatpush.bf16.msra.mxu0 %v2784
  %4416 = vmatpush.bf16.msra.mxu0 %v2782
  %4417 = vmatpush.bf16.msra.mxu0 %v2780
  %4418 = vmatpush.bf16.msra.mxu0 %v2778
  %4419 = vmatpush.bf16.msra.mxu0 %v2776
  %4420 = vmatpush.bf16.msra.mxu0 %v2774
  %4421 = vmatpush.bf16.msra.mxu0 %v2772
  %4422 = vmatpush.bf16.msra.mxu0 %v2770
  %4423 = vmatmul.bf16.gmra.mxu0 %v760
  %v4424 = vpop.f32.mrf.mxu0
  %v4425 = vadd.f32 %v4407, %v4424
  %v4426 = vpop.f32.mrf.mxu0
  %v4427 = vadd.f32 %v4409, %v4426
  %4428 = vmatmul.bf16.gmra.mxu0 %v792
  %v4429 = vpop.f32.mrf.mxu0
  %v4430 = vadd.f32 %v4412, %v4429
  %v4431 = vpop.f32.mrf.mxu0
  %4432 = vdwg.mxu0
  %4433 = vmatpush.bf16.msra.mxu0 %v2800
  %4434 = vmatpush.bf16.msra.mxu0 %v2798
  %4435 = vmatpush.bf16.msra.mxu0 %v2796
  %4436 = vmatpush.bf16.msra.mxu0 %v2794
  %4437 = vmatpush.bf16.msra.mxu0 %v2792
  %4438 = vmatpush.bf16.msra.mxu0 %v2790
  %4439 = vmatpush.bf16.msra.mxu0 %v2788
  %4440 = vmatpush.bf16.msra.mxu0 %v2786
  %4441 = vmatmul.bf16.gmra.mxu0 %v761
  %v4442 = vpop.f32.mrf.mxu0
  %v4443 = vadd.f32 %v4425, %v4442
  %v4444 = vpop.f32.mrf.mxu0
  %v4445 = vadd.f32 %v4427, %v4444
  %4446 = vmatmul.bf16.gmra.mxu0 %v793
  %v4447 = vpop.f32.mrf.mxu0
  %v4448 = vadd.f32 %v4430, %v4447
  %v4449 = vpop.f32.mrf.mxu0
  %4450 = vdwg.mxu0
  %4451 = vmatpush.bf16.msra.mxu0 %v2816
  %4452 = vmatpush.bf16.msra.mxu0 %v2814
  %4453 = vmatpush.bf16.msra.mxu0 %v2812
  %4454 = vmatpush.bf16.msra.mxu0 %v2810
  %4455 = vmatpush.bf16.msra.mxu0 %v2808
  %4456 = vmatpush.bf16.msra.mxu0 %v2806
  %4457 = vmatpush.bf16.msra.mxu0 %v2804
  %4458 = vmatpush.bf16.msra.mxu0 %v2802
  %4459 = vmatmul.bf16.gmra.mxu0 %v762
  %v4460 = vpop.f32.mrf.mxu0
  %v4461 = vadd.f32 %v4443, %v4460
  %v4462 = vpop.f32.mrf.mxu0
  %v4463 = vadd.f32 %v4445, %v4462
  %4464 = vmatmul.bf16.gmra.mxu0 %v794
  %v4465 = vpop.f32.mrf.mxu0
  %v4466 = vadd.f32 %v4448, %v4465
  %v4467 = vpop.f32.mrf.mxu0
  %4468 = vdwg.mxu0
  %4469 = vmatpush.bf16.msra.mxu0 %v2832
  %4470 = vmatpush.bf16.msra.mxu0 %v2830
  %4471 = vmatpush.bf16.msra.mxu0 %v2828
  %4472 = vmatpush.bf16.msra.mxu0 %v2826
  %4473 = vmatpush.bf16.msra.mxu0 %v2824
  %4474 = vmatpush.bf16.msra.mxu0 %v2822
  %4475 = vmatpush.bf16.msra.mxu0 %v2820
  %4476 = vmatpush.bf16.msra.mxu0 %v2818
  %4477 = vmatmul.bf16.gmra.mxu0 %v763
  %v4478 = vpop.f32.mrf.mxu0
  %v4479 = vadd.f32 %v4461, %v4478
  %v4480 = vpop.f32.mrf.mxu0
  %v4481 = vadd.f32 %v4463, %v4480
  %4482 = vmatmul.bf16.gmra.mxu0 %v795
  %v4483 = vpop.f32.mrf.mxu0
  %v4484 = vadd.f32 %v4466, %v4483
  %v4485 = vpop.f32.mrf.mxu0
  %4486 = vdwg.mxu0
  %4487 = vmatpush.bf16.msra.mxu0 %v2848
  %4488 = vmatpush.bf16.msra.mxu0 %v2846
  %4489 = vmatpush.bf16.msra.mxu0 %v2844
  %4490 = vmatpush.bf16.msra.mxu0 %v2842
  %4491 = vmatpush.bf16.msra.mxu0 %v2840
  %4492 = vmatpush.bf16.msra.mxu0 %v2838
  %4493 = vmatpush.bf16.msra.mxu0 %v2836
  %4494 = vmatpush.bf16.msra.mxu0 %v2834
  %4495 = vmatmul.bf16.gmra.mxu0 %v764
  %v4496 = vpop.f32.mrf.mxu0
  %v4497 = vadd.f32 %v4479, %v4496
  %v4498 = vpop.f32.mrf.mxu0
  %v4499 = vadd.f32 %v4481, %v4498
  %4500 = vmatmul.bf16.gmra.mxu0 %v796
  %v4501 = vpop.f32.mrf.mxu0
  %v4502 = vadd.f32 %v4484, %v4501
  %v4503 = vpop.f32.mrf.mxu0
  %4504 = vdwg.mxu0
  %4505 = vmatpush.bf16.msra.mxu0 %v2864
  %4506 = vmatpush.bf16.msra.mxu0 %v2862
  %4507 = vmatpush.bf16.msra.mxu0 %v2860
  %4508 = vmatpush.bf16.msra.mxu0 %v2858
  %4509 = vmatpush.bf16.msra.mxu0 %v2856
  %4510 = vmatpush.bf16.msra.mxu0 %v2854
  %4511 = vmatpush.bf16.msra.mxu0 %v2852
  %4512 = vmatpush.bf16.msra.mxu0 %v2850
  %4513 = vmatmul.bf16.gmra.mxu0 %v765
  %v4514 = vpop.f32.mrf.mxu0
  %v4515 = vadd.f32 %v4497, %v4514
  %v4516 = vpop.f32.mrf.mxu0
  %v4517 = vadd.f32 %v4499, %v4516
  %4518 = vmatmul.bf16.gmra.mxu0 %v797
  %v4519 = vpop.f32.mrf.mxu0
  %v4520 = vadd.f32 %v4502, %v4519
  %v4521 = vpop.f32.mrf.mxu0
  %4522 = vdwg.mxu0
  %4523 = vmatpush.bf16.msra.mxu0 %v2880
  %4524 = vmatpush.bf16.msra.mxu0 %v2878
  %4525 = vmatpush.bf16.msra.mxu0 %v2876
  %4526 = vmatpush.bf16.msra.mxu0 %v2874
  %4527 = vmatpush.bf16.msra.mxu0 %v2872
  %4528 = vmatpush.bf16.msra.mxu0 %v2870
  %4529 = vmatpush.bf16.msra.mxu0 %v2868
  %4530 = vmatpush.bf16.msra.mxu0 %v2866
  %4531 = vmatmul.bf16.gmra.mxu0 %v766
  %v4532 = vpop.f32.mrf.mxu0
  %v4533 = vadd.f32 %v4515, %v4532
  %v4534 = vpop.f32.mrf.mxu0
  %v4535 = vadd.f32 %v4517, %v4534
  %4536 = vmatmul.bf16.gmra.mxu0 %v798
  %v4537 = vpop.f32.mrf.mxu0
  %v4538 = vadd.f32 %v4520, %v4537
  %v4539 = vpop.f32.mrf.mxu0
  %4540 = vdwg.mxu0
  %4541 = vmatpush.bf16.msra.mxu0 %v2896
  %4542 = vmatpush.bf16.msra.mxu0 %v2894
  %4543 = vmatpush.bf16.msra.mxu0 %v2892
  %4544 = vmatpush.bf16.msra.mxu0 %v2890
  %4545 = vmatpush.bf16.msra.mxu0 %v2888
  %4546 = vmatpush.bf16.msra.mxu0 %v2886
  %4547 = vmatpush.bf16.msra.mxu0 %v2884
  %4548 = vmatpush.bf16.msra.mxu0 %v2882
  %4549 = vmatmul.bf16.gmra.mxu0 %v767
  %v4550 = vpop.f32.mrf.mxu0
  %v4551 = vadd.f32 %v4533, %v4550
  %v4552 = vpop.f32.mrf.mxu0
  %v4553 = vadd.f32 %v4535, %v4552
  %4554 = vmatmul.bf16.gmra.mxu0 %v799
  %v4555 = vpop.f32.mrf.mxu0
  %v4556 = vadd.f32 %v4538, %v4555
  %v4557 = vpop.f32.mrf.mxu0
  %4558 = vdwg.mxu0
  %4559 = vmatpush.bf16.msra.mxu0 %v2912
  %4560 = vmatpush.bf16.msra.mxu0 %v2910
  %4561 = vmatpush.bf16.msra.mxu0 %v2908
  %4562 = vmatpush.bf16.msra.mxu0 %v2906
  %4563 = vmatpush.bf16.msra.mxu0 %v2904
  %4564 = vmatpush.bf16.msra.mxu0 %v2902
  %4565 = vmatpush.bf16.msra.mxu0 %v2900
  %4566 = vmatpush.bf16.msra.mxu0 %v2898
  %4567 = vmatmul.bf16.gmra.mxu0 %v768
  %v4568 = vpop.f32.mrf.mxu0
  %v4569 = vadd.f32 %v4551, %v4568
  %v4570 = vpop.f32.mrf.mxu0
  %v4571 = vadd.f32 %v4553, %v4570
  %4572 = vmatmul.bf16.gmra.mxu0 %v800
  %v4573 = vpop.f32.mrf.mxu0
  %v4574 = vadd.f32 %v4556, %v4573
  %v4575 = vpop.f32.mrf.mxu0
  %4576 = vdwg.mxu0
  %4577 = vst [vmem:[%s3] sm:$0xff] %v3993
  %4578 = vst [vmem:[%s3 + $0x8] sm:$0xff] %v4569
  %4579 = vst [vmem:[%s3 + $0x10] sm:$0xff] %v3995
  %4580 = vst [vmem:[%s3 + $0x18] sm:$0xff] %v4571
  %4581 = vst [vmem:[%s3 + $0x20] sm:$0xff] %v3998
  %4582 = vst [vmem:[%s3 + $0x28] sm:$0xff] %v4574
  %v4583 = vlaneseq
  %v4584 = vshrl.u32 %v4583, 7
  %v4585 = vadd.s32 %v4584, 8
  %v4586 = vadd.s32 %v4584, 16
  %s4587 = smul.u32 0, 24
  %v4588 = vstv %s4587
  %v4589 = vadd.s32 %v4584, %v4588
  %v4590 = vadd.s32 %v4585, %v4588
  %v4591 = vadd.s32 %v4586, %v4588
  %vm4592 = vcmp.lt.s32.totalorder %v4589, 18
  %vm4593 = vcmp.lt.s32.totalorder %v4590, 18
  %vm4594 = vcmp.lt.s32.totalorder %v4591, 18
  %v4595 = vsel %vm4592, %v3993, 0.0
  %v4596 = vsel %vm4592, %v4569, 0.0
  %v4597 = vsel %vm4593, %v3995, 0.0
  %v4598 = vsel %vm4593, %v4571, 0.0
  %v4599 = vsel %vm4594, %v3998, 0.0
  %v4600 = vsel %vm4594, %v4574, 0.0
  %v4601 = vld [vmem:[%s4] sm:$0x3]
  %v4602 = vadd.f32 %v4595, %v4597
  %v4603 = vadd.f32 %v4602, %v4599
  %v4604 = vrot.slane %v4603, 4
  %v4605 = vadd.f32 %v4603, %v4604
  %v4606 = vrot.slane %v4605, 2
  %v4607 = vadd.f32 %v4605, %v4606
  %v4608 = vrot.slane %v4607, 1
  %v4609 = vadd.f32 %v4607, %v4608
  %v4610 = vadd.f32 %v4596, %v4598
  %v4611 = vadd.f32 %v4610, %v4600
  %v4612 = vrot.slane %v4611, 4
  %v4613 = vadd.f32 %v4611, %v4612
  %v4614 = vrot.slane %v4613, 2
  %v4615 = vadd.f32 %v4613, %v4614
  %v4616 = vrot.slane %v4615, 1
  %v4617 = vadd.f32 %v4615, %v4616
  %v4620 = vrot.slane %v4617, 7
  %vm4621 = vcmask 1040384
  %v4622 = vsel %vm4621, %v4609, %v4620
  %v4624 = vadd.f32 %v4601, %v4622
  %v4625 = vlaneseq
  %vm4626 = vcmp.ge.s32.totalorder %v4625, 0
  %vm4627 = vcmp.lt.s32.totalorder %v4625, 256
  %vm4628 = vmand %vm4626, %vm4627
  %4629 = vst.msk [vmem:[%s4] sm:$0x3] %vm4628, %v4624
  %v4630 = vld [vmem:[%s5] sm:$0x3]
  %v4631 = vmul.f32 %v4595, %v4595
  %v4632 = vmul.f32 %v4596, %v4596
  %v4633 = vmul.f32 %v4597, %v4597
  %v4634 = vmul.f32 %v4598, %v4598
  %v4635 = vmul.f32 %v4599, %v4599
  %v4636 = vmul.f32 %v4600, %v4600
  %v4637 = vadd.f32 %v4631, %v4633
  %v4638 = vadd.f32 %v4637, %v4635
  %v4639 = vrot.slane %v4638, 4
  %v4640 = vadd.f32 %v4638, %v4639
  %v4641 = vrot.slane %v4640, 2
  %v4642 = vadd.f32 %v4640, %v4641
  %v4643 = vrot.slane %v4642, 1
  %v4644 = vadd.f32 %v4642, %v4643
  %v4645 = vadd.f32 %v4632, %v4634
  %v4646 = vadd.f32 %v4645, %v4636
  %v4647 = vrot.slane %v4646, 4
  %v4648 = vadd.f32 %v4646, %v4647
  %v4649 = vrot.slane %v4648, 2
  %v4650 = vadd.f32 %v4648, %v4649
  %v4651 = vrot.slane %v4650, 1
  %v4652 = vadd.f32 %v4650, %v4651
  %v4655 = vrot.slane %v4652, 7
  %v4656 = vsel %vm4621, %v4644, %v4655
  %v4658 = vadd.f32 %v4630, %v4656
  %4659 = vst.msk [vmem:[%s5] sm:$0x3] %vm4628, %v4658
  // Predicated region
  $region18: #{_lambda_.13} parent=0 // pred_check
    _
  $region19: #{_lambda_.13} parent=0 // pred_check_branch
    %4661 = sbr.rel (0) target = $region21
  $region20: #{_lambda_.13} parent=0 // pred_region
    _
  $region21: #{_lambda_.13} parent=0 // pred_fallthru
    _
  // Predicated region
  $region22: #{_lambda_.13} parent=0 // pred_check
    _
  $region23: #{_lambda_.13} parent=0 // pred_check_branch
    %4663 = sbr.rel (0) target = $region25
  $region24: #{_lambda_.13} parent=0 // pred_region
    _
  $region25: #{_lambda_.13} parent=0 // pred_fallthru
    _
  // Predicated region
  $region26: #{_lambda_.13} parent=0 // pred_check
    _
  $region27: #{_lambda_.13} parent=0 // pred_check_branch
    %4665 = sbr.rel (0) target = $region29
  $region28: #{_lambda_.13} parent=0 // pred_region
    _
  $region29: #{_lambda_.13} parent=0 // pred_fallthru
    _
  // Predicated region
  $region30: #{_lambda_.13} parent=0 // pred_check
    _
  $region31: #{_lambda_.13} parent=0 // pred_check_branch
    %4667 = sbr.rel (0) target = $region33
  $region32: #{_lambda_.13} parent=0 // pred_region
    _
  $region33: #{_lambda_.13} parent=0 // pred_fallthru
    _
  // Predicated region
  $region34: #{_lambda_.13} parent=0 // pred_check
    _
  $region35: #{_lambda_.13} parent=0 // pred_check_branch
    %4669 = sbr.rel (0) target = $region37
  $region36: #{_lambda_.13} parent=0 // pred_region
    _
  $region37: #{_lambda_.13} parent=0 // pred_fallthru
    _
  // Predicated region
  $region38: #{_lambda_.13} parent=0 // pred_check
    _
  $region39: #{_lambda_.13} parent=0 // pred_check_branch
    %4671 = sbr.rel (0) target = $region41
  $region40: #{_lambda_.13} parent=0 // pred_region
    _
  $region41: #{_lambda_.13} parent=0 // pred_fallthru
    _

// kernel: _lambda_.15
$region0: #{_lambda_.15}
  #allocation0 [shape = 'u32[]', space=smem, size = 0x4, offset = 0x4, fixed_abs, tag = 'smem constant byte address 0x4 - core index']
  #allocation1 [shape = 'u32[72,128]{1,0:T(1,128)}', space=vmem, size = 0x9000, scoped, tag = 'internal scratch']
  %s0 = inlined_call_operand.vmem [shape: bf16[8,4096], index: 0, kind: input, shape index: {}]
  %s1 = inlined_call_operand.vmem [shape: bf16[4096,128], index: 1, kind: input, shape index: {}]
  %s2 = inlined_call_operand.vmem [shape: f32[1,128], index: 2, kind: input, shape index: {}]
  %s3 = inlined_call_operand.vmem [shape: f32[8,128], index: 3, kind: output, shape index: {}]
  %s4 = sld [smem:[#allocation0]]
  $region22: #{_lambda_.15} parent=0
    _
  %s6 = ssub.s32 1, %s4
  %s7 = scalar_select 0, %s6, %s4
  // Predicated region
  $region2: #{_lambda_.15} parent=0 // pred_check
    _
  $region3: #{_lambda_.15} parent=0 // pred_check_branch
    %9 = sbr.rel (0) target = $region5
  $region4: #{_lambda_.15} parent=0 // pred_region
    _
  $region5: #{_lambda_.15} parent=0 // pred_fallthru
    _
  // Predicated region
  $region6: #{_lambda_.15} parent=0 // pred_check
    _
  $region7: #{_lambda_.15} parent=0 // pred_check_branch
    %11 = sbr.rel (0) target = $region9
  $region8: #{_lambda_.15} parent=0 // pred_region
    _
  $region9: #{_lambda_.15} parent=0 // pred_fallthru
    _
  // Predicated region
  $region10: #{_lambda_.15} parent=0 // pred_check
    _
  $region11: #{_lambda_.15} parent=0 // pred_check_branch
    %13 = sbr.rel (0) target = $region13
  $region12: #{_lambda_.15} parent=0 // pred_region
    _
  $region13: #{_lambda_.15} parent=0 // pred_fallthru
    _
  %v14 = vld [vmem:[%s0] sm:$0xff]
  %v15 = vld [vmem:[%s0 + $0x8] sm:$0xff]
  %v16 = vld [vmem:[%s0 + $0x10] sm:$0xff]
  %v17 = vld [vmem:[%s0 + $0x18] sm:$0xff]
  %v18 = vld [vmem:[%s0 + $0x20] sm:$0xff]
  %v19 = vld [vmem:[%s0 + $0x28] sm:$0xff]
  %v20 = vld [vmem:[%s0 + $0x30] sm:$0xff]
  %v21 = vld [vmem:[%s0 + $0x38] sm:$0xff]
  %v22 = vld [vmem:[%s0 + $0x40] sm:$0xff]
  %v23 = vld [vmem:[%s0 + $0x48] sm:$0xff]
  %v24 = vld [vmem:[%s0 + $0x50] sm:$0xff]
  %v25 = vld [vmem:[%s0 + $0x58] sm:$0xff]
  %v26 = vld [vmem:[%s0 + $0x60] sm:$0xff]
  %v27 = vld [vmem:[%s0 + $0x68] sm:$0xff]
  %v28 = vld [vmem:[%s0 + $0x70] sm:$0xff]
  %v29 = vld [vmem:[%s0 + $0x78] sm:$0xff]
  %v30 = vld [vmem:[%s1] sm:$0xf]
  %v31 = vld [vmem:[%s1 + $0x4] sm:$0xf]
  %v32 = vld [vmem:[%s1 + $0x8] sm:$0xf]
  %v33 = vld [vmem:[%s1 + $0xc] sm:$0xf]
  %v34 = vld [vmem:[%s1 + $0x10] sm:$0xf]
  %v35 = vld [vmem:[%s1 + $0x14] sm:$0xf]
  %v36 = vld [vmem:[%s1 + $0x18] sm:$0xf]
  %v37 = vld [vmem:[%s1 + $0x1c] sm:$0xf]
  %v38 = vld [vmem:[%s1 + $0x20] sm:$0xf]
  %v39 = vld [vmem:[%s1 + $0x24] sm:$0xf]
  %v40 = vld [vmem:[%s1 + $0x28] sm:$0xf]
  %v41 = vld [vmem:[%s1 + $0x2c] sm:$0xf]
  %v42 = vld [vmem:[%s1 + $0x30] sm:$0xf]
  %v43 = vld [vmem:[%s1 + $0x34] sm:$0xf]
  %v44 = vld [vmem:[%s1 + $0x38] sm:$0xf]
  %v45 = vld [vmem:[%s1 + $0x3c] sm:$0xf]
  %v46 = vld [vmem:[%s1 + $0x40] sm:$0xf]
  %v47 = vld [vmem:[%s1 + $0x44] sm:$0xf]
  %v48 = vld [vmem:[%s1 + $0x48] sm:$0xf]
  %v49 = vld [vmem:[%s1 + $0x4c] sm:$0xf]
  %v50 = vld [vmem:[%s1 + $0x50] sm:$0xf]
  %v51 = vld [vmem:[%s1 + $0x54] sm:$0xf]
  %v52 = vld [vmem:[%s1 + $0x58] sm:$0xf]
  %v53 = vld [vmem:[%s1 + $0x5c] sm:$0xf]
  %v54 = vld [vmem:[%s1 + $0x60] sm:$0xf]
  %v55 = vld [vmem:[%s1 + $0x64] sm:$0xf]
  %v56 = vld [vmem:[%s1 + $0x68] sm:$0xf]
  %v57 = vld [vmem:[%s1 + $0x6c] sm:$0xf]
  %v58 = vld [vmem:[%s1 + $0x70] sm:$0xf]
  %v59 = vld [vmem:[%s1 + $0x74] sm:$0xf]
  %v60 = vld [vmem:[%s1 + $0x78] sm:$0xf]
  %v61 = vld [vmem:[%s1 + $0x7c] sm:$0xf]
  %v62 = vld [vmem:[%s1 + $0x80] sm:$0xf]
  %v63 = vld [vmem:[%s1 + $0x84] sm:$0xf]
  %v64 = vld [vmem:[%s1 + $0x88] sm:$0xf]
  %v65 = vld [vmem:[%s1 + $0x8c] sm:$0xf]
  %v66 = vld [vmem:[%s1 + $0x90] sm:$0xf]
  %v67 = vld [vmem:[%s1 + $0x94] sm:$0xf]
  %v68 = vld [vmem:[%s1 + $0x98] sm:$0xf]
  %v69 = vld [vmem:[%s1 + $0x9c] sm:$0xf]
  %v70 = vld [vmem:[%s1 + $0xa0] sm:$0xf]
  %v71 = vld [vmem:[%s1 + $0xa4] sm:$0xf]
  %v72 = vld [vmem:[%s1 + $0xa8] sm:$0xf]
  %v73 = vld [vmem:[%s1 + $0xac] sm:$0xf]
  %v74 = vld [vmem:[%s1 + $0xb0] sm:$0xf]
  %v75 = vld [vmem:[%s1 + $0xb4] sm:$0xf]
  %v76 = vld [vmem:[%s1 + $0xb8] sm:$0xf]
  %v77 = vld [vmem:[%s1 + $0xbc] sm:$0xf]
  %v78 = vld [vmem:[%s1 + $0xc0] sm:$0xf]
  %v79 = vld [vmem:[%s1 + $0xc4] sm:$0xf]
  %v80 = vld [vmem:[%s1 + $0xc8] sm:$0xf]
  %v81 = vld [vmem:[%s1 + $0xcc] sm:$0xf]
  %v82 = vld [vmem:[%s1 + $0xd0] sm:$0xf]
  %v83 = vld [vmem:[%s1 + $0xd4] sm:$0xf]
  %v84 = vld [vmem:[%s1 + $0xd8] sm:$0xf]
  %v85 = vld [vmem:[%s1 + $0xdc] sm:$0xf]
  %v86 = vld [vmem:[%s1 + $0xe0] sm:$0xf]
  %v87 = vld [vmem:[%s1 + $0xe4] sm:$0xf]
  %v88 = vld [vmem:[%s1 + $0xe8] sm:$0xf]
  %v89 = vld [vmem:[%s1 + $0xec] sm:$0xf]
  %v90 = vld [vmem:[%s1 + $0xf0] sm:$0xf]
  %v91 = vld [vmem:[%s1 + $0xf4] sm:$0xf]
  %v92 = vld [vmem:[%s1 + $0xf8] sm:$0xf]
  %v93 = vld [vmem:[%s1 + $0xfc] sm:$0xf]
  %v94 = vld [vmem:[%s1 + $0x100] sm:$0xf]
  %v95 = vld [vmem:[%s1 + $0x104] sm:$0xf]
  %v96 = vld [vmem:[%s1 + $0x108] sm:$0xf]
  %v97 = vld [vmem:[%s1 + $0x10c] sm:$0xf]
  %v98 = vld [vmem:[%s1 + $0x110] sm:$0xf]
  %v99 = vld [vmem:[%s1 + $0x114] sm:$0xf]
  %v100 = vld [vmem:[%s1 + $0x118] sm:$0xf]
  %v101 = vld [vmem:[%s1 + $0x11c] sm:$0xf]
  %v102 = vld [vmem:[%s1 + $0x120] sm:$0xf]
  %v103 = vld [vmem:[%s1 + $0x124] sm:$0xf]
  %v104 = vld [vmem:[%s1 + $0x128] sm:$0xf]
  %v105 = vld [vmem:[%s1 + $0x12c] sm:$0xf]
  %v106 = vld [vmem:[%s1 + $0x130] sm:$0xf]
  %v107 = vld [vmem:[%s1 + $0x134] sm:$0xf]
  %v108 = vld [vmem:[%s1 + $0x138] sm:$0xf]
  %v109 = vld [vmem:[%s1 + $0x13c] sm:$0xf]
  %v110 = vld [vmem:[%s1 + $0x140] sm:$0xf]
  %v111 = vld [vmem:[%s1 + $0x144] sm:$0xf]
  %v112 = vld [vmem:[%s1 + $0x148] sm:$0xf]
  %v113 = vld [vmem:[%s1 + $0x14c] sm:$0xf]
  %v114 = vld [vmem:[%s1 + $0x150] sm:$0xf]
  %v115 = vld [vmem:[%s1 + $0x154] sm:$0xf]
  %v116 = vld [vmem:[%s1 + $0x158] sm:$0xf]
  %v117 = vld [vmem:[%s1 + $0x15c] sm:$0xf]
  %v118 = vld [vmem:[%s1 + $0x160] sm:$0xf]
  %v119 = vld [vmem:[%s1 + $0x164] sm:$0xf]
  %v120 = vld [vmem:[%s1 + $0x168] sm:$0xf]
  %v121 = vld [vmem:[%s1 + $0x16c] sm:$0xf]
  %v122 = vld [vmem:[%s1 + $0x170] sm:$0xf]
  %v123 = vld [vmem:[%s1 + $0x174] sm:$0xf]
  %v124 = vld [vmem:[%s1 + $0x178] sm:$0xf]
  %v125 = vld [vmem:[%s1 + $0x17c] sm:$0xf]
  %v126 = vld [vmem:[%s1 + $0x180] sm:$0xf]
  %v127 = vld [vmem:[%s1 + $0x184] sm:$0xf]
  %v128 = vld [vmem:[%s1 + $0x188] sm:$0xf]
  %v129 = vld [vmem:[%s1 + $0x18c] sm:$0xf]
  %v130 = vld [vmem:[%s1 + $0x190] sm:$0xf]
  %v131 = vld [vmem:[%s1 + $0x194] sm:$0xf]
  %v132 = vld [vmem:[%s1 + $0x198] sm:$0xf]
  %v133 = vld [vmem:[%s1 + $0x19c] sm:$0xf]
  %v134 = vld [vmem:[%s1 + $0x1a0] sm:$0xf]
  %v135 = vld [vmem:[%s1 + $0x1a4] sm:$0xf]
  %v136 = vld [vmem:[%s1 + $0x1a8] sm:$0xf]
  %v137 = vld [vmem:[%s1 + $0x1ac] sm:$0xf]
  %v138 = vld [vmem:[%s1 + $0x1b0] sm:$0xf]
  %v139 = vld [vmem:[%s1 + $0x1b4] sm:$0xf]
  %v140 = vld [vmem:[%s1 + $0x1b8] sm:$0xf]
  %v141 = vld [vmem:[%s1 + $0x1bc] sm:$0xf]
  %v142 = vld [vmem:[%s1 + $0x1c0] sm:$0xf]
  %v143 = vld [vmem:[%s1 + $0x1c4] sm:$0xf]
  %v144 = vld [vmem:[%s1 + $0x1c8] sm:$0xf]
  %v145 = vld [vmem:[%s1 + $0x1cc] sm:$0xf]
  %v146 = vld [vmem:[%s1 + $0x1d0] sm:$0xf]
  %v147 = vld [vmem:[%s1 + $0x1d4] sm:$0xf]
  %v148 = vld [vmem:[%s1 + $0x1d8] sm:$0xf]
  %v149 = vld [vmem:[%s1 + $0x1dc] sm:$0xf]
  %v150 = vld [vmem:[%s1 + $0x1e0] sm:$0xf]
  %v151 = vld [vmem:[%s1 + $0x1e4] sm:$0xf]
  %v152 = vld [vmem:[%s1 + $0x1e8] sm:$0xf]
  %v153 = vld [vmem:[%s1 + $0x1ec] sm:$0xf]
  %v154 = vld [vmem:[%s1 + $0x1f0] sm:$0xf]
  %v155 = vld [vmem:[%s1 + $0x1f4] sm:$0xf]
  %v156 = vld [vmem:[%s1 + $0x1f8] sm:$0xf]
  %v157 = vld [vmem:[%s1 + $0x1fc] sm:$0xf]
  %v158 = vld [vmem:[%s1 + $0x200] sm:$0xf]
  %v159 = vld [vmem:[%s1 + $0x204] sm:$0xf]
  %v160 = vld [vmem:[%s1 + $0x208] sm:$0xf]
  %v161 = vld [vmem:[%s1 + $0x20c] sm:$0xf]
  %v162 = vld [vmem:[%s1 + $0x210] sm:$0xf]
  %v163 = vld [vmem:[%s1 + $0x214] sm:$0xf]
  %v164 = vld [vmem:[%s1 + $0x218] sm:$0xf]
  %v165 = vld [vmem:[%s1 + $0x21c] sm:$0xf]
  %v166 = vld [vmem:[%s1 + $0x220] sm:$0xf]
  %v167 = vld [vmem:[%s1 + $0x224] sm:$0xf]
  %v168 = vld [vmem:[%s1 + $0x228] sm:$0xf]
  %v169 = vld [vmem:[%s1 + $0x22c] sm:$0xf]
  %v170 = vld [vmem:[%s1 + $0x230] sm:$0xf]
  %v171 = vld [vmem:[%s1 + $0x234] sm:$0xf]
  %v172 = vld [vmem:[%s1 + $0x238] sm:$0xf]
  %v173 = vld [vmem:[%s1 + $0x23c] sm:$0xf]
  %v174 = vld [vmem:[%s1 + $0x240] sm:$0xf]
  %v175 = vld [vmem:[%s1 + $0x244] sm:$0xf]
  %v176 = vld [vmem:[%s1 + $0x248] sm:$0xf]
  %v177 = vld [vmem:[%s1 + $0x24c] sm:$0xf]
  %v178 = vld [vmem:[%s1 + $0x250] sm:$0xf]
  %v179 = vld [vmem:[%s1 + $0x254] sm:$0xf]
  %v180 = vld [vmem:[%s1 + $0x258] sm:$0xf]
  %v181 = vld [vmem:[%s1 + $0x25c] sm:$0xf]
  %v182 = vld [vmem:[%s1 + $0x260] sm:$0xf]
  %v183 = vld [vmem:[%s1 + $0x264] sm:$0xf]
  %v184 = vld [vmem:[%s1 + $0x268] sm:$0xf]
  %v185 = vld [vmem:[%s1 + $0x26c] sm:$0xf]
  %v186 = vld [vmem:[%s1 + $0x270] sm:$0xf]
  %v187 = vld [vmem:[%s1 + $0x274] sm:$0xf]
  %v188 = vld [vmem:[%s1 + $0x278] sm:$0xf]
  %v189 = vld [vmem:[%s1 + $0x27c] sm:$0xf]
  %v190 = vld [vmem:[%s1 + $0x280] sm:$0xf]
  %v191 = vld [vmem:[%s1 + $0x284] sm:$0xf]
  %v192 = vld [vmem:[%s1 + $0x288] sm:$0xf]
  %v193 = vld [vmem:[%s1 + $0x28c] sm:$0xf]
  %v194 = vld [vmem:[%s1 + $0x290] sm:$0xf]
  %v195 = vld [vmem:[%s1 + $0x294] sm:$0xf]
  %v196 = vld [vmem:[%s1 + $0x298] sm:$0xf]
  %v197 = vld [vmem:[%s1 + $0x29c] sm:$0xf]
  %v198 = vld [vmem:[%s1 + $0x2a0] sm:$0xf]
  %v199 = vld [vmem:[%s1 + $0x2a4] sm:$0xf]
  %v200 = vld [vmem:[%s1 + $0x2a8] sm:$0xf]
  %v201 = vld [vmem:[%s1 + $0x2ac] sm:$0xf]
  %v202 = vld [vmem:[%s1 + $0x2b0] sm:$0xf]
  %v203 = vld [vmem:[%s1 + $0x2b4] sm:$0xf]
  %v204 = vld [vmem:[%s1 + $0x2b8] sm:$0xf]
  %v205 = vld [vmem:[%s1 + $0x2bc] sm:$0xf]
  %v206 = vld [vmem:[%s1 + $0x2c0] sm:$0xf]
  %v207 = vld [vmem:[%s1 + $0x2c4] sm:$0xf]
  %v208 = vld [vmem:[%s1 + $0x2c8] sm:$0xf]
  %v209 = vld [vmem:[%s1 + $0x2cc] sm:$0xf]
  %v210 = vld [vmem:[%s1 + $0x2d0] sm:$0xf]
  %v211 = vld [vmem:[%s1 + $0x2d4] sm:$0xf]
  %v212 = vld [vmem:[%s1 + $0x2d8] sm:$0xf]
  %v213 = vld [vmem:[%s1 + $0x2dc] sm:$0xf]
  %v214 = vld [vmem:[%s1 + $0x2e0] sm:$0xf]
  %v215 = vld [vmem:[%s1 + $0x2e4] sm:$0xf]
  %v216 = vld [vmem:[%s1 + $0x2e8] sm:$0xf]
  %v217 = vld [vmem:[%s1 + $0x2ec] sm:$0xf]
  %v218 = vld [vmem:[%s1 + $0x2f0] sm:$0xf]
  %v219 = vld [vmem:[%s1 + $0x2f4] sm:$0xf]
  %v220 = vld [vmem:[%s1 + $0x2f8] sm:$0xf]
  %v221 = vld [vmem:[%s1 + $0x2fc] sm:$0xf]
  %v222 = vld [vmem:[%s1 + $0x300] sm:$0xf]
  %v223 = vld [vmem:[%s1 + $0x304] sm:$0xf]
  %v224 = vld [vmem:[%s1 + $0x308] sm:$0xf]
  %v225 = vld [vmem:[%s1 + $0x30c] sm:$0xf]
  %v226 = vld [vmem:[%s1 + $0x310] sm:$0xf]
  %v227 = vld [vmem:[%s1 + $0x314] sm:$0xf]
  %v228 = vld [vmem:[%s1 + $0x318] sm:$0xf]
  %v229 = vld [vmem:[%s1 + $0x31c] sm:$0xf]
  %v230 = vld [vmem:[%s1 + $0x320] sm:$0xf]
  %v231 = vld [vmem:[%s1 + $0x324] sm:$0xf]
  %v232 = vld [vmem:[%s1 + $0x328] sm:$0xf]
  %v233 = vld [vmem:[%s1 + $0x32c] sm:$0xf]
  %v234 = vld [vmem:[%s1 + $0x330] sm:$0xf]
  %v235 = vld [vmem:[%s1 + $0x334] sm:$0xf]
  %v236 = vld [vmem:[%s1 + $0x338] sm:$0xf]
  %v237 = vld [vmem:[%s1 + $0x33c] sm:$0xf]
  %v238 = vld [vmem:[%s1 + $0x340] sm:$0xf]
  %v239 = vld [vmem:[%s1 + $0x344] sm:$0xf]
  %v240 = vld [vmem:[%s1 + $0x348] sm:$0xf]
  %v241 = vld [vmem:[%s1 + $0x34c] sm:$0xf]
  %v242 = vld [vmem:[%s1 + $0x350] sm:$0xf]
  %v243 = vld [vmem:[%s1 + $0x354] sm:$0xf]
  %v244 = vld [vmem:[%s1 + $0x358] sm:$0xf]
  %v245 = vld [vmem:[%s1 + $0x35c] sm:$0xf]
  %v246 = vld [vmem:[%s1 + $0x360] sm:$0xf]
  %v247 = vld [vmem:[%s1 + $0x364] sm:$0xf]
  %v248 = vld [vmem:[%s1 + $0x368] sm:$0xf]
  %v249 = vld [vmem:[%s1 + $0x36c] sm:$0xf]
  %v250 = vld [vmem:[%s1 + $0x370] sm:$0xf]
  %v251 = vld [vmem:[%s1 + $0x374] sm:$0xf]
  %v252 = vld [vmem:[%s1 + $0x378] sm:$0xf]
  %v253 = vld [vmem:[%s1 + $0x37c] sm:$0xf]
  %v254 = vld [vmem:[%s1 + $0x380] sm:$0xf]
  %v255 = vld [vmem:[%s1 + $0x384] sm:$0xf]
  %v256 = vld [vmem:[%s1 + $0x388] sm:$0xf]
  %v257 = vld [vmem:[%s1 + $0x38c] sm:$0xf]
  %v258 = vld [vmem:[%s1 + $0x390] sm:$0xf]
  %v259 = vld [vmem:[%s1 + $0x394] sm:$0xf]
  %v260 = vld [vmem:[%s1 + $0x398] sm:$0xf]
  %v261 = vld [vmem:[%s1 + $0x39c] sm:$0xf]
  %v262 = vld [vmem:[%s1 + $0x3a0] sm:$0xf]
  %v263 = vld [vmem:[%s1 + $0x3a4] sm:$0xf]
  %v264 = vld [vmem:[%s1 + $0x3a8] sm:$0xf]
  %v265 = vld [vmem:[%s1 + $0x3ac] sm:$0xf]
  %v266 = vld [vmem:[%s1 + $0x3b0] sm:$0xf]
  %v267 = vld [vmem:[%s1 + $0x3b4] sm:$0xf]
  %v268 = vld [vmem:[%s1 + $0x3b8] sm:$0xf]
  %v269 = vld [vmem:[%s1 + $0x3bc] sm:$0xf]
  %v270 = vld [vmem:[%s1 + $0x3c0] sm:$0xf]
  %v271 = vld [vmem:[%s1 + $0x3c4] sm:$0xf]
  %v272 = vld [vmem:[%s1 + $0x3c8] sm:$0xf]
  %v273 = vld [vmem:[%s1 + $0x3cc] sm:$0xf]
  %v274 = vld [vmem:[%s1 + $0x3d0] sm:$0xf]
  %v275 = vld [vmem:[%s1 + $0x3d4] sm:$0xf]
  %v276 = vld [vmem:[%s1 + $0x3d8] sm:$0xf]
  %v277 = vld [vmem:[%s1 + $0x3dc] sm:$0xf]
  %v278 = vld [vmem:[%s1 + $0x3e0] sm:$0xf]
  %v279 = vld [vmem:[%s1 + $0x3e4] sm:$0xf]
  %v280 = vld [vmem:[%s1 + $0x3e8] sm:$0xf]
  %v281 = vld [vmem:[%s1 + $0x3ec] sm:$0xf]
  %v282 = vld [vmem:[%s1 + $0x3f0] sm:$0xf]
  %v283 = vld [vmem:[%s1 + $0x3f4] sm:$0xf]
  %v284 = vld [vmem:[%s1 + $0x3f8] sm:$0xf]
  %v285 = vld [vmem:[%s1 + $0x3fc] sm:$0xf]
  %v286 = vld [vmem:[%s1 + $0x400] sm:$0xf]
  %v287 = vld [vmem:[%s1 + $0x404] sm:$0xf]
  %v288 = vld [vmem:[%s1 + $0x408] sm:$0xf]
  %v289 = vld [vmem:[%s1 + $0x40c] sm:$0xf]
  %v290 = vld [vmem:[%s1 + $0x410] sm:$0xf]
  %v291 = vld [vmem:[%s1 + $0x414] sm:$0xf]
  %v292 = vld [vmem:[%s1 + $0x418] sm:$0xf]
  %v293 = vld [vmem:[%s1 + $0x41c] sm:$0xf]
  %v294 = vld [vmem:[%s1 + $0x420] sm:$0xf]
  %v295 = vld [vmem:[%s1 + $0x424] sm:$0xf]
  %v296 = vld [vmem:[%s1 + $0x428] sm:$0xf]
  %v297 = vld [vmem:[%s1 + $0x42c] sm:$0xf]
  %v298 = vld [vmem:[%s1 + $0x430] sm:$0xf]
  %v299 = vld [vmem:[%s1 + $0x434] sm:$0xf]
  %v300 = vld [vmem:[%s1 + $0x438] sm:$0xf]
  %v301 = vld [vmem:[%s1 + $0x43c] sm:$0xf]
  %v302 = vld [vmem:[%s1 + $0x440] sm:$0xf]
  %v303 = vld [vmem:[%s1 + $0x444] sm:$0xf]
  %v304 = vld [vmem:[%s1 + $0x448] sm:$0xf]
  %v305 = vld [vmem:[%s1 + $0x44c] sm:$0xf]
  %v306 = vld [vmem:[%s1 + $0x450] sm:$0xf]
  %v307 = vld [vmem:[%s1 + $0x454] sm:$0xf]
  %v308 = vld [vmem:[%s1 + $0x458] sm:$0xf]
  %v309 = vld [vmem:[%s1 + $0x45c] sm:$0xf]
  %v310 = vld [vmem:[%s1 + $0x460] sm:$0xf]
  %v311 = vld [vmem:[%s1 + $0x464] sm:$0xf]
  %v312 = vld [vmem:[%s1 + $0x468] sm:$0xf]
  %v313 = vld [vmem:[%s1 + $0x46c] sm:$0xf]
  %v314 = vld [vmem:[%s1 + $0x470] sm:$0xf]
  %v315 = vld [vmem:[%s1 + $0x474] sm:$0xf]
  %v316 = vld [vmem:[%s1 + $0x478] sm:$0xf]
  %v317 = vld [vmem:[%s1 + $0x47c] sm:$0xf]
  %v318 = vld [vmem:[%s1 + $0x480] sm:$0xf]
  %v319 = vld [vmem:[%s1 + $0x484] sm:$0xf]
  %v320 = vld [vmem:[%s1 + $0x488] sm:$0xf]
  %v321 = vld [vmem:[%s1 + $0x48c] sm:$0xf]
  %v322 = vld [vmem:[%s1 + $0x490] sm:$0xf]
  %v323 = vld [vmem:[%s1 + $0x494] sm:$0xf]
  %v324 = vld [vmem:[%s1 + $0x498] sm:$0xf]
  %v325 = vld [vmem:[%s1 + $0x49c] sm:$0xf]
  %v326 = vld [vmem:[%s1 + $0x4a0] sm:$0xf]
  %v327 = vld [vmem:[%s1 + $0x4a4] sm:$0xf]
  %v328 = vld [vmem:[%s1 + $0x4a8] sm:$0xf]
  %v329 = vld [vmem:[%s1 + $0x4ac] sm:$0xf]
  %v330 = vld [vmem:[%s1 + $0x4b0] sm:$0xf]
  %v331 = vld [vmem:[%s1 + $0x4b4] sm:$0xf]
  %v332 = vld [vmem:[%s1 + $0x4b8] sm:$0xf]
  %v333 = vld [vmem:[%s1 + $0x4bc] sm:$0xf]
  %v334 = vld [vmem:[%s1 + $0x4c0] sm:$0xf]
  %v335 = vld [vmem:[%s1 + $0x4c4] sm:$0xf]
  %v336 = vld [vmem:[%s1 + $0x4c8] sm:$0xf]
  %v337 = vld [vmem:[%s1 + $0x4cc] sm:$0xf]
  %v338 = vld [vmem:[%s1 + $0x4d0] sm:$0xf]
  %v339 = vld [vmem:[%s1 + $0x4d4] sm:$0xf]
  %v340 = vld [vmem:[%s1 + $0x4d8] sm:$0xf]
  %v341 = vld [vmem:[%s1 + $0x4dc] sm:$0xf]
  %v342 = vld [vmem:[%s1 + $0x4e0] sm:$0xf]
  %v343 = vld [vmem:[%s1 + $0x4e4] sm:$0xf]
  %v344 = vld [vmem:[%s1 + $0x4e8] sm:$0xf]
  %v345 = vld [vmem:[%s1 + $0x4ec] sm:$0xf]
  %v346 = vld [vmem:[%s1 + $0x4f0] sm:$0xf]
  %v347 = vld [vmem:[%s1 + $0x4f4] sm:$0xf]
  %v348 = vld [vmem:[%s1 + $0x4f8] sm:$0xf]
  %v349 = vld [vmem:[%s1 + $0x4fc] sm:$0xf]
  %v350 = vld [vmem:[%s1 + $0x500] sm:$0xf]
  %v351 = vld [vmem:[%s1 + $0x504] sm:$0xf]
  %v352 = vld [vmem:[%s1 + $0x508] sm:$0xf]
  %v353 = vld [vmem:[%s1 + $0x50c] sm:$0xf]
  %v354 = vld [vmem:[%s1 + $0x510] sm:$0xf]
  %v355 = vld [vmem:[%s1 + $0x514] sm:$0xf]
  %v356 = vld [vmem:[%s1 + $0x518] sm:$0xf]
  %v357 = vld [vmem:[%s1 + $0x51c] sm:$0xf]
  %v358 = vld [vmem:[%s1 + $0x520] sm:$0xf]
  %v359 = vld [vmem:[%s1 + $0x524] sm:$0xf]
  %v360 = vld [vmem:[%s1 + $0x528] sm:$0xf]
  %v361 = vld [vmem:[%s1 + $0x52c] sm:$0xf]
  %v362 = vld [vmem:[%s1 + $0x530] sm:$0xf]
  %v363 = vld [vmem:[%s1 + $0x534] sm:$0xf]
  %v364 = vld [vmem:[%s1 + $0x538] sm:$0xf]
  %v365 = vld [vmem:[%s1 + $0x53c] sm:$0xf]
  %v366 = vld [vmem:[%s1 + $0x540] sm:$0xf]
  %v367 = vld [vmem:[%s1 + $0x544] sm:$0xf]
  %v368 = vld [vmem:[%s1 + $0x548] sm:$0xf]
  %v369 = vld [vmem:[%s1 + $0x54c] sm:$0xf]
  %v370 = vld [vmem:[%s1 + $0x550] sm:$0xf]
  %v371 = vld [vmem:[%s1 + $0x554] sm:$0xf]
  %v372 = vld [vmem:[%s1 + $0x558] sm:$0xf]
  %v373 = vld [vmem:[%s1 + $0x55c] sm:$0xf]
  %v374 = vld [vmem:[%s1 + $0x560] sm:$0xf]
  %v375 = vld [vmem:[%s1 + $0x564] sm:$0xf]
  %v376 = vld [vmem:[%s1 + $0x568] sm:$0xf]
  %v377 = vld [vmem:[%s1 + $0x56c] sm:$0xf]
  %v378 = vld [vmem:[%s1 + $0x570] sm:$0xf]
  %v379 = vld [vmem:[%s1 + $0x574] sm:$0xf]
  %v380 = vld [vmem:[%s1 + $0x578] sm:$0xf]
  %v381 = vld [vmem:[%s1 + $0x57c] sm:$0xf]
  %v382 = vld [vmem:[%s1 + $0x580] sm:$0xf]
  %v383 = vld [vmem:[%s1 + $0x584] sm:$0xf]
  %v384 = vld [vmem:[%s1 + $0x588] sm:$0xf]
  %v385 = vld [vmem:[%s1 + $0x58c] sm:$0xf]
  %v386 = vld [vmem:[%s1 + $0x590] sm:$0xf]
  %v387 = vld [vmem:[%s1 + $0x594] sm:$0xf]
  %v388 = vld [vmem:[%s1 + $0x598] sm:$0xf]
  %v389 = vld [vmem:[%s1 + $0x59c] sm:$0xf]
  %v390 = vld [vmem:[%s1 + $0x5a0] sm:$0xf]
  %v391 = vld [vmem:[%s1 + $0x5a4] sm:$0xf]
  %v392 = vld [vmem:[%s1 + $0x5a8] sm:$0xf]
  %v393 = vld [vmem:[%s1 + $0x5ac] sm:$0xf]
  %v394 = vld [vmem:[%s1 + $0x5b0] sm:$0xf]
  %v395 = vld [vmem:[%s1 + $0x5b4] sm:$0xf]
  %v396 = vld [vmem:[%s1 + $0x5b8] sm:$0xf]
  %v397 = vld [vmem:[%s1 + $0x5bc] sm:$0xf]
  %v398 = vld [vmem:[%s1 + $0x5c0] sm:$0xf]
  %v399 = vld [vmem:[%s1 + $0x5c4] sm:$0xf]
  %v400 = vld [vmem:[%s1 + $0x5c8] sm:$0xf]
  %v401 = vld [vmem:[%s1 + $0x5cc] sm:$0xf]
  %v402 = vld [vmem:[%s1 + $0x5d0] sm:$0xf]
  %v403 = vld [vmem:[%s1 + $0x5d4] sm:$0xf]
  %v404 = vld [vmem:[%s1 + $0x5d8] sm:$0xf]
  %v405 = vld [vmem:[%s1 + $0x5dc] sm:$0xf]
  %v406 = vld [vmem:[%s1 + $0x5e0] sm:$0xf]
  %v407 = vld [vmem:[%s1 + $0x5e4] sm:$0xf]
  %v408 = vld [vmem:[%s1 + $0x5e8] sm:$0xf]
  %v409 = vld [vmem:[%s1 + $0x5ec] sm:$0xf]
  %v410 = vld [vmem:[%s1 + $0x5f0] sm:$0xf]
  %v411 = vld [vmem:[%s1 + $0x5f4] sm:$0xf]
  %v412 = vld [vmem:[%s1 + $0x5f8] sm:$0xf]
  %v413 = vld [vmem:[%s1 + $0x5fc] sm:$0xf]
  %v414 = vld [vmem:[%s1 + $0x600] sm:$0xf]
  %v415 = vld [vmem:[%s1 + $0x604] sm:$0xf]
  %v416 = vld [vmem:[%s1 + $0x608] sm:$0xf]
  %v417 = vld [vmem:[%s1 + $0x60c] sm:$0xf]
  %v418 = vld [vmem:[%s1 + $0x610] sm:$0xf]
  %v419 = vld [vmem:[%s1 + $0x614] sm:$0xf]
  %v420 = vld [vmem:[%s1 + $0x618] sm:$0xf]
  %v421 = vld [vmem:[%s1 + $0x61c] sm:$0xf]
  %v422 = vld [vmem:[%s1 + $0x620] sm:$0xf]
  %v423 = vld [vmem:[%s1 + $0x624] sm:$0xf]
  %v424 = vld [vmem:[%s1 + $0x628] sm:$0xf]
  %v425 = vld [vmem:[%s1 + $0x62c] sm:$0xf]
  %v426 = vld [vmem:[%s1 + $0x630] sm:$0xf]
  %v427 = vld [vmem:[%s1 + $0x634] sm:$0xf]
  %v428 = vld [vmem:[%s1 + $0x638] sm:$0xf]
  %v429 = vld [vmem:[%s1 + $0x63c] sm:$0xf]
  %v430 = vld [vmem:[%s1 + $0x640] sm:$0xf]
  %v431 = vld [vmem:[%s1 + $0x644] sm:$0xf]
  %v432 = vld [vmem:[%s1 + $0x648] sm:$0xf]
  %v433 = vld [vmem:[%s1 + $0x64c] sm:$0xf]
  %v434 = vld [vmem:[%s1 + $0x650] sm:$0xf]
  %v435 = vld [vmem:[%s1 + $0x654] sm:$0xf]
  %v436 = vld [vmem:[%s1 + $0x658] sm:$0xf]
  %v437 = vld [vmem:[%s1 + $0x65c] sm:$0xf]
  %v438 = vld [vmem:[%s1 + $0x660] sm:$0xf]
  %v439 = vld [vmem:[%s1 + $0x664] sm:$0xf]
  %v440 = vld [vmem:[%s1 + $0x668] sm:$0xf]
  %v441 = vld [vmem:[%s1 + $0x66c] sm:$0xf]
  %v442 = vld [vmem:[%s1 + $0x670] sm:$0xf]
  %v443 = vld [vmem:[%s1 + $0x674] sm:$0xf]
  %v444 = vld [vmem:[%s1 + $0x678] sm:$0xf]
  %v445 = vld [vmem:[%s1 + $0x67c] sm:$0xf]
  %v446 = vld [vmem:[%s1 + $0x680] sm:$0xf]
  %v447 = vld [vmem:[%s1 + $0x684] sm:$0xf]
  %v448 = vld [vmem:[%s1 + $0x688] sm:$0xf]
  %v449 = vld [vmem:[%s1 + $0x68c] sm:$0xf]
  %v450 = vld [vmem:[%s1 + $0x690] sm:$0xf]
  %v451 = vld [vmem:[%s1 + $0x694] sm:$0xf]
  %v452 = vld [vmem:[%s1 + $0x698] sm:$0xf]
  %v453 = vld [vmem:[%s1 + $0x69c] sm:$0xf]
  %v454 = vld [vmem:[%s1 + $0x6a0] sm:$0xf]
  %v455 = vld [vmem:[%s1 + $0x6a4] sm:$0xf]
  %v456 = vld [vmem:[%s1 + $0x6a8] sm:$0xf]
  %v457 = vld [vmem:[%s1 + $0x6ac] sm:$0xf]
  %v458 = vld [vmem:[%s1 + $0x6b0] sm:$0xf]
  %v459 = vld [vmem:[%s1 + $0x6b4] sm:$0xf]
  %v460 = vld [vmem:[%s1 + $0x6b8] sm:$0xf]
  %v461 = vld [vmem:[%s1 + $0x6bc] sm:$0xf]
  %v462 = vld [vmem:[%s1 + $0x6c0] sm:$0xf]
  %v463 = vld [vmem:[%s1 + $0x6c4] sm:$0xf]
  %v464 = vld [vmem:[%s1 + $0x6c8] sm:$0xf]
  %v465 = vld [vmem:[%s1 + $0x6cc] sm:$0xf]
  %v466 = vld [vmem:[%s1 + $0x6d0] sm:$0xf]
  %v467 = vld [vmem:[%s1 + $0x6d4] sm:$0xf]
  %v468 = vld [vmem:[%s1 + $0x6d8] sm:$0xf]
  %v469 = vld [vmem:[%s1 + $0x6dc] sm:$0xf]
  %v470 = vld [vmem:[%s1 + $0x6e0] sm:$0xf]
  %v471 = vld [vmem:[%s1 + $0x6e4] sm:$0xf]
  %v472 = vld [vmem:[%s1 + $0x6e8] sm:$0xf]
  %v473 = vld [vmem:[%s1 + $0x6ec] sm:$0xf]
  %v474 = vld [vmem:[%s1 + $0x6f0] sm:$0xf]
  %v475 = vld [vmem:[%s1 + $0x6f4] sm:$0xf]
  %v476 = vld [vmem:[%s1 + $0x6f8] sm:$0xf]
  %v477 = vld [vmem:[%s1 + $0x6fc] sm:$0xf]
  %v478 = vld [vmem:[%s1 + $0x700] sm:$0xf]
  %v479 = vld [vmem:[%s1 + $0x704] sm:$0xf]
  %v480 = vld [vmem:[%s1 + $0x708] sm:$0xf]
  %v481 = vld [vmem:[%s1 + $0x70c] sm:$0xf]
  %v482 = vld [vmem:[%s1 + $0x710] sm:$0xf]
  %v483 = vld [vmem:[%s1 + $0x714] sm:$0xf]
  %v484 = vld [vmem:[%s1 + $0x718] sm:$0xf]
  %v485 = vld [vmem:[%s1 + $0x71c] sm:$0xf]
  %v486 = vld [vmem:[%s1 + $0x720] sm:$0xf]
  %v487 = vld [vmem:[%s1 + $0x724] sm:$0xf]
  %v488 = vld [vmem:[%s1 + $0x728] sm:$0xf]
  %v489 = vld [vmem:[%s1 + $0x72c] sm:$0xf]
  %v490 = vld [vmem:[%s1 + $0x730] sm:$0xf]
  %v491 = vld [vmem:[%s1 + $0x734] sm:$0xf]
  %v492 = vld [vmem:[%s1 + $0x738] sm:$0xf]
  %v493 = vld [vmem:[%s1 + $0x73c] sm:$0xf]
  %v494 = vld [vmem:[%s1 + $0x740] sm:$0xf]
  %v495 = vld [vmem:[%s1 + $0x744] sm:$0xf]
  %v496 = vld [vmem:[%s1 + $0x748] sm:$0xf]
  %v497 = vld [vmem:[%s1 + $0x74c] sm:$0xf]
  %v498 = vld [vmem:[%s1 + $0x750] sm:$0xf]
  %v499 = vld [vmem:[%s1 + $0x754] sm:$0xf]
  %v500 = vld [vmem:[%s1 + $0x758] sm:$0xf]
  %v501 = vld [vmem:[%s1 + $0x75c] sm:$0xf]
  %v502 = vld [vmem:[%s1 + $0x760] sm:$0xf]
  %v503 = vld [vmem:[%s1 + $0x764] sm:$0xf]
  %v504 = vld [vmem:[%s1 + $0x768] sm:$0xf]
  %v505 = vld [vmem:[%s1 + $0x76c] sm:$0xf]
  %v506 = vld [vmem:[%s1 + $0x770] sm:$0xf]
  %v507 = vld [vmem:[%s1 + $0x774] sm:$0xf]
  %v508 = vld [vmem:[%s1 + $0x778] sm:$0xf]
  %v509 = vld [vmem:[%s1 + $0x77c] sm:$0xf]
  %v510 = vld [vmem:[%s1 + $0x780] sm:$0xf]
  %v511 = vld [vmem:[%s1 + $0x784] sm:$0xf]
  %v512 = vld [vmem:[%s1 + $0x788] sm:$0xf]
  %v513 = vld [vmem:[%s1 + $0x78c] sm:$0xf]
  %v514 = vld [vmem:[%s1 + $0x790] sm:$0xf]
  %v515 = vld [vmem:[%s1 + $0x794] sm:$0xf]
  %v516 = vld [vmem:[%s1 + $0x798] sm:$0xf]
  %v517 = vld [vmem:[%s1 + $0x79c] sm:$0xf]
  %v518 = vld [vmem:[%s1 + $0x7a0] sm:$0xf]
  %v519 = vld [vmem:[%s1 + $0x7a4] sm:$0xf]
  %v520 = vld [vmem:[%s1 + $0x7a8] sm:$0xf]
  %v521 = vld [vmem:[%s1 + $0x7ac] sm:$0xf]
  %v522 = vld [vmem:[%s1 + $0x7b0] sm:$0xf]
  %v523 = vld [vmem:[%s1 + $0x7b4] sm:$0xf]
  %v524 = vld [vmem:[%s1 + $0x7b8] sm:$0xf]
  %v525 = vld [vmem:[%s1 + $0x7bc] sm:$0xf]
  %v526 = vld [vmem:[%s1 + $0x7c0] sm:$0xf]
  %v527 = vld [vmem:[%s1 + $0x7c4] sm:$0xf]
  %v528 = vld [vmem:[%s1 + $0x7c8] sm:$0xf]
  %v529 = vld [vmem:[%s1 + $0x7cc] sm:$0xf]
  %v530 = vld [vmem:[%s1 + $0x7d0] sm:$0xf]
  %v531 = vld [vmem:[%s1 + $0x7d4] sm:$0xf]
  %v532 = vld [vmem:[%s1 + $0x7d8] sm:$0xf]
  %v533 = vld [vmem:[%s1 + $0x7dc] sm:$0xf]
  %v534 = vld [vmem:[%s1 + $0x7e0] sm:$0xf]
  %v535 = vld [vmem:[%s1 + $0x7e4] sm:$0xf]
  %v536 = vld [vmem:[%s1 + $0x7e8] sm:$0xf]
  %v537 = vld [vmem:[%s1 + $0x7ec] sm:$0xf]
  %v538 = vld [vmem:[%s1 + $0x7f0] sm:$0xf]
  %v539 = vld [vmem:[%s1 + $0x7f4] sm:$0xf]
  %v540 = vld [vmem:[%s1 + $0x7f8] sm:$0xf]
  %v541 = vld [vmem:[%s1 + $0x7fc] sm:$0xf]
  %v542 = vld [vmem:[%s2] sm:$0x1]
  %v544 = vperm.slane %v542, 0
  %v562 = vunpack.c.l.b16 %v14
  %v563 = vunpack.c.h.b16 %v14
  %v564 = vunpack.c.l.b16 %v15
  %v565 = vunpack.c.h.b16 %v15
  %v566 = vunpack.c.l.b16 %v16
  %v567 = vunpack.c.h.b16 %v16
  %v568 = vunpack.c.l.b16 %v17
  %v569 = vunpack.c.h.b16 %v17
  %v570 = vunpack.c.l.b16 %v18
  %v571 = vunpack.c.h.b16 %v18
  %v572 = vunpack.c.l.b16 %v19
  %v573 = vunpack.c.h.b16 %v19
  %v574 = vunpack.c.l.b16 %v20
  %v575 = vunpack.c.h.b16 %v20
  %v576 = vunpack.c.l.b16 %v21
  %v577 = vunpack.c.h.b16 %v21
  %v578 = vunpack.c.l.b16 %v22
  %v579 = vunpack.c.h.b16 %v22
  %v580 = vunpack.c.l.b16 %v23
  %v581 = vunpack.c.h.b16 %v23
  %v582 = vunpack.c.l.b16 %v24
  %v583 = vunpack.c.h.b16 %v24
  %v584 = vunpack.c.l.b16 %v25
  %v585 = vunpack.c.h.b16 %v25
  %v586 = vunpack.c.l.b16 %v26
  %v587 = vunpack.c.h.b16 %v26
  %v588 = vunpack.c.l.b16 %v27
  %v589 = vunpack.c.h.b16 %v27
  %v590 = vunpack.c.l.b16 %v28
  %v591 = vunpack.c.h.b16 %v28
  %v592 = vunpack.c.l.b16 %v29
  %v593 = vunpack.c.h.b16 %v29
  %v594 = vpack.c.b16 %v562, %v562
  %v595 = vpack.c.b16 %v563, %v563
  %v596 = vpack.c.b16 %v564, %v564
  %v597 = vpack.c.b16 %v565, %v565
  %v598 = vpack.c.b16 %v566, %v566
  %v599 = vpack.c.b16 %v567, %v567
  %v600 = vpack.c.b16 %v568, %v568
  %v601 = vpack.c.b16 %v569, %v569
  %v602 = vpack.c.b16 %v570, %v570
  %v603 = vpack.c.b16 %v571, %v571
  %v604 = vpack.c.b16 %v572, %v572
  %v605 = vpack.c.b16 %v573, %v573
  %v606 = vpack.c.b16 %v574, %v574
  %v607 = vpack.c.b16 %v575, %v575
  %v608 = vpack.c.b16 %v576, %v576
  %v609 = vpack.c.b16 %v577, %v577
  %v610 = vpack.c.b16 %v578, %v578
  %v611 = vpack.c.b16 %v579, %v579
  %v612 = vpack.c.b16 %v580, %v580
  %v613 = vpack.c.b16 %v581, %v581
  %v614 = vpack.c.b16 %v582, %v582
  %v615 = vpack.c.b16 %v583, %v583
  %v616 = vpack.c.b16 %v584, %v584
  %v617 = vpack.c.b16 %v585, %v585
  %v618 = vpack.c.b16 %v586, %v586
  %v619 = vpack.c.b16 %v587, %v587
  %v620 = vpack.c.b16 %v588, %v588
  %v621 = vpack.c.b16 %v589, %v589
  %v622 = vpack.c.b16 %v590, %v590
  %v623 = vpack.c.b16 %v591, %v591
  %v624 = vpack.c.b16 %v592, %v592
  %v625 = vpack.c.b16 %v593, %v593
  %v1170 = vunpack.c.l.b16 %v30
  %v1171 = vunpack.c.l.b16 %v31
  %v1172 = vunpack.c.l.b16 %v32
  %v1173 = vunpack.c.l.b16 %v33
  %v1174 = vunpack.c.l.b16 %v34
  %v1175 = vunpack.c.l.b16 %v35
  %v1176 = vunpack.c.l.b16 %v36
  %v1177 = vunpack.c.l.b16 %v37
  %v1178 = vunpack.c.l.b16 %v38
  %v1179 = vunpack.c.l.b16 %v39
  %v1180 = vunpack.c.l.b16 %v40
  %v1181 = vunpack.c.l.b16 %v41
  %v1182 = vunpack.c.l.b16 %v42
  %v1183 = vunpack.c.l.b16 %v43
  %v1184 = vunpack.c.l.b16 %v44
  %v1185 = vunpack.c.l.b16 %v45
  %v1186 = vunpack.c.l.b16 %v46
  %v1187 = vunpack.c.l.b16 %v47
  %v1188 = vunpack.c.l.b16 %v48
  %v1189 = vunpack.c.l.b16 %v49
  %v1190 = vunpack.c.l.b16 %v50
  %v1191 = vunpack.c.l.b16 %v51
  %v1192 = vunpack.c.l.b16 %v52
  %v1193 = vunpack.c.l.b16 %v53
  %v1194 = vunpack.c.l.b16 %v54
  %v1195 = vunpack.c.l.b16 %v55
  %v1196 = vunpack.c.l.b16 %v56
  %v1197 = vunpack.c.l.b16 %v57
  %v1198 = vunpack.c.l.b16 %v58
  %v1199 = vunpack.c.l.b16 %v59
  %v1200 = vunpack.c.l.b16 %v60
  %v1201 = vunpack.c.l.b16 %v61
  %v1202 = vunpack.c.l.b16 %v62
  %v1203 = vunpack.c.l.b16 %v63
  %v1204 = vunpack.c.l.b16 %v64
  %v1205 = vunpack.c.l.b16 %v65
  %v1206 = vunpack.c.l.b16 %v66
  %v1207 = vunpack.c.l.b16 %v67
  %v1208 = vunpack.c.l.b16 %v68
  %v1209 = vunpack.c.l.b16 %v69
  %v1210 = vunpack.c.l.b16 %v70
  %v1211 = vunpack.c.l.b16 %v71
  %v1212 = vunpack.c.l.b16 %v72
  %v1213 = vunpack.c.l.b16 %v73
  %v1214 = vunpack.c.l.b16 %v74
  %v1215 = vunpack.c.l.b16 %v75
  %v1216 = vunpack.c.l.b16 %v76
  %v1217 = vunpack.c.l.b16 %v77
  %v1218 = vunpack.c.l.b16 %v78
  %v1219 = vunpack.c.l.b16 %v79
  %v1220 = vunpack.c.l.b16 %v80
  %v1221 = vunpack.c.l.b16 %v81
  %v1222 = vunpack.c.l.b16 %v82
  %v1223 = vunpack.c.l.b16 %v83
  %v1224 = vunpack.c.l.b16 %v84
  %v1225 = vunpack.c.l.b16 %v85
  %v1226 = vunpack.c.l.b16 %v86
  %v1227 = vunpack.c.l.b16 %v87
  %v1228 = vunpack.c.l.b16 %v88
  %v1229 = vunpack.c.l.b16 %v89
  %v1230 = vunpack.c.l.b16 %v90
  %v1231 = vunpack.c.l.b16 %v91
  %v1232 = vunpack.c.l.b16 %v92
  %v1233 = vunpack.c.l.b16 %v93
  %v1234 = vunpack.c.l.b16 %v94
  %v1235 = vunpack.c.l.b16 %v95
  %v1236 = vunpack.c.l.b16 %v96
  %v1237 = vunpack.c.l.b16 %v97
  %v1238 = vunpack.c.l.b16 %v98
  %v1239 = vunpack.c.l.b16 %v99
  %v1240 = vunpack.c.l.b16 %v100
  %v1241 = vunpack.c.l.b16 %v101
  %v1242 = vunpack.c.l.b16 %v102
  %v1243 = vunpack.c.l.b16 %v103
  %v1244 = vunpack.c.l.b16 %v104
  %v1245 = vunpack.c.l.b16 %v105
  %v1246 = vunpack.c.l.b16 %v106
  %v1247 = vunpack.c.l.b16 %v107
  %v1248 = vunpack.c.l.b16 %v108
  %v1249 = vunpack.c.l.b16 %v109
  %v1250 = vunpack.c.l.b16 %v110
  %v1251 = vunpack.c.l.b16 %v111
  %v1252 = vunpack.c.l.b16 %v112
  %v1253 = vunpack.c.l.b16 %v113
  %v1254 = vunpack.c.l.b16 %v114
  %v1255 = vunpack.c.l.b16 %v115
  %v1256 = vunpack.c.l.b16 %v116
  %v1257 = vunpack.c.l.b16 %v117
  %v1258 = vunpack.c.l.b16 %v118
  %v1259 = vunpack.c.l.b16 %v119
  %v1260 = vunpack.c.l.b16 %v120
  %v1261 = vunpack.c.l.b16 %v121
  %v1262 = vunpack.c.l.b16 %v122
  %v1263 = vunpack.c.l.b16 %v123
  %v1264 = vunpack.c.l.b16 %v124
  %v1265 = vunpack.c.l.b16 %v125
  %v1266 = vunpack.c.l.b16 %v126
  %v1267 = vunpack.c.l.b16 %v127
  %v1268 = vunpack.c.l.b16 %v128
  %v1269 = vunpack.c.l.b16 %v129
  %v1270 = vunpack.c.l.b16 %v130
  %v1271 = vunpack.c.l.b16 %v131
  %v1272 = vunpack.c.l.b16 %v132
  %v1273 = vunpack.c.l.b16 %v133
  %v1274 = vunpack.c.l.b16 %v134
  %v1275 = vunpack.c.l.b16 %v135
  %v1276 = vunpack.c.l.b16 %v136
  %v1277 = vunpack.c.l.b16 %v137
  %v1278 = vunpack.c.l.b16 %v138
  %v1279 = vunpack.c.l.b16 %v139
  %v1280 = vunpack.c.l.b16 %v140
  %v1281 = vunpack.c.l.b16 %v141
  %v1282 = vunpack.c.l.b16 %v142
  %v1283 = vunpack.c.l.b16 %v143
  %v1284 = vunpack.c.l.b16 %v144
  %v1285 = vunpack.c.l.b16 %v145
  %v1286 = vunpack.c.l.b16 %v146
  %v1287 = vunpack.c.l.b16 %v147
  %v1288 = vunpack.c.l.b16 %v148
  %v1289 = vunpack.c.l.b16 %v149
  %v1290 = vunpack.c.l.b16 %v150
  %v1291 = vunpack.c.l.b16 %v151
  %v1292 = vunpack.c.l.b16 %v152
  %v1293 = vunpack.c.l.b16 %v153
  %v1294 = vunpack.c.l.b16 %v154
  %v1295 = vunpack.c.l.b16 %v155
  %v1296 = vunpack.c.l.b16 %v156
  %v1297 = vunpack.c.l.b16 %v157
  %v1298 = vunpack.c.l.b16 %v158
  %v1299 = vunpack.c.l.b16 %v159
  %v1300 = vunpack.c.l.b16 %v160
  %v1301 = vunpack.c.l.b16 %v161
  %v1302 = vunpack.c.l.b16 %v162
  %v1303 = vunpack.c.l.b16 %v163
  %v1304 = vunpack.c.l.b16 %v164
  %v1305 = vunpack.c.l.b16 %v165
  %v1306 = vunpack.c.l.b16 %v166
  %v1307 = vunpack.c.l.b16 %v167
  %v1308 = vunpack.c.l.b16 %v168
  %v1309 = vunpack.c.l.b16 %v169
  %v1310 = vunpack.c.l.b16 %v170
  %v1311 = vunpack.c.l.b16 %v171
  %v1312 = vunpack.c.l.b16 %v172
  %v1313 = vunpack.c.l.b16 %v173
  %v1314 = vunpack.c.l.b16 %v174
  %v1315 = vunpack.c.l.b16 %v175
  %v1316 = vunpack.c.l.b16 %v176
  %v1317 = vunpack.c.l.b16 %v177
  %v1318 = vunpack.c.l.b16 %v178
  %v1319 = vunpack.c.l.b16 %v179
  %v1320 = vunpack.c.l.b16 %v180
  %v1321 = vunpack.c.l.b16 %v181
  %v1322 = vunpack.c.l.b16 %v182
  %v1323 = vunpack.c.l.b16 %v183
  %v1324 = vunpack.c.l.b16 %v184
  %v1325 = vunpack.c.l.b16 %v185
  %v1326 = vunpack.c.l.b16 %v186
  %v1327 = vunpack.c.l.b16 %v187
  %v1328 = vunpack.c.l.b16 %v188
  %v1329 = vunpack.c.l.b16 %v189
  %v1330 = vunpack.c.l.b16 %v190
  %v1331 = vunpack.c.l.b16 %v191
  %v1332 = vunpack.c.l.b16 %v192
  %v1333 = vunpack.c.l.b16 %v193
  %v1334 = vunpack.c.l.b16 %v194
  %v1335 = vunpack.c.l.b16 %v195
  %v1336 = vunpack.c.l.b16 %v196
  %v1337 = vunpack.c.l.b16 %v197
  %v1338 = vunpack.c.l.b16 %v198
  %v1339 = vunpack.c.l.b16 %v199
  %v1340 = vunpack.c.l.b16 %v200
  %v1341 = vunpack.c.l.b16 %v201
  %v1342 = vunpack.c.l.b16 %v202
  %v1343 = vunpack.c.l.b16 %v203
  %v1344 = vunpack.c.l.b16 %v204
  %v1345 = vunpack.c.l.b16 %v205
  %v1346 = vunpack.c.l.b16 %v206
  %v1347 = vunpack.c.l.b16 %v207
  %v1348 = vunpack.c.l.b16 %v208
  %v1349 = vunpack.c.l.b16 %v209
  %v1350 = vunpack.c.l.b16 %v210
  %v1351 = vunpack.c.l.b16 %v211
  %v1352 = vunpack.c.l.b16 %v212
  %v1353 = vunpack.c.l.b16 %v213
  %v1354 = vunpack.c.l.b16 %v214
  %v1355 = vunpack.c.l.b16 %v215
  %v1356 = vunpack.c.l.b16 %v216
  %v1357 = vunpack.c.l.b16 %v217
  %v1358 = vunpack.c.l.b16 %v218
  %v1359 = vunpack.c.l.b16 %v219
  %v1360 = vunpack.c.l.b16 %v220
  %v1361 = vunpack.c.l.b16 %v221
  %v1362 = vunpack.c.l.b16 %v222
  %v1363 = vunpack.c.l.b16 %v223
  %v1364 = vunpack.c.l.b16 %v224
  %v1365 = vunpack.c.l.b16 %v225
  %v1366 = vunpack.c.l.b16 %v226
  %v1367 = vunpack.c.l.b16 %v227
  %v1368 = vunpack.c.l.b16 %v228
  %v1369 = vunpack.c.l.b16 %v229
  %v1370 = vunpack.c.l.b16 %v230
  %v1371 = vunpack.c.l.b16 %v231
  %v1372 = vunpack.c.l.b16 %v232
  %v1373 = vunpack.c.l.b16 %v233
  %v1374 = vunpack.c.l.b16 %v234
  %v1375 = vunpack.c.l.b16 %v235
  %v1376 = vunpack.c.l.b16 %v236
  %v1377 = vunpack.c.l.b16 %v237
  %v1378 = vunpack.c.l.b16 %v238
  %v1379 = vunpack.c.l.b16 %v239
  %v1380 = vunpack.c.l.b16 %v240
  %v1381 = vunpack.c.l.b16 %v241
  %v1382 = vunpack.c.l.b16 %v242
  %v1383 = vunpack.c.l.b16 %v243
  %v1384 = vunpack.c.l.b16 %v244
  %v1385 = vunpack.c.l.b16 %v245
  %v1386 = vunpack.c.l.b16 %v246
  %v1387 = vunpack.c.l.b16 %v247
  %v1388 = vunpack.c.l.b16 %v248
  %v1389 = vunpack.c.l.b16 %v249
  %v1390 = vunpack.c.l.b16 %v250
  %v1391 = vunpack.c.l.b16 %v251
  %v1392 = vunpack.c.l.b16 %v252
  %v1393 = vunpack.c.l.b16 %v253
  %v1394 = vunpack.c.l.b16 %v254
  %v1395 = vunpack.c.l.b16 %v255
  %v1396 = vunpack.c.l.b16 %v256
  %v1397 = vunpack.c.l.b16 %v257
  %v1398 = vunpack.c.l.b16 %v258
  %v1399 = vunpack.c.l.b16 %v259
  %v1400 = vunpack.c.l.b16 %v260
  %v1401 = vunpack.c.l.b16 %v261
  %v1402 = vunpack.c.l.b16 %v262
  %v1403 = vunpack.c.l.b16 %v263
  %v1404 = vunpack.c.l.b16 %v264
  %v1405 = vunpack.c.l.b16 %v265
  %v1406 = vunpack.c.l.b16 %v266
  %v1407 = vunpack.c.l.b16 %v267
  %v1408 = vunpack.c.l.b16 %v268
  %v1409 = vunpack.c.l.b16 %v269
  %v1410 = vunpack.c.l.b16 %v270
  %v1411 = vunpack.c.l.b16 %v271
  %v1412 = vunpack.c.l.b16 %v272
  %v1413 = vunpack.c.l.b16 %v273
  %v1414 = vunpack.c.l.b16 %v274
  %v1415 = vunpack.c.l.b16 %v275
  %v1416 = vunpack.c.l.b16 %v276
  %v1417 = vunpack.c.l.b16 %v277
  %v1418 = vunpack.c.l.b16 %v278
  %v1419 = vunpack.c.l.b16 %v279
  %v1420 = vunpack.c.l.b16 %v280
  %v1421 = vunpack.c.l.b16 %v281
  %v1422 = vunpack.c.l.b16 %v282
  %v1423 = vunpack.c.l.b16 %v283
  %v1424 = vunpack.c.l.b16 %v284
  %v1425 = vunpack.c.l.b16 %v285
  %v1426 = vunpack.c.l.b16 %v286
  %v1427 = vunpack.c.l.b16 %v287
  %v1428 = vunpack.c.l.b16 %v288
  %v1429 = vunpack.c.l.b16 %v289
  %v1430 = vunpack.c.l.b16 %v290
  %v1431 = vunpack.c.l.b16 %v291
  %v1432 = vunpack.c.l.b16 %v292
  %v1433 = vunpack.c.l.b16 %v293
  %v1434 = vunpack.c.l.b16 %v294
  %v1435 = vunpack.c.l.b16 %v295
  %v1436 = vunpack.c.l.b16 %v296
  %v1437 = vunpack.c.l.b16 %v297
  %v1438 = vunpack.c.l.b16 %v298
  %v1439 = vunpack.c.l.b16 %v299
  %v1440 = vunpack.c.l.b16 %v300
  %v1441 = vunpack.c.l.b16 %v301
  %v1442 = vunpack.c.l.b16 %v302
  %v1443 = vunpack.c.l.b16 %v303
  %v1444 = vunpack.c.l.b16 %v304
  %v1445 = vunpack.c.l.b16 %v305
  %v1446 = vunpack.c.l.b16 %v306
  %v1447 = vunpack.c.l.b16 %v307
  %v1448 = vunpack.c.l.b16 %v308
  %v1449 = vunpack.c.l.b16 %v309
  %v1450 = vunpack.c.l.b16 %v310
  %v1451 = vunpack.c.l.b16 %v311
  %v1452 = vunpack.c.l.b16 %v312
  %v1453 = vunpack.c.l.b16 %v313
  %v1454 = vunpack.c.l.b16 %v314
  %v1455 = vunpack.c.l.b16 %v315
  %v1456 = vunpack.c.l.b16 %v316
  %v1457 = vunpack.c.l.b16 %v317
  %v1458 = vunpack.c.l.b16 %v318
  %v1459 = vunpack.c.l.b16 %v319
  %v1460 = vunpack.c.l.b16 %v320
  %v1461 = vunpack.c.l.b16 %v321
  %v1462 = vunpack.c.l.b16 %v322
  %v1463 = vunpack.c.l.b16 %v323
  %v1464 = vunpack.c.l.b16 %v324
  %v1465 = vunpack.c.l.b16 %v325
  %v1466 = vunpack.c.l.b16 %v326
  %v1467 = vunpack.c.l.b16 %v327
  %v1468 = vunpack.c.l.b16 %v328
  %v1469 = vunpack.c.l.b16 %v329
  %v1470 = vunpack.c.l.b16 %v330
  %v1471 = vunpack.c.l.b16 %v331
  %v1472 = vunpack.c.l.b16 %v332
  %v1473 = vunpack.c.l.b16 %v333
  %v1474 = vunpack.c.l.b16 %v334
  %v1475 = vunpack.c.l.b16 %v335
  %v1476 = vunpack.c.l.b16 %v336
  %v1477 = vunpack.c.l.b16 %v337
  %v1478 = vunpack.c.l.b16 %v338
  %v1479 = vunpack.c.l.b16 %v339
  %v1480 = vunpack.c.l.b16 %v340
  %v1481 = vunpack.c.l.b16 %v341
  %v1482 = vunpack.c.l.b16 %v342
  %v1483 = vunpack.c.l.b16 %v343
  %v1484 = vunpack.c.l.b16 %v344
  %v1485 = vunpack.c.l.b16 %v345
  %v1486 = vunpack.c.l.b16 %v346
  %v1487 = vunpack.c.l.b16 %v347
  %v1488 = vunpack.c.l.b16 %v348
  %v1489 = vunpack.c.l.b16 %v349
  %v1490 = vunpack.c.l.b16 %v350
  %v1491 = vunpack.c.l.b16 %v351
  %v1492 = vunpack.c.l.b16 %v352
  %v1493 = vunpack.c.l.b16 %v353
  %v1494 = vunpack.c.l.b16 %v354
  %v1495 = vunpack.c.l.b16 %v355
  %v1496 = vunpack.c.l.b16 %v356
  %v1497 = vunpack.c.l.b16 %v357
  %v1498 = vunpack.c.l.b16 %v358
  %v1499 = vunpack.c.l.b16 %v359
  %v1500 = vunpack.c.l.b16 %v360
  %v1501 = vunpack.c.l.b16 %v361
  %v1502 = vunpack.c.l.b16 %v362
  %v1503 = vunpack.c.l.b16 %v363
  %v1504 = vunpack.c.l.b16 %v364
  %v1505 = vunpack.c.l.b16 %v365
  %v1506 = vunpack.c.l.b16 %v366
  %v1507 = vunpack.c.l.b16 %v367
  %v1508 = vunpack.c.l.b16 %v368
  %v1509 = vunpack.c.l.b16 %v369
  %v1510 = vunpack.c.l.b16 %v370
  %v1511 = vunpack.c.l.b16 %v371
  %v1512 = vunpack.c.l.b16 %v372
  %v1513 = vunpack.c.l.b16 %v373
  %v1514 = vunpack.c.l.b16 %v374
  %v1515 = vunpack.c.l.b16 %v375
  %v1516 = vunpack.c.l.b16 %v376
  %v1517 = vunpack.c.l.b16 %v377
  %v1518 = vunpack.c.l.b16 %v378
  %v1519 = vunpack.c.l.b16 %v379
  %v1520 = vunpack.c.l.b16 %v380
  %v1521 = vunpack.c.l.b16 %v381
  %v1522 = vunpack.c.l.b16 %v382
  %v1523 = vunpack.c.l.b16 %v383
  %v1524 = vunpack.c.l.b16 %v384
  %v1525 = vunpack.c.l.b16 %v385
  %v1526 = vunpack.c.l.b16 %v386
  %v1527 = vunpack.c.l.b16 %v387
  %v1528 = vunpack.c.l.b16 %v388
  %v1529 = vunpack.c.l.b16 %v389
  %v1530 = vunpack.c.l.b16 %v390
  %v1531 = vunpack.c.l.b16 %v391
  %v1532 = vunpack.c.l.b16 %v392
  %v1533 = vunpack.c.l.b16 %v393
  %v1534 = vunpack.c.l.b16 %v394
  %v1535 = vunpack.c.l.b16 %v395
  %v1536 = vunpack.c.l.b16 %v396
  %v1537 = vunpack.c.l.b16 %v397
  %v1538 = vunpack.c.l.b16 %v398
  %v1539 = vunpack.c.l.b16 %v399
  %v1540 = vunpack.c.l.b16 %v400
  %v1541 = vunpack.c.l.b16 %v401
  %v1542 = vunpack.c.l.b16 %v402
  %v1543 = vunpack.c.l.b16 %v403
  %v1544 = vunpack.c.l.b16 %v404
  %v1545 = vunpack.c.l.b16 %v405
  %v1546 = vunpack.c.l.b16 %v406
  %v1547 = vunpack.c.l.b16 %v407
  %v1548 = vunpack.c.l.b16 %v408
  %v1549 = vunpack.c.l.b16 %v409
  %v1550 = vunpack.c.l.b16 %v410
  %v1551 = vunpack.c.l.b16 %v411
  %v1552 = vunpack.c.l.b16 %v412
  %v1553 = vunpack.c.l.b16 %v413
  %v1554 = vunpack.c.l.b16 %v414
  %v1555 = vunpack.c.l.b16 %v415
  %v1556 = vunpack.c.l.b16 %v416
  %v1557 = vunpack.c.l.b16 %v417
  %v1558 = vunpack.c.l.b16 %v418
  %v1559 = vunpack.c.l.b16 %v419
  %v1560 = vunpack.c.l.b16 %v420
  %v1561 = vunpack.c.l.b16 %v421
  %v1562 = vunpack.c.l.b16 %v422
  %v1563 = vunpack.c.l.b16 %v423
  %v1564 = vunpack.c.l.b16 %v424
  %v1565 = vunpack.c.l.b16 %v425
  %v1566 = vunpack.c.l.b16 %v426
  %v1567 = vunpack.c.l.b16 %v427
  %v1568 = vunpack.c.l.b16 %v428
  %v1569 = vunpack.c.l.b16 %v429
  %v1570 = vunpack.c.l.b16 %v430
  %v1571 = vunpack.c.l.b16 %v431
  %v1572 = vunpack.c.l.b16 %v432
  %v1573 = vunpack.c.l.b16 %v433
  %v1574 = vunpack.c.l.b16 %v434
  %v1575 = vunpack.c.l.b16 %v435
  %v1576 = vunpack.c.l.b16 %v436
  %v1577 = vunpack.c.l.b16 %v437
  %v1578 = vunpack.c.l.b16 %v438
  %v1579 = vunpack.c.l.b16 %v439
  %v1580 = vunpack.c.l.b16 %v440
  %v1581 = vunpack.c.l.b16 %v441
  %v1582 = vunpack.c.l.b16 %v442
  %v1583 = vunpack.c.l.b16 %v443
  %v1584 = vunpack.c.l.b16 %v444
  %v1585 = vunpack.c.l.b16 %v445
  %v1586 = vunpack.c.l.b16 %v446
  %v1587 = vunpack.c.l.b16 %v447
  %v1588 = vunpack.c.l.b16 %v448
  %v1589 = vunpack.c.l.b16 %v449
  %v1590 = vunpack.c.l.b16 %v450
  %v1591 = vunpack.c.l.b16 %v451
  %v1592 = vunpack.c.l.b16 %v452
  %v1593 = vunpack.c.l.b16 %v453
  %v1594 = vunpack.c.l.b16 %v454
  %v1595 = vunpack.c.l.b16 %v455
  %v1596 = vunpack.c.l.b16 %v456
  %v1597 = vunpack.c.l.b16 %v457
  %v1598 = vunpack.c.l.b16 %v458
  %v1599 = vunpack.c.l.b16 %v459
  %v1600 = vunpack.c.l.b16 %v460
  %v1601 = vunpack.c.l.b16 %v461
  %v1602 = vunpack.c.l.b16 %v462
  %v1603 = vunpack.c.l.b16 %v463
  %v1604 = vunpack.c.l.b16 %v464
  %v1605 = vunpack.c.l.b16 %v465
  %v1606 = vunpack.c.l.b16 %v466
  %v1607 = vunpack.c.l.b16 %v467
  %v1608 = vunpack.c.l.b16 %v468
  %v1609 = vunpack.c.l.b16 %v469
  %v1610 = vunpack.c.l.b16 %v470
  %v1611 = vunpack.c.l.b16 %v471
  %v1612 = vunpack.c.l.b16 %v472
  %v1613 = vunpack.c.l.b16 %v473
  %v1614 = vunpack.c.l.b16 %v474
  %v1615 = vunpack.c.l.b16 %v475
  %v1616 = vunpack.c.l.b16 %v476
  %v1617 = vunpack.c.l.b16 %v477
  %v1618 = vunpack.c.l.b16 %v478
  %v1619 = vunpack.c.l.b16 %v479
  %v1620 = vunpack.c.l.b16 %v480
  %v1621 = vunpack.c.l.b16 %v481
  %v1622 = vunpack.c.l.b16 %v482
  %v1623 = vunpack.c.l.b16 %v483
  %v1624 = vunpack.c.l.b16 %v484
  %v1625 = vunpack.c.l.b16 %v485
  %v1626 = vunpack.c.l.b16 %v486
  %v1627 = vunpack.c.l.b16 %v487
  %v1628 = vunpack.c.l.b16 %v488
  %v1629 = vunpack.c.l.b16 %v489
  %v1630 = vunpack.c.l.b16 %v490
  %v1631 = vunpack.c.l.b16 %v491
  %v1632 = vunpack.c.l.b16 %v492
  %v1633 = vunpack.c.l.b16 %v493
  %v1634 = vunpack.c.l.b16 %v494
  %v1635 = vunpack.c.l.b16 %v495
  %v1636 = vunpack.c.l.b16 %v496
  %v1637 = vunpack.c.l.b16 %v497
  %v1638 = vunpack.c.l.b16 %v498
  %v1639 = vunpack.c.l.b16 %v499
  %v1640 = vunpack.c.l.b16 %v500
  %v1641 = vunpack.c.l.b16 %v501
  %v1642 = vunpack.c.l.b16 %v502
  %v1643 = vunpack.c.l.b16 %v503
  %v1644 = vunpack.c.l.b16 %v504
  %v1645 = vunpack.c.l.b16 %v505
  %v1646 = vunpack.c.l.b16 %v506
  %v1647 = vunpack.c.l.b16 %v507
  %v1648 = vunpack.c.l.b16 %v508
  %v1649 = vunpack.c.l.b16 %v509
  %v1650 = vunpack.c.l.b16 %v510
  %v1651 = vunpack.c.l.b16 %v511
  %v1652 = vunpack.c.l.b16 %v512
  %v1653 = vunpack.c.l.b16 %v513
  %v1654 = vunpack.c.l.b16 %v514
  %v1655 = vunpack.c.l.b16 %v515
  %v1656 = vunpack.c.l.b16 %v516
  %v1657 = vunpack.c.l.b16 %v517
  %v1658 = vunpack.c.l.b16 %v518
  %v1659 = vunpack.c.l.b16 %v519
  %v1660 = vunpack.c.l.b16 %v520
  %v1661 = vunpack.c.l.b16 %v521
  %v1662 = vunpack.c.l.b16 %v522
  %v1663 = vunpack.c.l.b16 %v523
  %v1664 = vunpack.c.l.b16 %v524
  %v1665 = vunpack.c.l.b16 %v525
  %v1666 = vunpack.c.l.b16 %v526
  %v1667 = vunpack.c.l.b16 %v527
  %v1668 = vunpack.c.l.b16 %v528
  %v1669 = vunpack.c.l.b16 %v529
  %v1670 = vunpack.c.l.b16 %v530
  %v1671 = vunpack.c.l.b16 %v531
  %v1672 = vunpack.c.l.b16 %v532
  %v1673 = vunpack.c.l.b16 %v533
  %v1674 = vunpack.c.l.b16 %v534
  %v1675 = vunpack.c.l.b16 %v535
  %v1676 = vunpack.c.l.b16 %v536
  %v1677 = vunpack.c.l.b16 %v537
  %v1678 = vunpack.c.l.b16 %v538
  %v1679 = vunpack.c.l.b16 %v539
  %v1680 = vunpack.c.l.b16 %v540
  %v1681 = vunpack.c.l.b16 %v541
  %v1682 = vpack.c.b16 %v1171, %v1170
  %v1683 = vpack.c.b16 %v1173, %v1172
  %v1684 = vpack.c.b16 %v1175, %v1174
  %v1685 = vpack.c.b16 %v1177, %v1176
  %v1686 = vpack.c.b16 %v1179, %v1178
  %v1687 = vpack.c.b16 %v1181, %v1180
  %v1688 = vpack.c.b16 %v1183, %v1182
  %v1689 = vpack.c.b16 %v1185, %v1184
  %v1690 = vpack.c.b16 %v1187, %v1186
  %v1691 = vpack.c.b16 %v1189, %v1188
  %v1692 = vpack.c.b16 %v1191, %v1190
  %v1693 = vpack.c.b16 %v1193, %v1192
  %v1694 = vpack.c.b16 %v1195, %v1194
  %v1695 = vpack.c.b16 %v1197, %v1196
  %v1696 = vpack.c.b16 %v1199, %v1198
  %v1697 = vpack.c.b16 %v1201, %v1200
  %v1698 = vpack.c.b16 %v1203, %v1202
  %v1699 = vpack.c.b16 %v1205, %v1204
  %v1700 = vpack.c.b16 %v1207, %v1206
  %v1701 = vpack.c.b16 %v1209, %v1208
  %v1702 = vpack.c.b16 %v1211, %v1210
  %v1703 = vpack.c.b16 %v1213, %v1212
  %v1704 = vpack.c.b16 %v1215, %v1214
  %v1705 = vpack.c.b16 %v1217, %v1216
  %v1706 = vpack.c.b16 %v1219, %v1218
  %v1707 = vpack.c.b16 %v1221, %v1220
  %v1708 = vpack.c.b16 %v1223, %v1222
  %v1709 = vpack.c.b16 %v1225, %v1224
  %v1710 = vpack.c.b16 %v1227, %v1226
  %v1711 = vpack.c.b16 %v1229, %v1228
  %v1712 = vpack.c.b16 %v1231, %v1230
  %v1713 = vpack.c.b16 %v1233, %v1232
  %v1714 = vpack.c.b16 %v1235, %v1234
  %v1715 = vpack.c.b16 %v1237, %v1236
  %v1716 = vpack.c.b16 %v1239, %v1238
  %v1717 = vpack.c.b16 %v1241, %v1240
  %v1718 = vpack.c.b16 %v1243, %v1242
  %v1719 = vpack.c.b16 %v1245, %v1244
  %v1720 = vpack.c.b16 %v1247, %v1246
  %v1721 = vpack.c.b16 %v1249, %v1248
  %v1722 = vpack.c.b16 %v1251, %v1250
  %v1723 = vpack.c.b16 %v1253, %v1252
  %v1724 = vpack.c.b16 %v1255, %v1254
  %v1725 = vpack.c.b16 %v1257, %v1256
  %v1726 = vpack.c.b16 %v1259, %v1258
  %v1727 = vpack.c.b16 %v1261, %v1260
  %v1728 = vpack.c.b16 %v1263, %v1262
  %v1729 = vpack.c.b16 %v1265, %v1264
  %v1730 = vpack.c.b16 %v1267, %v1266
  %v1731 = vpack.c.b16 %v1269, %v1268
  %v1732 = vpack.c.b16 %v1271, %v1270
  %v1733 = vpack.c.b16 %v1273, %v1272
  %v1734 = vpack.c.b16 %v1275, %v1274
  %v1735 = vpack.c.b16 %v1277, %v1276
  %v1736 = vpack.c.b16 %v1279, %v1278
  %v1737 = vpack.c.b16 %v1281, %v1280
  %v1738 = vpack.c.b16 %v1283, %v1282
  %v1739 = vpack.c.b16 %v1285, %v1284
  %v1740 = vpack.c.b16 %v1287, %v1286
  %v1741 = vpack.c.b16 %v1289, %v1288
  %v1742 = vpack.c.b16 %v1291, %v1290
  %v1743 = vpack.c.b16 %v1293, %v1292
  %v1744 = vpack.c.b16 %v1295, %v1294
  %v1745 = vpack.c.b16 %v1297, %v1296
  %v1746 = vpack.c.b16 %v1299, %v1298
  %v1747 = vpack.c.b16 %v1301, %v1300
  %v1748 = vpack.c.b16 %v1303, %v1302
  %v1749 = vpack.c.b16 %v1305, %v1304
  %v1750 = vpack.c.b16 %v1307, %v1306
  %v1751 = vpack.c.b16 %v1309, %v1308
  %v1752 = vpack.c.b16 %v1311, %v1310
  %v1753 = vpack.c.b16 %v1313, %v1312
  %v1754 = vpack.c.b16 %v1315, %v1314
  %v1755 = vpack.c.b16 %v1317, %v1316
  %v1756 = vpack.c.b16 %v1319, %v1318
  %v1757 = vpack.c.b16 %v1321, %v1320
  %v1758 = vpack.c.b16 %v1323, %v1322
  %v1759 = vpack.c.b16 %v1325, %v1324
  %v1760 = vpack.c.b16 %v1327, %v1326
  %v1761 = vpack.c.b16 %v1329, %v1328
  %v1762 = vpack.c.b16 %v1331, %v1330
  %v1763 = vpack.c.b16 %v1333, %v1332
  %v1764 = vpack.c.b16 %v1335, %v1334
  %v1765 = vpack.c.b16 %v1337, %v1336
  %v1766 = vpack.c.b16 %v1339, %v1338
  %v1767 = vpack.c.b16 %v1341, %v1340
  %v1768 = vpack.c.b16 %v1343, %v1342
  %v1769 = vpack.c.b16 %v1345, %v1344
  %v1770 = vpack.c.b16 %v1347, %v1346
  %v1771 = vpack.c.b16 %v1349, %v1348
  %v1772 = vpack.c.b16 %v1351, %v1350
  %v1773 = vpack.c.b16 %v1353, %v1352
  %v1774 = vpack.c.b16 %v1355, %v1354
  %v1775 = vpack.c.b16 %v1357, %v1356
  %v1776 = vpack.c.b16 %v1359, %v1358
  %v1777 = vpack.c.b16 %v1361, %v1360
  %v1778 = vpack.c.b16 %v1363, %v1362
  %v1779 = vpack.c.b16 %v1365, %v1364
  %v1780 = vpack.c.b16 %v1367, %v1366
  %v1781 = vpack.c.b16 %v1369, %v1368
  %v1782 = vpack.c.b16 %v1371, %v1370
  %v1783 = vpack.c.b16 %v1373, %v1372
  %v1784 = vpack.c.b16 %v1375, %v1374
  %v1785 = vpack.c.b16 %v1377, %v1376
  %v1786 = vpack.c.b16 %v1379, %v1378
  %v1787 = vpack.c.b16 %v1381, %v1380
  %v1788 = vpack.c.b16 %v1383, %v1382
  %v1789 = vpack.c.b16 %v1385, %v1384
  %v1790 = vpack.c.b16 %v1387, %v1386
  %v1791 = vpack.c.b16 %v1389, %v1388
  %v1792 = vpack.c.b16 %v1391, %v1390
  %v1793 = vpack.c.b16 %v1393, %v1392
  %v1794 = vpack.c.b16 %v1395, %v1394
  %v1795 = vpack.c.b16 %v1397, %v1396
  %v1796 = vpack.c.b16 %v1399, %v1398
  %v1797 = vpack.c.b16 %v1401, %v1400
  %v1798 = vpack.c.b16 %v1403, %v1402
  %v1799 = vpack.c.b16 %v1405, %v1404
  %v1800 = vpack.c.b16 %v1407, %v1406
  %v1801 = vpack.c.b16 %v1409, %v1408
  %v1802 = vpack.c.b16 %v1411, %v1410
  %v1803 = vpack.c.b16 %v1413, %v1412
  %v1804 = vpack.c.b16 %v1415, %v1414
  %v1805 = vpack.c.b16 %v1417, %v1416
  %v1806 = vpack.c.b16 %v1419, %v1418
  %v1807 = vpack.c.b16 %v1421, %v1420
  %v1808 = vpack.c.b16 %v1423, %v1422
  %v1809 = vpack.c.b16 %v1425, %v1424
  %v1810 = vpack.c.b16 %v1427, %v1426
  %v1811 = vpack.c.b16 %v1429, %v1428
  %v1812 = vpack.c.b16 %v1431, %v1430
  %v1813 = vpack.c.b16 %v1433, %v1432
  %v1814 = vpack.c.b16 %v1435, %v1434
  %v1815 = vpack.c.b16 %v1437, %v1436
  %v1816 = vpack.c.b16 %v1439, %v1438
  %v1817 = vpack.c.b16 %v1441, %v1440
  %v1818 = vpack.c.b16 %v1443, %v1442
  %v1819 = vpack.c.b16 %v1445, %v1444
  %v1820 = vpack.c.b16 %v1447, %v1446
  %v1821 = vpack.c.b16 %v1449, %v1448
  %v1822 = vpack.c.b16 %v1451, %v1450
  %v1823 = vpack.c.b16 %v1453, %v1452
  %v1824 = vpack.c.b16 %v1455, %v1454
  %v1825 = vpack.c.b16 %v1457, %v1456
  %v1826 = vpack.c.b16 %v1459, %v1458
  %v1827 = vpack.c.b16 %v1461, %v1460
  %v1828 = vpack.c.b16 %v1463, %v1462
  %v1829 = vpack.c.b16 %v1465, %v1464
  %v1830 = vpack.c.b16 %v1467, %v1466
  %v1831 = vpack.c.b16 %v1469, %v1468
  %v1832 = vpack.c.b16 %v1471, %v1470
  %v1833 = vpack.c.b16 %v1473, %v1472
  %v1834 = vpack.c.b16 %v1475, %v1474
  %v1835 = vpack.c.b16 %v1477, %v1476
  %v1836 = vpack.c.b16 %v1479, %v1478
  %v1837 = vpack.c.b16 %v1481, %v1480
  %v1838 = vpack.c.b16 %v1483, %v1482
  %v1839 = vpack.c.b16 %v1485, %v1484
  %v1840 = vpack.c.b16 %v1487, %v1486
  %v1841 = vpack.c.b16 %v1489, %v1488
  %v1842 = vpack.c.b16 %v1491, %v1490
  %v1843 = vpack.c.b16 %v1493, %v1492
  %v1844 = vpack.c.b16 %v1495, %v1494
  %v1845 = vpack.c.b16 %v1497, %v1496
  %v1846 = vpack.c.b16 %v1499, %v1498
  %v1847 = vpack.c.b16 %v1501, %v1500
  %v1848 = vpack.c.b16 %v1503, %v1502
  %v1849 = vpack.c.b16 %v1505, %v1504
  %v1850 = vpack.c.b16 %v1507, %v1506
  %v1851 = vpack.c.b16 %v1509, %v1508
  %v1852 = vpack.c.b16 %v1511, %v1510
  %v1853 = vpack.c.b16 %v1513, %v1512
  %v1854 = vpack.c.b16 %v1515, %v1514
  %v1855 = vpack.c.b16 %v1517, %v1516
  %v1856 = vpack.c.b16 %v1519, %v1518
  %v1857 = vpack.c.b16 %v1521, %v1520
  %v1858 = vpack.c.b16 %v1523, %v1522
  %v1859 = vpack.c.b16 %v1525, %v1524
  %v1860 = vpack.c.b16 %v1527, %v1526
  %v1861 = vpack.c.b16 %v1529, %v1528
  %v1862 = vpack.c.b16 %v1531, %v1530
  %v1863 = vpack.c.b16 %v1533, %v1532
  %v1864 = vpack.c.b16 %v1535, %v1534
  %v1865 = vpack.c.b16 %v1537, %v1536
  %v1866 = vpack.c.b16 %v1539, %v1538
  %v1867 = vpack.c.b16 %v1541, %v1540
  %v1868 = vpack.c.b16 %v1543, %v1542
  %v1869 = vpack.c.b16 %v1545, %v1544
  %v1870 = vpack.c.b16 %v1547, %v1546
  %v1871 = vpack.c.b16 %v1549, %v1548
  %v1872 = vpack.c.b16 %v1551, %v1550
  %v1873 = vpack.c.b16 %v1553, %v1552
  %v1874 = vpack.c.b16 %v1555, %v1554
  %v1875 = vpack.c.b16 %v1557, %v1556
  %v1876 = vpack.c.b16 %v1559, %v1558
  %v1877 = vpack.c.b16 %v1561, %v1560
  %v1878 = vpack.c.b16 %v1563, %v1562
  %v1879 = vpack.c.b16 %v1565, %v1564
  %v1880 = vpack.c.b16 %v1567, %v1566
  %v1881 = vpack.c.b16 %v1569, %v1568
  %v1882 = vpack.c.b16 %v1571, %v1570
  %v1883 = vpack.c.b16 %v1573, %v1572
  %v1884 = vpack.c.b16 %v1575, %v1574
  %v1885 = vpack.c.b16 %v1577, %v1576
  %v1886 = vpack.c.b16 %v1579, %v1578
  %v1887 = vpack.c.b16 %v1581, %v1580
  %v1888 = vpack.c.b16 %v1583, %v1582
  %v1889 = vpack.c.b16 %v1585, %v1584
  %v1890 = vpack.c.b16 %v1587, %v1586
  %v1891 = vpack.c.b16 %v1589, %v1588
  %v1892 = vpack.c.b16 %v1591, %v1590
  %v1893 = vpack.c.b16 %v1593, %v1592
  %v1894 = vpack.c.b16 %v1595, %v1594
  %v1895 = vpack.c.b16 %v1597, %v1596
  %v1896 = vpack.c.b16 %v1599, %v1598
  %v1897 = vpack.c.b16 %v1601, %v1600
  %v1898 = vpack.c.b16 %v1603, %v1602
  %v1899 = vpack.c.b16 %v1605, %v1604
  %v1900 = vpack.c.b16 %v1607, %v1606
  %v1901 = vpack.c.b16 %v1609, %v1608
  %v1902 = vpack.c.b16 %v1611, %v1610
  %v1903 = vpack.c.b16 %v1613, %v1612
  %v1904 = vpack.c.b16 %v1615, %v1614
  %v1905 = vpack.c.b16 %v1617, %v1616
  %v1906 = vpack.c.b16 %v1619, %v1618
  %v1907 = vpack.c.b16 %v1621, %v1620
  %v1908 = vpack.c.b16 %v1623, %v1622
  %v1909 = vpack.c.b16 %v1625, %v1624
  %v1910 = vpack.c.b16 %v1627, %v1626
  %v1911 = vpack.c.b16 %v1629, %v1628
  %v1912 = vpack.c.b16 %v1631, %v1630
  %v1913 = vpack.c.b16 %v1633, %v1632
  %v1914 = vpack.c.b16 %v1635, %v1634
  %v1915 = vpack.c.b16 %v1637, %v1636
  %v1916 = vpack.c.b16 %v1639, %v1638
  %v1917 = vpack.c.b16 %v1641, %v1640
  %v1918 = vpack.c.b16 %v1643, %v1642
  %v1919 = vpack.c.b16 %v1645, %v1644
  %v1920 = vpack.c.b16 %v1647, %v1646
  %v1921 = vpack.c.b16 %v1649, %v1648
  %v1922 = vpack.c.b16 %v1651, %v1650
  %v1923 = vpack.c.b16 %v1653, %v1652
  %v1924 = vpack.c.b16 %v1655, %v1654
  %v1925 = vpack.c.b16 %v1657, %v1656
  %v1926 = vpack.c.b16 %v1659, %v1658
  %v1927 = vpack.c.b16 %v1661, %v1660
  %v1928 = vpack.c.b16 %v1663, %v1662
  %v1929 = vpack.c.b16 %v1665, %v1664
  %v1930 = vpack.c.b16 %v1667, %v1666
  %v1931 = vpack.c.b16 %v1669, %v1668
  %v1932 = vpack.c.b16 %v1671, %v1670
  %v1933 = vpack.c.b16 %v1673, %v1672
  %v1934 = vpack.c.b16 %v1675, %v1674
  %v1935 = vpack.c.b16 %v1677, %v1676
  %v1936 = vpack.c.b16 %v1679, %v1678
  %v1937 = vpack.c.b16 %v1681, %v1680
  %2194 = vmatpush.bf16.msra.mxu0 %v1689
  %2195 = vmatpush.bf16.msra.mxu0 %v1688
  %2196 = vmatpush.bf16.msra.mxu0 %v1687
  %2197 = vmatpush.bf16.msra.mxu0 %v1686
  %2198 = vmatpush.bf16.msra.mxu0 %v1685
  %2199 = vmatpush.bf16.msra.mxu0 %v1684
  %2200 = vmatpush.bf16.msra.mxu0 %v1683
  %2201 = vmatpush.bf16.msra.mxu0 %v1682
  %2202 = vmatmul.bf16.gmra.mxu0 %v594
  %v2203 = vpop.f32.mrf.mxu0
  %v2204 = vadd.f32 %v544, %v2203
  %v2205 = vpop.f32.mrf.mxu0
  %2206 = vdwg.mxu0
  %2207 = vmatpush.bf16.msra.mxu0 %v1697
  %2208 = vmatpush.bf16.msra.mxu0 %v1696
  %2209 = vmatpush.bf16.msra.mxu0 %v1695
  %2210 = vmatpush.bf16.msra.mxu0 %v1694
  %2211 = vmatpush.bf16.msra.mxu0 %v1693
  %2212 = vmatpush.bf16.msra.mxu0 %v1692
  %2213 = vmatpush.bf16.msra.mxu0 %v1691
  %2214 = vmatpush.bf16.msra.mxu0 %v1690
  %2215 = vmatmul.bf16.gmra.mxu0 %v595
  %v2216 = vpop.f32.mrf.mxu0
  %v2217 = vadd.f32 %v2204, %v2216
  %v2218 = vpop.f32.mrf.mxu0
  %2219 = vdwg.mxu0
  %2220 = vmatpush.bf16.msra.mxu0 %v1705
  %2221 = vmatpush.bf16.msra.mxu0 %v1704
  %2222 = vmatpush.bf16.msra.mxu0 %v1703
  %2223 = vmatpush.bf16.msra.mxu0 %v1702
  %2224 = vmatpush.bf16.msra.mxu0 %v1701
  %2225 = vmatpush.bf16.msra.mxu0 %v1700
  %2226 = vmatpush.bf16.msra.mxu0 %v1699
  %2227 = vmatpush.bf16.msra.mxu0 %v1698
  %2228 = vmatmul.bf16.gmra.mxu0 %v596
  %v2229 = vpop.f32.mrf.mxu0
  %v2230 = vadd.f32 %v2217, %v2229
  %v2231 = vpop.f32.mrf.mxu0
  %2232 = vdwg.mxu0
  %2233 = vmatpush.bf16.msra.mxu0 %v1713
  %2234 = vmatpush.bf16.msra.mxu0 %v1712
  %2235 = vmatpush.bf16.msra.mxu0 %v1711
  %2236 = vmatpush.bf16.msra.mxu0 %v1710
  %2237 = vmatpush.bf16.msra.mxu0 %v1709
  %2238 = vmatpush.bf16.msra.mxu0 %v1708
  %2239 = vmatpush.bf16.msra.mxu0 %v1707
  %2240 = vmatpush.bf16.msra.mxu0 %v1706
  %2241 = vmatmul.bf16.gmra.mxu0 %v597
  %v2242 = vpop.f32.mrf.mxu0
  %v2243 = vadd.f32 %v2230, %v2242
  %v2244 = vpop.f32.mrf.mxu0
  %2245 = vdwg.mxu0
  %2246 = vmatpush.bf16.msra.mxu0 %v1721
  %2247 = vmatpush.bf16.msra.mxu0 %v1720
  %2248 = vmatpush.bf16.msra.mxu0 %v1719
  %2249 = vmatpush.bf16.msra.mxu0 %v1718
  %2250 = vmatpush.bf16.msra.mxu0 %v1717
  %2251 = vmatpush.bf16.msra.mxu0 %v1716
  %2252 = vmatpush.bf16.msra.mxu0 %v1715
  %2253 = vmatpush.bf16.msra.mxu0 %v1714
  %2254 = vmatmul.bf16.gmra.mxu0 %v598
  %v2255 = vpop.f32.mrf.mxu0
  %v2256 = vadd.f32 %v2243, %v2255
  %v2257 = vpop.f32.mrf.mxu0
  %2258 = vdwg.mxu0
  %2259 = vmatpush.bf16.msra.mxu0 %v1729
  %2260 = vmatpush.bf16.msra.mxu0 %v1728
  %2261 = vmatpush.bf16.msra.mxu0 %v1727
  %2262 = vmatpush.bf16.msra.mxu0 %v1726
  %2263 = vmatpush.bf16.msra.mxu0 %v1725
  %2264 = vmatpush.bf16.msra.mxu0 %v1724
  %2265 = vmatpush.bf16.msra.mxu0 %v1723
  %2266 = vmatpush.bf16.msra.mxu0 %v1722
  %2267 = vmatmul.bf16.gmra.mxu0 %v599
  %v2268 = vpop.f32.mrf.mxu0
  %v2269 = vadd.f32 %v2256, %v2268
  %v2270 = vpop.f32.mrf.mxu0
  %2271 = vdwg.mxu0
  %2272 = vmatpush.bf16.msra.mxu0 %v1737
  %2273 = vmatpush.bf16.msra.mxu0 %v1736
  %2274 = vmatpush.bf16.msra.mxu0 %v1735
  %2275 = vmatpush.bf16.msra.mxu0 %v1734
  %2276 = vmatpush.bf16.msra.mxu0 %v1733
  %2277 = vmatpush.bf16.msra.mxu0 %v1732
  %2278 = vmatpush.bf16.msra.mxu0 %v1731
  %2279 = vmatpush.bf16.msra.mxu0 %v1730
  %2280 = vmatmul.bf16.gmra.mxu0 %v600
  %v2281 = vpop.f32.mrf.mxu0
  %v2282 = vadd.f32 %v2269, %v2281
  %v2283 = vpop.f32.mrf.mxu0
  %2284 = vdwg.mxu0
  %2285 = vmatpush.bf16.msra.mxu0 %v1745
  %2286 = vmatpush.bf16.msra.mxu0 %v1744
  %2287 = vmatpush.bf16.msra.mxu0 %v1743
  %2288 = vmatpush.bf16.msra.mxu0 %v1742
  %2289 = vmatpush.bf16.msra.mxu0 %v1741
  %2290 = vmatpush.bf16.msra.mxu0 %v1740
  %2291 = vmatpush.bf16.msra.mxu0 %v1739
  %2292 = vmatpush.bf16.msra.mxu0 %v1738
  %2293 = vmatmul.bf16.gmra.mxu0 %v601
  %v2294 = vpop.f32.mrf.mxu0
  %v2295 = vadd.f32 %v2282, %v2294
  %v2296 = vpop.f32.mrf.mxu0
  %2297 = vdwg.mxu0
  %2298 = vmatpush.bf16.msra.mxu0 %v1753
  %2299 = vmatpush.bf16.msra.mxu0 %v1752
  %2300 = vmatpush.bf16.msra.mxu0 %v1751
  %2301 = vmatpush.bf16.msra.mxu0 %v1750
  %2302 = vmatpush.bf16.msra.mxu0 %v1749
  %2303 = vmatpush.bf16.msra.mxu0 %v1748
  %2304 = vmatpush.bf16.msra.mxu0 %v1747
  %2305 = vmatpush.bf16.msra.mxu0 %v1746
  %2306 = vmatmul.bf16.gmra.mxu0 %v602
  %v2307 = vpop.f32.mrf.mxu0
  %v2308 = vadd.f32 %v2295, %v2307
  %v2309 = vpop.f32.mrf.mxu0
  %2310 = vdwg.mxu0
  %2311 = vmatpush.bf16.msra.mxu0 %v1761
  %2312 = vmatpush.bf16.msra.mxu0 %v1760
  %2313 = vmatpush.bf16.msra.mxu0 %v1759
  %2314 = vmatpush.bf16.msra.mxu0 %v1758
  %2315 = vmatpush.bf16.msra.mxu0 %v1757
  %2316 = vmatpush.bf16.msra.mxu0 %v1756
  %2317 = vmatpush.bf16.msra.mxu0 %v1755
  %2318 = vmatpush.bf16.msra.mxu0 %v1754
  %2319 = vmatmul.bf16.gmra.mxu0 %v603
  %v2320 = vpop.f32.mrf.mxu0
  %v2321 = vadd.f32 %v2308, %v2320
  %v2322 = vpop.f32.mrf.mxu0
  %2323 = vdwg.mxu0
  %2324 = vmatpush.bf16.msra.mxu0 %v1769
  %2325 = vmatpush.bf16.msra.mxu0 %v1768
  %2326 = vmatpush.bf16.msra.mxu0 %v1767
  %2327 = vmatpush.bf16.msra.mxu0 %v1766
  %2328 = vmatpush.bf16.msra.mxu0 %v1765
  %2329 = vmatpush.bf16.msra.mxu0 %v1764
  %2330 = vmatpush.bf16.msra.mxu0 %v1763
  %2331 = vmatpush.bf16.msra.mxu0 %v1762
  %2332 = vmatmul.bf16.gmra.mxu0 %v604
  %v2333 = vpop.f32.mrf.mxu0
  %v2334 = vadd.f32 %v2321, %v2333
  %v2335 = vpop.f32.mrf.mxu0
  %2336 = vdwg.mxu0
  %2337 = vmatpush.bf16.msra.mxu0 %v1777
  %2338 = vmatpush.bf16.msra.mxu0 %v1776
  %2339 = vmatpush.bf16.msra.mxu0 %v1775
  %2340 = vmatpush.bf16.msra.mxu0 %v1774
  %2341 = vmatpush.bf16.msra.mxu0 %v1773
  %2342 = vmatpush.bf16.msra.mxu0 %v1772
  %2343 = vmatpush.bf16.msra.mxu0 %v1771
  %2344 = vmatpush.bf16.msra.mxu0 %v1770
  %2345 = vmatmul.bf16.gmra.mxu0 %v605
  %v2346 = vpop.f32.mrf.mxu0
  %v2347 = vadd.f32 %v2334, %v2346
  %v2348 = vpop.f32.mrf.mxu0
  %2349 = vdwg.mxu0
  %2350 = vmatpush.bf16.msra.mxu0 %v1785
  %2351 = vmatpush.bf16.msra.mxu0 %v1784
  %2352 = vmatpush.bf16.msra.mxu0 %v1783
  %2353 = vmatpush.bf16.msra.mxu0 %v1782
  %2354 = vmatpush.bf16.msra.mxu0 %v1781
  %2355 = vmatpush.bf16.msra.mxu0 %v1780
  %2356 = vmatpush.bf16.msra.mxu0 %v1779
  %2357 = vmatpush.bf16.msra.mxu0 %v1778
  %2358 = vmatmul.bf16.gmra.mxu0 %v606
  %v2359 = vpop.f32.mrf.mxu0
  %v2360 = vadd.f32 %v2347, %v2359
  %v2361 = vpop.f32.mrf.mxu0
  %2362 = vdwg.mxu0
  %2363 = vmatpush.bf16.msra.mxu0 %v1793
  %2364 = vmatpush.bf16.msra.mxu0 %v1792
  %2365 = vmatpush.bf16.msra.mxu0 %v1791
  %2366 = vmatpush.bf16.msra.mxu0 %v1790
  %2367 = vmatpush.bf16.msra.mxu0 %v1789
  %2368 = vmatpush.bf16.msra.mxu0 %v1788
  %2369 = vmatpush.bf16.msra.mxu0 %v1787
  %2370 = vmatpush.bf16.msra.mxu0 %v1786
  %2371 = vmatmul.bf16.gmra.mxu0 %v607
  %v2372 = vpop.f32.mrf.mxu0
  %v2373 = vadd.f32 %v2360, %v2372
  %v2374 = vpop.f32.mrf.mxu0
  %2375 = vdwg.mxu0
  %2376 = vmatpush.bf16.msra.mxu0 %v1801
  %2377 = vmatpush.bf16.msra.mxu0 %v1800
  %2378 = vmatpush.bf16.msra.mxu0 %v1799
  %2379 = vmatpush.bf16.msra.mxu0 %v1798
  %2380 = vmatpush.bf16.msra.mxu0 %v1797
  %2381 = vmatpush.bf16.msra.mxu0 %v1796
  %2382 = vmatpush.bf16.msra.mxu0 %v1795
  %2383 = vmatpush.bf16.msra.mxu0 %v1794
  %2384 = vmatmul.bf16.gmra.mxu0 %v608
  %v2385 = vpop.f32.mrf.mxu0
  %v2386 = vadd.f32 %v2373, %v2385
  %v2387 = vpop.f32.mrf.mxu0
  %2388 = vdwg.mxu0
  %2389 = vmatpush.bf16.msra.mxu0 %v1809
  %2390 = vmatpush.bf16.msra.mxu0 %v1808
  %2391 = vmatpush.bf16.msra.mxu0 %v1807
  %2392 = vmatpush.bf16.msra.mxu0 %v1806
  %2393 = vmatpush.bf16.msra.mxu0 %v1805
  %2394 = vmatpush.bf16.msra.mxu0 %v1804
  %2395 = vmatpush.bf16.msra.mxu0 %v1803
  %2396 = vmatpush.bf16.msra.mxu0 %v1802
  %2397 = vmatmul.bf16.gmra.mxu0 %v609
  %v2398 = vpop.f32.mrf.mxu0
  %v2399 = vadd.f32 %v2386, %v2398
  %v2400 = vpop.f32.mrf.mxu0
  %2401 = vdwg.mxu0
  %2402 = vmatpush.bf16.msra.mxu0 %v1817
  %2403 = vmatpush.bf16.msra.mxu0 %v1816
  %2404 = vmatpush.bf16.msra.mxu0 %v1815
  %2405 = vmatpush.bf16.msra.mxu0 %v1814
  %2406 = vmatpush.bf16.msra.mxu0 %v1813
  %2407 = vmatpush.bf16.msra.mxu0 %v1812
  %2408 = vmatpush.bf16.msra.mxu0 %v1811
  %2409 = vmatpush.bf16.msra.mxu0 %v1810
  %2410 = vmatmul.bf16.gmra.mxu0 %v610
  %v2411 = vpop.f32.mrf.mxu0
  %v2412 = vadd.f32 %v2399, %v2411
  %v2413 = vpop.f32.mrf.mxu0
  %2414 = vdwg.mxu0
  %2415 = vmatpush.bf16.msra.mxu0 %v1825
  %2416 = vmatpush.bf16.msra.mxu0 %v1824
  %2417 = vmatpush.bf16.msra.mxu0 %v1823
  %2418 = vmatpush.bf16.msra.mxu0 %v1822
  %2419 = vmatpush.bf16.msra.mxu0 %v1821
  %2420 = vmatpush.bf16.msra.mxu0 %v1820
  %2421 = vmatpush.bf16.msra.mxu0 %v1819
  %2422 = vmatpush.bf16.msra.mxu0 %v1818
  %2423 = vmatmul.bf16.gmra.mxu0 %v611
  %v2424 = vpop.f32.mrf.mxu0
  %v2425 = vadd.f32 %v2412, %v2424
  %v2426 = vpop.f32.mrf.mxu0
  %2427 = vdwg.mxu0
  %2428 = vmatpush.bf16.msra.mxu0 %v1833
  %2429 = vmatpush.bf16.msra.mxu0 %v1832
  %2430 = vmatpush.bf16.msra.mxu0 %v1831
  %2431 = vmatpush.bf16.msra.mxu0 %v1830
  %2432 = vmatpush.bf16.msra.mxu0 %v1829
  %2433 = vmatpush.bf16.msra.mxu0 %v1828
  %2434 = vmatpush.bf16.msra.mxu0 %v1827
  %2435 = vmatpush.bf16.msra.mxu0 %v1826
  %2436 = vmatmul.bf16.gmra.mxu0 %v612
  %v2437 = vpop.f32.mrf.mxu0
  %v2438 = vadd.f32 %v2425, %v2437
  %v2439 = vpop.f32.mrf.mxu0
  %2440 = vdwg.mxu0
  %2441 = vmatpush.bf16.msra.mxu0 %v1841
  %2442 = vmatpush.bf16.msra.mxu0 %v1840
  %2443 = vmatpush.bf16.msra.mxu0 %v1839
  %2444 = vmatpush.bf16.msra.mxu0 %v1838
  %2445 = vmatpush.bf16.msra.mxu0 %v1837
  %2446 = vmatpush.bf16.msra.mxu0 %v1836
  %2447 = vmatpush.bf16.msra.mxu0 %v1835
  %2448 = vmatpush.bf16.msra.mxu0 %v1834
  %2449 = vmatmul.bf16.gmra.mxu0 %v613
  %v2450 = vpop.f32.mrf.mxu0
  %v2451 = vadd.f32 %v2438, %v2450
  %v2452 = vpop.f32.mrf.mxu0
  %2453 = vdwg.mxu0
  %2454 = vmatpush.bf16.msra.mxu0 %v1849
  %2455 = vmatpush.bf16.msra.mxu0 %v1848
  %2456 = vmatpush.bf16.msra.mxu0 %v1847
  %2457 = vmatpush.bf16.msra.mxu0 %v1846
  %2458 = vmatpush.bf16.msra.mxu0 %v1845
  %2459 = vmatpush.bf16.msra.mxu0 %v1844
  %2460 = vmatpush.bf16.msra.mxu0 %v1843
  %2461 = vmatpush.bf16.msra.mxu0 %v1842
  %2462 = vmatmul.bf16.gmra.mxu0 %v614
  %v2463 = vpop.f32.mrf.mxu0
  %v2464 = vadd.f32 %v2451, %v2463
  %v2465 = vpop.f32.mrf.mxu0
  %2466 = vdwg.mxu0
  %2467 = vmatpush.bf16.msra.mxu0 %v1857
  %2468 = vmatpush.bf16.msra.mxu0 %v1856
  %2469 = vmatpush.bf16.msra.mxu0 %v1855
  %2470 = vmatpush.bf16.msra.mxu0 %v1854
  %2471 = vmatpush.bf16.msra.mxu0 %v1853
  %2472 = vmatpush.bf16.msra.mxu0 %v1852
  %2473 = vmatpush.bf16.msra.mxu0 %v1851
  %2474 = vmatpush.bf16.msra.mxu0 %v1850
  %2475 = vmatmul.bf16.gmra.mxu0 %v615
  %v2476 = vpop.f32.mrf.mxu0
  %v2477 = vadd.f32 %v2464, %v2476
  %v2478 = vpop.f32.mrf.mxu0
  %2479 = vdwg.mxu0
  %2480 = vmatpush.bf16.msra.mxu0 %v1865
  %2481 = vmatpush.bf16.msra.mxu0 %v1864
  %2482 = vmatpush.bf16.msra.mxu0 %v1863
  %2483 = vmatpush.bf16.msra.mxu0 %v1862
  %2484 = vmatpush.bf16.msra.mxu0 %v1861
  %2485 = vmatpush.bf16.msra.mxu0 %v1860
  %2486 = vmatpush.bf16.msra.mxu0 %v1859
  %2487 = vmatpush.bf16.msra.mxu0 %v1858
  %2488 = vmatmul.bf16.gmra.mxu0 %v616
  %v2489 = vpop.f32.mrf.mxu0
  %v2490 = vadd.f32 %v2477, %v2489
  %v2491 = vpop.f32.mrf.mxu0
  %2492 = vdwg.mxu0
  %2493 = vmatpush.bf16.msra.mxu0 %v1873
  %2494 = vmatpush.bf16.msra.mxu0 %v1872
  %2495 = vmatpush.bf16.msra.mxu0 %v1871
  %2496 = vmatpush.bf16.msra.mxu0 %v1870
  %2497 = vmatpush.bf16.msra.mxu0 %v1869
  %2498 = vmatpush.bf16.msra.mxu0 %v1868
  %2499 = vmatpush.bf16.msra.mxu0 %v1867
  %2500 = vmatpush.bf16.msra.mxu0 %v1866
  %2501 = vmatmul.bf16.gmra.mxu0 %v617
  %v2502 = vpop.f32.mrf.mxu0
  %v2503 = vadd.f32 %v2490, %v2502
  %v2504 = vpop.f32.mrf.mxu0
  %2505 = vdwg.mxu0
  %2506 = vmatpush.bf16.msra.mxu0 %v1881
  %2507 = vmatpush.bf16.msra.mxu0 %v1880
  %2508 = vmatpush.bf16.msra.mxu0 %v1879
  %2509 = vmatpush.bf16.msra.mxu0 %v1878
  %2510 = vmatpush.bf16.msra.mxu0 %v1877
  %2511 = vmatpush.bf16.msra.mxu0 %v1876
  %2512 = vmatpush.bf16.msra.mxu0 %v1875
  %2513 = vmatpush.bf16.msra.mxu0 %v1874
  %2514 = vmatmul.bf16.gmra.mxu0 %v618
  %v2515 = vpop.f32.mrf.mxu0
  %v2516 = vadd.f32 %v2503, %v2515
  %v2517 = vpop.f32.mrf.mxu0
  %2518 = vdwg.mxu0
  %2519 = vmatpush.bf16.msra.mxu0 %v1889
  %2520 = vmatpush.bf16.msra.mxu0 %v1888
  %2521 = vmatpush.bf16.msra.mxu0 %v1887
  %2522 = vmatpush.bf16.msra.mxu0 %v1886
  %2523 = vmatpush.bf16.msra.mxu0 %v1885
  %2524 = vmatpush.bf16.msra.mxu0 %v1884
  %2525 = vmatpush.bf16.msra.mxu0 %v1883
  %2526 = vmatpush.bf16.msra.mxu0 %v1882
  %2527 = vmatmul.bf16.gmra.mxu0 %v619
  %v2528 = vpop.f32.mrf.mxu0
  %v2529 = vadd.f32 %v2516, %v2528
  %v2530 = vpop.f32.mrf.mxu0
  %2531 = vdwg.mxu0
  %2532 = vmatpush.bf16.msra.mxu0 %v1897
  %2533 = vmatpush.bf16.msra.mxu0 %v1896
  %2534 = vmatpush.bf16.msra.mxu0 %v1895
  %2535 = vmatpush.bf16.msra.mxu0 %v1894
  %2536 = vmatpush.bf16.msra.mxu0 %v1893
  %2537 = vmatpush.bf16.msra.mxu0 %v1892
  %2538 = vmatpush.bf16.msra.mxu0 %v1891
  %2539 = vmatpush.bf16.msra.mxu0 %v1890
  %2540 = vmatmul.bf16.gmra.mxu0 %v620
  %v2541 = vpop.f32.mrf.mxu0
  %v2542 = vadd.f32 %v2529, %v2541
  %v2543 = vpop.f32.mrf.mxu0
  %2544 = vdwg.mxu0
  %2545 = vmatpush.bf16.msra.mxu0 %v1905
  %2546 = vmatpush.bf16.msra.mxu0 %v1904
  %2547 = vmatpush.bf16.msra.mxu0 %v1903
  %2548 = vmatpush.bf16.msra.mxu0 %v1902
  %2549 = vmatpush.bf16.msra.mxu0 %v1901
  %2550 = vmatpush.bf16.msra.mxu0 %v1900
  %2551 = vmatpush.bf16.msra.mxu0 %v1899
  %2552 = vmatpush.bf16.msra.mxu0 %v1898
  %2553 = vmatmul.bf16.gmra.mxu0 %v621
  %v2554 = vpop.f32.mrf.mxu0
  %v2555 = vadd.f32 %v2542, %v2554
  %v2556 = vpop.f32.mrf.mxu0
  %2557 = vdwg.mxu0
  %2558 = vmatpush.bf16.msra.mxu0 %v1913
  %2559 = vmatpush.bf16.msra.mxu0 %v1912
  %2560 = vmatpush.bf16.msra.mxu0 %v1911
  %2561 = vmatpush.bf16.msra.mxu0 %v1910
  %2562 = vmatpush.bf16.msra.mxu0 %v1909
  %2563 = vmatpush.bf16.msra.mxu0 %v1908
  %2564 = vmatpush.bf16.msra.mxu0 %v1907
  %2565 = vmatpush.bf16.msra.mxu0 %v1906
  %2566 = vmatmul.bf16.gmra.mxu0 %v622
  %v2567 = vpop.f32.mrf.mxu0
  %v2568 = vadd.f32 %v2555, %v2567
  %v2569 = vpop.f32.mrf.mxu0
  %2570 = vdwg.mxu0
  %2571 = vmatpush.bf16.msra.mxu0 %v1921
  %2572 = vmatpush.bf16.msra.mxu0 %v1920
  %2573 = vmatpush.bf16.msra.mxu0 %v1919
  %2574 = vmatpush.bf16.msra.mxu0 %v1918
  %2575 = vmatpush.bf16.msra.mxu0 %v1917
  %2576 = vmatpush.bf16.msra.mxu0 %v1916
  %2577 = vmatpush.bf16.msra.mxu0 %v1915
  %2578 = vmatpush.bf16.msra.mxu0 %v1914
  %2579 = vmatmul.bf16.gmra.mxu0 %v623
  %v2580 = vpop.f32.mrf.mxu0
  %v2581 = vadd.f32 %v2568, %v2580
  %v2582 = vpop.f32.mrf.mxu0
  %2583 = vdwg.mxu0
  %2584 = vmatpush.bf16.msra.mxu0 %v1929
  %2585 = vmatpush.bf16.msra.mxu0 %v1928
  %2586 = vmatpush.bf16.msra.mxu0 %v1927
  %2587 = vmatpush.bf16.msra.mxu0 %v1926
  %2588 = vmatpush.bf16.msra.mxu0 %v1925
  %2589 = vmatpush.bf16.msra.mxu0 %v1924
  %2590 = vmatpush.bf16.msra.mxu0 %v1923
  %2591 = vmatpush.bf16.msra.mxu0 %v1922
  %2592 = vmatmul.bf16.gmra.mxu0 %v624
  %v2593 = vpop.f32.mrf.mxu0
  %v2594 = vadd.f32 %v2581, %v2593
  %v2595 = vpop.f32.mrf.mxu0
  %2596 = vdwg.mxu0
  %2597 = vmatpush.bf16.msra.mxu0 %v1937
  %2598 = vmatpush.bf16.msra.mxu0 %v1936
  %2599 = vmatpush.bf16.msra.mxu0 %v1935
  %2600 = vmatpush.bf16.msra.mxu0 %v1934
  %2601 = vmatpush.bf16.msra.mxu0 %v1933
  %2602 = vmatpush.bf16.msra.mxu0 %v1932
  %2603 = vmatpush.bf16.msra.mxu0 %v1931
  %2604 = vmatpush.bf16.msra.mxu0 %v1930
  %2605 = vmatmul.bf16.gmra.mxu0 %v625
  %v2606 = vpop.f32.mrf.mxu0
  %v2607 = vadd.f32 %v2594, %v2606
  %v2608 = vpop.f32.mrf.mxu0
  %2609 = vdwg.mxu0
  %2610 = vst [vmem:[%s3] sm:$0xff] %v2607
  // Predicated region
  $region14: #{_lambda_.15} parent=0 // pred_check
    _
  $region15: #{_lambda_.15} parent=0 // pred_check_branch
    %2612 = sbr.rel (0) target = $region17
  $region16: #{_lambda_.15} parent=0 // pred_region
    _
  $region17: #{_lambda_.15} parent=0 // pred_fallthru
    _
  // Predicated region
  $region18: #{_lambda_.15} parent=0 // pred_check
    _
  $region19: #{_lambda_.15} parent=0 // pred_check_branch
    %2614 = sbr.rel (0) target = $region21
  $region20: #{_lambda_.15} parent=0 // pred_region
    _
  $region21: #{_lambda_.15} parent=0 // pred_fallthru
    _

</llo_original>
